<compile_context>
chip_gen: v7x
topology: tpu7x:2x2x1
jax: 0.10.0
libtpu: 0.0.40
codegen_flags: <defaults>
</compile_context>

<pallas_src>
import numpy as np
import jax
import jax.numpy as jnp
from jax.experimental import pallas as pl
from jax.experimental.pallas import tpu as pltpu

FEATURE_DIM = 384   # matches module-level feature_dim
HIDDEN_DIM = 256    # matches module-level hidden_dim
OUTPUT_DIM = 128    # matches module-level output_dim


def gru_encoder_kernel(x_ref, wih0_ref, whh0_ref, bih0_ref, bhh0_ref,
                       wih1_ref, whh1_ref, bih1_ref, bhh1_ref,
                       wfc_ref, bfc_ref, out_ref):
    """2-layer GRU + Linear over the whole (stacked) batch, fully in VMEM.

    x_ref: [B, T, F] bf16 (batch-first).  Weights bf16, biases f32.
    out_ref: [B, OUTPUT_DIM] f32.
    """
    B, T, F = x_ref.shape
    H = whh0_ref.shape[0]
    H3 = 3 * H

    # ---- hoist all weight / bias loads out of the recurrence (loaded once) ----
    wih0 = wih0_ref[...]
    whh0 = whh0_ref[...]
    wih1 = wih1_ref[...]
    whh1 = whh1_ref[...]
    wfc = wfc_ref[...]
    bih0 = bih0_ref[...]                                  # [1, 3H] f32
    bih1 = bih1_ref[...]                                  # [1, 3H] f32
    bfc = bfc_ref[...]                                    # [1, O]  f32
    bhh0 = jnp.broadcast_to(bhh0_ref[...], (B, H3))       # broadcast hoisted
    bhh1 = jnp.broadcast_to(bhh1_ref[...], (B, H3))

    def gru_gates(gi_t, gh, h_prev):
        # PyTorch GRU cell (gate order r, z, n; b_hn stays inside the r* term):
        #   r = sigmoid(gi_r + gh_r); z = sigmoid(gi_z + gh_z)
        #   n = tanh(gi_n + r * gh_n); h' = (1 - z) * n + z * h
        r = jax.nn.sigmoid(gi_t[:, :H] + gh[:, :H])
        z = jax.nn.sigmoid(gi_t[:, H:2 * H] + gh[:, H:2 * H])
        n = jnp.tanh(gi_t[:, 2 * H:] + r * gh[:, 2 * H:])
        return (1.0 - z) * n + z * h_prev

    # ---- layer 0: input gates for ALL timesteps in one MXU matmul ----
    x_bt = x_ref[...].reshape(B * T, F)                   # bf16, rows ordered (b, t)
    gi0 = jnp.dot(x_bt, wih0, preferred_element_type=jnp.float32) + bih0
    gi0 = gi0.reshape(B, T, H3)

    h0 = jnp.zeros((B, H), jnp.float32)
    h0_seq = []
    for t in range(T):                                    # only h @ W_hh in the loop
        gh0 = jnp.dot(h0.astype(whh0.dtype), whh0,
                      preferred_element_type=jnp.float32) + bhh0
        h0 = gru_gates(gi0[:, t, :], gh0, h0)
        h0_seq.append(h0)

    # ---- layer 1: batched input-gate matmul over the stored h0 sequence ----
    h0_all = jnp.concatenate(h0_seq, axis=0)              # [T*B, H], rows ordered (t, b)
    gi1 = jnp.dot(h0_all.astype(wih1.dtype), wih1,
                  preferred_element_type=jnp.float32) + bih1

    h1 = jnp.zeros((B, H), jnp.float32)
    for t in range(T):
        gh1 = jnp.dot(h1.astype(whh1.dtype), whh1,
                      preferred_element_type=jnp.float32) + bhh1
        h1 = gru_gates(gi1[t * B:(t + 1) * B, :], gh1, h1)

    # ---- final Linear, single lane-dense store ----
    out = jnp.dot(h1.astype(wfc.dtype), wfc,
                  preferred_element_type=jnp.float32) + bfc
    out_ref[...] = out.astype(out_ref.dtype)


@jax.jit
def _encode_batch(params, x):
    """x: [B, T, F] float32 -> [B, OUTPUT_DIM] float32, one pallas_call."""
    B, T, F = x.shape

    x_bf16 = x.astype(jnp.bfloat16)
    w = lambda name: params[name].astype(jnp.bfloat16)    # MXU operands in bf16
    b = lambda name: params[name].astype(jnp.float32)     # biases stay f32

    args = (x_bf16,
            w("wih0"), w("whh0"), b("bih0"), b("bhh0"),
            w("wih1"), w("whh1"), b("bih1"), b("bhh1"),
            w("wfc"), b("bfc"))

    def full_spec(arr):
        # Whole array resident in VMEM, single grid step.
        nd = arr.ndim
        return pl.BlockSpec(arr.shape, lambda i, _nd=nd: (0,) * _nd)

    # Total VMEM footprint (~2 MB bf16 weights + tiny activations, double
    # buffered) is far below the default scoped limit on v5e/v6e/v7x.
    return pl.pallas_call(
        gru_encoder_kernel,
        out_shape=jax.ShapeDtypeStruct((B, OUTPUT_DIM), jnp.float32),
        grid=(1,),
        in_specs=[full_spec(a) for a in args],
        out_specs=pl.BlockSpec((B, OUTPUT_DIM), lambda i: (0, 0)),
        compiler_params=pltpu.CompilerParams(
            dimension_semantics=("arbitrary",)),
    )(*args)


def contrastive_model_forward(params, x1, x2=None):
    """Mirror of ContrastiveModel.forward (encoder weights shared).

    The two encoder passes share one kernel launch via batch concatenation.
    logit_scale is kept in params but (as in the PyTorch module) unused here.
    """
    if x2 is None:
        return _encode_batch(params, x1)
    B = x1.shape[0]
    z = _encode_batch(params, jnp.concatenate([x1, x2], axis=0))
    return z[:B], z[B:]


def init_params(key):
    """Deterministic init matching PyTorch GRU/Linear param shapes
    (stored transposed for in-kernel x @ W)."""
    ks = jax.random.split(key, 10)
    s = 1.0 / np.sqrt(HIDDEN_DIM)

    def u(k, shape):
        return jax.random.uniform(k, shape, jnp.float32, -s, s)

    return {
        # GRU layer 0: W_ih [3H, F] -> stored [F, 3H]; W_hh [3H, H] -> [H, 3H]
        "wih0": u(ks[0], (FEATURE_DIM, 3 * HIDDEN_DIM)),
        "whh0": u(ks[1], (HIDDEN_DIM, 3 * HIDDEN_DIM)),
        "bih0": u(ks[2], (1, 3 * HIDDEN_DIM)),
        "bhh0": u(ks[3], (1, 3 * HIDDEN_DIM)),
        # GRU layer 1: W_ih [3H, H] -> stored [H, 3H]
        "wih1": u(ks[4], (HIDDEN_DIM, 3 * HIDDEN_DIM)),
        "whh1": u(ks[5], (HIDDEN_DIM, 3 * HIDDEN_DIM)),
        "bih1": u(ks[6], (1, 3 * HIDDEN_DIM)),
        "bhh1": u(ks[7], (1, 3 * HIDDEN_DIM)),
        # fc: [output_dim, hidden_dim] -> stored [H, O]
        "wfc": u(ks[8], (HIDDEN_DIM, OUTPUT_DIM)),
        "bfc": u(ks[9], (1, OUTPUT_DIM)),
        # present in the module but unused in forward
        "logit_scale": jnp.array(np.log(1.0 / 0.07), jnp.float32),
    }


def gru_encoder_ref(x, params, matmul_dtype=jnp.float32):
    """Pure-JAX reference (same math as PyTorch). matmul_dtype=bfloat16 mirrors
    the kernel's MXU operand precision (f32 accumulation either way)."""
    B, T, F = x.shape
    H = HIDDEN_DIM

    def mm(a, b):
        return jnp.dot(a.astype(matmul_dtype), b.astype(matmul_dtype),
                       preferred_element_type=jnp.float32)

    def cell(x_t, h, wih, whh, bih, bhh):
        gi = mm(x_t, wih) + bih
        gh = mm(h, whh) + bhh
        r = jax.nn.sigmoid(gi[:, :H] + gh[:, :H])
        z = jax.nn.sigmoid(gi[:, H:2 * H] + gh[:, H:2 * H])
        n = jnp.tanh(gi[:, 2 * H:] + r * gh[:, 2 * H:])
        return (1.0 - z) * n + z * h

    h0 = jnp.zeros((B, H), jnp.float32)
    h1 = jnp.zeros((B, H), jnp.float32)
    for t in range(T):
        h0 = cell(x[:, t, :], h0, params["wih0"], params["whh0"],
                  params["bih0"], params["bhh0"])
        h1 = cell(h0, h1, params["wih1"], params["whh1"],
                  params["bih1"], params["bhh1"])
    return mm(h1, params["wfc"]) + params["bfc"]


if __name__ == "__main__":
    B, T = 2, 8
    key = jax.random.PRNGKey(0)
    kp, k1, k2 = jax.random.split(key, 3)
    params = init_params(kp)
    x1 = jax.random.normal(k1, (B, T, FEATURE_DIM), jnp.float32)
    x2 = jax.random.normal(k2, (B, T, FEATURE_DIM), jnp.float32)

    # fused two-encoder path (single pallas_call on the concatenated batch)
    z1, z2 = contrastive_model_forward(params, x1, x2)
    z1 = jax.block_until_ready(z1)
    z2 = jax.block_until_ready(z2)

    # single-input path (x2 is None)
    z_single = jax.block_until_ready(contrastive_model_forward(params, x1))

    # correctness: tight vs a reference using the same bf16 MXU operands,
    # loose vs the full-f32 PyTorch-equivalent reference.
    for z, x in ((z1, x1), (z2, x2)):
        r_bf16 = gru_encoder_ref(x, params, matmul_dtype=jnp.bfloat16)
        r_f32 = gru_encoder_ref(x, params, matmul_dtype=jnp.float32)
        np.testing.assert_allclose(np.asarray(z), np.asarray(r_bf16),
                                   atol=5e-3, rtol=5e-3)
        np.testing.assert_allclose(np.asarray(z), np.asarray(r_f32),
                                   atol=5e-2, rtol=5e-2)
    np.testing.assert_allclose(np.asarray(z_single), np.asarray(z1),
                               atol=1e-5, rtol=1e-5)
    assert z1.shape == (B, OUTPUT_DIM) and z2.shape == (B, OUTPUT_DIM)

    print("KERNEL_OK")
</pallas_src>

<mosaic_0001>
module attributes {stable_mosaic.version = 11 : i64} {
  func.func @gru_encoder_kernel(%arg0: i32, %arg1: memref<4x8x384xbf16, #tpu.memory_space<vmem>>, %arg2: memref<384x768xbf16, #tpu.memory_space<vmem>>, %arg3: memref<256x768xbf16, #tpu.memory_space<vmem>>, %arg4: memref<1x768xf32, #tpu.memory_space<vmem>>, %arg5: memref<1x768xf32, #tpu.memory_space<vmem>>, %arg6: memref<256x768xbf16, #tpu.memory_space<vmem>>, %arg7: memref<256x768xbf16, #tpu.memory_space<vmem>>, %arg8: memref<1x768xf32, #tpu.memory_space<vmem>>, %arg9: memref<1x768xf32, #tpu.memory_space<vmem>>, %arg10: memref<256x128xbf16, #tpu.memory_space<vmem>>, %arg11: memref<1x128xf32, #tpu.memory_space<vmem>>, %arg12: memref<4x128xf32, #tpu.memory_space<vmem>>) attributes {dimension_semantics = [#tpu.dimension_semantics<arbitrary>], iteration_bounds = array<i64: 1>, scalar_prefetch = 0 : i64, scratch_operands = 0 : i64, tpu.core_type = #tpu.core_type<tc>, window_params = [{pipeline_mode = #tpu.pipeline_mode<synchronous>, transform_indices = @transform_0, window_bounds = array<i64: 4, 8, 384>}, {pipeline_mode = #tpu.pipeline_mode<synchronous>, transform_indices = @transform_1, window_bounds = array<i64: 384, 768>}, {pipeline_mode = #tpu.pipeline_mode<synchronous>, transform_indices = @transform_2, window_bounds = array<i64: 256, 768>}, {pipeline_mode = #tpu.pipeline_mode<synchronous>, transform_indices = @transform_3, window_bounds = array<i64: 1, 768>}, {pipeline_mode = #tpu.pipeline_mode<synchronous>, transform_indices = @transform_4, window_bounds = array<i64: 1, 768>}, {pipeline_mode = #tpu.pipeline_mode<synchronous>, transform_indices = @transform_5, window_bounds = array<i64: 256, 768>}, {pipeline_mode = #tpu.pipeline_mode<synchronous>, transform_indices = @transform_6, window_bounds = array<i64: 256, 768>}, {pipeline_mode = #tpu.pipeline_mode<synchronous>, transform_indices = @transform_7, window_bounds = array<i64: 1, 768>}, {pipeline_mode = #tpu.pipeline_mode<synchronous>, transform_indices = @transform_8, window_bounds = array<i64: 1, 768>}, {pipeline_mode = #tpu.pipeline_mode<synchronous>, transform_indices = @transform_9, window_bounds = array<i64: 256, 128>}, {pipeline_mode = #tpu.pipeline_mode<synchronous>, transform_indices = @transform_10, window_bounds = array<i64: 1, 128>}, {pipeline_mode = #tpu.pipeline_mode<synchronous>, transform_indices = @transform_11, window_bounds = array<i64: 4, 128>}]} {
    %c0 = arith.constant 0 : index
    %c0_0 = arith.constant 0 : index
    %0 = vector.load %arg2[%c0, %c0_0] : memref<384x768xbf16, #tpu.memory_space<vmem>>, vector<384x768xbf16>
    %c0_1 = arith.constant 0 : index
    %c0_2 = arith.constant 0 : index
    %1 = vector.load %arg3[%c0_1, %c0_2] : memref<256x768xbf16, #tpu.memory_space<vmem>>, vector<256x768xbf16>
    %c0_3 = arith.constant 0 : index
    %c0_4 = arith.constant 0 : index
    %2 = vector.load %arg6[%c0_3, %c0_4] : memref<256x768xbf16, #tpu.memory_space<vmem>>, vector<256x768xbf16>
    %c0_5 = arith.constant 0 : index
    %c0_6 = arith.constant 0 : index
    %3 = vector.load %arg7[%c0_5, %c0_6] : memref<256x768xbf16, #tpu.memory_space<vmem>>, vector<256x768xbf16>
    %c0_7 = arith.constant 0 : index
    %c0_8 = arith.constant 0 : index
    %4 = vector.load %arg10[%c0_7, %c0_8] : memref<256x128xbf16, #tpu.memory_space<vmem>>, vector<256x128xbf16>
    %c0_9 = arith.constant 0 : index
    %c0_10 = arith.constant 0 : index
    %5 = vector.load %arg4[%c0_9, %c0_10] : memref<1x768xf32, #tpu.memory_space<vmem>>, vector<1x768xf32>
    %c0_11 = arith.constant 0 : index
    %c0_12 = arith.constant 0 : index
    %6 = vector.load %arg8[%c0_11, %c0_12] : memref<1x768xf32, #tpu.memory_space<vmem>>, vector<1x768xf32>
    %c0_13 = arith.constant 0 : index
    %c0_14 = arith.constant 0 : index
    %7 = vector.load %arg11[%c0_13, %c0_14] : memref<1x128xf32, #tpu.memory_space<vmem>>, vector<1x128xf32>
    %c0_15 = arith.constant 0 : index
    %c0_16 = arith.constant 0 : index
    %8 = vector.load %arg5[%c0_15, %c0_16] : memref<1x768xf32, #tpu.memory_space<vmem>>, vector<1x768xf32>
    %9 = vector.shape_cast %8 : vector<1x768xf32> to vector<1x768xf32>
    %10 = vector.broadcast %9 : vector<1x768xf32> to vector<4x768xf32>
    %c0_17 = arith.constant 0 : index
    %c0_18 = arith.constant 0 : index
    %11 = vector.load %arg9[%c0_17, %c0_18] : memref<1x768xf32, #tpu.memory_space<vmem>>, vector<1x768xf32>
    %12 = vector.shape_cast %11 : vector<1x768xf32> to vector<1x768xf32>
    %13 = vector.broadcast %12 : vector<1x768xf32> to vector<4x768xf32>
    %c0_19 = arith.constant 0 : index
    %c0_20 = arith.constant 0 : index
    %c0_21 = arith.constant 0 : index
    %14 = vector.load %arg1[%c0_19, %c0_20, %c0_21] : memref<4x8x384xbf16, #tpu.memory_space<vmem>>, vector<4x8x384xbf16>
    %15 = vector.shape_cast %14 : vector<4x8x384xbf16> to vector<32x384xbf16>
    %cst = arith.constant dense<0.000000e+00> : vector<32x768xf32>
    %16 = tpu.matmul %15, %0, %cst {dimension_numbers = #tpu.dot_dimension_numbers<[1], [0], [0], [1], [0, 0, 1, 1], [], []>} : vector<32x384xbf16>, vector<384x768xbf16>, vector<32x768xf32> -> vector<32x768xf32>
    %17 = vector.broadcast %5 : vector<1x768xf32> to vector<32x768xf32>
    %18 = arith.addf %16, %17 : vector<32x768xf32>
    %19 = vector.shape_cast %18 : vector<32x768xf32> to vector<4x8x768xf32>
    %cst_22 = arith.constant 0.000000e+00 : f32
    %20 = vector.broadcast %cst_22 : f32 to vector<4x256xf32>
    %21 = arith.truncf %20 : vector<4x256xf32> to vector<4x256xbf16>
    %cst_23 = arith.constant dense<0.000000e+00> : vector<4x768xf32>
    %22 = tpu.matmul %21, %1, %cst_23 {dimension_numbers = #tpu.dot_dimension_numbers<[1], [0], [0], [1], [0, 0, 1, 1], [], []>} : vector<4x256xbf16>, vector<256x768xbf16>, vector<4x768xf32> -> vector<4x768xf32>
    %23 = arith.addf %22, %10 : vector<4x768xf32>
    %24 = vector.extract_strided_slice %19 {offsets = [0, 0, 0], sizes = [4, 1, 768], strides = [1, 1, 1]} : vector<4x8x768xf32> to vector<4x1x768xf32>
    %25 = vector.shape_cast %24 : vector<4x1x768xf32> to vector<4x768xf32>
    %26 = vector.extract_strided_slice %25 {offsets = [0, 0], sizes = [4, 256], strides = [1, 1]} : vector<4x768xf32> to vector<4x256xf32>
    %27 = vector.extract_strided_slice %23 {offsets = [0, 0], sizes = [4, 256], strides = [1, 1]} : vector<4x768xf32> to vector<4x256xf32>
    %28 = arith.addf %26, %27 : vector<4x256xf32>
    %29 = arith.negf %28 : vector<4x256xf32>
    %30 = math.exp %29 : vector<4x256xf32>
    %cst_24 = arith.constant 1.000000e+00 : f32
    %31 = vector.broadcast %cst_24 : f32 to vector<4x256xf32>
    %32 = arith.addf %31, %30 : vector<4x256xf32>
    %33 = arith.divf %31, %32 : vector<4x256xf32>
    %34 = vector.extract_strided_slice %25 {offsets = [0, 256], sizes = [4, 256], strides = [1, 1]} : vector<4x768xf32> to vector<4x256xf32>
    %35 = vector.extract_strided_slice %23 {offsets = [0, 256], sizes = [4, 256], strides = [1, 1]} : vector<4x768xf32> to vector<4x256xf32>
    %36 = arith.addf %34, %35 : vector<4x256xf32>
    %37 = arith.negf %36 : vector<4x256xf32>
    %38 = math.exp %37 : vector<4x256xf32>
    %cst_25 = arith.constant 1.000000e+00 : f32
    %39 = vector.broadcast %cst_25 : f32 to vector<4x256xf32>
    %40 = arith.addf %39, %38 : vector<4x256xf32>
    %41 = arith.divf %39, %40 : vector<4x256xf32>
    %42 = vector.extract_strided_slice %25 {offsets = [0, 512], sizes = [4, 256], strides = [1, 1]} : vector<4x768xf32> to vector<4x256xf32>
    %43 = vector.extract_strided_slice %23 {offsets = [0, 512], sizes = [4, 256], strides = [1, 1]} : vector<4x768xf32> to vector<4x256xf32>
    %44 = arith.mulf %33, %43 : vector<4x256xf32>
    %45 = arith.addf %42, %44 : vector<4x256xf32>
    %46 = math.tanh %45 : vector<4x256xf32>
    %cst_26 = arith.constant 1.000000e+00 : f32
    %47 = vector.broadcast %cst_26 : f32 to vector<4x256xf32>
    %48 = arith.subf %47, %41 : vector<4x256xf32>
    %49 = arith.mulf %48, %46 : vector<4x256xf32>
    %50 = arith.mulf %41, %20 : vector<4x256xf32>
    %51 = arith.addf %49, %50 : vector<4x256xf32>
    %52 = arith.truncf %51 : vector<4x256xf32> to vector<4x256xbf16>
    %cst_27 = arith.constant dense<0.000000e+00> : vector<4x768xf32>
    %53 = tpu.matmul %52, %1, %cst_27 {dimension_numbers = #tpu.dot_dimension_numbers<[1], [0], [0], [1], [0, 0, 1, 1], [], []>} : vector<4x256xbf16>, vector<256x768xbf16>, vector<4x768xf32> -> vector<4x768xf32>
    %54 = arith.addf %53, %10 : vector<4x768xf32>
    %55 = vector.extract_strided_slice %19 {offsets = [0, 1, 0], sizes = [4, 1, 768], strides = [1, 1, 1]} : vector<4x8x768xf32> to vector<4x1x768xf32>
    %56 = vector.shape_cast %55 : vector<4x1x768xf32> to vector<4x768xf32>
    %57 = vector.extract_strided_slice %56 {offsets = [0, 0], sizes = [4, 256], strides = [1, 1]} : vector<4x768xf32> to vector<4x256xf32>
    %58 = vector.extract_strided_slice %54 {offsets = [0, 0], sizes = [4, 256], strides = [1, 1]} : vector<4x768xf32> to vector<4x256xf32>
    %59 = arith.addf %57, %58 : vector<4x256xf32>
    %60 = arith.negf %59 : vector<4x256xf32>
    %61 = math.exp %60 : vector<4x256xf32>
    %cst_28 = arith.constant 1.000000e+00 : f32
    %62 = vector.broadcast %cst_28 : f32 to vector<4x256xf32>
    %63 = arith.addf %62, %61 : vector<4x256xf32>
    %64 = arith.divf %62, %63 : vector<4x256xf32>
    %65 = vector.extract_strided_slice %56 {offsets = [0, 256], sizes = [4, 256], strides = [1, 1]} : vector<4x768xf32> to vector<4x256xf32>
    %66 = vector.extract_strided_slice %54 {offsets = [0, 256], sizes = [4, 256], strides = [1, 1]} : vector<4x768xf32> to vector<4x256xf32>
    %67 = arith.addf %65, %66 : vector<4x256xf32>
    %68 = arith.negf %67 : vector<4x256xf32>
    %69 = math.exp %68 : vector<4x256xf32>
    %cst_29 = arith.constant 1.000000e+00 : f32
    %70 = vector.broadcast %cst_29 : f32 to vector<4x256xf32>
    %71 = arith.addf %70, %69 : vector<4x256xf32>
    %72 = arith.divf %70, %71 : vector<4x256xf32>
    %73 = vector.extract_strided_slice %56 {offsets = [0, 512], sizes = [4, 256], strides = [1, 1]} : vector<4x768xf32> to vector<4x256xf32>
    %74 = vector.extract_strided_slice %54 {offsets = [0, 512], sizes = [4, 256], strides = [1, 1]} : vector<4x768xf32> to vector<4x256xf32>
    %75 = arith.mulf %64, %74 : vector<4x256xf32>
    %76 = arith.addf %73, %75 : vector<4x256xf32>
    %77 = math.tanh %76 : vector<4x256xf32>
    %cst_30 = arith.constant 1.000000e+00 : f32
    %78 = vector.broadcast %cst_30 : f32 to vector<4x256xf32>
    %79 = arith.subf %78, %72 : vector<4x256xf32>
    %80 = arith.mulf %79, %77 : vector<4x256xf32>
    %81 = arith.mulf %72, %51 : vector<4x256xf32>
    %82 = arith.addf %80, %81 : vector<4x256xf32>
    %83 = arith.truncf %82 : vector<4x256xf32> to vector<4x256xbf16>
    %cst_31 = arith.constant dense<0.000000e+00> : vector<4x768xf32>
    %84 = tpu.matmul %83, %1, %cst_31 {dimension_numbers = #tpu.dot_dimension_numbers<[1], [0], [0], [1], [0, 0, 1, 1], [], []>} : vector<4x256xbf16>, vector<256x768xbf16>, vector<4x768xf32> -> vector<4x768xf32>
    %85 = arith.addf %84, %10 : vector<4x768xf32>
    %86 = vector.extract_strided_slice %19 {offsets = [0, 2, 0], sizes = [4, 1, 768], strides = [1, 1, 1]} : vector<4x8x768xf32> to vector<4x1x768xf32>
    %87 = vector.shape_cast %86 : vector<4x1x768xf32> to vector<4x768xf32>
    %88 = vector.extract_strided_slice %87 {offsets = [0, 0], sizes = [4, 256], strides = [1, 1]} : vector<4x768xf32> to vector<4x256xf32>
    %89 = vector.extract_strided_slice %85 {offsets = [0, 0], sizes = [4, 256], strides = [1, 1]} : vector<4x768xf32> to vector<4x256xf32>
    %90 = arith.addf %88, %89 : vector<4x256xf32>
    %91 = arith.negf %90 : vector<4x256xf32>
    %92 = math.exp %91 : vector<4x256xf32>
    %cst_32 = arith.constant 1.000000e+00 : f32
    %93 = vector.broadcast %cst_32 : f32 to vector<4x256xf32>
    %94 = arith.addf %93, %92 : vector<4x256xf32>
    %95 = arith.divf %93, %94 : vector<4x256xf32>
    %96 = vector.extract_strided_slice %87 {offsets = [0, 256], sizes = [4, 256], strides = [1, 1]} : vector<4x768xf32> to vector<4x256xf32>
    %97 = vector.extract_strided_slice %85 {offsets = [0, 256], sizes = [4, 256], strides = [1, 1]} : vector<4x768xf32> to vector<4x256xf32>
    %98 = arith.addf %96, %97 : vector<4x256xf32>
    %99 = arith.negf %98 : vector<4x256xf32>
    %100 = math.exp %99 : vector<4x256xf32>
    %cst_33 = arith.constant 1.000000e+00 : f32
    %101 = vector.broadcast %cst_33 : f32 to vector<4x256xf32>
    %102 = arith.addf %101, %100 : vector<4x256xf32>
    %103 = arith.divf %101, %102 : vector<4x256xf32>
    %104 = vector.extract_strided_slice %87 {offsets = [0, 512], sizes = [4, 256], strides = [1, 1]} : vector<4x768xf32> to vector<4x256xf32>
    %105 = vector.extract_strided_slice %85 {offsets = [0, 512], sizes = [4, 256], strides = [1, 1]} : vector<4x768xf32> to vector<4x256xf32>
    %106 = arith.mulf %95, %105 : vector<4x256xf32>
    %107 = arith.addf %104, %106 : vector<4x256xf32>
    %108 = math.tanh %107 : vector<4x256xf32>
    %cst_34 = arith.constant 1.000000e+00 : f32
    %109 = vector.broadcast %cst_34 : f32 to vector<4x256xf32>
    %110 = arith.subf %109, %103 : vector<4x256xf32>
    %111 = arith.mulf %110, %108 : vector<4x256xf32>
    %112 = arith.mulf %103, %82 : vector<4x256xf32>
    %113 = arith.addf %111, %112 : vector<4x256xf32>
    %114 = arith.truncf %113 : vector<4x256xf32> to vector<4x256xbf16>
    %cst_35 = arith.constant dense<0.000000e+00> : vector<4x768xf32>
    %115 = tpu.matmul %114, %1, %cst_35 {dimension_numbers = #tpu.dot_dimension_numbers<[1], [0], [0], [1], [0, 0, 1, 1], [], []>} : vector<4x256xbf16>, vector<256x768xbf16>, vector<4x768xf32> -> vector<4x768xf32>
    %116 = arith.addf %115, %10 : vector<4x768xf32>
    %117 = vector.extract_strided_slice %19 {offsets = [0, 3, 0], sizes = [4, 1, 768], strides = [1, 1, 1]} : vector<4x8x768xf32> to vector<4x1x768xf32>
    %118 = vector.shape_cast %117 : vector<4x1x768xf32> to vector<4x768xf32>
    %119 = vector.extract_strided_slice %118 {offsets = [0, 0], sizes = [4, 256], strides = [1, 1]} : vector<4x768xf32> to vector<4x256xf32>
    %120 = vector.extract_strided_slice %116 {offsets = [0, 0], sizes = [4, 256], strides = [1, 1]} : vector<4x768xf32> to vector<4x256xf32>
    %121 = arith.addf %119, %120 : vector<4x256xf32>
    %122 = arith.negf %121 : vector<4x256xf32>
    %123 = math.exp %122 : vector<4x256xf32>
    %cst_36 = arith.constant 1.000000e+00 : f32
    %124 = vector.broadcast %cst_36 : f32 to vector<4x256xf32>
    %125 = arith.addf %124, %123 : vector<4x256xf32>
    %126 = arith.divf %124, %125 : vector<4x256xf32>
    %127 = vector.extract_strided_slice %118 {offsets = [0, 256], sizes = [4, 256], strides = [1, 1]} : vector<4x768xf32> to vector<4x256xf32>
    %128 = vector.extract_strided_slice %116 {offsets = [0, 256], sizes = [4, 256], strides = [1, 1]} : vector<4x768xf32> to vector<4x256xf32>
    %129 = arith.addf %127, %128 : vector<4x256xf32>
    %130 = arith.negf %129 : vector<4x256xf32>
    %131 = math.exp %130 : vector<4x256xf32>
    %cst_37 = arith.constant 1.000000e+00 : f32
    %132 = vector.broadcast %cst_37 : f32 to vector<4x256xf32>
    %133 = arith.addf %132, %131 : vector<4x256xf32>
    %134 = arith.divf %132, %133 : vector<4x256xf32>
    %135 = vector.extract_strided_slice %118 {offsets = [0, 512], sizes = [4, 256], strides = [1, 1]} : vector<4x768xf32> to vector<4x256xf32>
    %136 = vector.extract_strided_slice %116 {offsets = [0, 512], sizes = [4, 256], strides = [1, 1]} : vector<4x768xf32> to vector<4x256xf32>
    %137 = arith.mulf %126, %136 : vector<4x256xf32>
    %138 = arith.addf %135, %137 : vector<4x256xf32>
    %139 = math.tanh %138 : vector<4x256xf32>
    %cst_38 = arith.constant 1.000000e+00 : f32
    %140 = vector.broadcast %cst_38 : f32 to vector<4x256xf32>
    %141 = arith.subf %140, %134 : vector<4x256xf32>
    %142 = arith.mulf %141, %139 : vector<4x256xf32>
    %143 = arith.mulf %134, %113 : vector<4x256xf32>
    %144 = arith.addf %142, %143 : vector<4x256xf32>
    %145 = arith.truncf %144 : vector<4x256xf32> to vector<4x256xbf16>
    %cst_39 = arith.constant dense<0.000000e+00> : vector<4x768xf32>
    %146 = tpu.matmul %145, %1, %cst_39 {dimension_numbers = #tpu.dot_dimension_numbers<[1], [0], [0], [1], [0, 0, 1, 1], [], []>} : vector<4x256xbf16>, vector<256x768xbf16>, vector<4x768xf32> -> vector<4x768xf32>
    %147 = arith.addf %146, %10 : vector<4x768xf32>
    %148 = vector.extract_strided_slice %19 {offsets = [0, 4, 0], sizes = [4, 1, 768], strides = [1, 1, 1]} : vector<4x8x768xf32> to vector<4x1x768xf32>
    %149 = vector.shape_cast %148 : vector<4x1x768xf32> to vector<4x768xf32>
    %150 = vector.extract_strided_slice %149 {offsets = [0, 0], sizes = [4, 256], strides = [1, 1]} : vector<4x768xf32> to vector<4x256xf32>
    %151 = vector.extract_strided_slice %147 {offsets = [0, 0], sizes = [4, 256], strides = [1, 1]} : vector<4x768xf32> to vector<4x256xf32>
    %152 = arith.addf %150, %151 : vector<4x256xf32>
    %153 = arith.negf %152 : vector<4x256xf32>
    %154 = math.exp %153 : vector<4x256xf32>
    %cst_40 = arith.constant 1.000000e+00 : f32
    %155 = vector.broadcast %cst_40 : f32 to vector<4x256xf32>
    %156 = arith.addf %155, %154 : vector<4x256xf32>
    %157 = arith.divf %155, %156 : vector<4x256xf32>
    %158 = vector.extract_strided_slice %149 {offsets = [0, 256], sizes = [4, 256], strides = [1, 1]} : vector<4x768xf32> to vector<4x256xf32>
    %159 = vector.extract_strided_slice %147 {offsets = [0, 256], sizes = [4, 256], strides = [1, 1]} : vector<4x768xf32> to vector<4x256xf32>
    %160 = arith.addf %158, %159 : vector<4x256xf32>
    %161 = arith.negf %160 : vector<4x256xf32>
    %162 = math.exp %161 : vector<4x256xf32>
    %cst_41 = arith.constant 1.000000e+00 : f32
    %163 = vector.broadcast %cst_41 : f32 to vector<4x256xf32>
    %164 = arith.addf %163, %162 : vector<4x256xf32>
    %165 = arith.divf %163, %164 : vector<4x256xf32>
    %166 = vector.extract_strided_slice %149 {offsets = [0, 512], sizes = [4, 256], strides = [1, 1]} : vector<4x768xf32> to vector<4x256xf32>
    %167 = vector.extract_strided_slice %147 {offsets = [0, 512], sizes = [4, 256], strides = [1, 1]} : vector<4x768xf32> to vector<4x256xf32>
    %168 = arith.mulf %157, %167 : vector<4x256xf32>
    %169 = arith.addf %166, %168 : vector<4x256xf32>
    %170 = math.tanh %169 : vector<4x256xf32>
    %cst_42 = arith.constant 1.000000e+00 : f32
    %171 = vector.broadcast %cst_42 : f32 to vector<4x256xf32>
    %172 = arith.subf %171, %165 : vector<4x256xf32>
    %173 = arith.mulf %172, %170 : vector<4x256xf32>
    %174 = arith.mulf %165, %144 : vector<4x256xf32>
    %175 = arith.addf %173, %174 : vector<4x256xf32>
    %176 = arith.truncf %175 : vector<4x256xf32> to vector<4x256xbf16>
    %cst_43 = arith.constant dense<0.000000e+00> : vector<4x768xf32>
    %177 = tpu.matmul %176, %1, %cst_43 {dimension_numbers = #tpu.dot_dimension_numbers<[1], [0], [0], [1], [0, 0, 1, 1], [], []>} : vector<4x256xbf16>, vector<256x768xbf16>, vector<4x768xf32> -> vector<4x768xf32>
    %178 = arith.addf %177, %10 : vector<4x768xf32>
    %179 = vector.extract_strided_slice %19 {offsets = [0, 5, 0], sizes = [4, 1, 768], strides = [1, 1, 1]} : vector<4x8x768xf32> to vector<4x1x768xf32>
    %180 = vector.shape_cast %179 : vector<4x1x768xf32> to vector<4x768xf32>
    %181 = vector.extract_strided_slice %180 {offsets = [0, 0], sizes = [4, 256], strides = [1, 1]} : vector<4x768xf32> to vector<4x256xf32>
    %182 = vector.extract_strided_slice %178 {offsets = [0, 0], sizes = [4, 256], strides = [1, 1]} : vector<4x768xf32> to vector<4x256xf32>
    %183 = arith.addf %181, %182 : vector<4x256xf32>
    %184 = arith.negf %183 : vector<4x256xf32>
    %185 = math.exp %184 : vector<4x256xf32>
    %cst_44 = arith.constant 1.000000e+00 : f32
    %186 = vector.broadcast %cst_44 : f32 to vector<4x256xf32>
    %187 = arith.addf %186, %185 : vector<4x256xf32>
    %188 = arith.divf %186, %187 : vector<4x256xf32>
    %189 = vector.extract_strided_slice %180 {offsets = [0, 256], sizes = [4, 256], strides = [1, 1]} : vector<4x768xf32> to vector<4x256xf32>
    %190 = vector.extract_strided_slice %178 {offsets = [0, 256], sizes = [4, 256], strides = [1, 1]} : vector<4x768xf32> to vector<4x256xf32>
    %191 = arith.addf %189, %190 : vector<4x256xf32>
    %192 = arith.negf %191 : vector<4x256xf32>
    %193 = math.exp %192 : vector<4x256xf32>
    %cst_45 = arith.constant 1.000000e+00 : f32
    %194 = vector.broadcast %cst_45 : f32 to vector<4x256xf32>
    %195 = arith.addf %194, %193 : vector<4x256xf32>
    %196 = arith.divf %194, %195 : vector<4x256xf32>
    %197 = vector.extract_strided_slice %180 {offsets = [0, 512], sizes = [4, 256], strides = [1, 1]} : vector<4x768xf32> to vector<4x256xf32>
    %198 = vector.extract_strided_slice %178 {offsets = [0, 512], sizes = [4, 256], strides = [1, 1]} : vector<4x768xf32> to vector<4x256xf32>
    %199 = arith.mulf %188, %198 : vector<4x256xf32>
    %200 = arith.addf %197, %199 : vector<4x256xf32>
    %201 = math.tanh %200 : vector<4x256xf32>
    %cst_46 = arith.constant 1.000000e+00 : f32
    %202 = vector.broadcast %cst_46 : f32 to vector<4x256xf32>
    %203 = arith.subf %202, %196 : vector<4x256xf32>
    %204 = arith.mulf %203, %201 : vector<4x256xf32>
    %205 = arith.mulf %196, %175 : vector<4x256xf32>
    %206 = arith.addf %204, %205 : vector<4x256xf32>
    %207 = arith.truncf %206 : vector<4x256xf32> to vector<4x256xbf16>
    %cst_47 = arith.constant dense<0.000000e+00> : vector<4x768xf32>
    %208 = tpu.matmul %207, %1, %cst_47 {dimension_numbers = #tpu.dot_dimension_numbers<[1], [0], [0], [1], [0, 0, 1, 1], [], []>} : vector<4x256xbf16>, vector<256x768xbf16>, vector<4x768xf32> -> vector<4x768xf32>
    %209 = arith.addf %208, %10 : vector<4x768xf32>
    %210 = vector.extract_strided_slice %19 {offsets = [0, 6, 0], sizes = [4, 1, 768], strides = [1, 1, 1]} : vector<4x8x768xf32> to vector<4x1x768xf32>
    %211 = vector.shape_cast %210 : vector<4x1x768xf32> to vector<4x768xf32>
    %212 = vector.extract_strided_slice %211 {offsets = [0, 0], sizes = [4, 256], strides = [1, 1]} : vector<4x768xf32> to vector<4x256xf32>
    %213 = vector.extract_strided_slice %209 {offsets = [0, 0], sizes = [4, 256], strides = [1, 1]} : vector<4x768xf32> to vector<4x256xf32>
    %214 = arith.addf %212, %213 : vector<4x256xf32>
    %215 = arith.negf %214 : vector<4x256xf32>
    %216 = math.exp %215 : vector<4x256xf32>
    %cst_48 = arith.constant 1.000000e+00 : f32
    %217 = vector.broadcast %cst_48 : f32 to vector<4x256xf32>
    %218 = arith.addf %217, %216 : vector<4x256xf32>
    %219 = arith.divf %217, %218 : vector<4x256xf32>
    %220 = vector.extract_strided_slice %211 {offsets = [0, 256], sizes = [4, 256], strides = [1, 1]} : vector<4x768xf32> to vector<4x256xf32>
    %221 = vector.extract_strided_slice %209 {offsets = [0, 256], sizes = [4, 256], strides = [1, 1]} : vector<4x768xf32> to vector<4x256xf32>
    %222 = arith.addf %220, %221 : vector<4x256xf32>
    %223 = arith.negf %222 : vector<4x256xf32>
    %224 = math.exp %223 : vector<4x256xf32>
    %cst_49 = arith.constant 1.000000e+00 : f32
    %225 = vector.broadcast %cst_49 : f32 to vector<4x256xf32>
    %226 = arith.addf %225, %224 : vector<4x256xf32>
    %227 = arith.divf %225, %226 : vector<4x256xf32>
    %228 = vector.extract_strided_slice %211 {offsets = [0, 512], sizes = [4, 256], strides = [1, 1]} : vector<4x768xf32> to vector<4x256xf32>
    %229 = vector.extract_strided_slice %209 {offsets = [0, 512], sizes = [4, 256], strides = [1, 1]} : vector<4x768xf32> to vector<4x256xf32>
    %230 = arith.mulf %219, %229 : vector<4x256xf32>
    %231 = arith.addf %228, %230 : vector<4x256xf32>
    %232 = math.tanh %231 : vector<4x256xf32>
    %cst_50 = arith.constant 1.000000e+00 : f32
    %233 = vector.broadcast %cst_50 : f32 to vector<4x256xf32>
    %234 = arith.subf %233, %227 : vector<4x256xf32>
    %235 = arith.mulf %234, %232 : vector<4x256xf32>
    %236 = arith.mulf %227, %206 : vector<4x256xf32>
    %237 = arith.addf %235, %236 : vector<4x256xf32>
    %238 = arith.truncf %237 : vector<4x256xf32> to vector<4x256xbf16>
    %cst_51 = arith.constant dense<0.000000e+00> : vector<4x768xf32>
    %239 = tpu.matmul %238, %1, %cst_51 {dimension_numbers = #tpu.dot_dimension_numbers<[1], [0], [0], [1], [0, 0, 1, 1], [], []>} : vector<4x256xbf16>, vector<256x768xbf16>, vector<4x768xf32> -> vector<4x768xf32>
    %240 = arith.addf %239, %10 : vector<4x768xf32>
    %241 = vector.extract_strided_slice %19 {offsets = [0, 7, 0], sizes = [4, 1, 768], strides = [1, 1, 1]} : vector<4x8x768xf32> to vector<4x1x768xf32>
    %242 = vector.shape_cast %241 : vector<4x1x768xf32> to vector<4x768xf32>
    %243 = vector.extract_strided_slice %242 {offsets = [0, 0], sizes = [4, 256], strides = [1, 1]} : vector<4x768xf32> to vector<4x256xf32>
    %244 = vector.extract_strided_slice %240 {offsets = [0, 0], sizes = [4, 256], strides = [1, 1]} : vector<4x768xf32> to vector<4x256xf32>
    %245 = arith.addf %243, %244 : vector<4x256xf32>
    %246 = arith.negf %245 : vector<4x256xf32>
    %247 = math.exp %246 : vector<4x256xf32>
    %cst_52 = arith.constant 1.000000e+00 : f32
    %248 = vector.broadcast %cst_52 : f32 to vector<4x256xf32>
    %249 = arith.addf %248, %247 : vector<4x256xf32>
    %250 = arith.divf %248, %249 : vector<4x256xf32>
    %251 = vector.extract_strided_slice %242 {offsets = [0, 256], sizes = [4, 256], strides = [1, 1]} : vector<4x768xf32> to vector<4x256xf32>
    %252 = vector.extract_strided_slice %240 {offsets = [0, 256], sizes = [4, 256], strides = [1, 1]} : vector<4x768xf32> to vector<4x256xf32>
    %253 = arith.addf %251, %252 : vector<4x256xf32>
    %254 = arith.negf %253 : vector<4x256xf32>
    %255 = math.exp %254 : vector<4x256xf32>
    %cst_53 = arith.constant 1.000000e+00 : f32
    %256 = vector.broadcast %cst_53 : f32 to vector<4x256xf32>
    %257 = arith.addf %256, %255 : vector<4x256xf32>
    %258 = arith.divf %256, %257 : vector<4x256xf32>
    %259 = vector.extract_strided_slice %242 {offsets = [0, 512], sizes = [4, 256], strides = [1, 1]} : vector<4x768xf32> to vector<4x256xf32>
    %260 = vector.extract_strided_slice %240 {offsets = [0, 512], sizes = [4, 256], strides = [1, 1]} : vector<4x768xf32> to vector<4x256xf32>
    %261 = arith.mulf %250, %260 : vector<4x256xf32>
    %262 = arith.addf %259, %261 : vector<4x256xf32>
    %263 = math.tanh %262 : vector<4x256xf32>
    %cst_54 = arith.constant 1.000000e+00 : f32
    %264 = vector.broadcast %cst_54 : f32 to vector<4x256xf32>
    %265 = arith.subf %264, %258 : vector<4x256xf32>
    %266 = arith.mulf %265, %263 : vector<4x256xf32>
    %267 = arith.mulf %258, %237 : vector<4x256xf32>
    %268 = arith.addf %266, %267 : vector<4x256xf32>
    %269 = tpu.concatenate %51, %82, %113, %144, %175, %206, %237, %268 in 0 : vector<4x256xf32>, vector<4x256xf32>, vector<4x256xf32>, vector<4x256xf32>, vector<4x256xf32>, vector<4x256xf32>, vector<4x256xf32>, vector<4x256xf32> -> vector<32x256xf32>
    %270 = arith.truncf %269 : vector<32x256xf32> to vector<32x256xbf16>
    %cst_55 = arith.constant dense<0.000000e+00> : vector<32x768xf32>
    %271 = tpu.matmul %270, %2, %cst_55 {dimension_numbers = #tpu.dot_dimension_numbers<[1], [0], [0], [1], [0, 0, 1, 1], [], []>} : vector<32x256xbf16>, vector<256x768xbf16>, vector<32x768xf32> -> vector<32x768xf32>
    %272 = vector.broadcast %6 : vector<1x768xf32> to vector<32x768xf32>
    %273 = arith.addf %271, %272 : vector<32x768xf32>
    %cst_56 = arith.constant 0.000000e+00 : f32
    %274 = vector.broadcast %cst_56 : f32 to vector<4x256xf32>
    %275 = arith.truncf %274 : vector<4x256xf32> to vector<4x256xbf16>
    %cst_57 = arith.constant dense<0.000000e+00> : vector<4x768xf32>
    %276 = tpu.matmul %275, %3, %cst_57 {dimension_numbers = #tpu.dot_dimension_numbers<[1], [0], [0], [1], [0, 0, 1, 1], [], []>} : vector<4x256xbf16>, vector<256x768xbf16>, vector<4x768xf32> -> vector<4x768xf32>
    %277 = arith.addf %276, %13 : vector<4x768xf32>
    %278 = vector.extract_strided_slice %273 {offsets = [0, 0], sizes = [4, 768], strides = [1, 1]} : vector<32x768xf32> to vector<4x768xf32>
    %279 = vector.extract_strided_slice %278 {offsets = [0, 0], sizes = [4, 256], strides = [1, 1]} : vector<4x768xf32> to vector<4x256xf32>
    %280 = vector.extract_strided_slice %277 {offsets = [0, 0], sizes = [4, 256], strides = [1, 1]} : vector<4x768xf32> to vector<4x256xf32>
    %281 = arith.addf %279, %280 : vector<4x256xf32>
    %282 = arith.negf %281 : vector<4x256xf32>
    %283 = math.exp %282 : vector<4x256xf32>
    %cst_58 = arith.constant 1.000000e+00 : f32
    %284 = vector.broadcast %cst_58 : f32 to vector<4x256xf32>
    %285 = arith.addf %284, %283 : vector<4x256xf32>
    %286 = arith.divf %284, %285 : vector<4x256xf32>
    %287 = vector.extract_strided_slice %278 {offsets = [0, 256], sizes = [4, 256], strides = [1, 1]} : vector<4x768xf32> to vector<4x256xf32>
    %288 = vector.extract_strided_slice %277 {offsets = [0, 256], sizes = [4, 256], strides = [1, 1]} : vector<4x768xf32> to vector<4x256xf32>
    %289 = arith.addf %287, %288 : vector<4x256xf32>
    %290 = arith.negf %289 : vector<4x256xf32>
    %291 = math.exp %290 : vector<4x256xf32>
    %cst_59 = arith.constant 1.000000e+00 : f32
    %292 = vector.broadcast %cst_59 : f32 to vector<4x256xf32>
    %293 = arith.addf %292, %291 : vector<4x256xf32>
    %294 = arith.divf %292, %293 : vector<4x256xf32>
    %295 = vector.extract_strided_slice %278 {offsets = [0, 512], sizes = [4, 256], strides = [1, 1]} : vector<4x768xf32> to vector<4x256xf32>
    %296 = vector.extract_strided_slice %277 {offsets = [0, 512], sizes = [4, 256], strides = [1, 1]} : vector<4x768xf32> to vector<4x256xf32>
    %297 = arith.mulf %286, %296 : vector<4x256xf32>
    %298 = arith.addf %295, %297 : vector<4x256xf32>
    %299 = math.tanh %298 : vector<4x256xf32>
    %cst_60 = arith.constant 1.000000e+00 : f32
    %300 = vector.broadcast %cst_60 : f32 to vector<4x256xf32>
    %301 = arith.subf %300, %294 : vector<4x256xf32>
    %302 = arith.mulf %301, %299 : vector<4x256xf32>
    %303 = arith.mulf %294, %274 : vector<4x256xf32>
    %304 = arith.addf %302, %303 : vector<4x256xf32>
    %305 = arith.truncf %304 : vector<4x256xf32> to vector<4x256xbf16>
    %cst_61 = arith.constant dense<0.000000e+00> : vector<4x768xf32>
    %306 = tpu.matmul %305, %3, %cst_61 {dimension_numbers = #tpu.dot_dimension_numbers<[1], [0], [0], [1], [0, 0, 1, 1], [], []>} : vector<4x256xbf16>, vector<256x768xbf16>, vector<4x768xf32> -> vector<4x768xf32>
    %307 = arith.addf %306, %13 : vector<4x768xf32>
    %308 = vector.extract_strided_slice %273 {offsets = [4, 0], sizes = [4, 768], strides = [1, 1]} : vector<32x768xf32> to vector<4x768xf32>
    %309 = vector.extract_strided_slice %308 {offsets = [0, 0], sizes = [4, 256], strides = [1, 1]} : vector<4x768xf32> to vector<4x256xf32>
    %310 = vector.extract_strided_slice %307 {offsets = [0, 0], sizes = [4, 256], strides = [1, 1]} : vector<4x768xf32> to vector<4x256xf32>
    %311 = arith.addf %309, %310 : vector<4x256xf32>
    %312 = arith.negf %311 : vector<4x256xf32>
    %313 = math.exp %312 : vector<4x256xf32>
    %cst_62 = arith.constant 1.000000e+00 : f32
    %314 = vector.broadcast %cst_62 : f32 to vector<4x256xf32>
    %315 = arith.addf %314, %313 : vector<4x256xf32>
    %316 = arith.divf %314, %315 : vector<4x256xf32>
    %317 = vector.extract_strided_slice %308 {offsets = [0, 256], sizes = [4, 256], strides = [1, 1]} : vector<4x768xf32> to vector<4x256xf32>
    %318 = vector.extract_strided_slice %307 {offsets = [0, 256], sizes = [4, 256], strides = [1, 1]} : vector<4x768xf32> to vector<4x256xf32>
    %319 = arith.addf %317, %318 : vector<4x256xf32>
    %320 = arith.negf %319 : vector<4x256xf32>
    %321 = math.exp %320 : vector<4x256xf32>
    %cst_63 = arith.constant 1.000000e+00 : f32
    %322 = vector.broadcast %cst_63 : f32 to vector<4x256xf32>
    %323 = arith.addf %322, %321 : vector<4x256xf32>
    %324 = arith.divf %322, %323 : vector<4x256xf32>
    %325 = vector.extract_strided_slice %308 {offsets = [0, 512], sizes = [4, 256], strides = [1, 1]} : vector<4x768xf32> to vector<4x256xf32>
    %326 = vector.extract_strided_slice %307 {offsets = [0, 512], sizes = [4, 256], strides = [1, 1]} : vector<4x768xf32> to vector<4x256xf32>
    %327 = arith.mulf %316, %326 : vector<4x256xf32>
    %328 = arith.addf %325, %327 : vector<4x256xf32>
    %329 = math.tanh %328 : vector<4x256xf32>
    %cst_64 = arith.constant 1.000000e+00 : f32
    %330 = vector.broadcast %cst_64 : f32 to vector<4x256xf32>
    %331 = arith.subf %330, %324 : vector<4x256xf32>
    %332 = arith.mulf %331, %329 : vector<4x256xf32>
    %333 = arith.mulf %324, %304 : vector<4x256xf32>
    %334 = arith.addf %332, %333 : vector<4x256xf32>
    %335 = arith.truncf %334 : vector<4x256xf32> to vector<4x256xbf16>
    %cst_65 = arith.constant dense<0.000000e+00> : vector<4x768xf32>
    %336 = tpu.matmul %335, %3, %cst_65 {dimension_numbers = #tpu.dot_dimension_numbers<[1], [0], [0], [1], [0, 0, 1, 1], [], []>} : vector<4x256xbf16>, vector<256x768xbf16>, vector<4x768xf32> -> vector<4x768xf32>
    %337 = arith.addf %336, %13 : vector<4x768xf32>
    %338 = vector.extract_strided_slice %273 {offsets = [8, 0], sizes = [4, 768], strides = [1, 1]} : vector<32x768xf32> to vector<4x768xf32>
    %339 = vector.extract_strided_slice %338 {offsets = [0, 0], sizes = [4, 256], strides = [1, 1]} : vector<4x768xf32> to vector<4x256xf32>
    %340 = vector.extract_strided_slice %337 {offsets = [0, 0], sizes = [4, 256], strides = [1, 1]} : vector<4x768xf32> to vector<4x256xf32>
    %341 = arith.addf %339, %340 : vector<4x256xf32>
    %342 = arith.negf %341 : vector<4x256xf32>
    %343 = math.exp %342 : vector<4x256xf32>
    %cst_66 = arith.constant 1.000000e+00 : f32
    %344 = vector.broadcast %cst_66 : f32 to vector<4x256xf32>
    %345 = arith.addf %344, %343 : vector<4x256xf32>
    %346 = arith.divf %344, %345 : vector<4x256xf32>
    %347 = vector.extract_strided_slice %338 {offsets = [0, 256], sizes = [4, 256], strides = [1, 1]} : vector<4x768xf32> to vector<4x256xf32>
    %348 = vector.extract_strided_slice %337 {offsets = [0, 256], sizes = [4, 256], strides = [1, 1]} : vector<4x768xf32> to vector<4x256xf32>
    %349 = arith.addf %347, %348 : vector<4x256xf32>
    %350 = arith.negf %349 : vector<4x256xf32>
    %351 = math.exp %350 : vector<4x256xf32>
    %cst_67 = arith.constant 1.000000e+00 : f32
    %352 = vector.broadcast %cst_67 : f32 to vector<4x256xf32>
    %353 = arith.addf %352, %351 : vector<4x256xf32>
    %354 = arith.divf %352, %353 : vector<4x256xf32>
    %355 = vector.extract_strided_slice %338 {offsets = [0, 512], sizes = [4, 256], strides = [1, 1]} : vector<4x768xf32> to vector<4x256xf32>
    %356 = vector.extract_strided_slice %337 {offsets = [0, 512], sizes = [4, 256], strides = [1, 1]} : vector<4x768xf32> to vector<4x256xf32>
    %357 = arith.mulf %346, %356 : vector<4x256xf32>
    %358 = arith.addf %355, %357 : vector<4x256xf32>
    %359 = math.tanh %358 : vector<4x256xf32>
    %cst_68 = arith.constant 1.000000e+00 : f32
    %360 = vector.broadcast %cst_68 : f32 to vector<4x256xf32>
    %361 = arith.subf %360, %354 : vector<4x256xf32>
    %362 = arith.mulf %361, %359 : vector<4x256xf32>
    %363 = arith.mulf %354, %334 : vector<4x256xf32>
    %364 = arith.addf %362, %363 : vector<4x256xf32>
    %365 = arith.truncf %364 : vector<4x256xf32> to vector<4x256xbf16>
    %cst_69 = arith.constant dense<0.000000e+00> : vector<4x768xf32>
    %366 = tpu.matmul %365, %3, %cst_69 {dimension_numbers = #tpu.dot_dimension_numbers<[1], [0], [0], [1], [0, 0, 1, 1], [], []>} : vector<4x256xbf16>, vector<256x768xbf16>, vector<4x768xf32> -> vector<4x768xf32>
    %367 = arith.addf %366, %13 : vector<4x768xf32>
    %368 = vector.extract_strided_slice %273 {offsets = [12, 0], sizes = [4, 768], strides = [1, 1]} : vector<32x768xf32> to vector<4x768xf32>
    %369 = vector.extract_strided_slice %368 {offsets = [0, 0], sizes = [4, 256], strides = [1, 1]} : vector<4x768xf32> to vector<4x256xf32>
    %370 = vector.extract_strided_slice %367 {offsets = [0, 0], sizes = [4, 256], strides = [1, 1]} : vector<4x768xf32> to vector<4x256xf32>
    %371 = arith.addf %369, %370 : vector<4x256xf32>
    %372 = arith.negf %371 : vector<4x256xf32>
    %373 = math.exp %372 : vector<4x256xf32>
    %cst_70 = arith.constant 1.000000e+00 : f32
    %374 = vector.broadcast %cst_70 : f32 to vector<4x256xf32>
    %375 = arith.addf %374, %373 : vector<4x256xf32>
    %376 = arith.divf %374, %375 : vector<4x256xf32>
    %377 = vector.extract_strided_slice %368 {offsets = [0, 256], sizes = [4, 256], strides = [1, 1]} : vector<4x768xf32> to vector<4x256xf32>
    %378 = vector.extract_strided_slice %367 {offsets = [0, 256], sizes = [4, 256], strides = [1, 1]} : vector<4x768xf32> to vector<4x256xf32>
    %379 = arith.addf %377, %378 : vector<4x256xf32>
    %380 = arith.negf %379 : vector<4x256xf32>
    %381 = math.exp %380 : vector<4x256xf32>
    %cst_71 = arith.constant 1.000000e+00 : f32
    %382 = vector.broadcast %cst_71 : f32 to vector<4x256xf32>
    %383 = arith.addf %382, %381 : vector<4x256xf32>
    %384 = arith.divf %382, %383 : vector<4x256xf32>
    %385 = vector.extract_strided_slice %368 {offsets = [0, 512], sizes = [4, 256], strides = [1, 1]} : vector<4x768xf32> to vector<4x256xf32>
    %386 = vector.extract_strided_slice %367 {offsets = [0, 512], sizes = [4, 256], strides = [1, 1]} : vector<4x768xf32> to vector<4x256xf32>
    %387 = arith.mulf %376, %386 : vector<4x256xf32>
    %388 = arith.addf %385, %387 : vector<4x256xf32>
    %389 = math.tanh %388 : vector<4x256xf32>
    %cst_72 = arith.constant 1.000000e+00 : f32
    %390 = vector.broadcast %cst_72 : f32 to vector<4x256xf32>
    %391 = arith.subf %390, %384 : vector<4x256xf32>
    %392 = arith.mulf %391, %389 : vector<4x256xf32>
    %393 = arith.mulf %384, %364 : vector<4x256xf32>
    %394 = arith.addf %392, %393 : vector<4x256xf32>
    %395 = arith.truncf %394 : vector<4x256xf32> to vector<4x256xbf16>
    %cst_73 = arith.constant dense<0.000000e+00> : vector<4x768xf32>
    %396 = tpu.matmul %395, %3, %cst_73 {dimension_numbers = #tpu.dot_dimension_numbers<[1], [0], [0], [1], [0, 0, 1, 1], [], []>} : vector<4x256xbf16>, vector<256x768xbf16>, vector<4x768xf32> -> vector<4x768xf32>
    %397 = arith.addf %396, %13 : vector<4x768xf32>
    %398 = vector.extract_strided_slice %273 {offsets = [16, 0], sizes = [4, 768], strides = [1, 1]} : vector<32x768xf32> to vector<4x768xf32>
    %399 = vector.extract_strided_slice %398 {offsets = [0, 0], sizes = [4, 256], strides = [1, 1]} : vector<4x768xf32> to vector<4x256xf32>
    %400 = vector.extract_strided_slice %397 {offsets = [0, 0], sizes = [4, 256], strides = [1, 1]} : vector<4x768xf32> to vector<4x256xf32>
    %401 = arith.addf %399, %400 : vector<4x256xf32>
    %402 = arith.negf %401 : vector<4x256xf32>
    %403 = math.exp %402 : vector<4x256xf32>
    %cst_74 = arith.constant 1.000000e+00 : f32
    %404 = vector.broadcast %cst_74 : f32 to vector<4x256xf32>
    %405 = arith.addf %404, %403 : vector<4x256xf32>
    %406 = arith.divf %404, %405 : vector<4x256xf32>
    %407 = vector.extract_strided_slice %398 {offsets = [0, 256], sizes = [4, 256], strides = [1, 1]} : vector<4x768xf32> to vector<4x256xf32>
    %408 = vector.extract_strided_slice %397 {offsets = [0, 256], sizes = [4, 256], strides = [1, 1]} : vector<4x768xf32> to vector<4x256xf32>
    %409 = arith.addf %407, %408 : vector<4x256xf32>
    %410 = arith.negf %409 : vector<4x256xf32>
    %411 = math.exp %410 : vector<4x256xf32>
    %cst_75 = arith.constant 1.000000e+00 : f32
    %412 = vector.broadcast %cst_75 : f32 to vector<4x256xf32>
    %413 = arith.addf %412, %411 : vector<4x256xf32>
    %414 = arith.divf %412, %413 : vector<4x256xf32>
    %415 = vector.extract_strided_slice %398 {offsets = [0, 512], sizes = [4, 256], strides = [1, 1]} : vector<4x768xf32> to vector<4x256xf32>
    %416 = vector.extract_strided_slice %397 {offsets = [0, 512], sizes = [4, 256], strides = [1, 1]} : vector<4x768xf32> to vector<4x256xf32>
    %417 = arith.mulf %406, %416 : vector<4x256xf32>
    %418 = arith.addf %415, %417 : vector<4x256xf32>
    %419 = math.tanh %418 : vector<4x256xf32>
    %cst_76 = arith.constant 1.000000e+00 : f32
    %420 = vector.broadcast %cst_76 : f32 to vector<4x256xf32>
    %421 = arith.subf %420, %414 : vector<4x256xf32>
    %422 = arith.mulf %421, %419 : vector<4x256xf32>
    %423 = arith.mulf %414, %394 : vector<4x256xf32>
    %424 = arith.addf %422, %423 : vector<4x256xf32>
    %425 = arith.truncf %424 : vector<4x256xf32> to vector<4x256xbf16>
    %cst_77 = arith.constant dense<0.000000e+00> : vector<4x768xf32>
    %426 = tpu.matmul %425, %3, %cst_77 {dimension_numbers = #tpu.dot_dimension_numbers<[1], [0], [0], [1], [0, 0, 1, 1], [], []>} : vector<4x256xbf16>, vector<256x768xbf16>, vector<4x768xf32> -> vector<4x768xf32>
    %427 = arith.addf %426, %13 : vector<4x768xf32>
    %428 = vector.extract_strided_slice %273 {offsets = [20, 0], sizes = [4, 768], strides = [1, 1]} : vector<32x768xf32> to vector<4x768xf32>
    %429 = vector.extract_strided_slice %428 {offsets = [0, 0], sizes = [4, 256], strides = [1, 1]} : vector<4x768xf32> to vector<4x256xf32>
    %430 = vector.extract_strided_slice %427 {offsets = [0, 0], sizes = [4, 256], strides = [1, 1]} : vector<4x768xf32> to vector<4x256xf32>
    %431 = arith.addf %429, %430 : vector<4x256xf32>
    %432 = arith.negf %431 : vector<4x256xf32>
    %433 = math.exp %432 : vector<4x256xf32>
    %cst_78 = arith.constant 1.000000e+00 : f32
    %434 = vector.broadcast %cst_78 : f32 to vector<4x256xf32>
    %435 = arith.addf %434, %433 : vector<4x256xf32>
    %436 = arith.divf %434, %435 : vector<4x256xf32>
    %437 = vector.extract_strided_slice %428 {offsets = [0, 256], sizes = [4, 256], strides = [1, 1]} : vector<4x768xf32> to vector<4x256xf32>
    %438 = vector.extract_strided_slice %427 {offsets = [0, 256], sizes = [4, 256], strides = [1, 1]} : vector<4x768xf32> to vector<4x256xf32>
    %439 = arith.addf %437, %438 : vector<4x256xf32>
    %440 = arith.negf %439 : vector<4x256xf32>
    %441 = math.exp %440 : vector<4x256xf32>
    %cst_79 = arith.constant 1.000000e+00 : f32
    %442 = vector.broadcast %cst_79 : f32 to vector<4x256xf32>
    %443 = arith.addf %442, %441 : vector<4x256xf32>
    %444 = arith.divf %442, %443 : vector<4x256xf32>
    %445 = vector.extract_strided_slice %428 {offsets = [0, 512], sizes = [4, 256], strides = [1, 1]} : vector<4x768xf32> to vector<4x256xf32>
    %446 = vector.extract_strided_slice %427 {offsets = [0, 512], sizes = [4, 256], strides = [1, 1]} : vector<4x768xf32> to vector<4x256xf32>
    %447 = arith.mulf %436, %446 : vector<4x256xf32>
    %448 = arith.addf %445, %447 : vector<4x256xf32>
    %449 = math.tanh %448 : vector<4x256xf32>
    %cst_80 = arith.constant 1.000000e+00 : f32
    %450 = vector.broadcast %cst_80 : f32 to vector<4x256xf32>
    %451 = arith.subf %450, %444 : vector<4x256xf32>
    %452 = arith.mulf %451, %449 : vector<4x256xf32>
    %453 = arith.mulf %444, %424 : vector<4x256xf32>
    %454 = arith.addf %452, %453 : vector<4x256xf32>
    %455 = arith.truncf %454 : vector<4x256xf32> to vector<4x256xbf16>
    %cst_81 = arith.constant dense<0.000000e+00> : vector<4x768xf32>
    %456 = tpu.matmul %455, %3, %cst_81 {dimension_numbers = #tpu.dot_dimension_numbers<[1], [0], [0], [1], [0, 0, 1, 1], [], []>} : vector<4x256xbf16>, vector<256x768xbf16>, vector<4x768xf32> -> vector<4x768xf32>
    %457 = arith.addf %456, %13 : vector<4x768xf32>
    %458 = vector.extract_strided_slice %273 {offsets = [24, 0], sizes = [4, 768], strides = [1, 1]} : vector<32x768xf32> to vector<4x768xf32>
    %459 = vector.extract_strided_slice %458 {offsets = [0, 0], sizes = [4, 256], strides = [1, 1]} : vector<4x768xf32> to vector<4x256xf32>
    %460 = vector.extract_strided_slice %457 {offsets = [0, 0], sizes = [4, 256], strides = [1, 1]} : vector<4x768xf32> to vector<4x256xf32>
    %461 = arith.addf %459, %460 : vector<4x256xf32>
    %462 = arith.negf %461 : vector<4x256xf32>
    %463 = math.exp %462 : vector<4x256xf32>
    %cst_82 = arith.constant 1.000000e+00 : f32
    %464 = vector.broadcast %cst_82 : f32 to vector<4x256xf32>
    %465 = arith.addf %464, %463 : vector<4x256xf32>
    %466 = arith.divf %464, %465 : vector<4x256xf32>
    %467 = vector.extract_strided_slice %458 {offsets = [0, 256], sizes = [4, 256], strides = [1, 1]} : vector<4x768xf32> to vector<4x256xf32>
    %468 = vector.extract_strided_slice %457 {offsets = [0, 256], sizes = [4, 256], strides = [1, 1]} : vector<4x768xf32> to vector<4x256xf32>
    %469 = arith.addf %467, %468 : vector<4x256xf32>
    %470 = arith.negf %469 : vector<4x256xf32>
    %471 = math.exp %470 : vector<4x256xf32>
    %cst_83 = arith.constant 1.000000e+00 : f32
    %472 = vector.broadcast %cst_83 : f32 to vector<4x256xf32>
    %473 = arith.addf %472, %471 : vector<4x256xf32>
    %474 = arith.divf %472, %473 : vector<4x256xf32>
    %475 = vector.extract_strided_slice %458 {offsets = [0, 512], sizes = [4, 256], strides = [1, 1]} : vector<4x768xf32> to vector<4x256xf32>
    %476 = vector.extract_strided_slice %457 {offsets = [0, 512], sizes = [4, 256], strides = [1, 1]} : vector<4x768xf32> to vector<4x256xf32>
    %477 = arith.mulf %466, %476 : vector<4x256xf32>
    %478 = arith.addf %475, %477 : vector<4x256xf32>
    %479 = math.tanh %478 : vector<4x256xf32>
    %cst_84 = arith.constant 1.000000e+00 : f32
    %480 = vector.broadcast %cst_84 : f32 to vector<4x256xf32>
    %481 = arith.subf %480, %474 : vector<4x256xf32>
    %482 = arith.mulf %481, %479 : vector<4x256xf32>
    %483 = arith.mulf %474, %454 : vector<4x256xf32>
    %484 = arith.addf %482, %483 : vector<4x256xf32>
    %485 = arith.truncf %484 : vector<4x256xf32> to vector<4x256xbf16>
    %cst_85 = arith.constant dense<0.000000e+00> : vector<4x768xf32>
    %486 = tpu.matmul %485, %3, %cst_85 {dimension_numbers = #tpu.dot_dimension_numbers<[1], [0], [0], [1], [0, 0, 1, 1], [], []>} : vector<4x256xbf16>, vector<256x768xbf16>, vector<4x768xf32> -> vector<4x768xf32>
    %487 = arith.addf %486, %13 : vector<4x768xf32>
    %488 = vector.extract_strided_slice %273 {offsets = [28, 0], sizes = [4, 768], strides = [1, 1]} : vector<32x768xf32> to vector<4x768xf32>
    %489 = vector.extract_strided_slice %488 {offsets = [0, 0], sizes = [4, 256], strides = [1, 1]} : vector<4x768xf32> to vector<4x256xf32>
    %490 = vector.extract_strided_slice %487 {offsets = [0, 0], sizes = [4, 256], strides = [1, 1]} : vector<4x768xf32> to vector<4x256xf32>
    %491 = arith.addf %489, %490 : vector<4x256xf32>
    %492 = arith.negf %491 : vector<4x256xf32>
    %493 = math.exp %492 : vector<4x256xf32>
    %cst_86 = arith.constant 1.000000e+00 : f32
    %494 = vector.broadcast %cst_86 : f32 to vector<4x256xf32>
    %495 = arith.addf %494, %493 : vector<4x256xf32>
    %496 = arith.divf %494, %495 : vector<4x256xf32>
    %497 = vector.extract_strided_slice %488 {offsets = [0, 256], sizes = [4, 256], strides = [1, 1]} : vector<4x768xf32> to vector<4x256xf32>
    %498 = vector.extract_strided_slice %487 {offsets = [0, 256], sizes = [4, 256], strides = [1, 1]} : vector<4x768xf32> to vector<4x256xf32>
    %499 = arith.addf %497, %498 : vector<4x256xf32>
    %500 = arith.negf %499 : vector<4x256xf32>
    %501 = math.exp %500 : vector<4x256xf32>
    %cst_87 = arith.constant 1.000000e+00 : f32
    %502 = vector.broadcast %cst_87 : f32 to vector<4x256xf32>
    %503 = arith.addf %502, %501 : vector<4x256xf32>
    %504 = arith.divf %502, %503 : vector<4x256xf32>
    %505 = vector.extract_strided_slice %488 {offsets = [0, 512], sizes = [4, 256], strides = [1, 1]} : vector<4x768xf32> to vector<4x256xf32>
    %506 = vector.extract_strided_slice %487 {offsets = [0, 512], sizes = [4, 256], strides = [1, 1]} : vector<4x768xf32> to vector<4x256xf32>
    %507 = arith.mulf %496, %506 : vector<4x256xf32>
    %508 = arith.addf %505, %507 : vector<4x256xf32>
    %509 = math.tanh %508 : vector<4x256xf32>
    %cst_88 = arith.constant 1.000000e+00 : f32
    %510 = vector.broadcast %cst_88 : f32 to vector<4x256xf32>
    %511 = arith.subf %510, %504 : vector<4x256xf32>
    %512 = arith.mulf %511, %509 : vector<4x256xf32>
    %513 = arith.mulf %504, %484 : vector<4x256xf32>
    %514 = arith.addf %512, %513 : vector<4x256xf32>
    %515 = arith.truncf %514 : vector<4x256xf32> to vector<4x256xbf16>
    %cst_89 = arith.constant dense<0.000000e+00> : vector<4x128xf32>
    %516 = tpu.matmul %515, %4, %cst_89 {dimension_numbers = #tpu.dot_dimension_numbers<[1], [0], [0], [1], [0, 0, 1, 1], [], []>} : vector<4x256xbf16>, vector<256x128xbf16>, vector<4x128xf32> -> vector<4x128xf32>
    %517 = vector.broadcast %7 : vector<1x128xf32> to vector<4x128xf32>
    %518 = arith.addf %516, %517 : vector<4x128xf32>
    %c0_90 = arith.constant 0 : index
    %c0_91 = arith.constant 0 : index
    %519 = vector.load %arg12[%c0_90, %c0_91] : memref<4x128xf32, #tpu.memory_space<vmem>>, vector<4x128xf32>
    tpu.vector_store %arg12[%c0_90, %c0_91], %518 {strides = array<i32>} : memref<4x128xf32, #tpu.memory_space<vmem>>, vector<4x128xf32>,
    return
  }
  func.func @transform_0(%arg0: i32) -> (i32, i32, i32) {
    %c0_i32 = arith.constant 0 : i32
    %c0_i32_0 = arith.constant 0 : i32
    %c0_i32_1 = arith.constant 0 : i32
    %c0_i32_2 = arith.constant 0 : i32
    return %c0_i32, %c0_i32_0, %c0_i32_1 : i32, i32, i32
  }
  func.func @transform_1(%arg0: i32) -> (i32, i32) {
    %c0_i32 = arith.constant 0 : i32
    %c0_i32_0 = arith.constant 0 : i32
    %c0_i32_1 = arith.constant 0 : i32
    return %c0_i32, %c0_i32_0 : i32, i32
  }
  func.func @transform_2(%arg0: i32) -> (i32, i32) {
    %c0_i32 = arith.constant 0 : i32
    %c0_i32_0 = arith.constant 0 : i32
    %c0_i32_1 = arith.constant 0 : i32
    return %c0_i32, %c0_i32_0 : i32, i32
  }
  func.func @transform_3(%arg0: i32) -> (i32, i32) {
    %c0_i32 = arith.constant 0 : i32
    %c0_i32_0 = arith.constant 0 : i32
    %c0_i32_1 = arith.constant 0 : i32
    return %c0_i32, %c0_i32_0 : i32, i32
  }
  func.func @transform_4(%arg0: i32) -> (i32, i32) {
    %c0_i32 = arith.constant 0 : i32
    %c0_i32_0 = arith.constant 0 : i32
    %c0_i32_1 = arith.constant 0 : i32
    return %c0_i32, %c0_i32_0 : i32, i32
  }
  func.func @transform_5(%arg0: i32) -> (i32, i32) {
    %c0_i32 = arith.constant 0 : i32
    %c0_i32_0 = arith.constant 0 : i32
    %c0_i32_1 = arith.constant 0 : i32
    return %c0_i32, %c0_i32_0 : i32, i32
  }
  func.func @transform_6(%arg0: i32) -> (i32, i32) {
    %c0_i32 = arith.constant 0 : i32
    %c0_i32_0 = arith.constant 0 : i32
    %c0_i32_1 = arith.constant 0 : i32
    return %c0_i32, %c0_i32_0 : i32, i32
  }
  func.func @transform_7(%arg0: i32) -> (i32, i32) {
    %c0_i32 = arith.constant 0 : i32
    %c0_i32_0 = arith.constant 0 : i32
    %c0_i32_1 = arith.constant 0 : i32
    return %c0_i32, %c0_i32_0 : i32, i32
  }
  func.func @transform_8(%arg0: i32) -> (i32, i32) {
    %c0_i32 = arith.constant 0 : i32
    %c0_i32_0 = arith.constant 0 : i32
    %c0_i32_1 = arith.constant 0 : i32
    return %c0_i32, %c0_i32_0 : i32, i32
  }
  func.func @transform_9(%arg0: i32) -> (i32, i32) {
    %c0_i32 = arith.constant 0 : i32
    %c0_i32_0 = arith.constant 0 : i32
    %c0_i32_1 = arith.constant 0 : i32
    return %c0_i32, %c0_i32_0 : i32, i32
  }
  func.func @transform_10(%arg0: i32) -> (i32, i32) {
    %c0_i32 = arith.constant 0 : i32
    %c0_i32_0 = arith.constant 0 : i32
    %c0_i32_1 = arith.constant 0 : i32
    return %c0_i32, %c0_i32_0 : i32, i32
  }
  func.func @transform_11(%arg0: i32) -> (i32, i32) {
    %c0_i32 = arith.constant 0 : i32
    %c0_i32_0 = arith.constant 0 : i32
    %c0_i32_1 = arith.constant 0 : i32
    return %c0_i32, %c0_i32_0 : i32, i32
  }
}

</mosaic_0001>

<llo_original>
// kernel: _encode_batch.1
$region0: #{_encode_batch.1}
  #allocation0 [shape = 'u32[]', space=smem, size = 0x4, offset = 0x4, fixed_abs, tag = 'smem constant byte address 0x4 - core index']
  #allocation1 [shape = 'u32[144,128]{1,0:T(1,128)}', space=vmem, size = 0x12000, scoped, tag = 'internal scratch']
  %s0 = inlined_call_operand.vmem [shape: bf16[4,8,384], index: 0, kind: input, shape index: {}]
  %s1 = inlined_call_operand.vmem [shape: bf16[384,768], index: 1, kind: input, shape index: {}]
  %s2 = inlined_call_operand.vmem [shape: bf16[256,768], index: 2, kind: input, shape index: {}]
  %s3 = inlined_call_operand.vmem [shape: f32[1,768], index: 3, kind: input, shape index: {}]
  %s4 = inlined_call_operand.vmem [shape: f32[1,768], index: 4, kind: input, shape index: {}]
  %s5 = inlined_call_operand.vmem [shape: bf16[256,768], index: 5, kind: input, shape index: {}]
  %s6 = inlined_call_operand.vmem [shape: bf16[256,768], index: 6, kind: input, shape index: {}]
  %s7 = inlined_call_operand.vmem [shape: f32[1,768], index: 7, kind: input, shape index: {}]
  %s8 = inlined_call_operand.vmem [shape: f32[1,768], index: 8, kind: input, shape index: {}]
  %s9 = inlined_call_operand.vmem [shape: bf16[256,128], index: 9, kind: input, shape index: {}]
  %s10 = inlined_call_operand.vmem [shape: f32[1,128], index: 10, kind: input, shape index: {}]
  %s11 = inlined_call_operand.hbm [shape: f32[4,128], index: 11, kind: output, shape index: {}]
  %s12 = sld [smem:[#allocation0]]
  $region54: #{_encode_batch.1} parent=0
    _
  %s14 = ssub.s32 1, %s12
  %s15 = scalar_select 0, %s14, %s12
  $region1: #{_encode_batch.1} parent=0
    #allocation2 [shape = 'u8[2048]{0}', space=vmem, size = 0x800, scoped, tag = 'output window, operand 0, single buffered']
    #allocation3 [shape = 's32[1]{0}', space=sflag, size = 0x4, scoped, tag = 'scoped memory for _encode_batch.1']
    %16 = vsyncpa [#allocation3], 0
    // Predicated region
    $region2: #{_encode_batch.1} parent=1 // pred_check
      _
    $region3: #{_encode_batch.1} parent=1 // pred_check_branch
      %18 = sbr.rel (0) target = $region5
    $region4: #{_encode_batch.1} parent=1 // pred_region
      _
    $region5: #{_encode_batch.1} parent=1 // pred_fallthru
      _
    // Predicated region
    $region6: #{_encode_batch.1} parent=1 // pred_check
      _
    $region7: #{_encode_batch.1} parent=1 // pred_check_branch
      %20 = sbr.rel (0) target = $region9
    $region8: #{_encode_batch.1} parent=1 // pred_region
      _
    $region9: #{_encode_batch.1} parent=1 // pred_fallthru
      _
    // Predicated region
    $region10: #{_encode_batch.1} parent=1 // pred_check
      _
    $region11: #{_encode_batch.1} parent=1 // pred_check_branch
      %22 = sbr.rel (0) target = $region13
    $region12: #{_encode_batch.1} parent=1 // pred_region
      _
    $region13: #{_encode_batch.1} parent=1 // pred_fallthru
      _
    // Predicated region
    $region14: #{_encode_batch.1} parent=1 // pred_check
      _
    $region15: #{_encode_batch.1} parent=1 // pred_check_branch
      %24 = sbr.rel (0) target = $region17
    $region16: #{_encode_batch.1} parent=1 // pred_region
      _
    $region17: #{_encode_batch.1} parent=1 // pred_fallthru
      _
    // Predicated region
    $region18: #{_encode_batch.1} parent=1 // pred_check
      _
    $region19: #{_encode_batch.1} parent=1 // pred_check_branch
      %26 = sbr.rel (0) target = $region21
    $region20: #{_encode_batch.1} parent=1 // pred_region
      _
    $region21: #{_encode_batch.1} parent=1 // pred_fallthru
      _
    // Predicated region
    $region22: #{_encode_batch.1} parent=1 // pred_check
      _
    $region23: #{_encode_batch.1} parent=1 // pred_check_branch
      %28 = sbr.rel (0) target = $region25
    $region24: #{_encode_batch.1} parent=1 // pred_region
      _
    $region25: #{_encode_batch.1} parent=1 // pred_fallthru
      _
    // Predicated region
    $region26: #{_encode_batch.1} parent=1 // pred_check
      _
    $region27: #{_encode_batch.1} parent=1 // pred_check_branch
      %30 = sbr.rel (0) target = $region29
    $region28: #{_encode_batch.1} parent=1 // pred_region
      _
    $region29: #{_encode_batch.1} parent=1 // pred_fallthru
      _
    // Predicated region
    $region30: #{_encode_batch.1} parent=1 // pred_check
      _
    $region31: #{_encode_batch.1} parent=1 // pred_check_branch
      %32 = sbr.rel (0) target = $region33
    $region32: #{_encode_batch.1} parent=1 // pred_region
      _
    $region33: #{_encode_batch.1} parent=1 // pred_fallthru
      _
    // Predicated region
    $region34: #{_encode_batch.1} parent=1 // pred_check
      _
    $region35: #{_encode_batch.1} parent=1 // pred_check_branch
      %34 = sbr.rel (0) target = $region37
    $region36: #{_encode_batch.1} parent=1 // pred_region
      _
    $region37: #{_encode_batch.1} parent=1 // pred_fallthru
      _
    // Predicated region
    $region38: #{_encode_batch.1} parent=1 // pred_check
      _
    $region39: #{_encode_batch.1} parent=1 // pred_check_branch
      %36 = sbr.rel (0) target = $region41
    $region40: #{_encode_batch.1} parent=1 // pred_region
      _
    $region41: #{_encode_batch.1} parent=1 // pred_fallthru
      _
    // Predicated region
    $region42: #{_encode_batch.1} parent=1 // pred_check
      _
    $region43: #{_encode_batch.1} parent=1 // pred_check_branch
      %38 = sbr.rel (0) target = $region45
    $region44: #{_encode_batch.1} parent=1 // pred_region
      _
    $region45: #{_encode_batch.1} parent=1 // pred_fallthru
      _
    %v40 = vld [vmem:[%s1] sm:$0xff]
    %v41 = vld [vmem:[%s1 + $0x8] sm:$0xff]
    %v42 = vld [vmem:[%s1 + $0x10] sm:$0xff]
    %v43 = vld [vmem:[%s1 + $0x18] sm:$0xff]
    %v44 = vld [vmem:[%s1 + $0x20] sm:$0xff]
    %v45 = vld [vmem:[%s1 + $0x28] sm:$0xff]
    %v46 = vld [vmem:[%s1 + $0x30] sm:$0xff]
    %v47 = vld [vmem:[%s1 + $0x38] sm:$0xff]
    %v48 = vld [vmem:[%s1 + $0x40] sm:$0xff]
    %v49 = vld [vmem:[%s1 + $0x48] sm:$0xff]
    %v50 = vld [vmem:[%s1 + $0x50] sm:$0xff]
    %v51 = vld [vmem:[%s1 + $0x58] sm:$0xff]
    %v52 = vld [vmem:[%s1 + $0x60] sm:$0xff]
    %v53 = vld [vmem:[%s1 + $0x68] sm:$0xff]
    %v54 = vld [vmem:[%s1 + $0x70] sm:$0xff]
    %v55 = vld [vmem:[%s1 + $0x78] sm:$0xff]
    %v56 = vld [vmem:[%s1 + $0x80] sm:$0xff]
    %v57 = vld [vmem:[%s1 + $0x88] sm:$0xff]
    %v58 = vld [vmem:[%s1 + $0x90] sm:$0xff]
    %v59 = vld [vmem:[%s1 + $0x98] sm:$0xff]
    %v60 = vld [vmem:[%s1 + $0xa0] sm:$0xff]
    %v61 = vld [vmem:[%s1 + $0xa8] sm:$0xff]
    %v62 = vld [vmem:[%s1 + $0xb0] sm:$0xff]
    %v63 = vld [vmem:[%s1 + $0xb8] sm:$0xff]
    %v64 = vld [vmem:[%s1 + $0xc0] sm:$0xff]
    %v65 = vld [vmem:[%s1 + $0xc8] sm:$0xff]
    %v66 = vld [vmem:[%s1 + $0xd0] sm:$0xff]
    %v67 = vld [vmem:[%s1 + $0xd8] sm:$0xff]
    %v68 = vld [vmem:[%s1 + $0xe0] sm:$0xff]
    %v69 = vld [vmem:[%s1 + $0xe8] sm:$0xff]
    %v70 = vld [vmem:[%s1 + $0xf0] sm:$0xff]
    %v71 = vld [vmem:[%s1 + $0xf8] sm:$0xff]
    %v72 = vld [vmem:[%s1 + $0x100] sm:$0xff]
    %v73 = vld [vmem:[%s1 + $0x108] sm:$0xff]
    %v74 = vld [vmem:[%s1 + $0x110] sm:$0xff]
    %v75 = vld [vmem:[%s1 + $0x118] sm:$0xff]
    %v76 = vld [vmem:[%s1 + $0x120] sm:$0xff]
    %v77 = vld [vmem:[%s1 + $0x128] sm:$0xff]
    %v78 = vld [vmem:[%s1 + $0x130] sm:$0xff]
    %v79 = vld [vmem:[%s1 + $0x138] sm:$0xff]
    %v80 = vld [vmem:[%s1 + $0x140] sm:$0xff]
    %v81 = vld [vmem:[%s1 + $0x148] sm:$0xff]
    %v82 = vld [vmem:[%s1 + $0x150] sm:$0xff]
    %v83 = vld [vmem:[%s1 + $0x158] sm:$0xff]
    %v84 = vld [vmem:[%s1 + $0x160] sm:$0xff]
    %v85 = vld [vmem:[%s1 + $0x168] sm:$0xff]
    %v86 = vld [vmem:[%s1 + $0x170] sm:$0xff]
    %v87 = vld [vmem:[%s1 + $0x178] sm:$0xff]
    %v88 = vld [vmem:[%s1 + $0x180] sm:$0xff]
    %v89 = vld [vmem:[%s1 + $0x188] sm:$0xff]
    %v90 = vld [vmem:[%s1 + $0x190] sm:$0xff]
    %v91 = vld [vmem:[%s1 + $0x198] sm:$0xff]
    %v92 = vld [vmem:[%s1 + $0x1a0] sm:$0xff]
    %v93 = vld [vmem:[%s1 + $0x1a8] sm:$0xff]
    %v94 = vld [vmem:[%s1 + $0x1b0] sm:$0xff]
    %v95 = vld [vmem:[%s1 + $0x1b8] sm:$0xff]
    %v96 = vld [vmem:[%s1 + $0x1c0] sm:$0xff]
    %v97 = vld [vmem:[%s1 + $0x1c8] sm:$0xff]
    %v98 = vld [vmem:[%s1 + $0x1d0] sm:$0xff]
    %v99 = vld [vmem:[%s1 + $0x1d8] sm:$0xff]
    %v100 = vld [vmem:[%s1 + $0x1e0] sm:$0xff]
    %v101 = vld [vmem:[%s1 + $0x1e8] sm:$0xff]
    %v102 = vld [vmem:[%s1 + $0x1f0] sm:$0xff]
    %v103 = vld [vmem:[%s1 + $0x1f8] sm:$0xff]
    %v104 = vld [vmem:[%s1 + $0x200] sm:$0xff]
    %v105 = vld [vmem:[%s1 + $0x208] sm:$0xff]
    %v106 = vld [vmem:[%s1 + $0x210] sm:$0xff]
    %v107 = vld [vmem:[%s1 + $0x218] sm:$0xff]
    %v108 = vld [vmem:[%s1 + $0x220] sm:$0xff]
    %v109 = vld [vmem:[%s1 + $0x228] sm:$0xff]
    %v110 = vld [vmem:[%s1 + $0x230] sm:$0xff]
    %v111 = vld [vmem:[%s1 + $0x238] sm:$0xff]
    %v112 = vld [vmem:[%s1 + $0x240] sm:$0xff]
    %v113 = vld [vmem:[%s1 + $0x248] sm:$0xff]
    %v114 = vld [vmem:[%s1 + $0x250] sm:$0xff]
    %v115 = vld [vmem:[%s1 + $0x258] sm:$0xff]
    %v116 = vld [vmem:[%s1 + $0x260] sm:$0xff]
    %v117 = vld [vmem:[%s1 + $0x268] sm:$0xff]
    %v118 = vld [vmem:[%s1 + $0x270] sm:$0xff]
    %v119 = vld [vmem:[%s1 + $0x278] sm:$0xff]
    %v120 = vld [vmem:[%s1 + $0x280] sm:$0xff]
    %v121 = vld [vmem:[%s1 + $0x288] sm:$0xff]
    %v122 = vld [vmem:[%s1 + $0x290] sm:$0xff]
    %v123 = vld [vmem:[%s1 + $0x298] sm:$0xff]
    %v124 = vld [vmem:[%s1 + $0x2a0] sm:$0xff]
    %v125 = vld [vmem:[%s1 + $0x2a8] sm:$0xff]
    %v126 = vld [vmem:[%s1 + $0x2b0] sm:$0xff]
    %v127 = vld [vmem:[%s1 + $0x2b8] sm:$0xff]
    %v128 = vld [vmem:[%s1 + $0x2c0] sm:$0xff]
    %v129 = vld [vmem:[%s1 + $0x2c8] sm:$0xff]
    %v130 = vld [vmem:[%s1 + $0x2d0] sm:$0xff]
    %v131 = vld [vmem:[%s1 + $0x2d8] sm:$0xff]
    %v132 = vld [vmem:[%s1 + $0x2e0] sm:$0xff]
    %v133 = vld [vmem:[%s1 + $0x2e8] sm:$0xff]
    %v134 = vld [vmem:[%s1 + $0x2f0] sm:$0xff]
    %v135 = vld [vmem:[%s1 + $0x2f8] sm:$0xff]
    %v136 = vld [vmem:[%s1 + $0x300] sm:$0xff]
    %v137 = vld [vmem:[%s1 + $0x308] sm:$0xff]
    %v138 = vld [vmem:[%s1 + $0x310] sm:$0xff]
    %v139 = vld [vmem:[%s1 + $0x318] sm:$0xff]
    %v140 = vld [vmem:[%s1 + $0x320] sm:$0xff]
    %v141 = vld [vmem:[%s1 + $0x328] sm:$0xff]
    %v142 = vld [vmem:[%s1 + $0x330] sm:$0xff]
    %v143 = vld [vmem:[%s1 + $0x338] sm:$0xff]
    %v144 = vld [vmem:[%s1 + $0x340] sm:$0xff]
    %v145 = vld [vmem:[%s1 + $0x348] sm:$0xff]
    %v146 = vld [vmem:[%s1 + $0x350] sm:$0xff]
    %v147 = vld [vmem:[%s1 + $0x358] sm:$0xff]
    %v148 = vld [vmem:[%s1 + $0x360] sm:$0xff]
    %v149 = vld [vmem:[%s1 + $0x368] sm:$0xff]
    %v150 = vld [vmem:[%s1 + $0x370] sm:$0xff]
    %v151 = vld [vmem:[%s1 + $0x378] sm:$0xff]
    %v152 = vld [vmem:[%s1 + $0x380] sm:$0xff]
    %v153 = vld [vmem:[%s1 + $0x388] sm:$0xff]
    %v154 = vld [vmem:[%s1 + $0x390] sm:$0xff]
    %v155 = vld [vmem:[%s1 + $0x398] sm:$0xff]
    %v156 = vld [vmem:[%s1 + $0x3a0] sm:$0xff]
    %v157 = vld [vmem:[%s1 + $0x3a8] sm:$0xff]
    %v158 = vld [vmem:[%s1 + $0x3b0] sm:$0xff]
    %v159 = vld [vmem:[%s1 + $0x3b8] sm:$0xff]
    %v160 = vld [vmem:[%s1 + $0x3c0] sm:$0xff]
    %v161 = vld [vmem:[%s1 + $0x3c8] sm:$0xff]
    %v162 = vld [vmem:[%s1 + $0x3d0] sm:$0xff]
    %v163 = vld [vmem:[%s1 + $0x3d8] sm:$0xff]
    %v164 = vld [vmem:[%s1 + $0x3e0] sm:$0xff]
    %v165 = vld [vmem:[%s1 + $0x3e8] sm:$0xff]
    %v166 = vld [vmem:[%s1 + $0x3f0] sm:$0xff]
    %v167 = vld [vmem:[%s1 + $0x3f8] sm:$0xff]
    %v168 = vld [vmem:[%s1 + $0x400] sm:$0xff]
    %v169 = vld [vmem:[%s1 + $0x408] sm:$0xff]
    %v170 = vld [vmem:[%s1 + $0x410] sm:$0xff]
    %v171 = vld [vmem:[%s1 + $0x418] sm:$0xff]
    %v172 = vld [vmem:[%s1 + $0x420] sm:$0xff]
    %v173 = vld [vmem:[%s1 + $0x428] sm:$0xff]
    %v174 = vld [vmem:[%s1 + $0x430] sm:$0xff]
    %v175 = vld [vmem:[%s1 + $0x438] sm:$0xff]
    %v176 = vld [vmem:[%s1 + $0x440] sm:$0xff]
    %v177 = vld [vmem:[%s1 + $0x448] sm:$0xff]
    %v178 = vld [vmem:[%s1 + $0x450] sm:$0xff]
    %v179 = vld [vmem:[%s1 + $0x458] sm:$0xff]
    %v180 = vld [vmem:[%s1 + $0x460] sm:$0xff]
    %v181 = vld [vmem:[%s1 + $0x468] sm:$0xff]
    %v182 = vld [vmem:[%s1 + $0x470] sm:$0xff]
    %v183 = vld [vmem:[%s1 + $0x478] sm:$0xff]
    %v184 = vld [vmem:[%s2] sm:$0xff]
    %v185 = vld [vmem:[%s2 + $0x8] sm:$0xff]
    %v186 = vld [vmem:[%s2 + $0x10] sm:$0xff]
    %v187 = vld [vmem:[%s2 + $0x18] sm:$0xff]
    %v188 = vld [vmem:[%s2 + $0x20] sm:$0xff]
    %v189 = vld [vmem:[%s2 + $0x28] sm:$0xff]
    %v190 = vld [vmem:[%s2 + $0x30] sm:$0xff]
    %v191 = vld [vmem:[%s2 + $0x38] sm:$0xff]
    %v192 = vld [vmem:[%s2 + $0x40] sm:$0xff]
    %v193 = vld [vmem:[%s2 + $0x48] sm:$0xff]
    %v194 = vld [vmem:[%s2 + $0x50] sm:$0xff]
    %v195 = vld [vmem:[%s2 + $0x58] sm:$0xff]
    %v196 = vld [vmem:[%s2 + $0x60] sm:$0xff]
    %v197 = vld [vmem:[%s2 + $0x68] sm:$0xff]
    %v198 = vld [vmem:[%s2 + $0x70] sm:$0xff]
    %v199 = vld [vmem:[%s2 + $0x78] sm:$0xff]
    %v200 = vld [vmem:[%s2 + $0x80] sm:$0xff]
    %v201 = vld [vmem:[%s2 + $0x88] sm:$0xff]
    %v202 = vld [vmem:[%s2 + $0x90] sm:$0xff]
    %v203 = vld [vmem:[%s2 + $0x98] sm:$0xff]
    %v204 = vld [vmem:[%s2 + $0xa0] sm:$0xff]
    %v205 = vld [vmem:[%s2 + $0xa8] sm:$0xff]
    %v206 = vld [vmem:[%s2 + $0xb0] sm:$0xff]
    %v207 = vld [vmem:[%s2 + $0xb8] sm:$0xff]
    %v208 = vld [vmem:[%s2 + $0xc0] sm:$0xff]
    %v209 = vld [vmem:[%s2 + $0xc8] sm:$0xff]
    %v210 = vld [vmem:[%s2 + $0xd0] sm:$0xff]
    %v211 = vld [vmem:[%s2 + $0xd8] sm:$0xff]
    %v212 = vld [vmem:[%s2 + $0xe0] sm:$0xff]
    %v213 = vld [vmem:[%s2 + $0xe8] sm:$0xff]
    %v214 = vld [vmem:[%s2 + $0xf0] sm:$0xff]
    %v215 = vld [vmem:[%s2 + $0xf8] sm:$0xff]
    %v216 = vld [vmem:[%s2 + $0x100] sm:$0xff]
    %v217 = vld [vmem:[%s2 + $0x108] sm:$0xff]
    %v218 = vld [vmem:[%s2 + $0x110] sm:$0xff]
    %v219 = vld [vmem:[%s2 + $0x118] sm:$0xff]
    %v220 = vld [vmem:[%s2 + $0x120] sm:$0xff]
    %v221 = vld [vmem:[%s2 + $0x128] sm:$0xff]
    %v222 = vld [vmem:[%s2 + $0x130] sm:$0xff]
    %v223 = vld [vmem:[%s2 + $0x138] sm:$0xff]
    %v224 = vld [vmem:[%s2 + $0x140] sm:$0xff]
    %v225 = vld [vmem:[%s2 + $0x148] sm:$0xff]
    %v226 = vld [vmem:[%s2 + $0x150] sm:$0xff]
    %v227 = vld [vmem:[%s2 + $0x158] sm:$0xff]
    %v228 = vld [vmem:[%s2 + $0x160] sm:$0xff]
    %v229 = vld [vmem:[%s2 + $0x168] sm:$0xff]
    %v230 = vld [vmem:[%s2 + $0x170] sm:$0xff]
    %v231 = vld [vmem:[%s2 + $0x178] sm:$0xff]
    %v232 = vld [vmem:[%s2 + $0x180] sm:$0xff]
    %v233 = vld [vmem:[%s2 + $0x188] sm:$0xff]
    %v234 = vld [vmem:[%s2 + $0x190] sm:$0xff]
    %v235 = vld [vmem:[%s2 + $0x198] sm:$0xff]
    %v236 = vld [vmem:[%s2 + $0x1a0] sm:$0xff]
    %v237 = vld [vmem:[%s2 + $0x1a8] sm:$0xff]
    %v238 = vld [vmem:[%s2 + $0x1b0] sm:$0xff]
    %v239 = vld [vmem:[%s2 + $0x1b8] sm:$0xff]
    %v240 = vld [vmem:[%s2 + $0x1c0] sm:$0xff]
    %v241 = vld [vmem:[%s2 + $0x1c8] sm:$0xff]
    %v242 = vld [vmem:[%s2 + $0x1d0] sm:$0xff]
    %v243 = vld [vmem:[%s2 + $0x1d8] sm:$0xff]
    %v244 = vld [vmem:[%s2 + $0x1e0] sm:$0xff]
    %v245 = vld [vmem:[%s2 + $0x1e8] sm:$0xff]
    %v246 = vld [vmem:[%s2 + $0x1f0] sm:$0xff]
    %v247 = vld [vmem:[%s2 + $0x1f8] sm:$0xff]
    %v248 = vld [vmem:[%s2 + $0x200] sm:$0xff]
    %v249 = vld [vmem:[%s2 + $0x208] sm:$0xff]
    %v250 = vld [vmem:[%s2 + $0x210] sm:$0xff]
    %v251 = vld [vmem:[%s2 + $0x218] sm:$0xff]
    %v252 = vld [vmem:[%s2 + $0x220] sm:$0xff]
    %v253 = vld [vmem:[%s2 + $0x228] sm:$0xff]
    %v254 = vld [vmem:[%s2 + $0x230] sm:$0xff]
    %v255 = vld [vmem:[%s2 + $0x238] sm:$0xff]
    %v256 = vld [vmem:[%s2 + $0x240] sm:$0xff]
    %v257 = vld [vmem:[%s2 + $0x248] sm:$0xff]
    %v258 = vld [vmem:[%s2 + $0x250] sm:$0xff]
    %v259 = vld [vmem:[%s2 + $0x258] sm:$0xff]
    %v260 = vld [vmem:[%s2 + $0x260] sm:$0xff]
    %v261 = vld [vmem:[%s2 + $0x268] sm:$0xff]
    %v262 = vld [vmem:[%s2 + $0x270] sm:$0xff]
    %v263 = vld [vmem:[%s2 + $0x278] sm:$0xff]
    %v264 = vld [vmem:[%s2 + $0x280] sm:$0xff]
    %v265 = vld [vmem:[%s2 + $0x288] sm:$0xff]
    %v266 = vld [vmem:[%s2 + $0x290] sm:$0xff]
    %v267 = vld [vmem:[%s2 + $0x298] sm:$0xff]
    %v268 = vld [vmem:[%s2 + $0x2a0] sm:$0xff]
    %v269 = vld [vmem:[%s2 + $0x2a8] sm:$0xff]
    %v270 = vld [vmem:[%s2 + $0x2b0] sm:$0xff]
    %v271 = vld [vmem:[%s2 + $0x2b8] sm:$0xff]
    %v272 = vld [vmem:[%s2 + $0x2c0] sm:$0xff]
    %v273 = vld [vmem:[%s2 + $0x2c8] sm:$0xff]
    %v274 = vld [vmem:[%s2 + $0x2d0] sm:$0xff]
    %v275 = vld [vmem:[%s2 + $0x2d8] sm:$0xff]
    %v276 = vld [vmem:[%s2 + $0x2e0] sm:$0xff]
    %v277 = vld [vmem:[%s2 + $0x2e8] sm:$0xff]
    %v278 = vld [vmem:[%s2 + $0x2f0] sm:$0xff]
    %v279 = vld [vmem:[%s2 + $0x2f8] sm:$0xff]
    %v280 = vld [vmem:[%s5] sm:$0xff]
    %v281 = vld [vmem:[%s5 + $0x8] sm:$0xff]
    %v282 = vld [vmem:[%s5 + $0x10] sm:$0xff]
    %v283 = vld [vmem:[%s5 + $0x18] sm:$0xff]
    %v284 = vld [vmem:[%s5 + $0x20] sm:$0xff]
    %v285 = vld [vmem:[%s5 + $0x28] sm:$0xff]
    %v286 = vld [vmem:[%s5 + $0x30] sm:$0xff]
    %v287 = vld [vmem:[%s5 + $0x38] sm:$0xff]
    %v288 = vld [vmem:[%s5 + $0x40] sm:$0xff]
    %v289 = vld [vmem:[%s5 + $0x48] sm:$0xff]
    %v290 = vld [vmem:[%s5 + $0x50] sm:$0xff]
    %v291 = vld [vmem:[%s5 + $0x58] sm:$0xff]
    %v292 = vld [vmem:[%s5 + $0x60] sm:$0xff]
    %v293 = vld [vmem:[%s5 + $0x68] sm:$0xff]
    %v294 = vld [vmem:[%s5 + $0x70] sm:$0xff]
    %v295 = vld [vmem:[%s5 + $0x78] sm:$0xff]
    %v296 = vld [vmem:[%s5 + $0x80] sm:$0xff]
    %v297 = vld [vmem:[%s5 + $0x88] sm:$0xff]
    %v298 = vld [vmem:[%s5 + $0x90] sm:$0xff]
    %v299 = vld [vmem:[%s5 + $0x98] sm:$0xff]
    %v300 = vld [vmem:[%s5 + $0xa0] sm:$0xff]
    %v301 = vld [vmem:[%s5 + $0xa8] sm:$0xff]
    %v302 = vld [vmem:[%s5 + $0xb0] sm:$0xff]
    %v303 = vld [vmem:[%s5 + $0xb8] sm:$0xff]
    %v304 = vld [vmem:[%s5 + $0xc0] sm:$0xff]
    %v305 = vld [vmem:[%s5 + $0xc8] sm:$0xff]
    %v306 = vld [vmem:[%s5 + $0xd0] sm:$0xff]
    %v307 = vld [vmem:[%s5 + $0xd8] sm:$0xff]
    %v308 = vld [vmem:[%s5 + $0xe0] sm:$0xff]
    %v309 = vld [vmem:[%s5 + $0xe8] sm:$0xff]
    %v310 = vld [vmem:[%s5 + $0xf0] sm:$0xff]
    %v311 = vld [vmem:[%s5 + $0xf8] sm:$0xff]
    %v312 = vld [vmem:[%s5 + $0x100] sm:$0xff]
    %v313 = vld [vmem:[%s5 + $0x108] sm:$0xff]
    %v314 = vld [vmem:[%s5 + $0x110] sm:$0xff]
    %v315 = vld [vmem:[%s5 + $0x118] sm:$0xff]
    %v316 = vld [vmem:[%s5 + $0x120] sm:$0xff]
    %v317 = vld [vmem:[%s5 + $0x128] sm:$0xff]
    %v318 = vld [vmem:[%s5 + $0x130] sm:$0xff]
    %v319 = vld [vmem:[%s5 + $0x138] sm:$0xff]
    %v320 = vld [vmem:[%s5 + $0x140] sm:$0xff]
    %v321 = vld [vmem:[%s5 + $0x148] sm:$0xff]
    %v322 = vld [vmem:[%s5 + $0x150] sm:$0xff]
    %v323 = vld [vmem:[%s5 + $0x158] sm:$0xff]
    %v324 = vld [vmem:[%s5 + $0x160] sm:$0xff]
    %v325 = vld [vmem:[%s5 + $0x168] sm:$0xff]
    %v326 = vld [vmem:[%s5 + $0x170] sm:$0xff]
    %v327 = vld [vmem:[%s5 + $0x178] sm:$0xff]
    %v328 = vld [vmem:[%s5 + $0x180] sm:$0xff]
    %v329 = vld [vmem:[%s5 + $0x188] sm:$0xff]
    %v330 = vld [vmem:[%s5 + $0x190] sm:$0xff]
    %v331 = vld [vmem:[%s5 + $0x198] sm:$0xff]
    %v332 = vld [vmem:[%s5 + $0x1a0] sm:$0xff]
    %v333 = vld [vmem:[%s5 + $0x1a8] sm:$0xff]
    %v334 = vld [vmem:[%s5 + $0x1b0] sm:$0xff]
    %v335 = vld [vmem:[%s5 + $0x1b8] sm:$0xff]
    %v336 = vld [vmem:[%s5 + $0x1c0] sm:$0xff]
    %v337 = vld [vmem:[%s5 + $0x1c8] sm:$0xff]
    %v338 = vld [vmem:[%s5 + $0x1d0] sm:$0xff]
    %v339 = vld [vmem:[%s5 + $0x1d8] sm:$0xff]
    %v340 = vld [vmem:[%s5 + $0x1e0] sm:$0xff]
    %v341 = vld [vmem:[%s5 + $0x1e8] sm:$0xff]
    %v342 = vld [vmem:[%s5 + $0x1f0] sm:$0xff]
    %v343 = vld [vmem:[%s5 + $0x1f8] sm:$0xff]
    %v344 = vld [vmem:[%s5 + $0x200] sm:$0xff]
    %v345 = vld [vmem:[%s5 + $0x208] sm:$0xff]
    %v346 = vld [vmem:[%s5 + $0x210] sm:$0xff]
    %v347 = vld [vmem:[%s5 + $0x218] sm:$0xff]
    %v348 = vld [vmem:[%s5 + $0x220] sm:$0xff]
    %v349 = vld [vmem:[%s5 + $0x228] sm:$0xff]
    %v350 = vld [vmem:[%s5 + $0x230] sm:$0xff]
    %v351 = vld [vmem:[%s5 + $0x238] sm:$0xff]
    %v352 = vld [vmem:[%s5 + $0x240] sm:$0xff]
    %v353 = vld [vmem:[%s5 + $0x248] sm:$0xff]
    %v354 = vld [vmem:[%s5 + $0x250] sm:$0xff]
    %v355 = vld [vmem:[%s5 + $0x258] sm:$0xff]
    %v356 = vld [vmem:[%s5 + $0x260] sm:$0xff]
    %v357 = vld [vmem:[%s5 + $0x268] sm:$0xff]
    %v358 = vld [vmem:[%s5 + $0x270] sm:$0xff]
    %v359 = vld [vmem:[%s5 + $0x278] sm:$0xff]
    %v360 = vld [vmem:[%s5 + $0x280] sm:$0xff]
    %v361 = vld [vmem:[%s5 + $0x288] sm:$0xff]
    %v362 = vld [vmem:[%s5 + $0x290] sm:$0xff]
    %v363 = vld [vmem:[%s5 + $0x298] sm:$0xff]
    %v364 = vld [vmem:[%s5 + $0x2a0] sm:$0xff]
    %v365 = vld [vmem:[%s5 + $0x2a8] sm:$0xff]
    %v366 = vld [vmem:[%s5 + $0x2b0] sm:$0xff]
    %v367 = vld [vmem:[%s5 + $0x2b8] sm:$0xff]
    %v368 = vld [vmem:[%s5 + $0x2c0] sm:$0xff]
    %v369 = vld [vmem:[%s5 + $0x2c8] sm:$0xff]
    %v370 = vld [vmem:[%s5 + $0x2d0] sm:$0xff]
    %v371 = vld [vmem:[%s5 + $0x2d8] sm:$0xff]
    %v372 = vld [vmem:[%s5 + $0x2e0] sm:$0xff]
    %v373 = vld [vmem:[%s5 + $0x2e8] sm:$0xff]
    %v374 = vld [vmem:[%s5 + $0x2f0] sm:$0xff]
    %v375 = vld [vmem:[%s5 + $0x2f8] sm:$0xff]
    %v376 = vld [vmem:[%s6] sm:$0xff]
    %v377 = vld [vmem:[%s6 + $0x8] sm:$0xff]
    %v378 = vld [vmem:[%s6 + $0x10] sm:$0xff]
    %v379 = vld [vmem:[%s6 + $0x18] sm:$0xff]
    %v380 = vld [vmem:[%s6 + $0x20] sm:$0xff]
    %v381 = vld [vmem:[%s6 + $0x28] sm:$0xff]
    %v382 = vld [vmem:[%s6 + $0x30] sm:$0xff]
    %v383 = vld [vmem:[%s6 + $0x38] sm:$0xff]
    %v384 = vld [vmem:[%s6 + $0x40] sm:$0xff]
    %v385 = vld [vmem:[%s6 + $0x48] sm:$0xff]
    %v386 = vld [vmem:[%s6 + $0x50] sm:$0xff]
    %v387 = vld [vmem:[%s6 + $0x58] sm:$0xff]
    %v388 = vld [vmem:[%s6 + $0x60] sm:$0xff]
    %v389 = vld [vmem:[%s6 + $0x68] sm:$0xff]
    %v390 = vld [vmem:[%s6 + $0x70] sm:$0xff]
    %v391 = vld [vmem:[%s6 + $0x78] sm:$0xff]
    %v392 = vld [vmem:[%s6 + $0x80] sm:$0xff]
    %v393 = vld [vmem:[%s6 + $0x88] sm:$0xff]
    %v394 = vld [vmem:[%s6 + $0x90] sm:$0xff]
    %v395 = vld [vmem:[%s6 + $0x98] sm:$0xff]
    %v396 = vld [vmem:[%s6 + $0xa0] sm:$0xff]
    %v397 = vld [vmem:[%s6 + $0xa8] sm:$0xff]
    %v398 = vld [vmem:[%s6 + $0xb0] sm:$0xff]
    %v399 = vld [vmem:[%s6 + $0xb8] sm:$0xff]
    %v400 = vld [vmem:[%s6 + $0xc0] sm:$0xff]
    %v401 = vld [vmem:[%s6 + $0xc8] sm:$0xff]
    %v402 = vld [vmem:[%s6 + $0xd0] sm:$0xff]
    %v403 = vld [vmem:[%s6 + $0xd8] sm:$0xff]
    %v404 = vld [vmem:[%s6 + $0xe0] sm:$0xff]
    %v405 = vld [vmem:[%s6 + $0xe8] sm:$0xff]
    %v406 = vld [vmem:[%s6 + $0xf0] sm:$0xff]
    %v407 = vld [vmem:[%s6 + $0xf8] sm:$0xff]
    %v408 = vld [vmem:[%s6 + $0x100] sm:$0xff]
    %v409 = vld [vmem:[%s6 + $0x108] sm:$0xff]
    %v410 = vld [vmem:[%s6 + $0x110] sm:$0xff]
    %v411 = vld [vmem:[%s6 + $0x118] sm:$0xff]
    %v412 = vld [vmem:[%s6 + $0x120] sm:$0xff]
    %v413 = vld [vmem:[%s6 + $0x128] sm:$0xff]
    %v414 = vld [vmem:[%s6 + $0x130] sm:$0xff]
    %v415 = vld [vmem:[%s6 + $0x138] sm:$0xff]
    %v416 = vld [vmem:[%s6 + $0x140] sm:$0xff]
    %v417 = vld [vmem:[%s6 + $0x148] sm:$0xff]
    %v418 = vld [vmem:[%s6 + $0x150] sm:$0xff]
    %v419 = vld [vmem:[%s6 + $0x158] sm:$0xff]
    %v420 = vld [vmem:[%s6 + $0x160] sm:$0xff]
    %v421 = vld [vmem:[%s6 + $0x168] sm:$0xff]
    %v422 = vld [vmem:[%s6 + $0x170] sm:$0xff]
    %v423 = vld [vmem:[%s6 + $0x178] sm:$0xff]
    %v424 = vld [vmem:[%s6 + $0x180] sm:$0xff]
    %v425 = vld [vmem:[%s6 + $0x188] sm:$0xff]
    %v426 = vld [vmem:[%s6 + $0x190] sm:$0xff]
    %v427 = vld [vmem:[%s6 + $0x198] sm:$0xff]
    %v428 = vld [vmem:[%s6 + $0x1a0] sm:$0xff]
    %v429 = vld [vmem:[%s6 + $0x1a8] sm:$0xff]
    %v430 = vld [vmem:[%s6 + $0x1b0] sm:$0xff]
    %v431 = vld [vmem:[%s6 + $0x1b8] sm:$0xff]
    %v432 = vld [vmem:[%s6 + $0x1c0] sm:$0xff]
    %v433 = vld [vmem:[%s6 + $0x1c8] sm:$0xff]
    %v434 = vld [vmem:[%s6 + $0x1d0] sm:$0xff]
    %v435 = vld [vmem:[%s6 + $0x1d8] sm:$0xff]
    %v436 = vld [vmem:[%s6 + $0x1e0] sm:$0xff]
    %v437 = vld [vmem:[%s6 + $0x1e8] sm:$0xff]
    %v438 = vld [vmem:[%s6 + $0x1f0] sm:$0xff]
    %v439 = vld [vmem:[%s6 + $0x1f8] sm:$0xff]
    %v440 = vld [vmem:[%s6 + $0x200] sm:$0xff]
    %v441 = vld [vmem:[%s6 + $0x208] sm:$0xff]
    %v442 = vld [vmem:[%s6 + $0x210] sm:$0xff]
    %v443 = vld [vmem:[%s6 + $0x218] sm:$0xff]
    %v444 = vld [vmem:[%s6 + $0x220] sm:$0xff]
    %v445 = vld [vmem:[%s6 + $0x228] sm:$0xff]
    %v446 = vld [vmem:[%s6 + $0x230] sm:$0xff]
    %v447 = vld [vmem:[%s6 + $0x238] sm:$0xff]
    %v448 = vld [vmem:[%s6 + $0x240] sm:$0xff]
    %v449 = vld [vmem:[%s6 + $0x248] sm:$0xff]
    %v450 = vld [vmem:[%s6 + $0x250] sm:$0xff]
    %v451 = vld [vmem:[%s6 + $0x258] sm:$0xff]
    %v452 = vld [vmem:[%s6 + $0x260] sm:$0xff]
    %v453 = vld [vmem:[%s6 + $0x268] sm:$0xff]
    %v454 = vld [vmem:[%s6 + $0x270] sm:$0xff]
    %v455 = vld [vmem:[%s6 + $0x278] sm:$0xff]
    %v456 = vld [vmem:[%s6 + $0x280] sm:$0xff]
    %v457 = vld [vmem:[%s6 + $0x288] sm:$0xff]
    %v458 = vld [vmem:[%s6 + $0x290] sm:$0xff]
    %v459 = vld [vmem:[%s6 + $0x298] sm:$0xff]
    %v460 = vld [vmem:[%s6 + $0x2a0] sm:$0xff]
    %v461 = vld [vmem:[%s6 + $0x2a8] sm:$0xff]
    %v462 = vld [vmem:[%s6 + $0x2b0] sm:$0xff]
    %v463 = vld [vmem:[%s6 + $0x2b8] sm:$0xff]
    %v464 = vld [vmem:[%s6 + $0x2c0] sm:$0xff]
    %v465 = vld [vmem:[%s6 + $0x2c8] sm:$0xff]
    %v466 = vld [vmem:[%s6 + $0x2d0] sm:$0xff]
    %v467 = vld [vmem:[%s6 + $0x2d8] sm:$0xff]
    %v468 = vld [vmem:[%s6 + $0x2e0] sm:$0xff]
    %v469 = vld [vmem:[%s6 + $0x2e8] sm:$0xff]
    %v470 = vld [vmem:[%s6 + $0x2f0] sm:$0xff]
    %v471 = vld [vmem:[%s6 + $0x2f8] sm:$0xff]
    %v472 = vld [vmem:[%s9] sm:$0xf]
    %v473 = vld [vmem:[%s9 + $0x4] sm:$0xf]
    %v474 = vld [vmem:[%s9 + $0x8] sm:$0xf]
    %v475 = vld [vmem:[%s9 + $0xc] sm:$0xf]
    %v476 = vld [vmem:[%s9 + $0x10] sm:$0xf]
    %v477 = vld [vmem:[%s9 + $0x14] sm:$0xf]
    %v478 = vld [vmem:[%s9 + $0x18] sm:$0xf]
    %v479 = vld [vmem:[%s9 + $0x1c] sm:$0xf]
    %v480 = vld [vmem:[%s9 + $0x20] sm:$0xf]
    %v481 = vld [vmem:[%s9 + $0x24] sm:$0xf]
    %v482 = vld [vmem:[%s9 + $0x28] sm:$0xf]
    %v483 = vld [vmem:[%s9 + $0x2c] sm:$0xf]
    %v484 = vld [vmem:[%s9 + $0x30] sm:$0xf]
    %v485 = vld [vmem:[%s9 + $0x34] sm:$0xf]
    %v486 = vld [vmem:[%s9 + $0x38] sm:$0xf]
    %v487 = vld [vmem:[%s9 + $0x3c] sm:$0xf]
    %v488 = vld [vmem:[%s9 + $0x40] sm:$0xf]
    %v489 = vld [vmem:[%s9 + $0x44] sm:$0xf]
    %v490 = vld [vmem:[%s9 + $0x48] sm:$0xf]
    %v491 = vld [vmem:[%s9 + $0x4c] sm:$0xf]
    %v492 = vld [vmem:[%s9 + $0x50] sm:$0xf]
    %v493 = vld [vmem:[%s9 + $0x54] sm:$0xf]
    %v494 = vld [vmem:[%s9 + $0x58] sm:$0xf]
    %v495 = vld [vmem:[%s9 + $0x5c] sm:$0xf]
    %v496 = vld [vmem:[%s9 + $0x60] sm:$0xf]
    %v497 = vld [vmem:[%s9 + $0x64] sm:$0xf]
    %v498 = vld [vmem:[%s9 + $0x68] sm:$0xf]
    %v499 = vld [vmem:[%s9 + $0x6c] sm:$0xf]
    %v500 = vld [vmem:[%s9 + $0x70] sm:$0xf]
    %v501 = vld [vmem:[%s9 + $0x74] sm:$0xf]
    %v502 = vld [vmem:[%s9 + $0x78] sm:$0xf]
    %v503 = vld [vmem:[%s9 + $0x7c] sm:$0xf]
    %v504 = vld [vmem:[%s3] sm:$0x3f]
    %v505 = vld [vmem:[%s7] sm:$0x3f]
    %v506 = vld [vmem:[%s10] sm:$0x1]
    %v507 = vld [vmem:[%s4] sm:$0x3f]
    %v509 = vlaneseq
    %v510 = vshrl.u32 %v509, 7
    %v511 = vsub.s32 0, %v510
    %v512 = vrot.slane %v507, %v511
    %v513 = vlaneseq
    %v514 = vshrl.u32 %v513, 7
    %v515 = vsub.s32 1, %v514
    %v516 = vrot.slane %v507, %v515
    %v517 = vlaneseq
    %v518 = vshrl.u32 %v517, 7
    %v519 = vsub.s32 2, %v518
    %v520 = vrot.slane %v507, %v519
    %v521 = vlaneseq
    %v522 = vshrl.u32 %v521, 7
    %v523 = vsub.s32 3, %v522
    %v524 = vrot.slane %v507, %v523
    %v525 = vlaneseq
    %v526 = vshrl.u32 %v525, 7
    %v527 = vsub.s32 4, %v526
    %v528 = vrot.slane %v507, %v527
    %v529 = vlaneseq
    %v530 = vshrl.u32 %v529, 7
    %v531 = vsub.s32 5, %v530
    %v532 = vrot.slane %v507, %v531
    %v539 = vld [vmem:[%s8] sm:$0x3f]
    %v541 = vlaneseq
    %v542 = vshrl.u32 %v541, 7
    %v543 = vsub.s32 0, %v542
    %v544 = vrot.slane %v539, %v543
    %v545 = vlaneseq
    %v546 = vshrl.u32 %v545, 7
    %v547 = vsub.s32 1, %v546
    %v548 = vrot.slane %v539, %v547
    %v549 = vlaneseq
    %v550 = vshrl.u32 %v549, 7
    %v551 = vsub.s32 2, %v550
    %v552 = vrot.slane %v539, %v551
    %v553 = vlaneseq
    %v554 = vshrl.u32 %v553, 7
    %v555 = vsub.s32 3, %v554
    %v556 = vrot.slane %v539, %v555
    %v557 = vlaneseq
    %v558 = vshrl.u32 %v557, 7
    %v559 = vsub.s32 4, %v558
    %v560 = vrot.slane %v539, %v559
    %v561 = vlaneseq
    %v562 = vshrl.u32 %v561, 7
    %v563 = vsub.s32 5, %v562
    %v564 = vrot.slane %v539, %v563
    %v571 = vld [vmem:[%s0] sm:$0xff]
    %v572 = vld [vmem:[%s0 + $0x8] sm:$0xf]
    %v573 = vld [vmem:[%s0 + $0xc] sm:$0xff]
    %v574 = vld [vmem:[%s0 + $0x14] sm:$0xf]
    %v575 = vld [vmem:[%s0 + $0x18] sm:$0xff]
    %v576 = vld [vmem:[%s0 + $0x20] sm:$0xf]
    %v577 = vld [vmem:[%s0 + $0x24] sm:$0xff]
    %v578 = vld [vmem:[%s0 + $0x2c] sm:$0xf]
    %v580 = vlaneseq
    %v581 = vshrl.u32 %v580, 7
    %v582 = vsub.s32 0, %v581
    %v583 = vrot.slane %v504, %v582
    %v584 = vlaneseq
    %v585 = vshrl.u32 %v584, 7
    %v586 = vsub.s32 1, %v585
    %v587 = vrot.slane %v504, %v586
    %v588 = vlaneseq
    %v589 = vshrl.u32 %v588, 7
    %v590 = vsub.s32 2, %v589
    %v591 = vrot.slane %v504, %v590
    %v592 = vlaneseq
    %v593 = vshrl.u32 %v592, 7
    %v594 = vsub.s32 3, %v593
    %v595 = vrot.slane %v504, %v594
    %v596 = vlaneseq
    %v597 = vshrl.u32 %v596, 7
    %v598 = vsub.s32 4, %v597
    %v599 = vrot.slane %v504, %v598
    %v600 = vlaneseq
    %v601 = vshrl.u32 %v600, 7
    %v602 = vsub.s32 5, %v601
    %v603 = vrot.slane %v504, %v602
    %v618 = vunpack.c.l.b16 %v571
    %v619 = vunpack.c.h.b16 %v571
    %v620 = vunpack.c.l.b16 %v572
    %v621 = vunpack.c.l.b16 %v573
    %v622 = vunpack.c.h.b16 %v573
    %v623 = vunpack.c.l.b16 %v574
    %v624 = vunpack.c.l.b16 %v575
    %v625 = vunpack.c.h.b16 %v575
    %v626 = vunpack.c.l.b16 %v576
    %v627 = vunpack.c.l.b16 %v577
    %v628 = vunpack.c.h.b16 %v577
    %v629 = vunpack.c.l.b16 %v578
    %v630 = vpack.c.b16 %v621, %v618
    %v631 = vpack.c.b16 %v622, %v619
    %v632 = vpack.c.b16 %v623, %v620
    %v633 = vpack.c.b16 %v627, %v624
    %v634 = vpack.c.b16 %v628, %v625
    %v635 = vpack.c.b16 %v629, %v626
    %v786 = vunpack.c.l.b16 %v40
    %v787 = vunpack.c.h.b16 %v40
    %v788 = vunpack.c.l.b16 %v41
    %v789 = vunpack.c.h.b16 %v41
    %v790 = vunpack.c.l.b16 %v42
    %v791 = vunpack.c.h.b16 %v42
    %v792 = vunpack.c.l.b16 %v43
    %v793 = vunpack.c.h.b16 %v43
    %v794 = vunpack.c.l.b16 %v44
    %v795 = vunpack.c.h.b16 %v44
    %v796 = vunpack.c.l.b16 %v45
    %v797 = vunpack.c.h.b16 %v45
    %v798 = vunpack.c.l.b16 %v46
    %v799 = vunpack.c.h.b16 %v46
    %v800 = vunpack.c.l.b16 %v47
    %v801 = vunpack.c.h.b16 %v47
    %v802 = vunpack.c.l.b16 %v48
    %v803 = vunpack.c.h.b16 %v48
    %v804 = vunpack.c.l.b16 %v49
    %v805 = vunpack.c.h.b16 %v49
    %v806 = vunpack.c.l.b16 %v50
    %v807 = vunpack.c.h.b16 %v50
    %v808 = vunpack.c.l.b16 %v51
    %v809 = vunpack.c.h.b16 %v51
    %v810 = vunpack.c.l.b16 %v52
    %v811 = vunpack.c.h.b16 %v52
    %v812 = vunpack.c.l.b16 %v53
    %v813 = vunpack.c.h.b16 %v53
    %v814 = vunpack.c.l.b16 %v54
    %v815 = vunpack.c.h.b16 %v54
    %v816 = vunpack.c.l.b16 %v55
    %v817 = vunpack.c.h.b16 %v55
    %v818 = vunpack.c.l.b16 %v56
    %v819 = vunpack.c.h.b16 %v56
    %v820 = vunpack.c.l.b16 %v57
    %v821 = vunpack.c.h.b16 %v57
    %v822 = vunpack.c.l.b16 %v58
    %v823 = vunpack.c.h.b16 %v58
    %v824 = vunpack.c.l.b16 %v59
    %v825 = vunpack.c.h.b16 %v59
    %v826 = vunpack.c.l.b16 %v60
    %v827 = vunpack.c.h.b16 %v60
    %v828 = vunpack.c.l.b16 %v61
    %v829 = vunpack.c.h.b16 %v61
    %v830 = vunpack.c.l.b16 %v62
    %v831 = vunpack.c.h.b16 %v62
    %v832 = vunpack.c.l.b16 %v63
    %v833 = vunpack.c.h.b16 %v63
    %v834 = vunpack.c.l.b16 %v64
    %v835 = vunpack.c.h.b16 %v64
    %v836 = vunpack.c.l.b16 %v65
    %v837 = vunpack.c.h.b16 %v65
    %v838 = vunpack.c.l.b16 %v66
    %v839 = vunpack.c.h.b16 %v66
    %v840 = vunpack.c.l.b16 %v67
    %v841 = vunpack.c.h.b16 %v67
    %v842 = vunpack.c.l.b16 %v68
    %v843 = vunpack.c.h.b16 %v68
    %v844 = vunpack.c.l.b16 %v69
    %v845 = vunpack.c.h.b16 %v69
    %v846 = vunpack.c.l.b16 %v70
    %v847 = vunpack.c.h.b16 %v70
    %v848 = vunpack.c.l.b16 %v71
    %v849 = vunpack.c.h.b16 %v71
    %v850 = vunpack.c.l.b16 %v72
    %v851 = vunpack.c.h.b16 %v72
    %v852 = vunpack.c.l.b16 %v73
    %v853 = vunpack.c.h.b16 %v73
    %v854 = vunpack.c.l.b16 %v74
    %v855 = vunpack.c.h.b16 %v74
    %v856 = vunpack.c.l.b16 %v75
    %v857 = vunpack.c.h.b16 %v75
    %v858 = vunpack.c.l.b16 %v76
    %v859 = vunpack.c.h.b16 %v76
    %v860 = vunpack.c.l.b16 %v77
    %v861 = vunpack.c.h.b16 %v77
    %v862 = vunpack.c.l.b16 %v78
    %v863 = vunpack.c.h.b16 %v78
    %v864 = vunpack.c.l.b16 %v79
    %v865 = vunpack.c.h.b16 %v79
    %v866 = vunpack.c.l.b16 %v80
    %v867 = vunpack.c.h.b16 %v80
    %v868 = vunpack.c.l.b16 %v81
    %v869 = vunpack.c.h.b16 %v81
    %v870 = vunpack.c.l.b16 %v82
    %v871 = vunpack.c.h.b16 %v82
    %v872 = vunpack.c.l.b16 %v83
    %v873 = vunpack.c.h.b16 %v83
    %v874 = vunpack.c.l.b16 %v84
    %v875 = vunpack.c.h.b16 %v84
    %v876 = vunpack.c.l.b16 %v85
    %v877 = vunpack.c.h.b16 %v85
    %v878 = vunpack.c.l.b16 %v86
    %v879 = vunpack.c.h.b16 %v86
    %v880 = vunpack.c.l.b16 %v87
    %v881 = vunpack.c.h.b16 %v87
    %v882 = vunpack.c.l.b16 %v88
    %v883 = vunpack.c.h.b16 %v88
    %v884 = vunpack.c.l.b16 %v89
    %v885 = vunpack.c.h.b16 %v89
    %v886 = vunpack.c.l.b16 %v90
    %v887 = vunpack.c.h.b16 %v90
    %v888 = vunpack.c.l.b16 %v91
    %v889 = vunpack.c.h.b16 %v91
    %v890 = vunpack.c.l.b16 %v92
    %v891 = vunpack.c.h.b16 %v92
    %v892 = vunpack.c.l.b16 %v93
    %v893 = vunpack.c.h.b16 %v93
    %v894 = vunpack.c.l.b16 %v94
    %v895 = vunpack.c.h.b16 %v94
    %v896 = vunpack.c.l.b16 %v95
    %v897 = vunpack.c.h.b16 %v95
    %v898 = vunpack.c.l.b16 %v96
    %v899 = vunpack.c.h.b16 %v96
    %v900 = vunpack.c.l.b16 %v97
    %v901 = vunpack.c.h.b16 %v97
    %v902 = vunpack.c.l.b16 %v98
    %v903 = vunpack.c.h.b16 %v98
    %v904 = vunpack.c.l.b16 %v99
    %v905 = vunpack.c.h.b16 %v99
    %v906 = vunpack.c.l.b16 %v100
    %v907 = vunpack.c.h.b16 %v100
    %v908 = vunpack.c.l.b16 %v101
    %v909 = vunpack.c.h.b16 %v101
    %v910 = vunpack.c.l.b16 %v102
    %v911 = vunpack.c.h.b16 %v102
    %v912 = vunpack.c.l.b16 %v103
    %v913 = vunpack.c.h.b16 %v103
    %v914 = vunpack.c.l.b16 %v104
    %v915 = vunpack.c.h.b16 %v104
    %v916 = vunpack.c.l.b16 %v105
    %v917 = vunpack.c.h.b16 %v105
    %v918 = vunpack.c.l.b16 %v106
    %v919 = vunpack.c.h.b16 %v106
    %v920 = vunpack.c.l.b16 %v107
    %v921 = vunpack.c.h.b16 %v107
    %v922 = vunpack.c.l.b16 %v108
    %v923 = vunpack.c.h.b16 %v108
    %v924 = vunpack.c.l.b16 %v109
    %v925 = vunpack.c.h.b16 %v109
    %v926 = vunpack.c.l.b16 %v110
    %v927 = vunpack.c.h.b16 %v110
    %v928 = vunpack.c.l.b16 %v111
    %v929 = vunpack.c.h.b16 %v111
    %v930 = vunpack.c.l.b16 %v112
    %v931 = vunpack.c.h.b16 %v112
    %v932 = vunpack.c.l.b16 %v113
    %v933 = vunpack.c.h.b16 %v113
    %v934 = vunpack.c.l.b16 %v114
    %v935 = vunpack.c.h.b16 %v114
    %v936 = vunpack.c.l.b16 %v115
    %v937 = vunpack.c.h.b16 %v115
    %v938 = vunpack.c.l.b16 %v116
    %v939 = vunpack.c.h.b16 %v116
    %v940 = vunpack.c.l.b16 %v117
    %v941 = vunpack.c.h.b16 %v117
    %v942 = vunpack.c.l.b16 %v118
    %v943 = vunpack.c.h.b16 %v118
    %v944 = vunpack.c.l.b16 %v119
    %v945 = vunpack.c.h.b16 %v119
    %v946 = vunpack.c.l.b16 %v120
    %v947 = vunpack.c.h.b16 %v120
    %v948 = vunpack.c.l.b16 %v121
    %v949 = vunpack.c.h.b16 %v121
    %v950 = vunpack.c.l.b16 %v122
    %v951 = vunpack.c.h.b16 %v122
    %v952 = vunpack.c.l.b16 %v123
    %v953 = vunpack.c.h.b16 %v123
    %v954 = vunpack.c.l.b16 %v124
    %v955 = vunpack.c.h.b16 %v124
    %v956 = vunpack.c.l.b16 %v125
    %v957 = vunpack.c.h.b16 %v125
    %v958 = vunpack.c.l.b16 %v126
    %v959 = vunpack.c.h.b16 %v126
    %v960 = vunpack.c.l.b16 %v127
    %v961 = vunpack.c.h.b16 %v127
    %v962 = vunpack.c.l.b16 %v128
    %v963 = vunpack.c.h.b16 %v128
    %v964 = vunpack.c.l.b16 %v129
    %v965 = vunpack.c.h.b16 %v129
    %v966 = vunpack.c.l.b16 %v130
    %v967 = vunpack.c.h.b16 %v130
    %v968 = vunpack.c.l.b16 %v131
    %v969 = vunpack.c.h.b16 %v131
    %v970 = vunpack.c.l.b16 %v132
    %v971 = vunpack.c.h.b16 %v132
    %v972 = vunpack.c.l.b16 %v133
    %v973 = vunpack.c.h.b16 %v133
    %v974 = vunpack.c.l.b16 %v134
    %v975 = vunpack.c.h.b16 %v134
    %v976 = vunpack.c.l.b16 %v135
    %v977 = vunpack.c.h.b16 %v135
    %v978 = vunpack.c.l.b16 %v136
    %v979 = vunpack.c.h.b16 %v136
    %v980 = vunpack.c.l.b16 %v137
    %v981 = vunpack.c.h.b16 %v137
    %v982 = vunpack.c.l.b16 %v138
    %v983 = vunpack.c.h.b16 %v138
    %v984 = vunpack.c.l.b16 %v139
    %v985 = vunpack.c.h.b16 %v139
    %v986 = vunpack.c.l.b16 %v140
    %v987 = vunpack.c.h.b16 %v140
    %v988 = vunpack.c.l.b16 %v141
    %v989 = vunpack.c.h.b16 %v141
    %v990 = vunpack.c.l.b16 %v142
    %v991 = vunpack.c.h.b16 %v142
    %v992 = vunpack.c.l.b16 %v143
    %v993 = vunpack.c.h.b16 %v143
    %v994 = vunpack.c.l.b16 %v144
    %v995 = vunpack.c.h.b16 %v144
    %v996 = vunpack.c.l.b16 %v145
    %v997 = vunpack.c.h.b16 %v145
    %v998 = vunpack.c.l.b16 %v146
    %v999 = vunpack.c.h.b16 %v146
    %v1000 = vunpack.c.l.b16 %v147
    %v1001 = vunpack.c.h.b16 %v147
    %v1002 = vunpack.c.l.b16 %v148
    %v1003 = vunpack.c.h.b16 %v148
    %v1004 = vunpack.c.l.b16 %v149
    %v1005 = vunpack.c.h.b16 %v149
    %v1006 = vunpack.c.l.b16 %v150
    %v1007 = vunpack.c.h.b16 %v150
    %v1008 = vunpack.c.l.b16 %v151
    %v1009 = vunpack.c.h.b16 %v151
    %v1010 = vunpack.c.l.b16 %v152
    %v1011 = vunpack.c.h.b16 %v152
    %v1012 = vunpack.c.l.b16 %v153
    %v1013 = vunpack.c.h.b16 %v153
    %v1014 = vunpack.c.l.b16 %v154
    %v1015 = vunpack.c.h.b16 %v154
    %v1016 = vunpack.c.l.b16 %v155
    %v1017 = vunpack.c.h.b16 %v155
    %v1018 = vunpack.c.l.b16 %v156
    %v1019 = vunpack.c.h.b16 %v156
    %v1020 = vunpack.c.l.b16 %v157
    %v1021 = vunpack.c.h.b16 %v157
    %v1022 = vunpack.c.l.b16 %v158
    %v1023 = vunpack.c.h.b16 %v158
    %v1024 = vunpack.c.l.b16 %v159
    %v1025 = vunpack.c.h.b16 %v159
    %v1026 = vunpack.c.l.b16 %v160
    %v1027 = vunpack.c.h.b16 %v160
    %v1028 = vunpack.c.l.b16 %v161
    %v1029 = vunpack.c.h.b16 %v161
    %v1030 = vunpack.c.l.b16 %v162
    %v1031 = vunpack.c.h.b16 %v162
    %v1032 = vunpack.c.l.b16 %v163
    %v1033 = vunpack.c.h.b16 %v163
    %v1034 = vunpack.c.l.b16 %v164
    %v1035 = vunpack.c.h.b16 %v164
    %v1036 = vunpack.c.l.b16 %v165
    %v1037 = vunpack.c.h.b16 %v165
    %v1038 = vunpack.c.l.b16 %v166
    %v1039 = vunpack.c.h.b16 %v166
    %v1040 = vunpack.c.l.b16 %v167
    %v1041 = vunpack.c.h.b16 %v167
    %v1042 = vunpack.c.l.b16 %v168
    %v1043 = vunpack.c.h.b16 %v168
    %v1044 = vunpack.c.l.b16 %v169
    %v1045 = vunpack.c.h.b16 %v169
    %v1046 = vunpack.c.l.b16 %v170
    %v1047 = vunpack.c.h.b16 %v170
    %v1048 = vunpack.c.l.b16 %v171
    %v1049 = vunpack.c.h.b16 %v171
    %v1050 = vunpack.c.l.b16 %v172
    %v1051 = vunpack.c.h.b16 %v172
    %v1052 = vunpack.c.l.b16 %v173
    %v1053 = vunpack.c.h.b16 %v173
    %v1054 = vunpack.c.l.b16 %v174
    %v1055 = vunpack.c.h.b16 %v174
    %v1056 = vunpack.c.l.b16 %v175
    %v1057 = vunpack.c.h.b16 %v175
    %v1058 = vunpack.c.l.b16 %v176
    %v1059 = vunpack.c.h.b16 %v176
    %v1060 = vunpack.c.l.b16 %v177
    %v1061 = vunpack.c.h.b16 %v177
    %v1062 = vunpack.c.l.b16 %v178
    %v1063 = vunpack.c.h.b16 %v178
    %v1064 = vunpack.c.l.b16 %v179
    %v1065 = vunpack.c.h.b16 %v179
    %v1066 = vunpack.c.l.b16 %v180
    %v1067 = vunpack.c.h.b16 %v180
    %v1068 = vunpack.c.l.b16 %v181
    %v1069 = vunpack.c.h.b16 %v181
    %v1070 = vunpack.c.l.b16 %v182
    %v1071 = vunpack.c.h.b16 %v182
    %v1072 = vunpack.c.l.b16 %v183
    %v1073 = vunpack.c.h.b16 %v183
    %v1074 = vpack.c.b16 %v792, %v786
    %v1075 = vpack.c.b16 %v793, %v787
    %v1076 = vpack.c.b16 %v794, %v788
    %v1077 = vpack.c.b16 %v795, %v789
    %v1078 = vpack.c.b16 %v796, %v790
    %v1079 = vpack.c.b16 %v797, %v791
    %v1080 = vpack.c.b16 %v804, %v798
    %v1081 = vpack.c.b16 %v805, %v799
    %v1082 = vpack.c.b16 %v806, %v800
    %v1083 = vpack.c.b16 %v807, %v801
    %v1084 = vpack.c.b16 %v808, %v802
    %v1085 = vpack.c.b16 %v809, %v803
    %v1086 = vpack.c.b16 %v816, %v810
    %v1087 = vpack.c.b16 %v817, %v811
    %v1088 = vpack.c.b16 %v818, %v812
    %v1089 = vpack.c.b16 %v819, %v813
    %v1090 = vpack.c.b16 %v820, %v814
    %v1091 = vpack.c.b16 %v821, %v815
    %v1092 = vpack.c.b16 %v828, %v822
    %v1093 = vpack.c.b16 %v829, %v823
    %v1094 = vpack.c.b16 %v830, %v824
    %v1095 = vpack.c.b16 %v831, %v825
    %v1096 = vpack.c.b16 %v832, %v826
    %v1097 = vpack.c.b16 %v833, %v827
    %v1098 = vpack.c.b16 %v840, %v834
    %v1099 = vpack.c.b16 %v841, %v835
    %v1100 = vpack.c.b16 %v842, %v836
    %v1101 = vpack.c.b16 %v843, %v837
    %v1102 = vpack.c.b16 %v844, %v838
    %v1103 = vpack.c.b16 %v845, %v839
    %v1104 = vpack.c.b16 %v852, %v846
    %v1105 = vpack.c.b16 %v853, %v847
    %v1106 = vpack.c.b16 %v854, %v848
    %v1107 = vpack.c.b16 %v855, %v849
    %v1108 = vpack.c.b16 %v856, %v850
    %v1109 = vpack.c.b16 %v857, %v851
    %v1110 = vpack.c.b16 %v864, %v858
    %v1111 = vpack.c.b16 %v865, %v859
    %v1112 = vpack.c.b16 %v866, %v860
    %v1113 = vpack.c.b16 %v867, %v861
    %v1114 = vpack.c.b16 %v868, %v862
    %v1115 = vpack.c.b16 %v869, %v863
    %v1116 = vpack.c.b16 %v876, %v870
    %v1117 = vpack.c.b16 %v877, %v871
    %v1118 = vpack.c.b16 %v878, %v872
    %v1119 = vpack.c.b16 %v879, %v873
    %v1120 = vpack.c.b16 %v880, %v874
    %v1121 = vpack.c.b16 %v881, %v875
    %v1122 = vpack.c.b16 %v888, %v882
    %v1123 = vpack.c.b16 %v889, %v883
    %v1124 = vpack.c.b16 %v890, %v884
    %v1125 = vpack.c.b16 %v891, %v885
    %v1126 = vpack.c.b16 %v892, %v886
    %v1127 = vpack.c.b16 %v893, %v887
    %v1128 = vpack.c.b16 %v900, %v894
    %v1129 = vpack.c.b16 %v901, %v895
    %v1130 = vpack.c.b16 %v902, %v896
    %v1131 = vpack.c.b16 %v903, %v897
    %v1132 = vpack.c.b16 %v904, %v898
    %v1133 = vpack.c.b16 %v905, %v899
    %v1134 = vpack.c.b16 %v912, %v906
    %v1135 = vpack.c.b16 %v913, %v907
    %v1136 = vpack.c.b16 %v914, %v908
    %v1137 = vpack.c.b16 %v915, %v909
    %v1138 = vpack.c.b16 %v916, %v910
    %v1139 = vpack.c.b16 %v917, %v911
    %v1140 = vpack.c.b16 %v924, %v918
    %v1141 = vpack.c.b16 %v925, %v919
    %v1142 = vpack.c.b16 %v926, %v920
    %v1143 = vpack.c.b16 %v927, %v921
    %v1144 = vpack.c.b16 %v928, %v922
    %v1145 = vpack.c.b16 %v929, %v923
    %v1146 = vpack.c.b16 %v936, %v930
    %v1147 = vpack.c.b16 %v937, %v931
    %v1148 = vpack.c.b16 %v938, %v932
    %v1149 = vpack.c.b16 %v939, %v933
    %v1150 = vpack.c.b16 %v940, %v934
    %v1151 = vpack.c.b16 %v941, %v935
    %v1152 = vpack.c.b16 %v948, %v942
    %v1153 = vpack.c.b16 %v949, %v943
    %v1154 = vpack.c.b16 %v950, %v944
    %v1155 = vpack.c.b16 %v951, %v945
    %v1156 = vpack.c.b16 %v952, %v946
    %v1157 = vpack.c.b16 %v953, %v947
    %v1158 = vpack.c.b16 %v960, %v954
    %v1159 = vpack.c.b16 %v961, %v955
    %v1160 = vpack.c.b16 %v962, %v956
    %v1161 = vpack.c.b16 %v963, %v957
    %v1162 = vpack.c.b16 %v964, %v958
    %v1163 = vpack.c.b16 %v965, %v959
    %v1164 = vpack.c.b16 %v972, %v966
    %v1165 = vpack.c.b16 %v973, %v967
    %v1166 = vpack.c.b16 %v974, %v968
    %v1167 = vpack.c.b16 %v975, %v969
    %v1168 = vpack.c.b16 %v976, %v970
    %v1169 = vpack.c.b16 %v977, %v971
    %v1170 = vpack.c.b16 %v984, %v978
    %v1171 = vpack.c.b16 %v985, %v979
    %v1172 = vpack.c.b16 %v986, %v980
    %v1173 = vpack.c.b16 %v987, %v981
    %v1174 = vpack.c.b16 %v988, %v982
    %v1175 = vpack.c.b16 %v989, %v983
    %v1176 = vpack.c.b16 %v996, %v990
    %v1177 = vpack.c.b16 %v997, %v991
    %v1178 = vpack.c.b16 %v998, %v992
    %v1179 = vpack.c.b16 %v999, %v993
    %v1180 = vpack.c.b16 %v1000, %v994
    %v1181 = vpack.c.b16 %v1001, %v995
    %v1182 = vpack.c.b16 %v1008, %v1002
    %v1183 = vpack.c.b16 %v1009, %v1003
    %v1184 = vpack.c.b16 %v1010, %v1004
    %v1185 = vpack.c.b16 %v1011, %v1005
    %v1186 = vpack.c.b16 %v1012, %v1006
    %v1187 = vpack.c.b16 %v1013, %v1007
    %v1188 = vpack.c.b16 %v1020, %v1014
    %v1189 = vpack.c.b16 %v1021, %v1015
    %v1190 = vpack.c.b16 %v1022, %v1016
    %v1191 = vpack.c.b16 %v1023, %v1017
    %v1192 = vpack.c.b16 %v1024, %v1018
    %v1193 = vpack.c.b16 %v1025, %v1019
    %v1194 = vpack.c.b16 %v1032, %v1026
    %v1195 = vpack.c.b16 %v1033, %v1027
    %v1196 = vpack.c.b16 %v1034, %v1028
    %v1197 = vpack.c.b16 %v1035, %v1029
    %v1198 = vpack.c.b16 %v1036, %v1030
    %v1199 = vpack.c.b16 %v1037, %v1031
    %v1200 = vpack.c.b16 %v1044, %v1038
    %v1201 = vpack.c.b16 %v1045, %v1039
    %v1202 = vpack.c.b16 %v1046, %v1040
    %v1203 = vpack.c.b16 %v1047, %v1041
    %v1204 = vpack.c.b16 %v1048, %v1042
    %v1205 = vpack.c.b16 %v1049, %v1043
    %v1206 = vpack.c.b16 %v1056, %v1050
    %v1207 = vpack.c.b16 %v1057, %v1051
    %v1208 = vpack.c.b16 %v1058, %v1052
    %v1209 = vpack.c.b16 %v1059, %v1053
    %v1210 = vpack.c.b16 %v1060, %v1054
    %v1211 = vpack.c.b16 %v1061, %v1055
    %v1212 = vpack.c.b16 %v1068, %v1062
    %v1213 = vpack.c.b16 %v1069, %v1063
    %v1214 = vpack.c.b16 %v1070, %v1064
    %v1215 = vpack.c.b16 %v1071, %v1065
    %v1216 = vpack.c.b16 %v1072, %v1066
    %v1217 = vpack.c.b16 %v1073, %v1067
    %1362 = vmatprep.subr.bf16.mxu0 %v1075
    %1363 = vmatpush1.bf16.msra.mxu0 %v1074
    %1364 = vmatprep.subr.bf16.mxu0 %v1081
    %1365 = vmatpush1.bf16.msra.mxu0 %v1080
    %1366 = vmatprep.subr.bf16.mxu0 %v1087
    %1367 = vmatpush1.bf16.msra.mxu0 %v1086
    %1368 = vmatprep.subr.bf16.mxu0 %v1093
    %1369 = vmatpush1.bf16.msra.mxu0 %v1092
    %1370 = vmatprep.subr.bf16.mxu0 %v1099
    %1371 = vmatpush1.bf16.msra.mxu0 %v1098
    %1372 = vmatprep.subr.bf16.mxu0 %v1105
    %1373 = vmatpush1.bf16.msra.mxu0 %v1104
    %1374 = vmatprep.subr.bf16.mxu0 %v1111
    %1375 = vmatpush1.bf16.msra.mxu0 %v1110
    %1376 = vmatprep.subr.bf16.mxu0 %v1117
    %1377 = vmatpush1.bf16.msra.mxu0 %v1116
    %1378 = vmatprep.subr.bf16.mxu0 %v1123
    %1379 = vmatpush1.bf16.msra.mxu0 %v1122
    %1380 = vmatprep.subr.bf16.mxu0 %v1129
    %1381 = vmatpush1.bf16.msra.mxu0 %v1128
    %1382 = vmatprep.subr.bf16.mxu0 %v1135
    %1383 = vmatpush1.bf16.msra.mxu0 %v1134
    %1384 = vmatprep.subr.bf16.mxu0 %v1141
    %1385 = vmatpush1.bf16.msra.mxu0 %v1140
    %1386 = vmatprep.subr.bf16.mxu0 %v1147
    %1387 = vmatpush1.bf16.msra.mxu0 %v1146
    %1388 = vmatprep.subr.bf16.mxu0 %v1153
    %1389 = vmatpush1.bf16.msra.mxu0 %v1152
    %1390 = vmatprep.subr.bf16.mxu0 %v1159
    %1391 = vmatpush1.bf16.msra.mxu0 %v1158
    %1392 = vmatprep.subr.bf16.mxu0 %v1165
    %1393 = vmatpush1.bf16.msra.mxu0 %v1164
    %1394 = vmatprep.mubr.bf16.mxu0 %v631
    %1395 = vmatmul.mubr.bf16.gmra.mrb[0].mxu0 %v630
    %v1396 = vpop.f32.mrb[0].mxu0
    %v1397 = vadd.f32 %v583, %v1396
    %v1398 = vpop.f32.mrb[0].mxu0
    %v1399 = vadd.f32 %v587, %v1398
    %v1400 = vpop.f32.mrb[0].mxu0
    %v1401 = vadd.f32 %v583, %v1400
    %v1402 = vpop.f32.mrb[0].mxu0
    %v1403 = vadd.f32 %v587, %v1402
    %1404 = vmatprep.mubr.bf16.mxu0 %v634
    %1405 = vmatmul.mubr.bf16.gmra.mrb[0].mxu0 %v633
    %v1406 = vpop.f32.mrb[0].mxu0
    %v1407 = vadd.f32 %v583, %v1406
    %v1408 = vpop.f32.mrb[0].mxu0
    %v1409 = vadd.f32 %v587, %v1408
    %v1410 = vpop.f32.mrb[0].mxu0
    %v1411 = vadd.f32 %v583, %v1410
    %v1412 = vpop.f32.mrb[0].mxu0
    %v1413 = vadd.f32 %v587, %v1412
    %1414 = vdwg.mxu0
    %1415 = vmatprep.subr.bf16.mxu0 %v1171
    %1416 = vmatpush1.bf16.msra.mxu0 %v1170
    %1417 = vmatprep.subr.bf16.mxu0 %v1177
    %1418 = vmatpush1.bf16.msra.mxu0 %v1176
    %1419 = vmatprep.subr.bf16.mxu0 %v1183
    %1420 = vmatpush1.bf16.msra.mxu0 %v1182
    %1421 = vmatprep.subr.bf16.mxu0 %v1189
    %1422 = vmatpush1.bf16.msra.mxu0 %v1188
    %1423 = vmatprep.subr.bf16.mxu0 %v1195
    %1424 = vmatpush1.bf16.msra.mxu0 %v1194
    %1425 = vmatprep.subr.bf16.mxu0 %v1201
    %1426 = vmatpush1.bf16.msra.mxu0 %v1200
    %1427 = vmatprep.subr.bf16.mxu0 %v1207
    %1428 = vmatpush1.bf16.msra.mxu0 %v1206
    %1429 = vmatprep.subr.bf16.mxu0 %v1213
    %1430 = vmatpush1.bf16.msra.mxu0 %v1212
    %1431 = vmatprep.subr.bf16.mxu0 0
    %1432 = vmatpush1.bf16.msra.mxu0 0
    %1433 = vmatprep.subr.bf16.mxu0 0
    %1434 = vmatpush1.bf16.msra.mxu0 0
    %1435 = vmatprep.subr.bf16.mxu0 0
    %1436 = vmatpush1.bf16.msra.mxu0 0
    %1437 = vmatprep.subr.bf16.mxu0 0
    %1438 = vmatpush1.bf16.msra.mxu0 0
    %1439 = vmatprep.subr.bf16.mxu0 0
    %1440 = vmatpush1.bf16.msra.mxu0 0
    %1441 = vmatprep.subr.bf16.mxu0 0
    %1442 = vmatpush1.bf16.msra.mxu0 0
    %1443 = vmatprep.subr.bf16.mxu0 0
    %1444 = vmatpush1.bf16.msra.mxu0 0
    %1445 = vmatprep.subr.bf16.mxu0 0
    %1446 = vmatpush1.bf16.msra.mxu0 0
    %1447 = vmatprep.mubr.bf16.mxu0 0
    %1448 = vmatmul.mubr.bf16.gmra.mrb[0].mxu0 %v632
    %v1449 = vpop.f32.mrb[0].mxu0
    %v1450 = vadd.f32 %v1397, %v1449
    %v1451 = vpop.f32.mrb[0].mxu0
    %v1452 = vadd.f32 %v1399, %v1451
    %v1453 = vpop.f32.mrb[0].mxu0
    %v1454 = vadd.f32 %v1401, %v1453
    %v1455 = vpop.f32.mrb[0].mxu0
    %v1456 = vadd.f32 %v1403, %v1455
    %1457 = vmatprep.mubr.bf16.mxu0 0
    %1458 = vmatmul.mubr.bf16.gmra.mrb[0].mxu0 %v635
    %v1459 = vpop.f32.mrb[0].mxu0
    %v1460 = vadd.f32 %v1407, %v1459
    %v1461 = vpop.f32.mrb[0].mxu0
    %v1462 = vadd.f32 %v1409, %v1461
    %v1463 = vpop.f32.mrb[0].mxu0
    %v1464 = vadd.f32 %v1411, %v1463
    %v1465 = vpop.f32.mrb[0].mxu0
    %v1466 = vadd.f32 %v1413, %v1465
    %1467 = vdwg.mxu0
    %1468 = vmatprep.subr.bf16.mxu0 %v1077
    %1469 = vmatpush1.bf16.msra.mxu0 %v1076
    %1470 = vmatprep.subr.bf16.mxu0 %v1083
    %1471 = vmatpush1.bf16.msra.mxu0 %v1082
    %1472 = vmatprep.subr.bf16.mxu0 %v1089
    %1473 = vmatpush1.bf16.msra.mxu0 %v1088
    %1474 = vmatprep.subr.bf16.mxu0 %v1095
    %1475 = vmatpush1.bf16.msra.mxu0 %v1094
    %1476 = vmatprep.subr.bf16.mxu0 %v1101
    %1477 = vmatpush1.bf16.msra.mxu0 %v1100
    %1478 = vmatprep.subr.bf16.mxu0 %v1107
    %1479 = vmatpush1.bf16.msra.mxu0 %v1106
    %1480 = vmatprep.subr.bf16.mxu0 %v1113
    %1481 = vmatpush1.bf16.msra.mxu0 %v1112
    %1482 = vmatprep.subr.bf16.mxu0 %v1119
    %1483 = vmatpush1.bf16.msra.mxu0 %v1118
    %1484 = vmatprep.subr.bf16.mxu0 %v1125
    %1485 = vmatpush1.bf16.msra.mxu0 %v1124
    %1486 = vmatprep.subr.bf16.mxu0 %v1131
    %1487 = vmatpush1.bf16.msra.mxu0 %v1130
    %1488 = vmatprep.subr.bf16.mxu0 %v1137
    %1489 = vmatpush1.bf16.msra.mxu0 %v1136
    %1490 = vmatprep.subr.bf16.mxu0 %v1143
    %1491 = vmatpush1.bf16.msra.mxu0 %v1142
    %1492 = vmatprep.subr.bf16.mxu0 %v1149
    %1493 = vmatpush1.bf16.msra.mxu0 %v1148
    %1494 = vmatprep.subr.bf16.mxu0 %v1155
    %1495 = vmatpush1.bf16.msra.mxu0 %v1154
    %1496 = vmatprep.subr.bf16.mxu0 %v1161
    %1497 = vmatpush1.bf16.msra.mxu0 %v1160
    %1498 = vmatprep.subr.bf16.mxu0 %v1167
    %1499 = vmatpush1.bf16.msra.mxu0 %v1166
    %1500 = vmatprep.mubr.bf16.mxu0 %v631
    %1501 = vmatmul.mubr.bf16.gmra.mrb[0].mxu0 %v630
    %v1502 = vpop.f32.mrb[0].mxu0
    %v1503 = vadd.f32 %v591, %v1502
    %v1504 = vpop.f32.mrb[0].mxu0
    %v1505 = vadd.f32 %v595, %v1504
    %v1506 = vpop.f32.mrb[0].mxu0
    %v1507 = vadd.f32 %v591, %v1506
    %v1508 = vpop.f32.mrb[0].mxu0
    %v1509 = vadd.f32 %v595, %v1508
    %1510 = vmatprep.mubr.bf16.mxu0 %v634
    %1511 = vmatmul.mubr.bf16.gmra.mrb[0].mxu0 %v633
    %v1512 = vpop.f32.mrb[0].mxu0
    %v1513 = vadd.f32 %v591, %v1512
    %v1514 = vpop.f32.mrb[0].mxu0
    %v1515 = vadd.f32 %v595, %v1514
    %v1516 = vpop.f32.mrb[0].mxu0
    %v1517 = vadd.f32 %v591, %v1516
    %v1518 = vpop.f32.mrb[0].mxu0
    %v1519 = vadd.f32 %v595, %v1518
    %1520 = vdwg.mxu0
    %1521 = vmatprep.subr.bf16.mxu0 %v1173
    %1522 = vmatpush1.bf16.msra.mxu0 %v1172
    %1523 = vmatprep.subr.bf16.mxu0 %v1179
    %1524 = vmatpush1.bf16.msra.mxu0 %v1178
    %1525 = vmatprep.subr.bf16.mxu0 %v1185
    %1526 = vmatpush1.bf16.msra.mxu0 %v1184
    %1527 = vmatprep.subr.bf16.mxu0 %v1191
    %1528 = vmatpush1.bf16.msra.mxu0 %v1190
    %1529 = vmatprep.subr.bf16.mxu0 %v1197
    %1530 = vmatpush1.bf16.msra.mxu0 %v1196
    %1531 = vmatprep.subr.bf16.mxu0 %v1203
    %1532 = vmatpush1.bf16.msra.mxu0 %v1202
    %1533 = vmatprep.subr.bf16.mxu0 %v1209
    %1534 = vmatpush1.bf16.msra.mxu0 %v1208
    %1535 = vmatprep.subr.bf16.mxu0 %v1215
    %1536 = vmatpush1.bf16.msra.mxu0 %v1214
    %1537 = vmatprep.subr.bf16.mxu0 0
    %1538 = vmatpush1.bf16.msra.mxu0 0
    %1539 = vmatprep.subr.bf16.mxu0 0
    %1540 = vmatpush1.bf16.msra.mxu0 0
    %1541 = vmatprep.subr.bf16.mxu0 0
    %1542 = vmatpush1.bf16.msra.mxu0 0
    %1543 = vmatprep.subr.bf16.mxu0 0
    %1544 = vmatpush1.bf16.msra.mxu0 0
    %1545 = vmatprep.subr.bf16.mxu0 0
    %1546 = vmatpush1.bf16.msra.mxu0 0
    %1547 = vmatprep.subr.bf16.mxu0 0
    %1548 = vmatpush1.bf16.msra.mxu0 0
    %1549 = vmatprep.subr.bf16.mxu0 0
    %1550 = vmatpush1.bf16.msra.mxu0 0
    %1551 = vmatprep.subr.bf16.mxu0 0
    %1552 = vmatpush1.bf16.msra.mxu0 0
    %1553 = vmatprep.mubr.bf16.mxu0 0
    %1554 = vmatmul.mubr.bf16.gmra.mrb[0].mxu0 %v632
    %v1555 = vpop.f32.mrb[0].mxu0
    %v1556 = vadd.f32 %v1503, %v1555
    %v1557 = vpop.f32.mrb[0].mxu0
    %v1558 = vadd.f32 %v1505, %v1557
    %v1559 = vpop.f32.mrb[0].mxu0
    %v1560 = vadd.f32 %v1507, %v1559
    %v1561 = vpop.f32.mrb[0].mxu0
    %v1562 = vadd.f32 %v1509, %v1561
    %1563 = vmatprep.mubr.bf16.mxu0 0
    %1564 = vmatmul.mubr.bf16.gmra.mrb[0].mxu0 %v635
    %v1565 = vpop.f32.mrb[0].mxu0
    %v1566 = vadd.f32 %v1513, %v1565
    %v1567 = vpop.f32.mrb[0].mxu0
    %v1568 = vadd.f32 %v1515, %v1567
    %v1569 = vpop.f32.mrb[0].mxu0
    %v1570 = vadd.f32 %v1517, %v1569
    %v1571 = vpop.f32.mrb[0].mxu0
    %v1572 = vadd.f32 %v1519, %v1571
    %1573 = vdwg.mxu0
    %1574 = vmatprep.subr.bf16.mxu0 %v1079
    %1575 = vmatpush1.bf16.msra.mxu0 %v1078
    %1576 = vmatprep.subr.bf16.mxu0 %v1085
    %1577 = vmatpush1.bf16.msra.mxu0 %v1084
    %1578 = vmatprep.subr.bf16.mxu0 %v1091
    %1579 = vmatpush1.bf16.msra.mxu0 %v1090
    %1580 = vmatprep.subr.bf16.mxu0 %v1097
    %1581 = vmatpush1.bf16.msra.mxu0 %v1096
    %1582 = vmatprep.subr.bf16.mxu0 %v1103
    %1583 = vmatpush1.bf16.msra.mxu0 %v1102
    %1584 = vmatprep.subr.bf16.mxu0 %v1109
    %1585 = vmatpush1.bf16.msra.mxu0 %v1108
    %1586 = vmatprep.subr.bf16.mxu0 %v1115
    %1587 = vmatpush1.bf16.msra.mxu0 %v1114
    %1588 = vmatprep.subr.bf16.mxu0 %v1121
    %1589 = vmatpush1.bf16.msra.mxu0 %v1120
    %1590 = vmatprep.subr.bf16.mxu0 %v1127
    %1591 = vmatpush1.bf16.msra.mxu0 %v1126
    %1592 = vmatprep.subr.bf16.mxu0 %v1133
    %1593 = vmatpush1.bf16.msra.mxu0 %v1132
    %1594 = vmatprep.subr.bf16.mxu0 %v1139
    %1595 = vmatpush1.bf16.msra.mxu0 %v1138
    %1596 = vmatprep.subr.bf16.mxu0 %v1145
    %1597 = vmatpush1.bf16.msra.mxu0 %v1144
    %1598 = vmatprep.subr.bf16.mxu0 %v1151
    %1599 = vmatpush1.bf16.msra.mxu0 %v1150
    %1600 = vmatprep.subr.bf16.mxu0 %v1157
    %1601 = vmatpush1.bf16.msra.mxu0 %v1156
    %1602 = vmatprep.subr.bf16.mxu0 %v1163
    %1603 = vmatpush1.bf16.msra.mxu0 %v1162
    %1604 = vmatprep.subr.bf16.mxu0 %v1169
    %1605 = vmatpush1.bf16.msra.mxu0 %v1168
    %1606 = vmatprep.mubr.bf16.mxu0 %v631
    %1607 = vmatmul.mubr.bf16.gmra.mrb[0].mxu0 %v630
    %v1608 = vpop.f32.mrb[0].mxu0
    %v1609 = vadd.f32 %v599, %v1608
    %v1610 = vpop.f32.mrb[0].mxu0
    %v1611 = vadd.f32 %v603, %v1610
    %v1612 = vpop.f32.mrb[0].mxu0
    %v1613 = vadd.f32 %v599, %v1612
    %v1614 = vpop.f32.mrb[0].mxu0
    %v1615 = vadd.f32 %v603, %v1614
    %1616 = vmatprep.mubr.bf16.mxu0 %v634
    %1617 = vmatmul.mubr.bf16.gmra.mrb[0].mxu0 %v633
    %v1618 = vpop.f32.mrb[0].mxu0
    %v1619 = vadd.f32 %v599, %v1618
    %v1620 = vpop.f32.mrb[0].mxu0
    %v1621 = vadd.f32 %v603, %v1620
    %v1622 = vpop.f32.mrb[0].mxu0
    %v1623 = vadd.f32 %v599, %v1622
    %v1624 = vpop.f32.mrb[0].mxu0
    %v1625 = vadd.f32 %v603, %v1624
    %1626 = vdwg.mxu0
    %1627 = vmatprep.subr.bf16.mxu0 %v1175
    %1628 = vmatpush1.bf16.msra.mxu0 %v1174
    %1629 = vmatprep.subr.bf16.mxu0 %v1181
    %1630 = vmatpush1.bf16.msra.mxu0 %v1180
    %1631 = vmatprep.subr.bf16.mxu0 %v1187
    %1632 = vmatpush1.bf16.msra.mxu0 %v1186
    %1633 = vmatprep.subr.bf16.mxu0 %v1193
    %1634 = vmatpush1.bf16.msra.mxu0 %v1192
    %1635 = vmatprep.subr.bf16.mxu0 %v1199
    %1636 = vmatpush1.bf16.msra.mxu0 %v1198
    %1637 = vmatprep.subr.bf16.mxu0 %v1205
    %1638 = vmatpush1.bf16.msra.mxu0 %v1204
    %1639 = vmatprep.subr.bf16.mxu0 %v1211
    %1640 = vmatpush1.bf16.msra.mxu0 %v1210
    %1641 = vmatprep.subr.bf16.mxu0 %v1217
    %1642 = vmatpush1.bf16.msra.mxu0 %v1216
    %1643 = vmatprep.subr.bf16.mxu0 0
    %1644 = vmatpush1.bf16.msra.mxu0 0
    %1645 = vmatprep.subr.bf16.mxu0 0
    %1646 = vmatpush1.bf16.msra.mxu0 0
    %1647 = vmatprep.subr.bf16.mxu0 0
    %1648 = vmatpush1.bf16.msra.mxu0 0
    %1649 = vmatprep.subr.bf16.mxu0 0
    %1650 = vmatpush1.bf16.msra.mxu0 0
    %1651 = vmatprep.subr.bf16.mxu0 0
    %1652 = vmatpush1.bf16.msra.mxu0 0
    %1653 = vmatprep.subr.bf16.mxu0 0
    %1654 = vmatpush1.bf16.msra.mxu0 0
    %1655 = vmatprep.subr.bf16.mxu0 0
    %1656 = vmatpush1.bf16.msra.mxu0 0
    %1657 = vmatprep.subr.bf16.mxu0 0
    %1658 = vmatpush1.bf16.msra.mxu0 0
    %1659 = vmatprep.mubr.bf16.mxu0 0
    %1660 = vmatmul.mubr.bf16.gmra.mrb[0].mxu0 %v632
    %v1661 = vpop.f32.mrb[0].mxu0
    %v1662 = vadd.f32 %v1609, %v1661
    %v1663 = vpop.f32.mrb[0].mxu0
    %v1664 = vadd.f32 %v1611, %v1663
    %v1665 = vpop.f32.mrb[0].mxu0
    %v1666 = vadd.f32 %v1613, %v1665
    %v1667 = vpop.f32.mrb[0].mxu0
    %v1668 = vadd.f32 %v1615, %v1667
    %1669 = vmatprep.mubr.bf16.mxu0 0
    %1670 = vmatmul.mubr.bf16.gmra.mrb[0].mxu0 %v635
    %v1671 = vpop.f32.mrb[0].mxu0
    %v1672 = vadd.f32 %v1619, %v1671
    %v1673 = vpop.f32.mrb[0].mxu0
    %v1674 = vadd.f32 %v1621, %v1673
    %v1675 = vpop.f32.mrb[0].mxu0
    %v1676 = vadd.f32 %v1623, %v1675
    %v1677 = vpop.f32.mrb[0].mxu0
    %v1678 = vadd.f32 %v1625, %v1677
    %1679 = vdwg.mxu0
    %v1776 = vunpack.c.l.b16 %v184
    %v1777 = vunpack.c.h.b16 %v184
    %v1778 = vunpack.c.l.b16 %v185
    %v1779 = vunpack.c.h.b16 %v185
    %v1780 = vunpack.c.l.b16 %v186
    %v1781 = vunpack.c.h.b16 %v186
    %v1782 = vunpack.c.l.b16 %v187
    %v1783 = vunpack.c.h.b16 %v187
    %v1784 = vunpack.c.l.b16 %v188
    %v1785 = vunpack.c.h.b16 %v188
    %v1786 = vunpack.c.l.b16 %v189
    %v1787 = vunpack.c.h.b16 %v189
    %v1788 = vunpack.c.l.b16 %v190
    %v1789 = vunpack.c.h.b16 %v190
    %v1790 = vunpack.c.l.b16 %v191
    %v1791 = vunpack.c.h.b16 %v191
    %v1792 = vunpack.c.l.b16 %v192
    %v1793 = vunpack.c.h.b16 %v192
    %v1794 = vunpack.c.l.b16 %v193
    %v1795 = vunpack.c.h.b16 %v193
    %v1796 = vunpack.c.l.b16 %v194
    %v1797 = vunpack.c.h.b16 %v194
    %v1798 = vunpack.c.l.b16 %v195
    %v1799 = vunpack.c.h.b16 %v195
    %v1800 = vunpack.c.l.b16 %v196
    %v1801 = vunpack.c.h.b16 %v196
    %v1802 = vunpack.c.l.b16 %v197
    %v1803 = vunpack.c.h.b16 %v197
    %v1804 = vunpack.c.l.b16 %v198
    %v1805 = vunpack.c.h.b16 %v198
    %v1806 = vunpack.c.l.b16 %v199
    %v1807 = vunpack.c.h.b16 %v199
    %v1808 = vunpack.c.l.b16 %v200
    %v1809 = vunpack.c.h.b16 %v200
    %v1810 = vunpack.c.l.b16 %v201
    %v1811 = vunpack.c.h.b16 %v201
    %v1812 = vunpack.c.l.b16 %v202
    %v1813 = vunpack.c.h.b16 %v202
    %v1814 = vunpack.c.l.b16 %v203
    %v1815 = vunpack.c.h.b16 %v203
    %v1816 = vunpack.c.l.b16 %v204
    %v1817 = vunpack.c.h.b16 %v204
    %v1818 = vunpack.c.l.b16 %v205
    %v1819 = vunpack.c.h.b16 %v205
    %v1820 = vunpack.c.l.b16 %v206
    %v1821 = vunpack.c.h.b16 %v206
    %v1822 = vunpack.c.l.b16 %v207
    %v1823 = vunpack.c.h.b16 %v207
    %v1824 = vunpack.c.l.b16 %v208
    %v1825 = vunpack.c.h.b16 %v208
    %v1826 = vunpack.c.l.b16 %v209
    %v1827 = vunpack.c.h.b16 %v209
    %v1828 = vunpack.c.l.b16 %v210
    %v1829 = vunpack.c.h.b16 %v210
    %v1830 = vunpack.c.l.b16 %v211
    %v1831 = vunpack.c.h.b16 %v211
    %v1832 = vunpack.c.l.b16 %v212
    %v1833 = vunpack.c.h.b16 %v212
    %v1834 = vunpack.c.l.b16 %v213
    %v1835 = vunpack.c.h.b16 %v213
    %v1836 = vunpack.c.l.b16 %v214
    %v1837 = vunpack.c.h.b16 %v214
    %v1838 = vunpack.c.l.b16 %v215
    %v1839 = vunpack.c.h.b16 %v215
    %v1840 = vunpack.c.l.b16 %v216
    %v1841 = vunpack.c.h.b16 %v216
    %v1842 = vunpack.c.l.b16 %v217
    %v1843 = vunpack.c.h.b16 %v217
    %v1844 = vunpack.c.l.b16 %v218
    %v1845 = vunpack.c.h.b16 %v218
    %v1846 = vunpack.c.l.b16 %v219
    %v1847 = vunpack.c.h.b16 %v219
    %v1848 = vunpack.c.l.b16 %v220
    %v1849 = vunpack.c.h.b16 %v220
    %v1850 = vunpack.c.l.b16 %v221
    %v1851 = vunpack.c.h.b16 %v221
    %v1852 = vunpack.c.l.b16 %v222
    %v1853 = vunpack.c.h.b16 %v222
    %v1854 = vunpack.c.l.b16 %v223
    %v1855 = vunpack.c.h.b16 %v223
    %v1856 = vunpack.c.l.b16 %v224
    %v1857 = vunpack.c.h.b16 %v224
    %v1858 = vunpack.c.l.b16 %v225
    %v1859 = vunpack.c.h.b16 %v225
    %v1860 = vunpack.c.l.b16 %v226
    %v1861 = vunpack.c.h.b16 %v226
    %v1862 = vunpack.c.l.b16 %v227
    %v1863 = vunpack.c.h.b16 %v227
    %v1864 = vunpack.c.l.b16 %v228
    %v1865 = vunpack.c.h.b16 %v228
    %v1866 = vunpack.c.l.b16 %v229
    %v1867 = vunpack.c.h.b16 %v229
    %v1868 = vunpack.c.l.b16 %v230
    %v1869 = vunpack.c.h.b16 %v230
    %v1870 = vunpack.c.l.b16 %v231
    %v1871 = vunpack.c.h.b16 %v231
    %v1872 = vunpack.c.l.b16 %v232
    %v1873 = vunpack.c.h.b16 %v232
    %v1874 = vunpack.c.l.b16 %v233
    %v1875 = vunpack.c.h.b16 %v233
    %v1876 = vunpack.c.l.b16 %v234
    %v1877 = vunpack.c.h.b16 %v234
    %v1878 = vunpack.c.l.b16 %v235
    %v1879 = vunpack.c.h.b16 %v235
    %v1880 = vunpack.c.l.b16 %v236
    %v1881 = vunpack.c.h.b16 %v236
    %v1882 = vunpack.c.l.b16 %v237
    %v1883 = vunpack.c.h.b16 %v237
    %v1884 = vunpack.c.l.b16 %v238
    %v1885 = vunpack.c.h.b16 %v238
    %v1886 = vunpack.c.l.b16 %v239
    %v1887 = vunpack.c.h.b16 %v239
    %v1888 = vunpack.c.l.b16 %v240
    %v1889 = vunpack.c.h.b16 %v240
    %v1890 = vunpack.c.l.b16 %v241
    %v1891 = vunpack.c.h.b16 %v241
    %v1892 = vunpack.c.l.b16 %v242
    %v1893 = vunpack.c.h.b16 %v242
    %v1894 = vunpack.c.l.b16 %v243
    %v1895 = vunpack.c.h.b16 %v243
    %v1896 = vunpack.c.l.b16 %v244
    %v1897 = vunpack.c.h.b16 %v244
    %v1898 = vunpack.c.l.b16 %v245
    %v1899 = vunpack.c.h.b16 %v245
    %v1900 = vunpack.c.l.b16 %v246
    %v1901 = vunpack.c.h.b16 %v246
    %v1902 = vunpack.c.l.b16 %v247
    %v1903 = vunpack.c.h.b16 %v247
    %v1904 = vunpack.c.l.b16 %v248
    %v1905 = vunpack.c.h.b16 %v248
    %v1906 = vunpack.c.l.b16 %v249
    %v1907 = vunpack.c.h.b16 %v249
    %v1908 = vunpack.c.l.b16 %v250
    %v1909 = vunpack.c.h.b16 %v250
    %v1910 = vunpack.c.l.b16 %v251
    %v1911 = vunpack.c.h.b16 %v251
    %v1912 = vunpack.c.l.b16 %v252
    %v1913 = vunpack.c.h.b16 %v252
    %v1914 = vunpack.c.l.b16 %v253
    %v1915 = vunpack.c.h.b16 %v253
    %v1916 = vunpack.c.l.b16 %v254
    %v1917 = vunpack.c.h.b16 %v254
    %v1918 = vunpack.c.l.b16 %v255
    %v1919 = vunpack.c.h.b16 %v255
    %v1920 = vunpack.c.l.b16 %v256
    %v1921 = vunpack.c.h.b16 %v256
    %v1922 = vunpack.c.l.b16 %v257
    %v1923 = vunpack.c.h.b16 %v257
    %v1924 = vunpack.c.l.b16 %v258
    %v1925 = vunpack.c.h.b16 %v258
    %v1926 = vunpack.c.l.b16 %v259
    %v1927 = vunpack.c.h.b16 %v259
    %v1928 = vunpack.c.l.b16 %v260
    %v1929 = vunpack.c.h.b16 %v260
    %v1930 = vunpack.c.l.b16 %v261
    %v1931 = vunpack.c.h.b16 %v261
    %v1932 = vunpack.c.l.b16 %v262
    %v1933 = vunpack.c.h.b16 %v262
    %v1934 = vunpack.c.l.b16 %v263
    %v1935 = vunpack.c.h.b16 %v263
    %v1936 = vunpack.c.l.b16 %v264
    %v1937 = vunpack.c.h.b16 %v264
    %v1938 = vunpack.c.l.b16 %v265
    %v1939 = vunpack.c.h.b16 %v265
    %v1940 = vunpack.c.l.b16 %v266
    %v1941 = vunpack.c.h.b16 %v266
    %v1942 = vunpack.c.l.b16 %v267
    %v1943 = vunpack.c.h.b16 %v267
    %v1944 = vunpack.c.l.b16 %v268
    %v1945 = vunpack.c.h.b16 %v268
    %v1946 = vunpack.c.l.b16 %v269
    %v1947 = vunpack.c.h.b16 %v269
    %v1948 = vunpack.c.l.b16 %v270
    %v1949 = vunpack.c.h.b16 %v270
    %v1950 = vunpack.c.l.b16 %v271
    %v1951 = vunpack.c.h.b16 %v271
    %v1952 = vunpack.c.l.b16 %v272
    %v1953 = vunpack.c.h.b16 %v272
    %v1954 = vunpack.c.l.b16 %v273
    %v1955 = vunpack.c.h.b16 %v273
    %v1956 = vunpack.c.l.b16 %v274
    %v1957 = vunpack.c.h.b16 %v274
    %v1958 = vunpack.c.l.b16 %v275
    %v1959 = vunpack.c.h.b16 %v275
    %v1960 = vunpack.c.l.b16 %v276
    %v1961 = vunpack.c.h.b16 %v276
    %v1962 = vunpack.c.l.b16 %v277
    %v1963 = vunpack.c.h.b16 %v277
    %v1964 = vunpack.c.l.b16 %v278
    %v1965 = vunpack.c.h.b16 %v278
    %v1966 = vunpack.c.l.b16 %v279
    %v1967 = vunpack.c.h.b16 %v279
    %v1968 = vpack.c.b16 %v1782, %v1776
    %v1969 = vpack.c.b16 %v1783, %v1777
    %v1970 = vpack.c.b16 %v1784, %v1778
    %v1971 = vpack.c.b16 %v1785, %v1779
    %v1972 = vpack.c.b16 %v1786, %v1780
    %v1973 = vpack.c.b16 %v1787, %v1781
    %v1974 = vpack.c.b16 %v1794, %v1788
    %v1975 = vpack.c.b16 %v1795, %v1789
    %v1976 = vpack.c.b16 %v1796, %v1790
    %v1977 = vpack.c.b16 %v1797, %v1791
    %v1978 = vpack.c.b16 %v1798, %v1792
    %v1979 = vpack.c.b16 %v1799, %v1793
    %v1980 = vpack.c.b16 %v1806, %v1800
    %v1981 = vpack.c.b16 %v1807, %v1801
    %v1982 = vpack.c.b16 %v1808, %v1802
    %v1983 = vpack.c.b16 %v1809, %v1803
    %v1984 = vpack.c.b16 %v1810, %v1804
    %v1985 = vpack.c.b16 %v1811, %v1805
    %v1986 = vpack.c.b16 %v1818, %v1812
    %v1987 = vpack.c.b16 %v1819, %v1813
    %v1988 = vpack.c.b16 %v1820, %v1814
    %v1989 = vpack.c.b16 %v1821, %v1815
    %v1990 = vpack.c.b16 %v1822, %v1816
    %v1991 = vpack.c.b16 %v1823, %v1817
    %v1992 = vpack.c.b16 %v1830, %v1824
    %v1993 = vpack.c.b16 %v1831, %v1825
    %v1994 = vpack.c.b16 %v1832, %v1826
    %v1995 = vpack.c.b16 %v1833, %v1827
    %v1996 = vpack.c.b16 %v1834, %v1828
    %v1997 = vpack.c.b16 %v1835, %v1829
    %v1998 = vpack.c.b16 %v1842, %v1836
    %v1999 = vpack.c.b16 %v1843, %v1837
    %v2000 = vpack.c.b16 %v1844, %v1838
    %v2001 = vpack.c.b16 %v1845, %v1839
    %v2002 = vpack.c.b16 %v1846, %v1840
    %v2003 = vpack.c.b16 %v1847, %v1841
    %v2004 = vpack.c.b16 %v1854, %v1848
    %v2005 = vpack.c.b16 %v1855, %v1849
    %v2006 = vpack.c.b16 %v1856, %v1850
    %v2007 = vpack.c.b16 %v1857, %v1851
    %v2008 = vpack.c.b16 %v1858, %v1852
    %v2009 = vpack.c.b16 %v1859, %v1853
    %v2010 = vpack.c.b16 %v1866, %v1860
    %v2011 = vpack.c.b16 %v1867, %v1861
    %v2012 = vpack.c.b16 %v1868, %v1862
    %v2013 = vpack.c.b16 %v1869, %v1863
    %v2014 = vpack.c.b16 %v1870, %v1864
    %v2015 = vpack.c.b16 %v1871, %v1865
    %v2016 = vpack.c.b16 %v1878, %v1872
    %v2017 = vpack.c.b16 %v1879, %v1873
    %v2018 = vpack.c.b16 %v1880, %v1874
    %v2019 = vpack.c.b16 %v1881, %v1875
    %v2020 = vpack.c.b16 %v1882, %v1876
    %v2021 = vpack.c.b16 %v1883, %v1877
    %v2022 = vpack.c.b16 %v1890, %v1884
    %v2023 = vpack.c.b16 %v1891, %v1885
    %v2024 = vpack.c.b16 %v1892, %v1886
    %v2025 = vpack.c.b16 %v1893, %v1887
    %v2026 = vpack.c.b16 %v1894, %v1888
    %v2027 = vpack.c.b16 %v1895, %v1889
    %v2028 = vpack.c.b16 %v1902, %v1896
    %v2029 = vpack.c.b16 %v1903, %v1897
    %v2030 = vpack.c.b16 %v1904, %v1898
    %v2031 = vpack.c.b16 %v1905, %v1899
    %v2032 = vpack.c.b16 %v1906, %v1900
    %v2033 = vpack.c.b16 %v1907, %v1901
    %v2034 = vpack.c.b16 %v1914, %v1908
    %v2035 = vpack.c.b16 %v1915, %v1909
    %v2036 = vpack.c.b16 %v1916, %v1910
    %v2037 = vpack.c.b16 %v1917, %v1911
    %v2038 = vpack.c.b16 %v1918, %v1912
    %v2039 = vpack.c.b16 %v1919, %v1913
    %v2040 = vpack.c.b16 %v1926, %v1920
    %v2041 = vpack.c.b16 %v1927, %v1921
    %v2042 = vpack.c.b16 %v1928, %v1922
    %v2043 = vpack.c.b16 %v1929, %v1923
    %v2044 = vpack.c.b16 %v1930, %v1924
    %v2045 = vpack.c.b16 %v1931, %v1925
    %v2046 = vpack.c.b16 %v1938, %v1932
    %v2047 = vpack.c.b16 %v1939, %v1933
    %v2048 = vpack.c.b16 %v1940, %v1934
    %v2049 = vpack.c.b16 %v1941, %v1935
    %v2050 = vpack.c.b16 %v1942, %v1936
    %v2051 = vpack.c.b16 %v1943, %v1937
    %v2052 = vpack.c.b16 %v1950, %v1944
    %v2053 = vpack.c.b16 %v1951, %v1945
    %v2054 = vpack.c.b16 %v1952, %v1946
    %v2055 = vpack.c.b16 %v1953, %v1947
    %v2056 = vpack.c.b16 %v1954, %v1948
    %v2057 = vpack.c.b16 %v1955, %v1949
    %v2058 = vpack.c.b16 %v1962, %v1956
    %v2059 = vpack.c.b16 %v1963, %v1957
    %v2060 = vpack.c.b16 %v1964, %v1958
    %v2061 = vpack.c.b16 %v1965, %v1959
    %v2062 = vpack.c.b16 %v1966, %v1960
    %v2063 = vpack.c.b16 %v1967, %v1961
    %2160 = vmatprep.subr.bf16.mxu0 %v1969
    %2161 = vmatpush1.bf16.msra.mxu0 %v1968
    %2162 = vmatprep.subr.bf16.mxu0 %v1975
    %2163 = vmatpush1.bf16.msra.mxu0 %v1974
    %2164 = vmatprep.subr.bf16.mxu0 %v1981
    %2165 = vmatpush1.bf16.msra.mxu0 %v1980
    %2166 = vmatprep.subr.bf16.mxu0 %v1987
    %2167 = vmatpush1.bf16.msra.mxu0 %v1986
    %2168 = vmatprep.subr.bf16.mxu0 %v1993
    %2169 = vmatpush1.bf16.msra.mxu0 %v1992
    %2170 = vmatprep.subr.bf16.mxu0 %v1999
    %2171 = vmatpush1.bf16.msra.mxu0 %v1998
    %2172 = vmatprep.subr.bf16.mxu0 %v2005
    %2173 = vmatpush1.bf16.msra.mxu0 %v2004
    %2174 = vmatprep.subr.bf16.mxu0 %v2011
    %2175 = vmatpush1.bf16.msra.mxu0 %v2010
    %2176 = vmatprep.subr.bf16.mxu0 %v2017
    %2177 = vmatpush1.bf16.msra.mxu0 %v2016
    %2178 = vmatprep.subr.bf16.mxu0 %v2023
    %2179 = vmatpush1.bf16.msra.mxu0 %v2022
    %2180 = vmatprep.subr.bf16.mxu0 %v2029
    %2181 = vmatpush1.bf16.msra.mxu0 %v2028
    %2182 = vmatprep.subr.bf16.mxu0 %v2035
    %2183 = vmatpush1.bf16.msra.mxu0 %v2034
    %2184 = vmatprep.subr.bf16.mxu0 %v2041
    %2185 = vmatpush1.bf16.msra.mxu0 %v2040
    %2186 = vmatprep.subr.bf16.mxu0 %v2047
    %2187 = vmatpush1.bf16.msra.mxu0 %v2046
    %2188 = vmatprep.subr.bf16.mxu0 %v2053
    %2189 = vmatpush1.bf16.msra.mxu0 %v2052
    %2190 = vmatprep.subr.bf16.mxu0 %v2059
    %2191 = vmatpush1.bf16.msra.mxu0 %v2058
    %2192 = vmatprep.mubr.bf16.mxu0 0
    %2193 = vmatmul.mubr.bf16.gmra.mrb[0].mxu0 0
    %v2194 = vpop.f32.mrb[0].mxu0
    %v2195 = vadd.f32 %v512, %v2194
    %v2196 = vpop.f32.mrb[0].mxu0
    %v2197 = vadd.f32 %v516, %v2196
    %v2198 = vpop.f32.mrb[0].mxu0
    %v2199 = vpop.f32.mrb[0].mxu0
    %2200 = vdwg.mxu0
    %2201 = vmatprep.subr.bf16.mxu0 %v1971
    %2202 = vmatpush1.bf16.msra.mxu0 %v1970
    %2203 = vmatprep.subr.bf16.mxu0 %v1977
    %2204 = vmatpush1.bf16.msra.mxu0 %v1976
    %2205 = vmatprep.subr.bf16.mxu0 %v1983
    %2206 = vmatpush1.bf16.msra.mxu0 %v1982
    %2207 = vmatprep.subr.bf16.mxu0 %v1989
    %2208 = vmatpush1.bf16.msra.mxu0 %v1988
    %2209 = vmatprep.subr.bf16.mxu0 %v1995
    %2210 = vmatpush1.bf16.msra.mxu0 %v1994
    %2211 = vmatprep.subr.bf16.mxu0 %v2001
    %2212 = vmatpush1.bf16.msra.mxu0 %v2000
    %2213 = vmatprep.subr.bf16.mxu0 %v2007
    %2214 = vmatpush1.bf16.msra.mxu0 %v2006
    %2215 = vmatprep.subr.bf16.mxu0 %v2013
    %2216 = vmatpush1.bf16.msra.mxu0 %v2012
    %2217 = vmatprep.subr.bf16.mxu0 %v2019
    %2218 = vmatpush1.bf16.msra.mxu0 %v2018
    %2219 = vmatprep.subr.bf16.mxu0 %v2025
    %2220 = vmatpush1.bf16.msra.mxu0 %v2024
    %2221 = vmatprep.subr.bf16.mxu0 %v2031
    %2222 = vmatpush1.bf16.msra.mxu0 %v2030
    %2223 = vmatprep.subr.bf16.mxu0 %v2037
    %2224 = vmatpush1.bf16.msra.mxu0 %v2036
    %2225 = vmatprep.subr.bf16.mxu0 %v2043
    %2226 = vmatpush1.bf16.msra.mxu0 %v2042
    %2227 = vmatprep.subr.bf16.mxu0 %v2049
    %2228 = vmatpush1.bf16.msra.mxu0 %v2048
    %2229 = vmatprep.subr.bf16.mxu0 %v2055
    %2230 = vmatpush1.bf16.msra.mxu0 %v2054
    %2231 = vmatprep.subr.bf16.mxu0 %v2061
    %2232 = vmatpush1.bf16.msra.mxu0 %v2060
    %2233 = vmatprep.mubr.bf16.mxu0 0
    %2234 = vmatmul.mubr.bf16.gmra.mrb[0].mxu0 0
    %v2235 = vpop.f32.mrb[0].mxu0
    %v2236 = vadd.f32 %v520, %v2235
    %v2237 = vpop.f32.mrb[0].mxu0
    %v2238 = vadd.f32 %v524, %v2237
    %v2239 = vpop.f32.mrb[0].mxu0
    %v2240 = vpop.f32.mrb[0].mxu0
    %2241 = vdwg.mxu0
    %2242 = vmatprep.subr.bf16.mxu0 %v1973
    %2243 = vmatpush1.bf16.msra.mxu0 %v1972
    %2244 = vmatprep.subr.bf16.mxu0 %v1979
    %2245 = vmatpush1.bf16.msra.mxu0 %v1978
    %2246 = vmatprep.subr.bf16.mxu0 %v1985
    %2247 = vmatpush1.bf16.msra.mxu0 %v1984
    %2248 = vmatprep.subr.bf16.mxu0 %v1991
    %2249 = vmatpush1.bf16.msra.mxu0 %v1990
    %2250 = vmatprep.subr.bf16.mxu0 %v1997
    %2251 = vmatpush1.bf16.msra.mxu0 %v1996
    %2252 = vmatprep.subr.bf16.mxu0 %v2003
    %2253 = vmatpush1.bf16.msra.mxu0 %v2002
    %2254 = vmatprep.subr.bf16.mxu0 %v2009
    %2255 = vmatpush1.bf16.msra.mxu0 %v2008
    %2256 = vmatprep.subr.bf16.mxu0 %v2015
    %2257 = vmatpush1.bf16.msra.mxu0 %v2014
    %2258 = vmatprep.subr.bf16.mxu0 %v2021
    %2259 = vmatpush1.bf16.msra.mxu0 %v2020
    %2260 = vmatprep.subr.bf16.mxu0 %v2027
    %2261 = vmatpush1.bf16.msra.mxu0 %v2026
    %2262 = vmatprep.subr.bf16.mxu0 %v2033
    %2263 = vmatpush1.bf16.msra.mxu0 %v2032
    %2264 = vmatprep.subr.bf16.mxu0 %v2039
    %2265 = vmatpush1.bf16.msra.mxu0 %v2038
    %2266 = vmatprep.subr.bf16.mxu0 %v2045
    %2267 = vmatpush1.bf16.msra.mxu0 %v2044
    %2268 = vmatprep.subr.bf16.mxu0 %v2051
    %2269 = vmatpush1.bf16.msra.mxu0 %v2050
    %2270 = vmatprep.subr.bf16.mxu0 %v2057
    %2271 = vmatpush1.bf16.msra.mxu0 %v2056
    %2272 = vmatprep.subr.bf16.mxu0 %v2063
    %2273 = vmatpush1.bf16.msra.mxu0 %v2062
    %2274 = vmatprep.mubr.bf16.mxu0 0
    %2275 = vmatmul.mubr.bf16.gmra.mrb[0].mxu0 0
    %v2276 = vpop.f32.mrb[0].mxu0
    %v2277 = vadd.f32 %v528, %v2276
    %v2278 = vpop.f32.mrb[0].mxu0
    %v2279 = vadd.f32 %v532, %v2278
    %v2280 = vpop.f32.mrb[0].mxu0
    %v2281 = vpop.f32.mrb[0].mxu0
    %2282 = vdwg.mxu0
    %v2285 = vrot.slane %v2195, 1
    %v2286 = vrot.slane %v2197, 1
    %v2287 = vrot.slane %v2195, 2
    %v2288 = vrot.slane %v2197, 2
    %v2289 = vrot.slane %v2195, 3
    %v2290 = vrot.slane %v2197, 3
    %v2299 = vadd.f32 %v1450, %v2195
    %v2300 = vadd.f32 %v1452, %v2197
    %v2301 = vadd.f32 %v1454, %v2285
    %v2302 = vadd.f32 %v1456, %v2286
    %v2303 = vadd.f32 %v1460, %v2287
    %v2304 = vadd.f32 %v1462, %v2288
    %v2305 = vadd.f32 %v1464, %v2289
    %v2306 = vadd.f32 %v1466, %v2290
    %v2307 = vxor.u32 %v2299, 2147483648
    %v2308 = vxor.u32 %v2300, 2147483648
    %v2309 = vxor.u32 %v2301, 2147483648
    %v2310 = vxor.u32 %v2302, 2147483648
    %v2311 = vxor.u32 %v2303, 2147483648
    %v2312 = vxor.u32 %v2304, 2147483648
    %v2313 = vxor.u32 %v2305, 2147483648
    %v2314 = vxor.u32 %v2306, 2147483648
    %v2315 = vmul.f32 %v2307, 1.442695
    %v2316 = vpow.pop %v2315
    %v2317 = vmul.f32 %v2308, 1.442695
    %v2318 = vpow.pop %v2317
    %v2319 = vmul.f32 %v2309, 1.442695
    %v2320 = vpow.pop %v2319
    %v2321 = vmul.f32 %v2310, 1.442695
    %v2322 = vpow.pop %v2321
    %v2323 = vmul.f32 %v2311, 1.442695
    %v2324 = vpow.pop %v2323
    %v2325 = vmul.f32 %v2312, 1.442695
    %v2326 = vpow.pop %v2325
    %v2327 = vmul.f32 %v2313, 1.442695
    %v2328 = vpow.pop %v2327
    %v2329 = vmul.f32 %v2314, 1.442695
    %v2330 = vpow.pop %v2329
    %v2331 = vadd.f32 %v2316, 1.0
    %v2332 = vadd.f32 %v2318, 1.0
    %v2333 = vadd.f32 %v2320, 1.0
    %v2334 = vadd.f32 %v2322, 1.0
    %v2335 = vadd.f32 %v2324, 1.0
    %v2336 = vadd.f32 %v2326, 1.0
    %v2337 = vadd.f32 %v2328, 1.0
    %v2338 = vadd.f32 %v2330, 1.0
    %v2339 = vrcp.pop %v2331
    %v2340 = vmul.f32 1.0, %v2339
    %v2341 = vrcp.pop %v2332
    %v2342 = vmul.f32 1.0, %v2341
    %v2343 = vrcp.pop %v2333
    %v2344 = vmul.f32 1.0, %v2343
    %v2345 = vrcp.pop %v2334
    %v2346 = vmul.f32 1.0, %v2345
    %v2347 = vrcp.pop %v2335
    %v2348 = vmul.f32 1.0, %v2347
    %v2349 = vrcp.pop %v2336
    %v2350 = vmul.f32 1.0, %v2349
    %v2351 = vrcp.pop %v2337
    %v2352 = vmul.f32 1.0, %v2351
    %v2353 = vrcp.pop %v2338
    %v2354 = vmul.f32 1.0, %v2353
    %v2357 = vrot.slane %v2236, 1
    %v2358 = vrot.slane %v2238, 1
    %v2359 = vrot.slane %v2236, 2
    %v2360 = vrot.slane %v2238, 2
    %v2361 = vrot.slane %v2236, 3
    %v2362 = vrot.slane %v2238, 3
    %v2371 = vadd.f32 %v1556, %v2236
    %v2372 = vadd.f32 %v1558, %v2238
    %v2373 = vadd.f32 %v1560, %v2357
    %v2374 = vadd.f32 %v1562, %v2358
    %v2375 = vadd.f32 %v1566, %v2359
    %v2376 = vadd.f32 %v1568, %v2360
    %v2377 = vadd.f32 %v1570, %v2361
    %v2378 = vadd.f32 %v1572, %v2362
    %v2379 = vxor.u32 %v2371, 2147483648
    %v2380 = vxor.u32 %v2372, 2147483648
    %v2381 = vxor.u32 %v2373, 2147483648
    %v2382 = vxor.u32 %v2374, 2147483648
    %v2383 = vxor.u32 %v2375, 2147483648
    %v2384 = vxor.u32 %v2376, 2147483648
    %v2385 = vxor.u32 %v2377, 2147483648
    %v2386 = vxor.u32 %v2378, 2147483648
    %v2387 = vmul.f32 %v2379, 1.442695
    %v2388 = vpow.pop %v2387
    %v2389 = vmul.f32 %v2380, 1.442695
    %v2390 = vpow.pop %v2389
    %v2391 = vmul.f32 %v2381, 1.442695
    %v2392 = vpow.pop %v2391
    %v2393 = vmul.f32 %v2382, 1.442695
    %v2394 = vpow.pop %v2393
    %v2395 = vmul.f32 %v2383, 1.442695
    %v2396 = vpow.pop %v2395
    %v2397 = vmul.f32 %v2384, 1.442695
    %v2398 = vpow.pop %v2397
    %v2399 = vmul.f32 %v2385, 1.442695
    %v2400 = vpow.pop %v2399
    %v2401 = vmul.f32 %v2386, 1.442695
    %v2402 = vpow.pop %v2401
    %v2403 = vadd.f32 %v2388, 1.0
    %v2404 = vadd.f32 %v2390, 1.0
    %v2405 = vadd.f32 %v2392, 1.0
    %v2406 = vadd.f32 %v2394, 1.0
    %v2407 = vadd.f32 %v2396, 1.0
    %v2408 = vadd.f32 %v2398, 1.0
    %v2409 = vadd.f32 %v2400, 1.0
    %v2410 = vadd.f32 %v2402, 1.0
    %v2411 = vrcp.pop %v2403
    %v2412 = vmul.f32 1.0, %v2411
    %v2413 = vrcp.pop %v2404
    %v2414 = vmul.f32 1.0, %v2413
    %v2415 = vrcp.pop %v2405
    %v2416 = vmul.f32 1.0, %v2415
    %v2417 = vrcp.pop %v2406
    %v2418 = vmul.f32 1.0, %v2417
    %v2419 = vrcp.pop %v2407
    %v2420 = vmul.f32 1.0, %v2419
    %v2421 = vrcp.pop %v2408
    %v2422 = vmul.f32 1.0, %v2421
    %v2423 = vrcp.pop %v2409
    %v2424 = vmul.f32 1.0, %v2423
    %v2425 = vrcp.pop %v2410
    %v2426 = vmul.f32 1.0, %v2425
    %v2429 = vrot.slane %v2277, 1
    %v2430 = vrot.slane %v2279, 1
    %v2431 = vrot.slane %v2277, 2
    %v2432 = vrot.slane %v2279, 2
    %v2433 = vrot.slane %v2277, 3
    %v2434 = vrot.slane %v2279, 3
    %v2443 = vmul.f32 %v2340, %v2277
    %v2444 = vmul.f32 %v2342, %v2279
    %v2445 = vmul.f32 %v2344, %v2429
    %v2446 = vmul.f32 %v2346, %v2430
    %v2447 = vmul.f32 %v2348, %v2431
    %v2448 = vmul.f32 %v2350, %v2432
    %v2449 = vmul.f32 %v2352, %v2433
    %v2450 = vmul.f32 %v2354, %v2434
    %v2451 = vadd.f32 %v1662, %v2443
    %v2452 = vadd.f32 %v1664, %v2444
    %v2453 = vadd.f32 %v1666, %v2445
    %v2454 = vadd.f32 %v1668, %v2446
    %v2455 = vadd.f32 %v1672, %v2447
    %v2456 = vadd.f32 %v1674, %v2448
    %v2457 = vadd.f32 %v1676, %v2449
    %v2458 = vadd.f32 %v1678, %v2450
    %v2459 = vtanh.pop %v2451
    %v2460 = vtanh.pop %v2452
    %v2461 = vtanh.pop %v2453
    %v2462 = vtanh.pop %v2454
    %v2463 = vtanh.pop %v2455
    %v2464 = vtanh.pop %v2456
    %v2465 = vtanh.pop %v2457
    %v2466 = vtanh.pop %v2458
    %v2467 = vsub.f32 1.0, %v2412
    %v2468 = vsub.f32 1.0, %v2414
    %v2469 = vsub.f32 1.0, %v2416
    %v2470 = vsub.f32 1.0, %v2418
    %v2471 = vsub.f32 1.0, %v2420
    %v2472 = vsub.f32 1.0, %v2422
    %v2473 = vsub.f32 1.0, %v2424
    %v2474 = vsub.f32 1.0, %v2426
    %v2475 = vmul.f32 %v2467, %v2459
    %v2476 = vmul.f32 %v2468, %v2460
    %v2477 = vmul.f32 %v2469, %v2461
    %v2478 = vmul.f32 %v2470, %v2462
    %v2479 = vmul.f32 %v2471, %v2463
    %v2480 = vmul.f32 %v2472, %v2464
    %v2481 = vmul.f32 %v2473, %v2465
    %v2482 = vmul.f32 %v2474, %v2466
    %v2483 = vmul.f32 %v2412, 0.0
    %v2484 = vmul.f32 %v2414, 0.0
    %v2485 = vmul.f32 %v2416, 0.0
    %v2486 = vmul.f32 %v2418, 0.0
    %v2487 = vmul.f32 %v2420, 0.0
    %v2488 = vmul.f32 %v2422, 0.0
    %v2489 = vmul.f32 %v2424, 0.0
    %v2490 = vmul.f32 %v2426, 0.0
    %v2491 = vadd.f32 %v2475, %v2483
    %v2492 = vadd.f32 %v2476, %v2484
    %v2493 = vadd.f32 %v2477, %v2485
    %v2494 = vadd.f32 %v2478, %v2486
    %v2495 = vadd.f32 %v2479, %v2487
    %v2496 = vadd.f32 %v2480, %v2488
    %v2497 = vadd.f32 %v2481, %v2489
    %v2498 = vadd.f32 %v2482, %v2490
    %v2499 = vpack.c.bf16 %v2491, %v2491
    %v2500 = vpack.c.bf16 %v2492, %v2492
    %v2501 = vpack.c.bf16 %v2493, %v2493
    %v2502 = vpack.c.bf16 %v2494, %v2494
    %v2503 = vpack.c.bf16 %v2495, %v2495
    %v2504 = vpack.c.bf16 %v2496, %v2496
    %v2505 = vpack.c.bf16 %v2497, %v2497
    %v2506 = vpack.c.bf16 %v2498, %v2498
    %v2515 = vunpack.c.l.b16 %v2499
    %v2516 = vunpack.c.l.b16 %v2500
    %v2517 = vunpack.c.l.b16 %v2501
    %v2518 = vunpack.c.l.b16 %v2502
    %v2519 = vunpack.c.l.b16 %v2503
    %v2520 = vunpack.c.l.b16 %v2504
    %v2521 = vunpack.c.l.b16 %v2505
    %v2522 = vunpack.c.l.b16 %v2506
    %v2523 = vrot.slane %v2517, 7
    %vm2524 = vcmask 1041409
    %v2525 = vsel %vm2524, %v2523, %v2515
    %v2526 = vrot.slane %v2519, 6
    %vm2527 = vcmask 1042434
    %v2528 = vsel %vm2527, %v2526, %v2525
    %v2529 = vrot.slane %v2521, 5
    %vm2530 = vcmask 1043459
    %v2531 = vsel %vm2530, %v2529, %v2528
    %v2532 = vrot.slane %v2518, 7
    %v2533 = vsel %vm2524, %v2532, %v2516
    %v2534 = vrot.slane %v2520, 6
    %v2535 = vsel %vm2527, %v2534, %v2533
    %v2536 = vrot.slane %v2522, 5
    %v2537 = vsel %vm2530, %v2536, %v2535
    %v2538 = vpack.c.b16 %v2531, %v2531
    %v2539 = vpack.c.b16 %v2537, %v2537
    %2542 = vmatprep.subr.bf16.mxu0 %v1969
    %2543 = vmatpush1.bf16.msra.mxu0 %v1968
    %2544 = vmatprep.subr.bf16.mxu0 %v1975
    %2545 = vmatpush1.bf16.msra.mxu0 %v1974
    %2546 = vmatprep.subr.bf16.mxu0 %v1981
    %2547 = vmatpush1.bf16.msra.mxu0 %v1980
    %2548 = vmatprep.subr.bf16.mxu0 %v1987
    %2549 = vmatpush1.bf16.msra.mxu0 %v1986
    %2550 = vmatprep.subr.bf16.mxu0 %v1993
    %2551 = vmatpush1.bf16.msra.mxu0 %v1992
    %2552 = vmatprep.subr.bf16.mxu0 %v1999
    %2553 = vmatpush1.bf16.msra.mxu0 %v1998
    %2554 = vmatprep.subr.bf16.mxu0 %v2005
    %2555 = vmatpush1.bf16.msra.mxu0 %v2004
    %2556 = vmatprep.subr.bf16.mxu0 %v2011
    %2557 = vmatpush1.bf16.msra.mxu0 %v2010
    %2558 = vmatprep.subr.bf16.mxu0 %v2017
    %2559 = vmatpush1.bf16.msra.mxu0 %v2016
    %2560 = vmatprep.subr.bf16.mxu0 %v2023
    %2561 = vmatpush1.bf16.msra.mxu0 %v2022
    %2562 = vmatprep.subr.bf16.mxu0 %v2029
    %2563 = vmatpush1.bf16.msra.mxu0 %v2028
    %2564 = vmatprep.subr.bf16.mxu0 %v2035
    %2565 = vmatpush1.bf16.msra.mxu0 %v2034
    %2566 = vmatprep.subr.bf16.mxu0 %v2041
    %2567 = vmatpush1.bf16.msra.mxu0 %v2040
    %2568 = vmatprep.subr.bf16.mxu0 %v2047
    %2569 = vmatpush1.bf16.msra.mxu0 %v2046
    %2570 = vmatprep.subr.bf16.mxu0 %v2053
    %2571 = vmatpush1.bf16.msra.mxu0 %v2052
    %2572 = vmatprep.subr.bf16.mxu0 %v2059
    %2573 = vmatpush1.bf16.msra.mxu0 %v2058
    %2574 = vmatprep.mubr.bf16.mxu0 %v2539
    %2575 = vmatmul.mubr.bf16.gmra.mrb[0].mxu0 %v2538
    %v2576 = vpop.f32.mrb[0].mxu0
    %v2577 = vadd.f32 %v512, %v2576
    %v2578 = vpop.f32.mrb[0].mxu0
    %v2579 = vadd.f32 %v516, %v2578
    %v2580 = vpop.f32.mrb[0].mxu0
    %v2581 = vpop.f32.mrb[0].mxu0
    %2582 = vdwg.mxu0
    %2583 = vmatprep.subr.bf16.mxu0 %v1971
    %2584 = vmatpush1.bf16.msra.mxu0 %v1970
    %2585 = vmatprep.subr.bf16.mxu0 %v1977
    %2586 = vmatpush1.bf16.msra.mxu0 %v1976
    %2587 = vmatprep.subr.bf16.mxu0 %v1983
    %2588 = vmatpush1.bf16.msra.mxu0 %v1982
    %2589 = vmatprep.subr.bf16.mxu0 %v1989
    %2590 = vmatpush1.bf16.msra.mxu0 %v1988
    %2591 = vmatprep.subr.bf16.mxu0 %v1995
    %2592 = vmatpush1.bf16.msra.mxu0 %v1994
    %2593 = vmatprep.subr.bf16.mxu0 %v2001
    %2594 = vmatpush1.bf16.msra.mxu0 %v2000
    %2595 = vmatprep.subr.bf16.mxu0 %v2007
    %2596 = vmatpush1.bf16.msra.mxu0 %v2006
    %2597 = vmatprep.subr.bf16.mxu0 %v2013
    %2598 = vmatpush1.bf16.msra.mxu0 %v2012
    %2599 = vmatprep.subr.bf16.mxu0 %v2019
    %2600 = vmatpush1.bf16.msra.mxu0 %v2018
    %2601 = vmatprep.subr.bf16.mxu0 %v2025
    %2602 = vmatpush1.bf16.msra.mxu0 %v2024
    %2603 = vmatprep.subr.bf16.mxu0 %v2031
    %2604 = vmatpush1.bf16.msra.mxu0 %v2030
    %2605 = vmatprep.subr.bf16.mxu0 %v2037
    %2606 = vmatpush1.bf16.msra.mxu0 %v2036
    %2607 = vmatprep.subr.bf16.mxu0 %v2043
    %2608 = vmatpush1.bf16.msra.mxu0 %v2042
    %2609 = vmatprep.subr.bf16.mxu0 %v2049
    %2610 = vmatpush1.bf16.msra.mxu0 %v2048
    %2611 = vmatprep.subr.bf16.mxu0 %v2055
    %2612 = vmatpush1.bf16.msra.mxu0 %v2054
    %2613 = vmatprep.subr.bf16.mxu0 %v2061
    %2614 = vmatpush1.bf16.msra.mxu0 %v2060
    %2615 = vmatprep.mubr.bf16.mxu0 %v2539
    %2616 = vmatmul.mubr.bf16.gmra.mrb[0].mxu0 %v2538
    %v2617 = vpop.f32.mrb[0].mxu0
    %v2618 = vadd.f32 %v520, %v2617
    %v2619 = vpop.f32.mrb[0].mxu0
    %v2620 = vadd.f32 %v524, %v2619
    %v2621 = vpop.f32.mrb[0].mxu0
    %v2622 = vpop.f32.mrb[0].mxu0
    %2623 = vdwg.mxu0
    %2624 = vmatprep.subr.bf16.mxu0 %v1973
    %2625 = vmatpush1.bf16.msra.mxu0 %v1972
    %2626 = vmatprep.subr.bf16.mxu0 %v1979
    %2627 = vmatpush1.bf16.msra.mxu0 %v1978
    %2628 = vmatprep.subr.bf16.mxu0 %v1985
    %2629 = vmatpush1.bf16.msra.mxu0 %v1984
    %2630 = vmatprep.subr.bf16.mxu0 %v1991
    %2631 = vmatpush1.bf16.msra.mxu0 %v1990
    %2632 = vmatprep.subr.bf16.mxu0 %v1997
    %2633 = vmatpush1.bf16.msra.mxu0 %v1996
    %2634 = vmatprep.subr.bf16.mxu0 %v2003
    %2635 = vmatpush1.bf16.msra.mxu0 %v2002
    %2636 = vmatprep.subr.bf16.mxu0 %v2009
    %2637 = vmatpush1.bf16.msra.mxu0 %v2008
    %2638 = vmatprep.subr.bf16.mxu0 %v2015
    %2639 = vmatpush1.bf16.msra.mxu0 %v2014
    %2640 = vmatprep.subr.bf16.mxu0 %v2021
    %2641 = vmatpush1.bf16.msra.mxu0 %v2020
    %2642 = vmatprep.subr.bf16.mxu0 %v2027
    %2643 = vmatpush1.bf16.msra.mxu0 %v2026
    %2644 = vmatprep.subr.bf16.mxu0 %v2033
    %2645 = vmatpush1.bf16.msra.mxu0 %v2032
    %2646 = vmatprep.subr.bf16.mxu0 %v2039
    %2647 = vmatpush1.bf16.msra.mxu0 %v2038
    %2648 = vmatprep.subr.bf16.mxu0 %v2045
    %2649 = vmatpush1.bf16.msra.mxu0 %v2044
    %2650 = vmatprep.subr.bf16.mxu0 %v2051
    %2651 = vmatpush1.bf16.msra.mxu0 %v2050
    %2652 = vmatprep.subr.bf16.mxu0 %v2057
    %2653 = vmatpush1.bf16.msra.mxu0 %v2056
    %2654 = vmatprep.subr.bf16.mxu0 %v2063
    %2655 = vmatpush1.bf16.msra.mxu0 %v2062
    %2656 = vmatprep.mubr.bf16.mxu0 %v2539
    %2657 = vmatmul.mubr.bf16.gmra.mrb[0].mxu0 %v2538
    %v2658 = vpop.f32.mrb[0].mxu0
    %v2659 = vadd.f32 %v528, %v2658
    %v2660 = vpop.f32.mrb[0].mxu0
    %v2661 = vadd.f32 %v532, %v2660
    %v2662 = vpop.f32.mrb[0].mxu0
    %v2663 = vpop.f32.mrb[0].mxu0
    %2664 = vdwg.mxu0
    %v2667 = vrot.slane %v2577, 7
    %v2668 = vrot.slane %v2579, 7
    %v2669 = vrot.slane %v2577, 1
    %v2670 = vrot.slane %v2579, 1
    %v2671 = vrot.slane %v2577, 2
    %v2672 = vrot.slane %v2579, 2
    %v2681 = vadd.f32 %v1450, %v2667
    %v2682 = vadd.f32 %v1452, %v2668
    %v2683 = vadd.f32 %v1454, %v2577
    %v2684 = vadd.f32 %v1456, %v2579
    %v2685 = vadd.f32 %v1460, %v2669
    %v2686 = vadd.f32 %v1462, %v2670
    %v2687 = vadd.f32 %v1464, %v2671
    %v2688 = vadd.f32 %v1466, %v2672
    %v2689 = vxor.u32 %v2681, 2147483648
    %v2690 = vxor.u32 %v2682, 2147483648
    %v2691 = vxor.u32 %v2683, 2147483648
    %v2692 = vxor.u32 %v2684, 2147483648
    %v2693 = vxor.u32 %v2685, 2147483648
    %v2694 = vxor.u32 %v2686, 2147483648
    %v2695 = vxor.u32 %v2687, 2147483648
    %v2696 = vxor.u32 %v2688, 2147483648
    %v2697 = vmul.f32 %v2689, 1.442695
    %v2698 = vpow.pop %v2697
    %v2699 = vmul.f32 %v2690, 1.442695
    %v2700 = vpow.pop %v2699
    %v2701 = vmul.f32 %v2691, 1.442695
    %v2702 = vpow.pop %v2701
    %v2703 = vmul.f32 %v2692, 1.442695
    %v2704 = vpow.pop %v2703
    %v2705 = vmul.f32 %v2693, 1.442695
    %v2706 = vpow.pop %v2705
    %v2707 = vmul.f32 %v2694, 1.442695
    %v2708 = vpow.pop %v2707
    %v2709 = vmul.f32 %v2695, 1.442695
    %v2710 = vpow.pop %v2709
    %v2711 = vmul.f32 %v2696, 1.442695
    %v2712 = vpow.pop %v2711
    %v2713 = vadd.f32 %v2698, 1.0
    %v2714 = vadd.f32 %v2700, 1.0
    %v2715 = vadd.f32 %v2702, 1.0
    %v2716 = vadd.f32 %v2704, 1.0
    %v2717 = vadd.f32 %v2706, 1.0
    %v2718 = vadd.f32 %v2708, 1.0
    %v2719 = vadd.f32 %v2710, 1.0
    %v2720 = vadd.f32 %v2712, 1.0
    %v2721 = vrcp.pop %v2713
    %v2722 = vmul.f32 1.0, %v2721
    %v2723 = vrcp.pop %v2714
    %v2724 = vmul.f32 1.0, %v2723
    %v2725 = vrcp.pop %v2715
    %v2726 = vmul.f32 1.0, %v2725
    %v2727 = vrcp.pop %v2716
    %v2728 = vmul.f32 1.0, %v2727
    %v2729 = vrcp.pop %v2717
    %v2730 = vmul.f32 1.0, %v2729
    %v2731 = vrcp.pop %v2718
    %v2732 = vmul.f32 1.0, %v2731
    %v2733 = vrcp.pop %v2719
    %v2734 = vmul.f32 1.0, %v2733
    %v2735 = vrcp.pop %v2720
    %v2736 = vmul.f32 1.0, %v2735
    %v2739 = vrot.slane %v2618, 7
    %v2740 = vrot.slane %v2620, 7
    %v2741 = vrot.slane %v2618, 1
    %v2742 = vrot.slane %v2620, 1
    %v2743 = vrot.slane %v2618, 2
    %v2744 = vrot.slane %v2620, 2
    %v2753 = vadd.f32 %v1556, %v2739
    %v2754 = vadd.f32 %v1558, %v2740
    %v2755 = vadd.f32 %v1560, %v2618
    %v2756 = vadd.f32 %v1562, %v2620
    %v2757 = vadd.f32 %v1566, %v2741
    %v2758 = vadd.f32 %v1568, %v2742
    %v2759 = vadd.f32 %v1570, %v2743
    %v2760 = vadd.f32 %v1572, %v2744
    %v2761 = vxor.u32 %v2753, 2147483648
    %v2762 = vxor.u32 %v2754, 2147483648
    %v2763 = vxor.u32 %v2755, 2147483648
    %v2764 = vxor.u32 %v2756, 2147483648
    %v2765 = vxor.u32 %v2757, 2147483648
    %v2766 = vxor.u32 %v2758, 2147483648
    %v2767 = vxor.u32 %v2759, 2147483648
    %v2768 = vxor.u32 %v2760, 2147483648
    %v2769 = vmul.f32 %v2761, 1.442695
    %v2770 = vpow.pop %v2769
    %v2771 = vmul.f32 %v2762, 1.442695
    %v2772 = vpow.pop %v2771
    %v2773 = vmul.f32 %v2763, 1.442695
    %v2774 = vpow.pop %v2773
    %v2775 = vmul.f32 %v2764, 1.442695
    %v2776 = vpow.pop %v2775
    %v2777 = vmul.f32 %v2765, 1.442695
    %v2778 = vpow.pop %v2777
    %v2779 = vmul.f32 %v2766, 1.442695
    %v2780 = vpow.pop %v2779
    %v2781 = vmul.f32 %v2767, 1.442695
    %v2782 = vpow.pop %v2781
    %v2783 = vmul.f32 %v2768, 1.442695
    %v2784 = vpow.pop %v2783
    %v2785 = vadd.f32 %v2770, 1.0
    %v2786 = vadd.f32 %v2772, 1.0
    %v2787 = vadd.f32 %v2774, 1.0
    %v2788 = vadd.f32 %v2776, 1.0
    %v2789 = vadd.f32 %v2778, 1.0
    %v2790 = vadd.f32 %v2780, 1.0
    %v2791 = vadd.f32 %v2782, 1.0
    %v2792 = vadd.f32 %v2784, 1.0
    %v2793 = vrcp.pop %v2785
    %v2794 = vmul.f32 1.0, %v2793
    %v2795 = vrcp.pop %v2786
    %v2796 = vmul.f32 1.0, %v2795
    %v2797 = vrcp.pop %v2787
    %v2798 = vmul.f32 1.0, %v2797
    %v2799 = vrcp.pop %v2788
    %v2800 = vmul.f32 1.0, %v2799
    %v2801 = vrcp.pop %v2789
    %v2802 = vmul.f32 1.0, %v2801
    %v2803 = vrcp.pop %v2790
    %v2804 = vmul.f32 1.0, %v2803
    %v2805 = vrcp.pop %v2791
    %v2806 = vmul.f32 1.0, %v2805
    %v2807 = vrcp.pop %v2792
    %v2808 = vmul.f32 1.0, %v2807
    %v2811 = vrot.slane %v2659, 7
    %v2812 = vrot.slane %v2661, 7
    %v2813 = vrot.slane %v2659, 1
    %v2814 = vrot.slane %v2661, 1
    %v2815 = vrot.slane %v2659, 2
    %v2816 = vrot.slane %v2661, 2
    %v2825 = vmul.f32 %v2722, %v2811
    %v2826 = vmul.f32 %v2724, %v2812
    %v2827 = vmul.f32 %v2726, %v2659
    %v2828 = vmul.f32 %v2728, %v2661
    %v2829 = vmul.f32 %v2730, %v2813
    %v2830 = vmul.f32 %v2732, %v2814
    %v2831 = vmul.f32 %v2734, %v2815
    %v2832 = vmul.f32 %v2736, %v2816
    %v2833 = vadd.f32 %v1662, %v2825
    %v2834 = vadd.f32 %v1664, %v2826
    %v2835 = vadd.f32 %v1666, %v2827
    %v2836 = vadd.f32 %v1668, %v2828
    %v2837 = vadd.f32 %v1672, %v2829
    %v2838 = vadd.f32 %v1674, %v2830
    %v2839 = vadd.f32 %v1676, %v2831
    %v2840 = vadd.f32 %v1678, %v2832
    %v2841 = vtanh.pop %v2833
    %v2842 = vtanh.pop %v2834
    %v2843 = vtanh.pop %v2835
    %v2844 = vtanh.pop %v2836
    %v2845 = vtanh.pop %v2837
    %v2846 = vtanh.pop %v2838
    %v2847 = vtanh.pop %v2839
    %v2848 = vtanh.pop %v2840
    %v2849 = vsub.f32 1.0, %v2794
    %v2850 = vsub.f32 1.0, %v2796
    %v2851 = vsub.f32 1.0, %v2798
    %v2852 = vsub.f32 1.0, %v2800
    %v2853 = vsub.f32 1.0, %v2802
    %v2854 = vsub.f32 1.0, %v2804
    %v2855 = vsub.f32 1.0, %v2806
    %v2856 = vsub.f32 1.0, %v2808
    %v2857 = vmul.f32 %v2849, %v2841
    %v2858 = vmul.f32 %v2850, %v2842
    %v2859 = vmul.f32 %v2851, %v2843
    %v2860 = vmul.f32 %v2852, %v2844
    %v2861 = vmul.f32 %v2853, %v2845
    %v2862 = vmul.f32 %v2854, %v2846
    %v2863 = vmul.f32 %v2855, %v2847
    %v2864 = vmul.f32 %v2856, %v2848
    %v2873 = vrot.slane %v2491, 7
    %v2874 = vrot.slane %v2492, 7
    %v2875 = vrot.slane %v2493, 7
    %v2876 = vrot.slane %v2494, 7
    %v2877 = vrot.slane %v2495, 7
    %v2878 = vrot.slane %v2496, 7
    %v2879 = vrot.slane %v2497, 7
    %v2880 = vrot.slane %v2498, 7
    %v2889 = vmul.f32 %v2794, %v2873
    %v2890 = vmul.f32 %v2796, %v2874
    %v2891 = vmul.f32 %v2798, %v2875
    %v2892 = vmul.f32 %v2800, %v2876
    %v2893 = vmul.f32 %v2802, %v2877
    %v2894 = vmul.f32 %v2804, %v2878
    %v2895 = vmul.f32 %v2806, %v2879
    %v2896 = vmul.f32 %v2808, %v2880
    %v2897 = vadd.f32 %v2857, %v2889
    %v2898 = vadd.f32 %v2858, %v2890
    %v2899 = vadd.f32 %v2859, %v2891
    %v2900 = vadd.f32 %v2860, %v2892
    %v2901 = vadd.f32 %v2861, %v2893
    %v2902 = vadd.f32 %v2862, %v2894
    %v2903 = vadd.f32 %v2863, %v2895
    %v2904 = vadd.f32 %v2864, %v2896
    %v2905 = vpack.c.bf16 %v2897, %v2897
    %v2906 = vpack.c.bf16 %v2898, %v2898
    %v2907 = vpack.c.bf16 %v2899, %v2899
    %v2908 = vpack.c.bf16 %v2900, %v2900
    %v2909 = vpack.c.bf16 %v2901, %v2901
    %v2910 = vpack.c.bf16 %v2902, %v2902
    %v2911 = vpack.c.bf16 %v2903, %v2903
    %v2912 = vpack.c.bf16 %v2904, %v2904
    %v2921 = vunpack.c.l.b16 %v2905
    %v2922 = vunpack.c.l.b16 %v2906
    %v2923 = vunpack.c.l.b16 %v2907
    %v2924 = vunpack.c.l.b16 %v2908
    %v2925 = vunpack.c.l.b16 %v2909
    %v2926 = vunpack.c.l.b16 %v2910
    %v2927 = vunpack.c.l.b16 %v2911
    %v2928 = vunpack.c.l.b16 %v2912
    %v2929 = vrot.slane %v2921, 1
    %v2930 = vsel %vm2524, %v2923, %v2929
    %v2931 = vrot.slane %v2925, 7
    %v2932 = vsel %vm2527, %v2931, %v2930
    %v2933 = vrot.slane %v2927, 6
    %v2934 = vsel %vm2530, %v2933, %v2932
    %v2935 = vrot.slane %v2922, 1
    %v2936 = vsel %vm2524, %v2924, %v2935
    %v2937 = vrot.slane %v2926, 7
    %v2938 = vsel %vm2527, %v2937, %v2936
    %v2939 = vrot.slane %v2928, 6
    %v2940 = vsel %vm2530, %v2939, %v2938
    %v2941 = vpack.c.b16 %v2934, %v2934
    %v2942 = vpack.c.b16 %v2940, %v2940
    %2945 = vmatprep.subr.bf16.mxu0 %v1969
    %2946 = vmatpush1.bf16.msra.mxu0 %v1968
    %2947 = vmatprep.subr.bf16.mxu0 %v1975
    %2948 = vmatpush1.bf16.msra.mxu0 %v1974
    %2949 = vmatprep.subr.bf16.mxu0 %v1981
    %2950 = vmatpush1.bf16.msra.mxu0 %v1980
    %2951 = vmatprep.subr.bf16.mxu0 %v1987
    %2952 = vmatpush1.bf16.msra.mxu0 %v1986
    %2953 = vmatprep.subr.bf16.mxu0 %v1993
    %2954 = vmatpush1.bf16.msra.mxu0 %v1992
    %2955 = vmatprep.subr.bf16.mxu0 %v1999
    %2956 = vmatpush1.bf16.msra.mxu0 %v1998
    %2957 = vmatprep.subr.bf16.mxu0 %v2005
    %2958 = vmatpush1.bf16.msra.mxu0 %v2004
    %2959 = vmatprep.subr.bf16.mxu0 %v2011
    %2960 = vmatpush1.bf16.msra.mxu0 %v2010
    %2961 = vmatprep.subr.bf16.mxu0 %v2017
    %2962 = vmatpush1.bf16.msra.mxu0 %v2016
    %2963 = vmatprep.subr.bf16.mxu0 %v2023
    %2964 = vmatpush1.bf16.msra.mxu0 %v2022
    %2965 = vmatprep.subr.bf16.mxu0 %v2029
    %2966 = vmatpush1.bf16.msra.mxu0 %v2028
    %2967 = vmatprep.subr.bf16.mxu0 %v2035
    %2968 = vmatpush1.bf16.msra.mxu0 %v2034
    %2969 = vmatprep.subr.bf16.mxu0 %v2041
    %2970 = vmatpush1.bf16.msra.mxu0 %v2040
    %2971 = vmatprep.subr.bf16.mxu0 %v2047
    %2972 = vmatpush1.bf16.msra.mxu0 %v2046
    %2973 = vmatprep.subr.bf16.mxu0 %v2053
    %2974 = vmatpush1.bf16.msra.mxu0 %v2052
    %2975 = vmatprep.subr.bf16.mxu0 %v2059
    %2976 = vmatpush1.bf16.msra.mxu0 %v2058
    %2977 = vmatprep.mubr.bf16.mxu0 %v2942
    %2978 = vmatmul.mubr.bf16.gmra.mrb[0].mxu0 %v2941
    %v2979 = vpop.f32.mrb[0].mxu0
    %v2980 = vadd.f32 %v512, %v2979
    %v2981 = vpop.f32.mrb[0].mxu0
    %v2982 = vadd.f32 %v516, %v2981
    %v2983 = vpop.f32.mrb[0].mxu0
    %v2984 = vpop.f32.mrb[0].mxu0
    %2985 = vdwg.mxu0
    %2986 = vmatprep.subr.bf16.mxu0 %v1971
    %2987 = vmatpush1.bf16.msra.mxu0 %v1970
    %2988 = vmatprep.subr.bf16.mxu0 %v1977
    %2989 = vmatpush1.bf16.msra.mxu0 %v1976
    %2990 = vmatprep.subr.bf16.mxu0 %v1983
    %2991 = vmatpush1.bf16.msra.mxu0 %v1982
    %2992 = vmatprep.subr.bf16.mxu0 %v1989
    %2993 = vmatpush1.bf16.msra.mxu0 %v1988
    %2994 = vmatprep.subr.bf16.mxu0 %v1995
    %2995 = vmatpush1.bf16.msra.mxu0 %v1994
    %2996 = vmatprep.subr.bf16.mxu0 %v2001
    %2997 = vmatpush1.bf16.msra.mxu0 %v2000
    %2998 = vmatprep.subr.bf16.mxu0 %v2007
    %2999 = vmatpush1.bf16.msra.mxu0 %v2006
    %3000 = vmatprep.subr.bf16.mxu0 %v2013
    %3001 = vmatpush1.bf16.msra.mxu0 %v2012
    %3002 = vmatprep.subr.bf16.mxu0 %v2019
    %3003 = vmatpush1.bf16.msra.mxu0 %v2018
    %3004 = vmatprep.subr.bf16.mxu0 %v2025
    %3005 = vmatpush1.bf16.msra.mxu0 %v2024
    %3006 = vmatprep.subr.bf16.mxu0 %v2031
    %3007 = vmatpush1.bf16.msra.mxu0 %v2030
    %3008 = vmatprep.subr.bf16.mxu0 %v2037
    %3009 = vmatpush1.bf16.msra.mxu0 %v2036
    %3010 = vmatprep.subr.bf16.mxu0 %v2043
    %3011 = vmatpush1.bf16.msra.mxu0 %v2042
    %3012 = vmatprep.subr.bf16.mxu0 %v2049
    %3013 = vmatpush1.bf16.msra.mxu0 %v2048
    %3014 = vmatprep.subr.bf16.mxu0 %v2055
    %3015 = vmatpush1.bf16.msra.mxu0 %v2054
    %3016 = vmatprep.subr.bf16.mxu0 %v2061
    %3017 = vmatpush1.bf16.msra.mxu0 %v2060
    %3018 = vmatprep.mubr.bf16.mxu0 %v2942
    %3019 = vmatmul.mubr.bf16.gmra.mrb[0].mxu0 %v2941
    %v3020 = vpop.f32.mrb[0].mxu0
    %v3021 = vadd.f32 %v520, %v3020
    %v3022 = vpop.f32.mrb[0].mxu0
    %v3023 = vadd.f32 %v524, %v3022
    %v3024 = vpop.f32.mrb[0].mxu0
    %v3025 = vpop.f32.mrb[0].mxu0
    %3026 = vdwg.mxu0
    %3027 = vmatprep.subr.bf16.mxu0 %v1973
    %3028 = vmatpush1.bf16.msra.mxu0 %v1972
    %3029 = vmatprep.subr.bf16.mxu0 %v1979
    %3030 = vmatpush1.bf16.msra.mxu0 %v1978
    %3031 = vmatprep.subr.bf16.mxu0 %v1985
    %3032 = vmatpush1.bf16.msra.mxu0 %v1984
    %3033 = vmatprep.subr.bf16.mxu0 %v1991
    %3034 = vmatpush1.bf16.msra.mxu0 %v1990
    %3035 = vmatprep.subr.bf16.mxu0 %v1997
    %3036 = vmatpush1.bf16.msra.mxu0 %v1996
    %3037 = vmatprep.subr.bf16.mxu0 %v2003
    %3038 = vmatpush1.bf16.msra.mxu0 %v2002
    %3039 = vmatprep.subr.bf16.mxu0 %v2009
    %3040 = vmatpush1.bf16.msra.mxu0 %v2008
    %3041 = vmatprep.subr.bf16.mxu0 %v2015
    %3042 = vmatpush1.bf16.msra.mxu0 %v2014
    %3043 = vmatprep.subr.bf16.mxu0 %v2021
    %3044 = vmatpush1.bf16.msra.mxu0 %v2020
    %3045 = vmatprep.subr.bf16.mxu0 %v2027
    %3046 = vmatpush1.bf16.msra.mxu0 %v2026
    %3047 = vmatprep.subr.bf16.mxu0 %v2033
    %3048 = vmatpush1.bf16.msra.mxu0 %v2032
    %3049 = vmatprep.subr.bf16.mxu0 %v2039
    %3050 = vmatpush1.bf16.msra.mxu0 %v2038
    %3051 = vmatprep.subr.bf16.mxu0 %v2045
    %3052 = vmatpush1.bf16.msra.mxu0 %v2044
    %3053 = vmatprep.subr.bf16.mxu0 %v2051
    %3054 = vmatpush1.bf16.msra.mxu0 %v2050
    %3055 = vmatprep.subr.bf16.mxu0 %v2057
    %3056 = vmatpush1.bf16.msra.mxu0 %v2056
    %3057 = vmatprep.subr.bf16.mxu0 %v2063
    %3058 = vmatpush1.bf16.msra.mxu0 %v2062
    %3059 = vmatprep.mubr.bf16.mxu0 %v2942
    %3060 = vmatmul.mubr.bf16.gmra.mrb[0].mxu0 %v2941
    %v3061 = vpop.f32.mrb[0].mxu0
    %v3062 = vadd.f32 %v528, %v3061
    %v3063 = vpop.f32.mrb[0].mxu0
    %v3064 = vadd.f32 %v532, %v3063
    %v3065 = vpop.f32.mrb[0].mxu0
    %v3066 = vpop.f32.mrb[0].mxu0
    %3067 = vdwg.mxu0
    %v3070 = vrot.slane %v2980, 6
    %v3071 = vrot.slane %v2982, 6
    %v3072 = vrot.slane %v2980, 7
    %v3073 = vrot.slane %v2982, 7
    %v3074 = vrot.slane %v2980, 1
    %v3075 = vrot.slane %v2982, 1
    %v3084 = vadd.f32 %v1450, %v3070
    %v3085 = vadd.f32 %v1452, %v3071
    %v3086 = vadd.f32 %v1454, %v3072
    %v3087 = vadd.f32 %v1456, %v3073
    %v3088 = vadd.f32 %v1460, %v2980
    %v3089 = vadd.f32 %v1462, %v2982
    %v3090 = vadd.f32 %v1464, %v3074
    %v3091 = vadd.f32 %v1466, %v3075
    %v3092 = vxor.u32 %v3084, 2147483648
    %v3093 = vxor.u32 %v3085, 2147483648
    %v3094 = vxor.u32 %v3086, 2147483648
    %v3095 = vxor.u32 %v3087, 2147483648
    %v3096 = vxor.u32 %v3088, 2147483648
    %v3097 = vxor.u32 %v3089, 2147483648
    %v3098 = vxor.u32 %v3090, 2147483648
    %v3099 = vxor.u32 %v3091, 2147483648
    %v3100 = vmul.f32 %v3092, 1.442695
    %v3101 = vpow.pop %v3100
    %v3102 = vmul.f32 %v3093, 1.442695
    %v3103 = vpow.pop %v3102
    %v3104 = vmul.f32 %v3094, 1.442695
    %v3105 = vpow.pop %v3104
    %v3106 = vmul.f32 %v3095, 1.442695
    %v3107 = vpow.pop %v3106
    %v3108 = vmul.f32 %v3096, 1.442695
    %v3109 = vpow.pop %v3108
    %v3110 = vmul.f32 %v3097, 1.442695
    %v3111 = vpow.pop %v3110
    %v3112 = vmul.f32 %v3098, 1.442695
    %v3113 = vpow.pop %v3112
    %v3114 = vmul.f32 %v3099, 1.442695
    %v3115 = vpow.pop %v3114
    %v3116 = vadd.f32 %v3101, 1.0
    %v3117 = vadd.f32 %v3103, 1.0
    %v3118 = vadd.f32 %v3105, 1.0
    %v3119 = vadd.f32 %v3107, 1.0
    %v3120 = vadd.f32 %v3109, 1.0
    %v3121 = vadd.f32 %v3111, 1.0
    %v3122 = vadd.f32 %v3113, 1.0
    %v3123 = vadd.f32 %v3115, 1.0
    %v3124 = vrcp.pop %v3116
    %v3125 = vmul.f32 1.0, %v3124
    %v3126 = vrcp.pop %v3117
    %v3127 = vmul.f32 1.0, %v3126
    %v3128 = vrcp.pop %v3118
    %v3129 = vmul.f32 1.0, %v3128
    %v3130 = vrcp.pop %v3119
    %v3131 = vmul.f32 1.0, %v3130
    %v3132 = vrcp.pop %v3120
    %v3133 = vmul.f32 1.0, %v3132
    %v3134 = vrcp.pop %v3121
    %v3135 = vmul.f32 1.0, %v3134
    %v3136 = vrcp.pop %v3122
    %v3137 = vmul.f32 1.0, %v3136
    %v3138 = vrcp.pop %v3123
    %v3139 = vmul.f32 1.0, %v3138
    %v3142 = vrot.slane %v3021, 6
    %v3143 = vrot.slane %v3023, 6
    %v3144 = vrot.slane %v3021, 7
    %v3145 = vrot.slane %v3023, 7
    %v3146 = vrot.slane %v3021, 1
    %v3147 = vrot.slane %v3023, 1
    %v3156 = vadd.f32 %v1556, %v3142
    %v3157 = vadd.f32 %v1558, %v3143
    %v3158 = vadd.f32 %v1560, %v3144
    %v3159 = vadd.f32 %v1562, %v3145
    %v3160 = vadd.f32 %v1566, %v3021
    %v3161 = vadd.f32 %v1568, %v3023
    %v3162 = vadd.f32 %v1570, %v3146
    %v3163 = vadd.f32 %v1572, %v3147
    %v3164 = vxor.u32 %v3156, 2147483648
    %v3165 = vxor.u32 %v3157, 2147483648
    %v3166 = vxor.u32 %v3158, 2147483648
    %v3167 = vxor.u32 %v3159, 2147483648
    %v3168 = vxor.u32 %v3160, 2147483648
    %v3169 = vxor.u32 %v3161, 2147483648
    %v3170 = vxor.u32 %v3162, 2147483648
    %v3171 = vxor.u32 %v3163, 2147483648
    %v3172 = vmul.f32 %v3164, 1.442695
    %v3173 = vpow.pop %v3172
    %v3174 = vmul.f32 %v3165, 1.442695
    %v3175 = vpow.pop %v3174
    %v3176 = vmul.f32 %v3166, 1.442695
    %v3177 = vpow.pop %v3176
    %v3178 = vmul.f32 %v3167, 1.442695
    %v3179 = vpow.pop %v3178
    %v3180 = vmul.f32 %v3168, 1.442695
    %v3181 = vpow.pop %v3180
    %v3182 = vmul.f32 %v3169, 1.442695
    %v3183 = vpow.pop %v3182
    %v3184 = vmul.f32 %v3170, 1.442695
    %v3185 = vpow.pop %v3184
    %v3186 = vmul.f32 %v3171, 1.442695
    %v3187 = vpow.pop %v3186
    %v3188 = vadd.f32 %v3173, 1.0
    %v3189 = vadd.f32 %v3175, 1.0
    %v3190 = vadd.f32 %v3177, 1.0
    %v3191 = vadd.f32 %v3179, 1.0
    %v3192 = vadd.f32 %v3181, 1.0
    %v3193 = vadd.f32 %v3183, 1.0
    %v3194 = vadd.f32 %v3185, 1.0
    %v3195 = vadd.f32 %v3187, 1.0
    %v3196 = vrcp.pop %v3188
    %v3197 = vmul.f32 1.0, %v3196
    %v3198 = vrcp.pop %v3189
    %v3199 = vmul.f32 1.0, %v3198
    %v3200 = vrcp.pop %v3190
    %v3201 = vmul.f32 1.0, %v3200
    %v3202 = vrcp.pop %v3191
    %v3203 = vmul.f32 1.0, %v3202
    %v3204 = vrcp.pop %v3192
    %v3205 = vmul.f32 1.0, %v3204
    %v3206 = vrcp.pop %v3193
    %v3207 = vmul.f32 1.0, %v3206
    %v3208 = vrcp.pop %v3194
    %v3209 = vmul.f32 1.0, %v3208
    %v3210 = vrcp.pop %v3195
    %v3211 = vmul.f32 1.0, %v3210
    %v3214 = vrot.slane %v3062, 6
    %v3215 = vrot.slane %v3064, 6
    %v3216 = vrot.slane %v3062, 7
    %v3217 = vrot.slane %v3064, 7
    %v3218 = vrot.slane %v3062, 1
    %v3219 = vrot.slane %v3064, 1
    %v3228 = vmul.f32 %v3125, %v3214
    %v3229 = vmul.f32 %v3127, %v3215
    %v3230 = vmul.f32 %v3129, %v3216
    %v3231 = vmul.f32 %v3131, %v3217
    %v3232 = vmul.f32 %v3133, %v3062
    %v3233 = vmul.f32 %v3135, %v3064
    %v3234 = vmul.f32 %v3137, %v3218
    %v3235 = vmul.f32 %v3139, %v3219
    %v3236 = vadd.f32 %v1662, %v3228
    %v3237 = vadd.f32 %v1664, %v3229
    %v3238 = vadd.f32 %v1666, %v3230
    %v3239 = vadd.f32 %v1668, %v3231
    %v3240 = vadd.f32 %v1672, %v3232
    %v3241 = vadd.f32 %v1674, %v3233
    %v3242 = vadd.f32 %v1676, %v3234
    %v3243 = vadd.f32 %v1678, %v3235
    %v3244 = vtanh.pop %v3236
    %v3245 = vtanh.pop %v3237
    %v3246 = vtanh.pop %v3238
    %v3247 = vtanh.pop %v3239
    %v3248 = vtanh.pop %v3240
    %v3249 = vtanh.pop %v3241
    %v3250 = vtanh.pop %v3242
    %v3251 = vtanh.pop %v3243
    %v3252 = vsub.f32 1.0, %v3197
    %v3253 = vsub.f32 1.0, %v3199
    %v3254 = vsub.f32 1.0, %v3201
    %v3255 = vsub.f32 1.0, %v3203
    %v3256 = vsub.f32 1.0, %v3205
    %v3257 = vsub.f32 1.0, %v3207
    %v3258 = vsub.f32 1.0, %v3209
    %v3259 = vsub.f32 1.0, %v3211
    %v3260 = vmul.f32 %v3252, %v3244
    %v3261 = vmul.f32 %v3253, %v3245
    %v3262 = vmul.f32 %v3254, %v3246
    %v3263 = vmul.f32 %v3255, %v3247
    %v3264 = vmul.f32 %v3256, %v3248
    %v3265 = vmul.f32 %v3257, %v3249
    %v3266 = vmul.f32 %v3258, %v3250
    %v3267 = vmul.f32 %v3259, %v3251
    %v3276 = vrot.slane %v2897, 7
    %v3277 = vrot.slane %v2898, 7
    %v3278 = vrot.slane %v2899, 7
    %v3279 = vrot.slane %v2900, 7
    %v3280 = vrot.slane %v2901, 7
    %v3281 = vrot.slane %v2902, 7
    %v3282 = vrot.slane %v2903, 7
    %v3283 = vrot.slane %v2904, 7
    %v3292 = vmul.f32 %v3197, %v3276
    %v3293 = vmul.f32 %v3199, %v3277
    %v3294 = vmul.f32 %v3201, %v3278
    %v3295 = vmul.f32 %v3203, %v3279
    %v3296 = vmul.f32 %v3205, %v3280
    %v3297 = vmul.f32 %v3207, %v3281
    %v3298 = vmul.f32 %v3209, %v3282
    %v3299 = vmul.f32 %v3211, %v3283
    %v3300 = vadd.f32 %v3260, %v3292
    %v3301 = vadd.f32 %v3261, %v3293
    %v3302 = vadd.f32 %v3262, %v3294
    %v3303 = vadd.f32 %v3263, %v3295
    %v3304 = vadd.f32 %v3264, %v3296
    %v3305 = vadd.f32 %v3265, %v3297
    %v3306 = vadd.f32 %v3266, %v3298
    %v3307 = vadd.f32 %v3267, %v3299
    %v3308 = vpack.c.bf16 %v3300, %v3300
    %v3309 = vpack.c.bf16 %v3301, %v3301
    %v3310 = vpack.c.bf16 %v3302, %v3302
    %v3311 = vpack.c.bf16 %v3303, %v3303
    %v3312 = vpack.c.bf16 %v3304, %v3304
    %v3313 = vpack.c.bf16 %v3305, %v3305
    %v3314 = vpack.c.bf16 %v3306, %v3306
    %v3315 = vpack.c.bf16 %v3307, %v3307
    %v3324 = vunpack.c.l.b16 %v3308
    %v3325 = vunpack.c.l.b16 %v3309
    %v3326 = vunpack.c.l.b16 %v3310
    %v3327 = vunpack.c.l.b16 %v3311
    %v3328 = vunpack.c.l.b16 %v3312
    %v3329 = vunpack.c.l.b16 %v3313
    %v3330 = vunpack.c.l.b16 %v3314
    %v3331 = vunpack.c.l.b16 %v3315
    %v3332 = vrot.slane %v3324, 2
    %v3333 = vrot.slane %v3326, 1
    %v3334 = vsel %vm2524, %v3333, %v3332
    %v3335 = vsel %vm2527, %v3328, %v3334
    %v3336 = vrot.slane %v3330, 7
    %v3337 = vsel %vm2530, %v3336, %v3335
    %v3338 = vrot.slane %v3325, 2
    %v3339 = vrot.slane %v3327, 1
    %v3340 = vsel %vm2524, %v3339, %v3338
    %v3341 = vsel %vm2527, %v3329, %v3340
    %v3342 = vrot.slane %v3331, 7
    %v3343 = vsel %vm2530, %v3342, %v3341
    %v3344 = vpack.c.b16 %v3337, %v3337
    %v3345 = vpack.c.b16 %v3343, %v3343
    %3348 = vmatprep.subr.bf16.mxu0 %v1969
    %3349 = vmatpush1.bf16.msra.mxu0 %v1968
    %3350 = vmatprep.subr.bf16.mxu0 %v1975
    %3351 = vmatpush1.bf16.msra.mxu0 %v1974
    %3352 = vmatprep.subr.bf16.mxu0 %v1981
    %3353 = vmatpush1.bf16.msra.mxu0 %v1980
    %3354 = vmatprep.subr.bf16.mxu0 %v1987
    %3355 = vmatpush1.bf16.msra.mxu0 %v1986
    %3356 = vmatprep.subr.bf16.mxu0 %v1993
    %3357 = vmatpush1.bf16.msra.mxu0 %v1992
    %3358 = vmatprep.subr.bf16.mxu0 %v1999
    %3359 = vmatpush1.bf16.msra.mxu0 %v1998
    %3360 = vmatprep.subr.bf16.mxu0 %v2005
    %3361 = vmatpush1.bf16.msra.mxu0 %v2004
    %3362 = vmatprep.subr.bf16.mxu0 %v2011
    %3363 = vmatpush1.bf16.msra.mxu0 %v2010
    %3364 = vmatprep.subr.bf16.mxu0 %v2017
    %3365 = vmatpush1.bf16.msra.mxu0 %v2016
    %3366 = vmatprep.subr.bf16.mxu0 %v2023
    %3367 = vmatpush1.bf16.msra.mxu0 %v2022
    %3368 = vmatprep.subr.bf16.mxu0 %v2029
    %3369 = vmatpush1.bf16.msra.mxu0 %v2028
    %3370 = vmatprep.subr.bf16.mxu0 %v2035
    %3371 = vmatpush1.bf16.msra.mxu0 %v2034
    %3372 = vmatprep.subr.bf16.mxu0 %v2041
    %3373 = vmatpush1.bf16.msra.mxu0 %v2040
    %3374 = vmatprep.subr.bf16.mxu0 %v2047
    %3375 = vmatpush1.bf16.msra.mxu0 %v2046
    %3376 = vmatprep.subr.bf16.mxu0 %v2053
    %3377 = vmatpush1.bf16.msra.mxu0 %v2052
    %3378 = vmatprep.subr.bf16.mxu0 %v2059
    %3379 = vmatpush1.bf16.msra.mxu0 %v2058
    %3380 = vmatprep.mubr.bf16.mxu0 %v3345
    %3381 = vmatmul.mubr.bf16.gmra.mrb[0].mxu0 %v3344
    %v3382 = vpop.f32.mrb[0].mxu0
    %v3383 = vadd.f32 %v512, %v3382
    %v3384 = vpop.f32.mrb[0].mxu0
    %v3385 = vadd.f32 %v516, %v3384
    %v3386 = vpop.f32.mrb[0].mxu0
    %v3387 = vpop.f32.mrb[0].mxu0
    %3388 = vdwg.mxu0
    %3389 = vmatprep.subr.bf16.mxu0 %v1971
    %3390 = vmatpush1.bf16.msra.mxu0 %v1970
    %3391 = vmatprep.subr.bf16.mxu0 %v1977
    %3392 = vmatpush1.bf16.msra.mxu0 %v1976
    %3393 = vmatprep.subr.bf16.mxu0 %v1983
    %3394 = vmatpush1.bf16.msra.mxu0 %v1982
    %3395 = vmatprep.subr.bf16.mxu0 %v1989
    %3396 = vmatpush1.bf16.msra.mxu0 %v1988
    %3397 = vmatprep.subr.bf16.mxu0 %v1995
    %3398 = vmatpush1.bf16.msra.mxu0 %v1994
    %3399 = vmatprep.subr.bf16.mxu0 %v2001
    %3400 = vmatpush1.bf16.msra.mxu0 %v2000
    %3401 = vmatprep.subr.bf16.mxu0 %v2007
    %3402 = vmatpush1.bf16.msra.mxu0 %v2006
    %3403 = vmatprep.subr.bf16.mxu0 %v2013
    %3404 = vmatpush1.bf16.msra.mxu0 %v2012
    %3405 = vmatprep.subr.bf16.mxu0 %v2019
    %3406 = vmatpush1.bf16.msra.mxu0 %v2018
    %3407 = vmatprep.subr.bf16.mxu0 %v2025
    %3408 = vmatpush1.bf16.msra.mxu0 %v2024
    %3409 = vmatprep.subr.bf16.mxu0 %v2031
    %3410 = vmatpush1.bf16.msra.mxu0 %v2030
    %3411 = vmatprep.subr.bf16.mxu0 %v2037
    %3412 = vmatpush1.bf16.msra.mxu0 %v2036
    %3413 = vmatprep.subr.bf16.mxu0 %v2043
    %3414 = vmatpush1.bf16.msra.mxu0 %v2042
    %3415 = vmatprep.subr.bf16.mxu0 %v2049
    %3416 = vmatpush1.bf16.msra.mxu0 %v2048
    %3417 = vmatprep.subr.bf16.mxu0 %v2055
    %3418 = vmatpush1.bf16.msra.mxu0 %v2054
    %3419 = vmatprep.subr.bf16.mxu0 %v2061
    %3420 = vmatpush1.bf16.msra.mxu0 %v2060
    %3421 = vmatprep.mubr.bf16.mxu0 %v3345
    %3422 = vmatmul.mubr.bf16.gmra.mrb[0].mxu0 %v3344
    %v3423 = vpop.f32.mrb[0].mxu0
    %v3424 = vadd.f32 %v520, %v3423
    %v3425 = vpop.f32.mrb[0].mxu0
    %v3426 = vadd.f32 %v524, %v3425
    %v3427 = vpop.f32.mrb[0].mxu0
    %v3428 = vpop.f32.mrb[0].mxu0
    %3429 = vdwg.mxu0
    %3430 = vmatprep.subr.bf16.mxu0 %v1973
    %3431 = vmatpush1.bf16.msra.mxu0 %v1972
    %3432 = vmatprep.subr.bf16.mxu0 %v1979
    %3433 = vmatpush1.bf16.msra.mxu0 %v1978
    %3434 = vmatprep.subr.bf16.mxu0 %v1985
    %3435 = vmatpush1.bf16.msra.mxu0 %v1984
    %3436 = vmatprep.subr.bf16.mxu0 %v1991
    %3437 = vmatpush1.bf16.msra.mxu0 %v1990
    %3438 = vmatprep.subr.bf16.mxu0 %v1997
    %3439 = vmatpush1.bf16.msra.mxu0 %v1996
    %3440 = vmatprep.subr.bf16.mxu0 %v2003
    %3441 = vmatpush1.bf16.msra.mxu0 %v2002
    %3442 = vmatprep.subr.bf16.mxu0 %v2009
    %3443 = vmatpush1.bf16.msra.mxu0 %v2008
    %3444 = vmatprep.subr.bf16.mxu0 %v2015
    %3445 = vmatpush1.bf16.msra.mxu0 %v2014
    %3446 = vmatprep.subr.bf16.mxu0 %v2021
    %3447 = vmatpush1.bf16.msra.mxu0 %v2020
    %3448 = vmatprep.subr.bf16.mxu0 %v2027
    %3449 = vmatpush1.bf16.msra.mxu0 %v2026
    %3450 = vmatprep.subr.bf16.mxu0 %v2033
    %3451 = vmatpush1.bf16.msra.mxu0 %v2032
    %3452 = vmatprep.subr.bf16.mxu0 %v2039
    %3453 = vmatpush1.bf16.msra.mxu0 %v2038
    %3454 = vmatprep.subr.bf16.mxu0 %v2045
    %3455 = vmatpush1.bf16.msra.mxu0 %v2044
    %3456 = vmatprep.subr.bf16.mxu0 %v2051
    %3457 = vmatpush1.bf16.msra.mxu0 %v2050
    %3458 = vmatprep.subr.bf16.mxu0 %v2057
    %3459 = vmatpush1.bf16.msra.mxu0 %v2056
    %3460 = vmatprep.subr.bf16.mxu0 %v2063
    %3461 = vmatpush1.bf16.msra.mxu0 %v2062
    %3462 = vmatprep.mubr.bf16.mxu0 %v3345
    %3463 = vmatmul.mubr.bf16.gmra.mrb[0].mxu0 %v3344
    %v3464 = vpop.f32.mrb[0].mxu0
    %v3465 = vadd.f32 %v528, %v3464
    %v3466 = vpop.f32.mrb[0].mxu0
    %v3467 = vadd.f32 %v532, %v3466
    %v3468 = vpop.f32.mrb[0].mxu0
    %v3469 = vpop.f32.mrb[0].mxu0
    %3470 = vdwg.mxu0
    %v3473 = vrot.slane %v3383, 5
    %v3474 = vrot.slane %v3385, 5
    %v3475 = vrot.slane %v3383, 6
    %v3476 = vrot.slane %v3385, 6
    %v3477 = vrot.slane %v3383, 7
    %v3478 = vrot.slane %v3385, 7
    %v3487 = vadd.f32 %v1450, %v3473
    %v3488 = vadd.f32 %v1452, %v3474
    %v3489 = vadd.f32 %v1454, %v3475
    %v3490 = vadd.f32 %v1456, %v3476
    %v3491 = vadd.f32 %v1460, %v3477
    %v3492 = vadd.f32 %v1462, %v3478
    %v3493 = vadd.f32 %v1464, %v3383
    %v3494 = vadd.f32 %v1466, %v3385
    %v3495 = vxor.u32 %v3487, 2147483648
    %v3496 = vxor.u32 %v3488, 2147483648
    %v3497 = vxor.u32 %v3489, 2147483648
    %v3498 = vxor.u32 %v3490, 2147483648
    %v3499 = vxor.u32 %v3491, 2147483648
    %v3500 = vxor.u32 %v3492, 2147483648
    %v3501 = vxor.u32 %v3493, 2147483648
    %v3502 = vxor.u32 %v3494, 2147483648
    %v3503 = vmul.f32 %v3495, 1.442695
    %v3504 = vpow.pop %v3503
    %v3505 = vmul.f32 %v3496, 1.442695
    %v3506 = vpow.pop %v3505
    %v3507 = vmul.f32 %v3497, 1.442695
    %v3508 = vpow.pop %v3507
    %v3509 = vmul.f32 %v3498, 1.442695
    %v3510 = vpow.pop %v3509
    %v3511 = vmul.f32 %v3499, 1.442695
    %v3512 = vpow.pop %v3511
    %v3513 = vmul.f32 %v3500, 1.442695
    %v3514 = vpow.pop %v3513
    %v3515 = vmul.f32 %v3501, 1.442695
    %v3516 = vpow.pop %v3515
    %v3517 = vmul.f32 %v3502, 1.442695
    %v3518 = vpow.pop %v3517
    %v3519 = vadd.f32 %v3504, 1.0
    %v3520 = vadd.f32 %v3506, 1.0
    %v3521 = vadd.f32 %v3508, 1.0
    %v3522 = vadd.f32 %v3510, 1.0
    %v3523 = vadd.f32 %v3512, 1.0
    %v3524 = vadd.f32 %v3514, 1.0
    %v3525 = vadd.f32 %v3516, 1.0
    %v3526 = vadd.f32 %v3518, 1.0
    %v3527 = vrcp.pop %v3519
    %v3528 = vmul.f32 1.0, %v3527
    %v3529 = vrcp.pop %v3520
    %v3530 = vmul.f32 1.0, %v3529
    %v3531 = vrcp.pop %v3521
    %v3532 = vmul.f32 1.0, %v3531
    %v3533 = vrcp.pop %v3522
    %v3534 = vmul.f32 1.0, %v3533
    %v3535 = vrcp.pop %v3523
    %v3536 = vmul.f32 1.0, %v3535
    %v3537 = vrcp.pop %v3524
    %v3538 = vmul.f32 1.0, %v3537
    %v3539 = vrcp.pop %v3525
    %v3540 = vmul.f32 1.0, %v3539
    %v3541 = vrcp.pop %v3526
    %v3542 = vmul.f32 1.0, %v3541
    %v3545 = vrot.slane %v3424, 5
    %v3546 = vrot.slane %v3426, 5
    %v3547 = vrot.slane %v3424, 6
    %v3548 = vrot.slane %v3426, 6
    %v3549 = vrot.slane %v3424, 7
    %v3550 = vrot.slane %v3426, 7
    %v3559 = vadd.f32 %v1556, %v3545
    %v3560 = vadd.f32 %v1558, %v3546
    %v3561 = vadd.f32 %v1560, %v3547
    %v3562 = vadd.f32 %v1562, %v3548
    %v3563 = vadd.f32 %v1566, %v3549
    %v3564 = vadd.f32 %v1568, %v3550
    %v3565 = vadd.f32 %v1570, %v3424
    %v3566 = vadd.f32 %v1572, %v3426
    %v3567 = vxor.u32 %v3559, 2147483648
    %v3568 = vxor.u32 %v3560, 2147483648
    %v3569 = vxor.u32 %v3561, 2147483648
    %v3570 = vxor.u32 %v3562, 2147483648
    %v3571 = vxor.u32 %v3563, 2147483648
    %v3572 = vxor.u32 %v3564, 2147483648
    %v3573 = vxor.u32 %v3565, 2147483648
    %v3574 = vxor.u32 %v3566, 2147483648
    %v3575 = vmul.f32 %v3567, 1.442695
    %v3576 = vpow.pop %v3575
    %v3577 = vmul.f32 %v3568, 1.442695
    %v3578 = vpow.pop %v3577
    %v3579 = vmul.f32 %v3569, 1.442695
    %v3580 = vpow.pop %v3579
    %v3581 = vmul.f32 %v3570, 1.442695
    %v3582 = vpow.pop %v3581
    %v3583 = vmul.f32 %v3571, 1.442695
    %v3584 = vpow.pop %v3583
    %v3585 = vmul.f32 %v3572, 1.442695
    %v3586 = vpow.pop %v3585
    %v3587 = vmul.f32 %v3573, 1.442695
    %v3588 = vpow.pop %v3587
    %v3589 = vmul.f32 %v3574, 1.442695
    %v3590 = vpow.pop %v3589
    %v3591 = vadd.f32 %v3576, 1.0
    %v3592 = vadd.f32 %v3578, 1.0
    %v3593 = vadd.f32 %v3580, 1.0
    %v3594 = vadd.f32 %v3582, 1.0
    %v3595 = vadd.f32 %v3584, 1.0
    %v3596 = vadd.f32 %v3586, 1.0
    %v3597 = vadd.f32 %v3588, 1.0
    %v3598 = vadd.f32 %v3590, 1.0
    %v3599 = vrcp.pop %v3591
    %v3600 = vmul.f32 1.0, %v3599
    %v3601 = vrcp.pop %v3592
    %v3602 = vmul.f32 1.0, %v3601
    %v3603 = vrcp.pop %v3593
    %v3604 = vmul.f32 1.0, %v3603
    %v3605 = vrcp.pop %v3594
    %v3606 = vmul.f32 1.0, %v3605
    %v3607 = vrcp.pop %v3595
    %v3608 = vmul.f32 1.0, %v3607
    %v3609 = vrcp.pop %v3596
    %v3610 = vmul.f32 1.0, %v3609
    %v3611 = vrcp.pop %v3597
    %v3612 = vmul.f32 1.0, %v3611
    %v3613 = vrcp.pop %v3598
    %v3614 = vmul.f32 1.0, %v3613
    %v3617 = vrot.slane %v3465, 5
    %v3618 = vrot.slane %v3467, 5
    %v3619 = vrot.slane %v3465, 6
    %v3620 = vrot.slane %v3467, 6
    %v3621 = vrot.slane %v3465, 7
    %v3622 = vrot.slane %v3467, 7
    %v3631 = vmul.f32 %v3528, %v3617
    %v3632 = vmul.f32 %v3530, %v3618
    %v3633 = vmul.f32 %v3532, %v3619
    %v3634 = vmul.f32 %v3534, %v3620
    %v3635 = vmul.f32 %v3536, %v3621
    %v3636 = vmul.f32 %v3538, %v3622
    %v3637 = vmul.f32 %v3540, %v3465
    %v3638 = vmul.f32 %v3542, %v3467
    %v3639 = vadd.f32 %v1662, %v3631
    %v3640 = vadd.f32 %v1664, %v3632
    %v3641 = vadd.f32 %v1666, %v3633
    %v3642 = vadd.f32 %v1668, %v3634
    %v3643 = vadd.f32 %v1672, %v3635
    %v3644 = vadd.f32 %v1674, %v3636
    %v3645 = vadd.f32 %v1676, %v3637
    %v3646 = vadd.f32 %v1678, %v3638
    %v3647 = vtanh.pop %v3639
    %v3648 = vtanh.pop %v3640
    %v3649 = vtanh.pop %v3641
    %v3650 = vtanh.pop %v3642
    %v3651 = vtanh.pop %v3643
    %v3652 = vtanh.pop %v3644
    %v3653 = vtanh.pop %v3645
    %v3654 = vtanh.pop %v3646
    %v3655 = vsub.f32 1.0, %v3600
    %v3656 = vsub.f32 1.0, %v3602
    %v3657 = vsub.f32 1.0, %v3604
    %v3658 = vsub.f32 1.0, %v3606
    %v3659 = vsub.f32 1.0, %v3608
    %v3660 = vsub.f32 1.0, %v3610
    %v3661 = vsub.f32 1.0, %v3612
    %v3662 = vsub.f32 1.0, %v3614
    %v3663 = vmul.f32 %v3655, %v3647
    %v3664 = vmul.f32 %v3656, %v3648
    %v3665 = vmul.f32 %v3657, %v3649
    %v3666 = vmul.f32 %v3658, %v3650
    %v3667 = vmul.f32 %v3659, %v3651
    %v3668 = vmul.f32 %v3660, %v3652
    %v3669 = vmul.f32 %v3661, %v3653
    %v3670 = vmul.f32 %v3662, %v3654
    %v3679 = vrot.slane %v3300, 7
    %v3680 = vrot.slane %v3301, 7
    %v3681 = vrot.slane %v3302, 7
    %v3682 = vrot.slane %v3303, 7
    %v3683 = vrot.slane %v3304, 7
    %v3684 = vrot.slane %v3305, 7
    %v3685 = vrot.slane %v3306, 7
    %v3686 = vrot.slane %v3307, 7
    %v3695 = vmul.f32 %v3600, %v3679
    %v3696 = vmul.f32 %v3602, %v3680
    %v3697 = vmul.f32 %v3604, %v3681
    %v3698 = vmul.f32 %v3606, %v3682
    %v3699 = vmul.f32 %v3608, %v3683
    %v3700 = vmul.f32 %v3610, %v3684
    %v3701 = vmul.f32 %v3612, %v3685
    %v3702 = vmul.f32 %v3614, %v3686
    %v3703 = vadd.f32 %v3663, %v3695
    %v3704 = vadd.f32 %v3664, %v3696
    %v3705 = vadd.f32 %v3665, %v3697
    %v3706 = vadd.f32 %v3666, %v3698
    %v3707 = vadd.f32 %v3667, %v3699
    %v3708 = vadd.f32 %v3668, %v3700
    %v3709 = vadd.f32 %v3669, %v3701
    %v3710 = vadd.f32 %v3670, %v3702
    %v3711 = vpack.c.bf16 %v3703, %v3703
    %v3712 = vpack.c.bf16 %v3704, %v3704
    %v3713 = vpack.c.bf16 %v3705, %v3705
    %v3714 = vpack.c.bf16 %v3706, %v3706
    %v3715 = vpack.c.bf16 %v3707, %v3707
    %v3716 = vpack.c.bf16 %v3708, %v3708
    %v3717 = vpack.c.bf16 %v3709, %v3709
    %v3718 = vpack.c.bf16 %v3710, %v3710
    %v3727 = vunpack.c.l.b16 %v3711
    %v3728 = vunpack.c.l.b16 %v3712
    %v3729 = vunpack.c.l.b16 %v3713
    %v3730 = vunpack.c.l.b16 %v3714
    %v3731 = vunpack.c.l.b16 %v3715
    %v3732 = vunpack.c.l.b16 %v3716
    %v3733 = vunpack.c.l.b16 %v3717
    %v3734 = vunpack.c.l.b16 %v3718
    %v3735 = vrot.slane %v3727, 3
    %v3736 = vrot.slane %v3729, 2
    %v3737 = vsel %vm2524, %v3736, %v3735
    %v3738 = vrot.slane %v3731, 1
    %v3739 = vsel %vm2527, %v3738, %v3737
    %v3740 = vsel %vm2530, %v3733, %v3739
    %v3741 = vrot.slane %v3728, 3
    %v3742 = vrot.slane %v3730, 2
    %v3743 = vsel %vm2524, %v3742, %v3741
    %v3744 = vrot.slane %v3732, 1
    %v3745 = vsel %vm2527, %v3744, %v3743
    %v3746 = vsel %vm2530, %v3734, %v3745
    %v3747 = vpack.c.b16 %v3740, %v3740
    %v3748 = vpack.c.b16 %v3746, %v3746
    %3751 = vmatprep.subr.bf16.mxu0 %v1969
    %3752 = vmatpush1.bf16.msra.mxu0 %v1968
    %3753 = vmatprep.subr.bf16.mxu0 %v1975
    %3754 = vmatpush1.bf16.msra.mxu0 %v1974
    %3755 = vmatprep.subr.bf16.mxu0 %v1981
    %3756 = vmatpush1.bf16.msra.mxu0 %v1980
    %3757 = vmatprep.subr.bf16.mxu0 %v1987
    %3758 = vmatpush1.bf16.msra.mxu0 %v1986
    %3759 = vmatprep.subr.bf16.mxu0 %v1993
    %3760 = vmatpush1.bf16.msra.mxu0 %v1992
    %3761 = vmatprep.subr.bf16.mxu0 %v1999
    %3762 = vmatpush1.bf16.msra.mxu0 %v1998
    %3763 = vmatprep.subr.bf16.mxu0 %v2005
    %3764 = vmatpush1.bf16.msra.mxu0 %v2004
    %3765 = vmatprep.subr.bf16.mxu0 %v2011
    %3766 = vmatpush1.bf16.msra.mxu0 %v2010
    %3767 = vmatprep.subr.bf16.mxu0 %v2017
    %3768 = vmatpush1.bf16.msra.mxu0 %v2016
    %3769 = vmatprep.subr.bf16.mxu0 %v2023
    %3770 = vmatpush1.bf16.msra.mxu0 %v2022
    %3771 = vmatprep.subr.bf16.mxu0 %v2029
    %3772 = vmatpush1.bf16.msra.mxu0 %v2028
    %3773 = vmatprep.subr.bf16.mxu0 %v2035
    %3774 = vmatpush1.bf16.msra.mxu0 %v2034
    %3775 = vmatprep.subr.bf16.mxu0 %v2041
    %3776 = vmatpush1.bf16.msra.mxu0 %v2040
    %3777 = vmatprep.subr.bf16.mxu0 %v2047
    %3778 = vmatpush1.bf16.msra.mxu0 %v2046
    %3779 = vmatprep.subr.bf16.mxu0 %v2053
    %3780 = vmatpush1.bf16.msra.mxu0 %v2052
    %3781 = vmatprep.subr.bf16.mxu0 %v2059
    %3782 = vmatpush1.bf16.msra.mxu0 %v2058
    %3783 = vmatprep.mubr.bf16.mxu0 %v3748
    %3784 = vmatmul.mubr.bf16.gmra.mrb[0].mxu0 %v3747
    %v3785 = vpop.f32.mrb[0].mxu0
    %v3786 = vadd.f32 %v512, %v3785
    %v3787 = vpop.f32.mrb[0].mxu0
    %v3788 = vadd.f32 %v516, %v3787
    %v3789 = vpop.f32.mrb[0].mxu0
    %v3790 = vpop.f32.mrb[0].mxu0
    %3791 = vdwg.mxu0
    %3792 = vmatprep.subr.bf16.mxu0 %v1971
    %3793 = vmatpush1.bf16.msra.mxu0 %v1970
    %3794 = vmatprep.subr.bf16.mxu0 %v1977
    %3795 = vmatpush1.bf16.msra.mxu0 %v1976
    %3796 = vmatprep.subr.bf16.mxu0 %v1983
    %3797 = vmatpush1.bf16.msra.mxu0 %v1982
    %3798 = vmatprep.subr.bf16.mxu0 %v1989
    %3799 = vmatpush1.bf16.msra.mxu0 %v1988
    %3800 = vmatprep.subr.bf16.mxu0 %v1995
    %3801 = vmatpush1.bf16.msra.mxu0 %v1994
    %3802 = vmatprep.subr.bf16.mxu0 %v2001
    %3803 = vmatpush1.bf16.msra.mxu0 %v2000
    %3804 = vmatprep.subr.bf16.mxu0 %v2007
    %3805 = vmatpush1.bf16.msra.mxu0 %v2006
    %3806 = vmatprep.subr.bf16.mxu0 %v2013
    %3807 = vmatpush1.bf16.msra.mxu0 %v2012
    %3808 = vmatprep.subr.bf16.mxu0 %v2019
    %3809 = vmatpush1.bf16.msra.mxu0 %v2018
    %3810 = vmatprep.subr.bf16.mxu0 %v2025
    %3811 = vmatpush1.bf16.msra.mxu0 %v2024
    %3812 = vmatprep.subr.bf16.mxu0 %v2031
    %3813 = vmatpush1.bf16.msra.mxu0 %v2030
    %3814 = vmatprep.subr.bf16.mxu0 %v2037
    %3815 = vmatpush1.bf16.msra.mxu0 %v2036
    %3816 = vmatprep.subr.bf16.mxu0 %v2043
    %3817 = vmatpush1.bf16.msra.mxu0 %v2042
    %3818 = vmatprep.subr.bf16.mxu0 %v2049
    %3819 = vmatpush1.bf16.msra.mxu0 %v2048
    %3820 = vmatprep.subr.bf16.mxu0 %v2055
    %3821 = vmatpush1.bf16.msra.mxu0 %v2054
    %3822 = vmatprep.subr.bf16.mxu0 %v2061
    %3823 = vmatpush1.bf16.msra.mxu0 %v2060
    %3824 = vmatprep.mubr.bf16.mxu0 %v3748
    %3825 = vmatmul.mubr.bf16.gmra.mrb[0].mxu0 %v3747
    %v3826 = vpop.f32.mrb[0].mxu0
    %v3827 = vadd.f32 %v520, %v3826
    %v3828 = vpop.f32.mrb[0].mxu0
    %v3829 = vadd.f32 %v524, %v3828
    %v3830 = vpop.f32.mrb[0].mxu0
    %v3831 = vpop.f32.mrb[0].mxu0
    %3832 = vdwg.mxu0
    %3833 = vmatprep.subr.bf16.mxu0 %v1973
    %3834 = vmatpush1.bf16.msra.mxu0 %v1972
    %3835 = vmatprep.subr.bf16.mxu0 %v1979
    %3836 = vmatpush1.bf16.msra.mxu0 %v1978
    %3837 = vmatprep.subr.bf16.mxu0 %v1985
    %3838 = vmatpush1.bf16.msra.mxu0 %v1984
    %3839 = vmatprep.subr.bf16.mxu0 %v1991
    %3840 = vmatpush1.bf16.msra.mxu0 %v1990
    %3841 = vmatprep.subr.bf16.mxu0 %v1997
    %3842 = vmatpush1.bf16.msra.mxu0 %v1996
    %3843 = vmatprep.subr.bf16.mxu0 %v2003
    %3844 = vmatpush1.bf16.msra.mxu0 %v2002
    %3845 = vmatprep.subr.bf16.mxu0 %v2009
    %3846 = vmatpush1.bf16.msra.mxu0 %v2008
    %3847 = vmatprep.subr.bf16.mxu0 %v2015
    %3848 = vmatpush1.bf16.msra.mxu0 %v2014
    %3849 = vmatprep.subr.bf16.mxu0 %v2021
    %3850 = vmatpush1.bf16.msra.mxu0 %v2020
    %3851 = vmatprep.subr.bf16.mxu0 %v2027
    %3852 = vmatpush1.bf16.msra.mxu0 %v2026
    %3853 = vmatprep.subr.bf16.mxu0 %v2033
    %3854 = vmatpush1.bf16.msra.mxu0 %v2032
    %3855 = vmatprep.subr.bf16.mxu0 %v2039
    %3856 = vmatpush1.bf16.msra.mxu0 %v2038
    %3857 = vmatprep.subr.bf16.mxu0 %v2045
    %3858 = vmatpush1.bf16.msra.mxu0 %v2044
    %3859 = vmatprep.subr.bf16.mxu0 %v2051
    %3860 = vmatpush1.bf16.msra.mxu0 %v2050
    %3861 = vmatprep.subr.bf16.mxu0 %v2057
    %3862 = vmatpush1.bf16.msra.mxu0 %v2056
    %3863 = vmatprep.subr.bf16.mxu0 %v2063
    %3864 = vmatpush1.bf16.msra.mxu0 %v2062
    %3865 = vmatprep.mubr.bf16.mxu0 %v3748
    %3866 = vmatmul.mubr.bf16.gmra.mrb[0].mxu0 %v3747
    %v3867 = vpop.f32.mrb[0].mxu0
    %v3868 = vadd.f32 %v528, %v3867
    %v3869 = vpop.f32.mrb[0].mxu0
    %v3870 = vadd.f32 %v532, %v3869
    %v3871 = vpop.f32.mrb[0].mxu0
    %v3872 = vpop.f32.mrb[0].mxu0
    %3873 = vdwg.mxu0
    %v3876 = vrot.slane %v3786, 4
    %v3877 = vrot.slane %v3788, 4
    %v3878 = vrot.slane %v3786, 5
    %v3879 = vrot.slane %v3788, 5
    %v3880 = vrot.slane %v3786, 6
    %v3881 = vrot.slane %v3788, 6
    %v3882 = vrot.slane %v3786, 7
    %v3883 = vrot.slane %v3788, 7
    %v3892 = vadd.f32 %v1450, %v3876
    %v3893 = vadd.f32 %v1452, %v3877
    %v3894 = vadd.f32 %v1454, %v3878
    %v3895 = vadd.f32 %v1456, %v3879
    %v3896 = vadd.f32 %v1460, %v3880
    %v3897 = vadd.f32 %v1462, %v3881
    %v3898 = vadd.f32 %v1464, %v3882
    %v3899 = vadd.f32 %v1466, %v3883
    %v3900 = vxor.u32 %v3892, 2147483648
    %v3901 = vxor.u32 %v3893, 2147483648
    %v3902 = vxor.u32 %v3894, 2147483648
    %v3903 = vxor.u32 %v3895, 2147483648
    %v3904 = vxor.u32 %v3896, 2147483648
    %v3905 = vxor.u32 %v3897, 2147483648
    %v3906 = vxor.u32 %v3898, 2147483648
    %v3907 = vxor.u32 %v3899, 2147483648
    %v3908 = vmul.f32 %v3900, 1.442695
    %v3909 = vpow.pop %v3908
    %v3910 = vmul.f32 %v3901, 1.442695
    %v3911 = vpow.pop %v3910
    %v3912 = vmul.f32 %v3902, 1.442695
    %v3913 = vpow.pop %v3912
    %v3914 = vmul.f32 %v3903, 1.442695
    %v3915 = vpow.pop %v3914
    %v3916 = vmul.f32 %v3904, 1.442695
    %v3917 = vpow.pop %v3916
    %v3918 = vmul.f32 %v3905, 1.442695
    %v3919 = vpow.pop %v3918
    %v3920 = vmul.f32 %v3906, 1.442695
    %v3921 = vpow.pop %v3920
    %v3922 = vmul.f32 %v3907, 1.442695
    %v3923 = vpow.pop %v3922
    %v3924 = vadd.f32 %v3909, 1.0
    %v3925 = vadd.f32 %v3911, 1.0
    %v3926 = vadd.f32 %v3913, 1.0
    %v3927 = vadd.f32 %v3915, 1.0
    %v3928 = vadd.f32 %v3917, 1.0
    %v3929 = vadd.f32 %v3919, 1.0
    %v3930 = vadd.f32 %v3921, 1.0
    %v3931 = vadd.f32 %v3923, 1.0
    %v3932 = vrcp.pop %v3924
    %v3933 = vmul.f32 1.0, %v3932
    %v3934 = vrcp.pop %v3925
    %v3935 = vmul.f32 1.0, %v3934
    %v3936 = vrcp.pop %v3926
    %v3937 = vmul.f32 1.0, %v3936
    %v3938 = vrcp.pop %v3927
    %v3939 = vmul.f32 1.0, %v3938
    %v3940 = vrcp.pop %v3928
    %v3941 = vmul.f32 1.0, %v3940
    %v3942 = vrcp.pop %v3929
    %v3943 = vmul.f32 1.0, %v3942
    %v3944 = vrcp.pop %v3930
    %v3945 = vmul.f32 1.0, %v3944
    %v3946 = vrcp.pop %v3931
    %v3947 = vmul.f32 1.0, %v3946
    %v3950 = vrot.slane %v3827, 4
    %v3951 = vrot.slane %v3829, 4
    %v3952 = vrot.slane %v3827, 5
    %v3953 = vrot.slane %v3829, 5
    %v3954 = vrot.slane %v3827, 6
    %v3955 = vrot.slane %v3829, 6
    %v3956 = vrot.slane %v3827, 7
    %v3957 = vrot.slane %v3829, 7
    %v3966 = vadd.f32 %v1556, %v3950
    %v3967 = vadd.f32 %v1558, %v3951
    %v3968 = vadd.f32 %v1560, %v3952
    %v3969 = vadd.f32 %v1562, %v3953
    %v3970 = vadd.f32 %v1566, %v3954
    %v3971 = vadd.f32 %v1568, %v3955
    %v3972 = vadd.f32 %v1570, %v3956
    %v3973 = vadd.f32 %v1572, %v3957
    %v3974 = vxor.u32 %v3966, 2147483648
    %v3975 = vxor.u32 %v3967, 2147483648
    %v3976 = vxor.u32 %v3968, 2147483648
    %v3977 = vxor.u32 %v3969, 2147483648
    %v3978 = vxor.u32 %v3970, 2147483648
    %v3979 = vxor.u32 %v3971, 2147483648
    %v3980 = vxor.u32 %v3972, 2147483648
    %v3981 = vxor.u32 %v3973, 2147483648
    %v3982 = vmul.f32 %v3974, 1.442695
    %v3983 = vpow.pop %v3982
    %v3984 = vmul.f32 %v3975, 1.442695
    %v3985 = vpow.pop %v3984
    %v3986 = vmul.f32 %v3976, 1.442695
    %v3987 = vpow.pop %v3986
    %v3988 = vmul.f32 %v3977, 1.442695
    %v3989 = vpow.pop %v3988
    %v3990 = vmul.f32 %v3978, 1.442695
    %v3991 = vpow.pop %v3990
    %v3992 = vmul.f32 %v3979, 1.442695
    %v3993 = vpow.pop %v3992
    %v3994 = vmul.f32 %v3980, 1.442695
    %v3995 = vpow.pop %v3994
    %v3996 = vmul.f32 %v3981, 1.442695
    %v3997 = vpow.pop %v3996
    %v3998 = vadd.f32 %v3983, 1.0
    %v3999 = vadd.f32 %v3985, 1.0
    %v4000 = vadd.f32 %v3987, 1.0
    %v4001 = vadd.f32 %v3989, 1.0
    %v4002 = vadd.f32 %v3991, 1.0
    %v4003 = vadd.f32 %v3993, 1.0
    %v4004 = vadd.f32 %v3995, 1.0
    %v4005 = vadd.f32 %v3997, 1.0
    %v4006 = vrcp.pop %v3998
    %v4007 = vmul.f32 1.0, %v4006
    %v4008 = vrcp.pop %v3999
    %v4009 = vmul.f32 1.0, %v4008
    %v4010 = vrcp.pop %v4000
    %v4011 = vmul.f32 1.0, %v4010
    %v4012 = vrcp.pop %v4001
    %v4013 = vmul.f32 1.0, %v4012
    %v4014 = vrcp.pop %v4002
    %v4015 = vmul.f32 1.0, %v4014
    %v4016 = vrcp.pop %v4003
    %v4017 = vmul.f32 1.0, %v4016
    %v4018 = vrcp.pop %v4004
    %v4019 = vmul.f32 1.0, %v4018
    %v4020 = vrcp.pop %v4005
    %v4021 = vmul.f32 1.0, %v4020
    %v4024 = vrot.slane %v3868, 4
    %v4025 = vrot.slane %v3870, 4
    %v4026 = vrot.slane %v3868, 5
    %v4027 = vrot.slane %v3870, 5
    %v4028 = vrot.slane %v3868, 6
    %v4029 = vrot.slane %v3870, 6
    %v4030 = vrot.slane %v3868, 7
    %v4031 = vrot.slane %v3870, 7
    %v4040 = vmul.f32 %v3933, %v4024
    %v4041 = vmul.f32 %v3935, %v4025
    %v4042 = vmul.f32 %v3937, %v4026
    %v4043 = vmul.f32 %v3939, %v4027
    %v4044 = vmul.f32 %v3941, %v4028
    %v4045 = vmul.f32 %v3943, %v4029
    %v4046 = vmul.f32 %v3945, %v4030
    %v4047 = vmul.f32 %v3947, %v4031
    %v4048 = vadd.f32 %v1662, %v4040
    %v4049 = vadd.f32 %v1664, %v4041
    %v4050 = vadd.f32 %v1666, %v4042
    %v4051 = vadd.f32 %v1668, %v4043
    %v4052 = vadd.f32 %v1672, %v4044
    %v4053 = vadd.f32 %v1674, %v4045
    %v4054 = vadd.f32 %v1676, %v4046
    %v4055 = vadd.f32 %v1678, %v4047
    %v4056 = vtanh.pop %v4048
    %v4057 = vtanh.pop %v4049
    %v4058 = vtanh.pop %v4050
    %v4059 = vtanh.pop %v4051
    %v4060 = vtanh.pop %v4052
    %v4061 = vtanh.pop %v4053
    %v4062 = vtanh.pop %v4054
    %v4063 = vtanh.pop %v4055
    %v4064 = vsub.f32 1.0, %v4007
    %v4065 = vsub.f32 1.0, %v4009
    %v4066 = vsub.f32 1.0, %v4011
    %v4067 = vsub.f32 1.0, %v4013
    %v4068 = vsub.f32 1.0, %v4015
    %v4069 = vsub.f32 1.0, %v4017
    %v4070 = vsub.f32 1.0, %v4019
    %v4071 = vsub.f32 1.0, %v4021
    %v4072 = vmul.f32 %v4064, %v4056
    %v4073 = vmul.f32 %v4065, %v4057
    %v4074 = vmul.f32 %v4066, %v4058
    %v4075 = vmul.f32 %v4067, %v4059
    %v4076 = vmul.f32 %v4068, %v4060
    %v4077 = vmul.f32 %v4069, %v4061
    %v4078 = vmul.f32 %v4070, %v4062
    %v4079 = vmul.f32 %v4071, %v4063
    %v4088 = vrot.slane %v3703, 7
    %v4089 = vrot.slane %v3704, 7
    %v4090 = vrot.slane %v3705, 7
    %v4091 = vrot.slane %v3706, 7
    %v4092 = vrot.slane %v3707, 7
    %v4093 = vrot.slane %v3708, 7
    %v4094 = vrot.slane %v3709, 7
    %v4095 = vrot.slane %v3710, 7
    %v4104 = vmul.f32 %v4007, %v4088
    %v4105 = vmul.f32 %v4009, %v4089
    %v4106 = vmul.f32 %v4011, %v4090
    %v4107 = vmul.f32 %v4013, %v4091
    %v4108 = vmul.f32 %v4015, %v4092
    %v4109 = vmul.f32 %v4017, %v4093
    %v4110 = vmul.f32 %v4019, %v4094
    %v4111 = vmul.f32 %v4021, %v4095
    %v4112 = vadd.f32 %v4072, %v4104
    %v4113 = vadd.f32 %v4073, %v4105
    %v4114 = vadd.f32 %v4074, %v4106
    %v4115 = vadd.f32 %v4075, %v4107
    %v4116 = vadd.f32 %v4076, %v4108
    %v4117 = vadd.f32 %v4077, %v4109
    %v4118 = vadd.f32 %v4078, %v4110
    %v4119 = vadd.f32 %v4079, %v4111
    %v4120 = vpack.c.bf16 %v4112, %v4112
    %v4121 = vpack.c.bf16 %v4113, %v4113
    %v4122 = vpack.c.bf16 %v4114, %v4114
    %v4123 = vpack.c.bf16 %v4115, %v4115
    %v4124 = vpack.c.bf16 %v4116, %v4116
    %v4125 = vpack.c.bf16 %v4117, %v4117
    %v4126 = vpack.c.bf16 %v4118, %v4118
    %v4127 = vpack.c.bf16 %v4119, %v4119
    %v4136 = vunpack.c.l.b16 %v4120
    %v4137 = vunpack.c.l.b16 %v4121
    %v4138 = vunpack.c.l.b16 %v4122
    %v4139 = vunpack.c.l.b16 %v4123
    %v4140 = vunpack.c.l.b16 %v4124
    %v4141 = vunpack.c.l.b16 %v4125
    %v4142 = vunpack.c.l.b16 %v4126
    %v4143 = vunpack.c.l.b16 %v4127
    %v4144 = vrot.slane %v4136, 4
    %v4145 = vrot.slane %v4138, 3
    %v4146 = vsel %vm2524, %v4145, %v4144
    %v4147 = vrot.slane %v4140, 2
    %v4148 = vsel %vm2527, %v4147, %v4146
    %v4149 = vrot.slane %v4142, 1
    %v4150 = vsel %vm2530, %v4149, %v4148
    %v4151 = vrot.slane %v4137, 4
    %v4152 = vrot.slane %v4139, 3
    %v4153 = vsel %vm2524, %v4152, %v4151
    %v4154 = vrot.slane %v4141, 2
    %v4155 = vsel %vm2527, %v4154, %v4153
    %v4156 = vrot.slane %v4143, 1
    %v4157 = vsel %vm2530, %v4156, %v4155
    %v4158 = vpack.c.b16 %v4150, %v4150
    %v4159 = vpack.c.b16 %v4157, %v4157
    %4162 = vmatprep.subr.bf16.mxu0 %v1969
    %4163 = vmatpush1.bf16.msra.mxu0 %v1968
    %4164 = vmatprep.subr.bf16.mxu0 %v1975
    %4165 = vmatpush1.bf16.msra.mxu0 %v1974
    %4166 = vmatprep.subr.bf16.mxu0 %v1981
    %4167 = vmatpush1.bf16.msra.mxu0 %v1980
    %4168 = vmatprep.subr.bf16.mxu0 %v1987
    %4169 = vmatpush1.bf16.msra.mxu0 %v1986
    %4170 = vmatprep.subr.bf16.mxu0 %v1993
    %4171 = vmatpush1.bf16.msra.mxu0 %v1992
    %4172 = vmatprep.subr.bf16.mxu0 %v1999
    %4173 = vmatpush1.bf16.msra.mxu0 %v1998
    %4174 = vmatprep.subr.bf16.mxu0 %v2005
    %4175 = vmatpush1.bf16.msra.mxu0 %v2004
    %4176 = vmatprep.subr.bf16.mxu0 %v2011
    %4177 = vmatpush1.bf16.msra.mxu0 %v2010
    %4178 = vmatprep.subr.bf16.mxu0 %v2017
    %4179 = vmatpush1.bf16.msra.mxu0 %v2016
    %4180 = vmatprep.subr.bf16.mxu0 %v2023
    %4181 = vmatpush1.bf16.msra.mxu0 %v2022
    %4182 = vmatprep.subr.bf16.mxu0 %v2029
    %4183 = vmatpush1.bf16.msra.mxu0 %v2028
    %4184 = vmatprep.subr.bf16.mxu0 %v2035
    %4185 = vmatpush1.bf16.msra.mxu0 %v2034
    %4186 = vmatprep.subr.bf16.mxu0 %v2041
    %4187 = vmatpush1.bf16.msra.mxu0 %v2040
    %4188 = vmatprep.subr.bf16.mxu0 %v2047
    %4189 = vmatpush1.bf16.msra.mxu0 %v2046
    %4190 = vmatprep.subr.bf16.mxu0 %v2053
    %4191 = vmatpush1.bf16.msra.mxu0 %v2052
    %4192 = vmatprep.subr.bf16.mxu0 %v2059
    %4193 = vmatpush1.bf16.msra.mxu0 %v2058
    %4194 = vmatprep.mubr.bf16.mxu0 %v4159
    %4195 = vmatmul.mubr.bf16.gmra.mrb[0].mxu0 %v4158
    %v4196 = vpop.f32.mrb[0].mxu0
    %v4197 = vadd.f32 %v512, %v4196
    %v4198 = vpop.f32.mrb[0].mxu0
    %v4199 = vadd.f32 %v516, %v4198
    %v4200 = vpop.f32.mrb[0].mxu0
    %v4201 = vpop.f32.mrb[0].mxu0
    %4202 = vdwg.mxu0
    %4203 = vmatprep.subr.bf16.mxu0 %v1971
    %4204 = vmatpush1.bf16.msra.mxu0 %v1970
    %4205 = vmatprep.subr.bf16.mxu0 %v1977
    %4206 = vmatpush1.bf16.msra.mxu0 %v1976
    %4207 = vmatprep.subr.bf16.mxu0 %v1983
    %4208 = vmatpush1.bf16.msra.mxu0 %v1982
    %4209 = vmatprep.subr.bf16.mxu0 %v1989
    %4210 = vmatpush1.bf16.msra.mxu0 %v1988
    %4211 = vmatprep.subr.bf16.mxu0 %v1995
    %4212 = vmatpush1.bf16.msra.mxu0 %v1994
    %4213 = vmatprep.subr.bf16.mxu0 %v2001
    %4214 = vmatpush1.bf16.msra.mxu0 %v2000
    %4215 = vmatprep.subr.bf16.mxu0 %v2007
    %4216 = vmatpush1.bf16.msra.mxu0 %v2006
    %4217 = vmatprep.subr.bf16.mxu0 %v2013
    %4218 = vmatpush1.bf16.msra.mxu0 %v2012
    %4219 = vmatprep.subr.bf16.mxu0 %v2019
    %4220 = vmatpush1.bf16.msra.mxu0 %v2018
    %4221 = vmatprep.subr.bf16.mxu0 %v2025
    %4222 = vmatpush1.bf16.msra.mxu0 %v2024
    %4223 = vmatprep.subr.bf16.mxu0 %v2031
    %4224 = vmatpush1.bf16.msra.mxu0 %v2030
    %4225 = vmatprep.subr.bf16.mxu0 %v2037
    %4226 = vmatpush1.bf16.msra.mxu0 %v2036
    %4227 = vmatprep.subr.bf16.mxu0 %v2043
    %4228 = vmatpush1.bf16.msra.mxu0 %v2042
    %4229 = vmatprep.subr.bf16.mxu0 %v2049
    %4230 = vmatpush1.bf16.msra.mxu0 %v2048
    %4231 = vmatprep.subr.bf16.mxu0 %v2055
    %4232 = vmatpush1.bf16.msra.mxu0 %v2054
    %4233 = vmatprep.subr.bf16.mxu0 %v2061
    %4234 = vmatpush1.bf16.msra.mxu0 %v2060
    %4235 = vmatprep.mubr.bf16.mxu0 %v4159
    %4236 = vmatmul.mubr.bf16.gmra.mrb[0].mxu0 %v4158
    %v4237 = vpop.f32.mrb[0].mxu0
    %v4238 = vadd.f32 %v520, %v4237
    %v4239 = vpop.f32.mrb[0].mxu0
    %v4240 = vadd.f32 %v524, %v4239
    %v4241 = vpop.f32.mrb[0].mxu0
    %v4242 = vpop.f32.mrb[0].mxu0
    %4243 = vdwg.mxu0
    %4244 = vmatprep.subr.bf16.mxu0 %v1973
    %4245 = vmatpush1.bf16.msra.mxu0 %v1972
    %4246 = vmatprep.subr.bf16.mxu0 %v1979
    %4247 = vmatpush1.bf16.msra.mxu0 %v1978
    %4248 = vmatprep.subr.bf16.mxu0 %v1985
    %4249 = vmatpush1.bf16.msra.mxu0 %v1984
    %4250 = vmatprep.subr.bf16.mxu0 %v1991
    %4251 = vmatpush1.bf16.msra.mxu0 %v1990
    %4252 = vmatprep.subr.bf16.mxu0 %v1997
    %4253 = vmatpush1.bf16.msra.mxu0 %v1996
    %4254 = vmatprep.subr.bf16.mxu0 %v2003
    %4255 = vmatpush1.bf16.msra.mxu0 %v2002
    %4256 = vmatprep.subr.bf16.mxu0 %v2009
    %4257 = vmatpush1.bf16.msra.mxu0 %v2008
    %4258 = vmatprep.subr.bf16.mxu0 %v2015
    %4259 = vmatpush1.bf16.msra.mxu0 %v2014
    %4260 = vmatprep.subr.bf16.mxu0 %v2021
    %4261 = vmatpush1.bf16.msra.mxu0 %v2020
    %4262 = vmatprep.subr.bf16.mxu0 %v2027
    %4263 = vmatpush1.bf16.msra.mxu0 %v2026
    %4264 = vmatprep.subr.bf16.mxu0 %v2033
    %4265 = vmatpush1.bf16.msra.mxu0 %v2032
    %4266 = vmatprep.subr.bf16.mxu0 %v2039
    %4267 = vmatpush1.bf16.msra.mxu0 %v2038
    %4268 = vmatprep.subr.bf16.mxu0 %v2045
    %4269 = vmatpush1.bf16.msra.mxu0 %v2044
    %4270 = vmatprep.subr.bf16.mxu0 %v2051
    %4271 = vmatpush1.bf16.msra.mxu0 %v2050
    %4272 = vmatprep.subr.bf16.mxu0 %v2057
    %4273 = vmatpush1.bf16.msra.mxu0 %v2056
    %4274 = vmatprep.subr.bf16.mxu0 %v2063
    %4275 = vmatpush1.bf16.msra.mxu0 %v2062
    %4276 = vmatprep.mubr.bf16.mxu0 %v4159
    %4277 = vmatmul.mubr.bf16.gmra.mrb[0].mxu0 %v4158
    %v4278 = vpop.f32.mrb[0].mxu0
    %v4279 = vadd.f32 %v528, %v4278
    %v4280 = vpop.f32.mrb[0].mxu0
    %v4281 = vadd.f32 %v532, %v4280
    %v4282 = vpop.f32.mrb[0].mxu0
    %v4283 = vpop.f32.mrb[0].mxu0
    %4284 = vdwg.mxu0
    %v4287 = vrot.slane %v4197, 3
    %v4288 = vrot.slane %v4199, 3
    %v4289 = vrot.slane %v4197, 4
    %v4290 = vrot.slane %v4199, 4
    %v4291 = vrot.slane %v4197, 5
    %v4292 = vrot.slane %v4199, 5
    %v4293 = vrot.slane %v4197, 6
    %v4294 = vrot.slane %v4199, 6
    %v4303 = vadd.f32 %v1450, %v4287
    %v4304 = vadd.f32 %v1452, %v4288
    %v4305 = vadd.f32 %v1454, %v4289
    %v4306 = vadd.f32 %v1456, %v4290
    %v4307 = vadd.f32 %v1460, %v4291
    %v4308 = vadd.f32 %v1462, %v4292
    %v4309 = vadd.f32 %v1464, %v4293
    %v4310 = vadd.f32 %v1466, %v4294
    %v4311 = vxor.u32 %v4303, 2147483648
    %v4312 = vxor.u32 %v4304, 2147483648
    %v4313 = vxor.u32 %v4305, 2147483648
    %v4314 = vxor.u32 %v4306, 2147483648
    %v4315 = vxor.u32 %v4307, 2147483648
    %v4316 = vxor.u32 %v4308, 2147483648
    %v4317 = vxor.u32 %v4309, 2147483648
    %v4318 = vxor.u32 %v4310, 2147483648
    %v4319 = vmul.f32 %v4311, 1.442695
    %v4320 = vpow.pop %v4319
    %v4321 = vmul.f32 %v4312, 1.442695
    %v4322 = vpow.pop %v4321
    %v4323 = vmul.f32 %v4313, 1.442695
    %v4324 = vpow.pop %v4323
    %v4325 = vmul.f32 %v4314, 1.442695
    %v4326 = vpow.pop %v4325
    %v4327 = vmul.f32 %v4315, 1.442695
    %v4328 = vpow.pop %v4327
    %v4329 = vmul.f32 %v4316, 1.442695
    %v4330 = vpow.pop %v4329
    %v4331 = vmul.f32 %v4317, 1.442695
    %v4332 = vpow.pop %v4331
    %v4333 = vmul.f32 %v4318, 1.442695
    %v4334 = vpow.pop %v4333
    %v4335 = vadd.f32 %v4320, 1.0
    %v4336 = vadd.f32 %v4322, 1.0
    %v4337 = vadd.f32 %v4324, 1.0
    %v4338 = vadd.f32 %v4326, 1.0
    %v4339 = vadd.f32 %v4328, 1.0
    %v4340 = vadd.f32 %v4330, 1.0
    %v4341 = vadd.f32 %v4332, 1.0
    %v4342 = vadd.f32 %v4334, 1.0
    %v4343 = vrcp.pop %v4335
    %v4344 = vmul.f32 1.0, %v4343
    %v4345 = vrcp.pop %v4336
    %v4346 = vmul.f32 1.0, %v4345
    %v4347 = vrcp.pop %v4337
    %v4348 = vmul.f32 1.0, %v4347
    %v4349 = vrcp.pop %v4338
    %v4350 = vmul.f32 1.0, %v4349
    %v4351 = vrcp.pop %v4339
    %v4352 = vmul.f32 1.0, %v4351
    %v4353 = vrcp.pop %v4340
    %v4354 = vmul.f32 1.0, %v4353
    %v4355 = vrcp.pop %v4341
    %v4356 = vmul.f32 1.0, %v4355
    %v4357 = vrcp.pop %v4342
    %v4358 = vmul.f32 1.0, %v4357
    %v4361 = vrot.slane %v4238, 3
    %v4362 = vrot.slane %v4240, 3
    %v4363 = vrot.slane %v4238, 4
    %v4364 = vrot.slane %v4240, 4
    %v4365 = vrot.slane %v4238, 5
    %v4366 = vrot.slane %v4240, 5
    %v4367 = vrot.slane %v4238, 6
    %v4368 = vrot.slane %v4240, 6
    %v4377 = vadd.f32 %v1556, %v4361
    %v4378 = vadd.f32 %v1558, %v4362
    %v4379 = vadd.f32 %v1560, %v4363
    %v4380 = vadd.f32 %v1562, %v4364
    %v4381 = vadd.f32 %v1566, %v4365
    %v4382 = vadd.f32 %v1568, %v4366
    %v4383 = vadd.f32 %v1570, %v4367
    %v4384 = vadd.f32 %v1572, %v4368
    %v4385 = vxor.u32 %v4377, 2147483648
    %v4386 = vxor.u32 %v4378, 2147483648
    %v4387 = vxor.u32 %v4379, 2147483648
    %v4388 = vxor.u32 %v4380, 2147483648
    %v4389 = vxor.u32 %v4381, 2147483648
    %v4390 = vxor.u32 %v4382, 2147483648
    %v4391 = vxor.u32 %v4383, 2147483648
    %v4392 = vxor.u32 %v4384, 2147483648
    %v4393 = vmul.f32 %v4385, 1.442695
    %v4394 = vpow.pop %v4393
    %v4395 = vmul.f32 %v4386, 1.442695
    %v4396 = vpow.pop %v4395
    %v4397 = vmul.f32 %v4387, 1.442695
    %v4398 = vpow.pop %v4397
    %v4399 = vmul.f32 %v4388, 1.442695
    %v4400 = vpow.pop %v4399
    %v4401 = vmul.f32 %v4389, 1.442695
    %v4402 = vpow.pop %v4401
    %v4403 = vmul.f32 %v4390, 1.442695
    %v4404 = vpow.pop %v4403
    %v4405 = vmul.f32 %v4391, 1.442695
    %v4406 = vpow.pop %v4405
    %v4407 = vmul.f32 %v4392, 1.442695
    %v4408 = vpow.pop %v4407
    %v4409 = vadd.f32 %v4394, 1.0
    %v4410 = vadd.f32 %v4396, 1.0
    %v4411 = vadd.f32 %v4398, 1.0
    %v4412 = vadd.f32 %v4400, 1.0
    %v4413 = vadd.f32 %v4402, 1.0
    %v4414 = vadd.f32 %v4404, 1.0
    %v4415 = vadd.f32 %v4406, 1.0
    %v4416 = vadd.f32 %v4408, 1.0
    %v4417 = vrcp.pop %v4409
    %v4418 = vmul.f32 1.0, %v4417
    %v4419 = vrcp.pop %v4410
    %v4420 = vmul.f32 1.0, %v4419
    %v4421 = vrcp.pop %v4411
    %v4422 = vmul.f32 1.0, %v4421
    %v4423 = vrcp.pop %v4412
    %v4424 = vmul.f32 1.0, %v4423
    %v4425 = vrcp.pop %v4413
    %v4426 = vmul.f32 1.0, %v4425
    %v4427 = vrcp.pop %v4414
    %v4428 = vmul.f32 1.0, %v4427
    %v4429 = vrcp.pop %v4415
    %v4430 = vmul.f32 1.0, %v4429
    %v4431 = vrcp.pop %v4416
    %v4432 = vmul.f32 1.0, %v4431
    %v4435 = vrot.slane %v4279, 3
    %v4436 = vrot.slane %v4281, 3
    %v4437 = vrot.slane %v4279, 4
    %v4438 = vrot.slane %v4281, 4
    %v4439 = vrot.slane %v4279, 5
    %v4440 = vrot.slane %v4281, 5
    %v4441 = vrot.slane %v4279, 6
    %v4442 = vrot.slane %v4281, 6
    %v4451 = vmul.f32 %v4344, %v4435
    %v4452 = vmul.f32 %v4346, %v4436
    %v4453 = vmul.f32 %v4348, %v4437
    %v4454 = vmul.f32 %v4350, %v4438
    %v4455 = vmul.f32 %v4352, %v4439
    %v4456 = vmul.f32 %v4354, %v4440
    %v4457 = vmul.f32 %v4356, %v4441
    %v4458 = vmul.f32 %v4358, %v4442
    %v4459 = vadd.f32 %v1662, %v4451
    %v4460 = vadd.f32 %v1664, %v4452
    %v4461 = vadd.f32 %v1666, %v4453
    %v4462 = vadd.f32 %v1668, %v4454
    %v4463 = vadd.f32 %v1672, %v4455
    %v4464 = vadd.f32 %v1674, %v4456
    %v4465 = vadd.f32 %v1676, %v4457
    %v4466 = vadd.f32 %v1678, %v4458
    %v4467 = vtanh.pop %v4459
    %v4468 = vtanh.pop %v4460
    %v4469 = vtanh.pop %v4461
    %v4470 = vtanh.pop %v4462
    %v4471 = vtanh.pop %v4463
    %v4472 = vtanh.pop %v4464
    %v4473 = vtanh.pop %v4465
    %v4474 = vtanh.pop %v4466
    %v4475 = vsub.f32 1.0, %v4418
    %v4476 = vsub.f32 1.0, %v4420
    %v4477 = vsub.f32 1.0, %v4422
    %v4478 = vsub.f32 1.0, %v4424
    %v4479 = vsub.f32 1.0, %v4426
    %v4480 = vsub.f32 1.0, %v4428
    %v4481 = vsub.f32 1.0, %v4430
    %v4482 = vsub.f32 1.0, %v4432
    %v4483 = vmul.f32 %v4475, %v4467
    %v4484 = vmul.f32 %v4476, %v4468
    %v4485 = vmul.f32 %v4477, %v4469
    %v4486 = vmul.f32 %v4478, %v4470
    %v4487 = vmul.f32 %v4479, %v4471
    %v4488 = vmul.f32 %v4480, %v4472
    %v4489 = vmul.f32 %v4481, %v4473
    %v4490 = vmul.f32 %v4482, %v4474
    %v4499 = vrot.slane %v4112, 7
    %v4500 = vrot.slane %v4113, 7
    %v4501 = vrot.slane %v4114, 7
    %v4502 = vrot.slane %v4115, 7
    %v4503 = vrot.slane %v4116, 7
    %v4504 = vrot.slane %v4117, 7
    %v4505 = vrot.slane %v4118, 7
    %v4506 = vrot.slane %v4119, 7
    %v4515 = vmul.f32 %v4418, %v4499
    %v4516 = vmul.f32 %v4420, %v4500
    %v4517 = vmul.f32 %v4422, %v4501
    %v4518 = vmul.f32 %v4424, %v4502
    %v4519 = vmul.f32 %v4426, %v4503
    %v4520 = vmul.f32 %v4428, %v4504
    %v4521 = vmul.f32 %v4430, %v4505
    %v4522 = vmul.f32 %v4432, %v4506
    %v4523 = vadd.f32 %v4483, %v4515
    %v4524 = vadd.f32 %v4484, %v4516
    %v4525 = vadd.f32 %v4485, %v4517
    %v4526 = vadd.f32 %v4486, %v4518
    %v4527 = vadd.f32 %v4487, %v4519
    %v4528 = vadd.f32 %v4488, %v4520
    %v4529 = vadd.f32 %v4489, %v4521
    %v4530 = vadd.f32 %v4490, %v4522
    %v4531 = vpack.c.bf16 %v4523, %v4523
    %v4532 = vpack.c.bf16 %v4524, %v4524
    %v4533 = vpack.c.bf16 %v4525, %v4525
    %v4534 = vpack.c.bf16 %v4526, %v4526
    %v4535 = vpack.c.bf16 %v4527, %v4527
    %v4536 = vpack.c.bf16 %v4528, %v4528
    %v4537 = vpack.c.bf16 %v4529, %v4529
    %v4538 = vpack.c.bf16 %v4530, %v4530
    %v4547 = vunpack.c.l.b16 %v4531
    %v4548 = vunpack.c.l.b16 %v4532
    %v4549 = vunpack.c.l.b16 %v4533
    %v4550 = vunpack.c.l.b16 %v4534
    %v4551 = vunpack.c.l.b16 %v4535
    %v4552 = vunpack.c.l.b16 %v4536
    %v4553 = vunpack.c.l.b16 %v4537
    %v4554 = vunpack.c.l.b16 %v4538
    %v4555 = vrot.slane %v4547, 5
    %v4556 = vrot.slane %v4549, 4
    %v4557 = vsel %vm2524, %v4556, %v4555
    %v4558 = vrot.slane %v4551, 3
    %v4559 = vsel %vm2527, %v4558, %v4557
    %v4560 = vrot.slane %v4553, 2
    %v4561 = vsel %vm2530, %v4560, %v4559
    %v4562 = vrot.slane %v4548, 5
    %v4563 = vrot.slane %v4550, 4
    %v4564 = vsel %vm2524, %v4563, %v4562
    %v4565 = vrot.slane %v4552, 3
    %v4566 = vsel %vm2527, %v4565, %v4564
    %v4567 = vrot.slane %v4554, 2
    %v4568 = vsel %vm2530, %v4567, %v4566
    %v4569 = vpack.c.b16 %v4561, %v4561
    %v4570 = vpack.c.b16 %v4568, %v4568
    %4573 = vmatprep.subr.bf16.mxu0 %v1969
    %4574 = vmatpush1.bf16.msra.mxu0 %v1968
    %4575 = vmatprep.subr.bf16.mxu0 %v1975
    %4576 = vmatpush1.bf16.msra.mxu0 %v1974
    %4577 = vmatprep.subr.bf16.mxu0 %v1981
    %4578 = vmatpush1.bf16.msra.mxu0 %v1980
    %4579 = vmatprep.subr.bf16.mxu0 %v1987
    %4580 = vmatpush1.bf16.msra.mxu0 %v1986
    %4581 = vmatprep.subr.bf16.mxu0 %v1993
    %4582 = vmatpush1.bf16.msra.mxu0 %v1992
    %4583 = vmatprep.subr.bf16.mxu0 %v1999
    %4584 = vmatpush1.bf16.msra.mxu0 %v1998
    %4585 = vmatprep.subr.bf16.mxu0 %v2005
    %4586 = vmatpush1.bf16.msra.mxu0 %v2004
    %4587 = vmatprep.subr.bf16.mxu0 %v2011
    %4588 = vmatpush1.bf16.msra.mxu0 %v2010
    %4589 = vmatprep.subr.bf16.mxu0 %v2017
    %4590 = vmatpush1.bf16.msra.mxu0 %v2016
    %4591 = vmatprep.subr.bf16.mxu0 %v2023
    %4592 = vmatpush1.bf16.msra.mxu0 %v2022
    %4593 = vmatprep.subr.bf16.mxu0 %v2029
    %4594 = vmatpush1.bf16.msra.mxu0 %v2028
    %4595 = vmatprep.subr.bf16.mxu0 %v2035
    %4596 = vmatpush1.bf16.msra.mxu0 %v2034
    %4597 = vmatprep.subr.bf16.mxu0 %v2041
    %4598 = vmatpush1.bf16.msra.mxu0 %v2040
    %4599 = vmatprep.subr.bf16.mxu0 %v2047
    %4600 = vmatpush1.bf16.msra.mxu0 %v2046
    %4601 = vmatprep.subr.bf16.mxu0 %v2053
    %4602 = vmatpush1.bf16.msra.mxu0 %v2052
    %4603 = vmatprep.subr.bf16.mxu0 %v2059
    %4604 = vmatpush1.bf16.msra.mxu0 %v2058
    %4605 = vmatprep.mubr.bf16.mxu0 %v4570
    %4606 = vmatmul.mubr.bf16.gmra.mrb[0].mxu0 %v4569
    %v4607 = vpop.f32.mrb[0].mxu0
    %v4608 = vadd.f32 %v512, %v4607
    %v4609 = vpop.f32.mrb[0].mxu0
    %v4610 = vadd.f32 %v516, %v4609
    %v4611 = vpop.f32.mrb[0].mxu0
    %v4612 = vpop.f32.mrb[0].mxu0
    %4613 = vdwg.mxu0
    %4614 = vmatprep.subr.bf16.mxu0 %v1971
    %4615 = vmatpush1.bf16.msra.mxu0 %v1970
    %4616 = vmatprep.subr.bf16.mxu0 %v1977
    %4617 = vmatpush1.bf16.msra.mxu0 %v1976
    %4618 = vmatprep.subr.bf16.mxu0 %v1983
    %4619 = vmatpush1.bf16.msra.mxu0 %v1982
    %4620 = vmatprep.subr.bf16.mxu0 %v1989
    %4621 = vmatpush1.bf16.msra.mxu0 %v1988
    %4622 = vmatprep.subr.bf16.mxu0 %v1995
    %4623 = vmatpush1.bf16.msra.mxu0 %v1994
    %4624 = vmatprep.subr.bf16.mxu0 %v2001
    %4625 = vmatpush1.bf16.msra.mxu0 %v2000
    %4626 = vmatprep.subr.bf16.mxu0 %v2007
    %4627 = vmatpush1.bf16.msra.mxu0 %v2006
    %4628 = vmatprep.subr.bf16.mxu0 %v2013
    %4629 = vmatpush1.bf16.msra.mxu0 %v2012
    %4630 = vmatprep.subr.bf16.mxu0 %v2019
    %4631 = vmatpush1.bf16.msra.mxu0 %v2018
    %4632 = vmatprep.subr.bf16.mxu0 %v2025
    %4633 = vmatpush1.bf16.msra.mxu0 %v2024
    %4634 = vmatprep.subr.bf16.mxu0 %v2031
    %4635 = vmatpush1.bf16.msra.mxu0 %v2030
    %4636 = vmatprep.subr.bf16.mxu0 %v2037
    %4637 = vmatpush1.bf16.msra.mxu0 %v2036
    %4638 = vmatprep.subr.bf16.mxu0 %v2043
    %4639 = vmatpush1.bf16.msra.mxu0 %v2042
    %4640 = vmatprep.subr.bf16.mxu0 %v2049
    %4641 = vmatpush1.bf16.msra.mxu0 %v2048
    %4642 = vmatprep.subr.bf16.mxu0 %v2055
    %4643 = vmatpush1.bf16.msra.mxu0 %v2054
    %4644 = vmatprep.subr.bf16.mxu0 %v2061
    %4645 = vmatpush1.bf16.msra.mxu0 %v2060
    %4646 = vmatprep.mubr.bf16.mxu0 %v4570
    %4647 = vmatmul.mubr.bf16.gmra.mrb[0].mxu0 %v4569
    %v4648 = vpop.f32.mrb[0].mxu0
    %v4649 = vadd.f32 %v520, %v4648
    %v4650 = vpop.f32.mrb[0].mxu0
    %v4651 = vadd.f32 %v524, %v4650
    %v4652 = vpop.f32.mrb[0].mxu0
    %v4653 = vpop.f32.mrb[0].mxu0
    %4654 = vdwg.mxu0
    %4655 = vmatprep.subr.bf16.mxu0 %v1973
    %4656 = vmatpush1.bf16.msra.mxu0 %v1972
    %4657 = vmatprep.subr.bf16.mxu0 %v1979
    %4658 = vmatpush1.bf16.msra.mxu0 %v1978
    %4659 = vmatprep.subr.bf16.mxu0 %v1985
    %4660 = vmatpush1.bf16.msra.mxu0 %v1984
    %4661 = vmatprep.subr.bf16.mxu0 %v1991
    %4662 = vmatpush1.bf16.msra.mxu0 %v1990
    %4663 = vmatprep.subr.bf16.mxu0 %v1997
    %4664 = vmatpush1.bf16.msra.mxu0 %v1996
    %4665 = vmatprep.subr.bf16.mxu0 %v2003
    %4666 = vmatpush1.bf16.msra.mxu0 %v2002
    %4667 = vmatprep.subr.bf16.mxu0 %v2009
    %4668 = vmatpush1.bf16.msra.mxu0 %v2008
    %4669 = vmatprep.subr.bf16.mxu0 %v2015
    %4670 = vmatpush1.bf16.msra.mxu0 %v2014
    %4671 = vmatprep.subr.bf16.mxu0 %v2021
    %4672 = vmatpush1.bf16.msra.mxu0 %v2020
    %4673 = vmatprep.subr.bf16.mxu0 %v2027
    %4674 = vmatpush1.bf16.msra.mxu0 %v2026
    %4675 = vmatprep.subr.bf16.mxu0 %v2033
    %4676 = vmatpush1.bf16.msra.mxu0 %v2032
    %4677 = vmatprep.subr.bf16.mxu0 %v2039
    %4678 = vmatpush1.bf16.msra.mxu0 %v2038
    %4679 = vmatprep.subr.bf16.mxu0 %v2045
    %4680 = vmatpush1.bf16.msra.mxu0 %v2044
    %4681 = vmatprep.subr.bf16.mxu0 %v2051
    %4682 = vmatpush1.bf16.msra.mxu0 %v2050
    %4683 = vmatprep.subr.bf16.mxu0 %v2057
    %4684 = vmatpush1.bf16.msra.mxu0 %v2056
    %4685 = vmatprep.subr.bf16.mxu0 %v2063
    %4686 = vmatpush1.bf16.msra.mxu0 %v2062
    %4687 = vmatprep.mubr.bf16.mxu0 %v4570
    %4688 = vmatmul.mubr.bf16.gmra.mrb[0].mxu0 %v4569
    %v4689 = vpop.f32.mrb[0].mxu0
    %v4690 = vadd.f32 %v528, %v4689
    %v4691 = vpop.f32.mrb[0].mxu0
    %v4692 = vadd.f32 %v532, %v4691
    %v4693 = vpop.f32.mrb[0].mxu0
    %v4694 = vpop.f32.mrb[0].mxu0
    %4695 = vdwg.mxu0
    %v4698 = vrot.slane %v4608, 2
    %v4699 = vrot.slane %v4610, 2
    %v4700 = vrot.slane %v4608, 3
    %v4701 = vrot.slane %v4610, 3
    %v4702 = vrot.slane %v4608, 4
    %v4703 = vrot.slane %v4610, 4
    %v4704 = vrot.slane %v4608, 5
    %v4705 = vrot.slane %v4610, 5
    %v4714 = vadd.f32 %v1450, %v4698
    %v4715 = vadd.f32 %v1452, %v4699
    %v4716 = vadd.f32 %v1454, %v4700
    %v4717 = vadd.f32 %v1456, %v4701
    %v4718 = vadd.f32 %v1460, %v4702
    %v4719 = vadd.f32 %v1462, %v4703
    %v4720 = vadd.f32 %v1464, %v4704
    %v4721 = vadd.f32 %v1466, %v4705
    %v4722 = vxor.u32 %v4714, 2147483648
    %v4723 = vxor.u32 %v4715, 2147483648
    %v4724 = vxor.u32 %v4716, 2147483648
    %v4725 = vxor.u32 %v4717, 2147483648
    %v4726 = vxor.u32 %v4718, 2147483648
    %v4727 = vxor.u32 %v4719, 2147483648
    %v4728 = vxor.u32 %v4720, 2147483648
    %v4729 = vxor.u32 %v4721, 2147483648
    %v4730 = vmul.f32 %v4722, 1.442695
    %v4731 = vpow.pop %v4730
    %v4732 = vmul.f32 %v4723, 1.442695
    %v4733 = vpow.pop %v4732
    %v4734 = vmul.f32 %v4724, 1.442695
    %v4735 = vpow.pop %v4734
    %v4736 = vmul.f32 %v4725, 1.442695
    %v4737 = vpow.pop %v4736
    %v4738 = vmul.f32 %v4726, 1.442695
    %v4739 = vpow.pop %v4738
    %v4740 = vmul.f32 %v4727, 1.442695
    %v4741 = vpow.pop %v4740
    %v4742 = vmul.f32 %v4728, 1.442695
    %v4743 = vpow.pop %v4742
    %v4744 = vmul.f32 %v4729, 1.442695
    %v4745 = vpow.pop %v4744
    %v4746 = vadd.f32 %v4731, 1.0
    %v4747 = vadd.f32 %v4733, 1.0
    %v4748 = vadd.f32 %v4735, 1.0
    %v4749 = vadd.f32 %v4737, 1.0
    %v4750 = vadd.f32 %v4739, 1.0
    %v4751 = vadd.f32 %v4741, 1.0
    %v4752 = vadd.f32 %v4743, 1.0
    %v4753 = vadd.f32 %v4745, 1.0
    %v4754 = vrcp.pop %v4746
    %v4755 = vmul.f32 1.0, %v4754
    %v4756 = vrcp.pop %v4747
    %v4757 = vmul.f32 1.0, %v4756
    %v4758 = vrcp.pop %v4748
    %v4759 = vmul.f32 1.0, %v4758
    %v4760 = vrcp.pop %v4749
    %v4761 = vmul.f32 1.0, %v4760
    %v4762 = vrcp.pop %v4750
    %v4763 = vmul.f32 1.0, %v4762
    %v4764 = vrcp.pop %v4751
    %v4765 = vmul.f32 1.0, %v4764
    %v4766 = vrcp.pop %v4752
    %v4767 = vmul.f32 1.0, %v4766
    %v4768 = vrcp.pop %v4753
    %v4769 = vmul.f32 1.0, %v4768
    %v4772 = vrot.slane %v4649, 2
    %v4773 = vrot.slane %v4651, 2
    %v4774 = vrot.slane %v4649, 3
    %v4775 = vrot.slane %v4651, 3
    %v4776 = vrot.slane %v4649, 4
    %v4777 = vrot.slane %v4651, 4
    %v4778 = vrot.slane %v4649, 5
    %v4779 = vrot.slane %v4651, 5
    %v4788 = vadd.f32 %v1556, %v4772
    %v4789 = vadd.f32 %v1558, %v4773
    %v4790 = vadd.f32 %v1560, %v4774
    %v4791 = vadd.f32 %v1562, %v4775
    %v4792 = vadd.f32 %v1566, %v4776
    %v4793 = vadd.f32 %v1568, %v4777
    %v4794 = vadd.f32 %v1570, %v4778
    %v4795 = vadd.f32 %v1572, %v4779
    %v4796 = vxor.u32 %v4788, 2147483648
    %v4797 = vxor.u32 %v4789, 2147483648
    %v4798 = vxor.u32 %v4790, 2147483648
    %v4799 = vxor.u32 %v4791, 2147483648
    %v4800 = vxor.u32 %v4792, 2147483648
    %v4801 = vxor.u32 %v4793, 2147483648
    %v4802 = vxor.u32 %v4794, 2147483648
    %v4803 = vxor.u32 %v4795, 2147483648
    %v4804 = vmul.f32 %v4796, 1.442695
    %v4805 = vpow.pop %v4804
    %v4806 = vmul.f32 %v4797, 1.442695
    %v4807 = vpow.pop %v4806
    %v4808 = vmul.f32 %v4798, 1.442695
    %v4809 = vpow.pop %v4808
    %v4810 = vmul.f32 %v4799, 1.442695
    %v4811 = vpow.pop %v4810
    %v4812 = vmul.f32 %v4800, 1.442695
    %v4813 = vpow.pop %v4812
    %v4814 = vmul.f32 %v4801, 1.442695
    %v4815 = vpow.pop %v4814
    %v4816 = vmul.f32 %v4802, 1.442695
    %v4817 = vpow.pop %v4816
    %v4818 = vmul.f32 %v4803, 1.442695
    %v4819 = vpow.pop %v4818
    %v4820 = vadd.f32 %v4805, 1.0
    %v4821 = vadd.f32 %v4807, 1.0
    %v4822 = vadd.f32 %v4809, 1.0
    %v4823 = vadd.f32 %v4811, 1.0
    %v4824 = vadd.f32 %v4813, 1.0
    %v4825 = vadd.f32 %v4815, 1.0
    %v4826 = vadd.f32 %v4817, 1.0
    %v4827 = vadd.f32 %v4819, 1.0
    %v4828 = vrcp.pop %v4820
    %v4829 = vmul.f32 1.0, %v4828
    %v4830 = vrcp.pop %v4821
    %v4831 = vmul.f32 1.0, %v4830
    %v4832 = vrcp.pop %v4822
    %v4833 = vmul.f32 1.0, %v4832
    %v4834 = vrcp.pop %v4823
    %v4835 = vmul.f32 1.0, %v4834
    %v4836 = vrcp.pop %v4824
    %v4837 = vmul.f32 1.0, %v4836
    %v4838 = vrcp.pop %v4825
    %v4839 = vmul.f32 1.0, %v4838
    %v4840 = vrcp.pop %v4826
    %v4841 = vmul.f32 1.0, %v4840
    %v4842 = vrcp.pop %v4827
    %v4843 = vmul.f32 1.0, %v4842
    %v4846 = vrot.slane %v4690, 2
    %v4847 = vrot.slane %v4692, 2
    %v4848 = vrot.slane %v4690, 3
    %v4849 = vrot.slane %v4692, 3
    %v4850 = vrot.slane %v4690, 4
    %v4851 = vrot.slane %v4692, 4
    %v4852 = vrot.slane %v4690, 5
    %v4853 = vrot.slane %v4692, 5
    %v4862 = vmul.f32 %v4755, %v4846
    %v4863 = vmul.f32 %v4757, %v4847
    %v4864 = vmul.f32 %v4759, %v4848
    %v4865 = vmul.f32 %v4761, %v4849
    %v4866 = vmul.f32 %v4763, %v4850
    %v4867 = vmul.f32 %v4765, %v4851
    %v4868 = vmul.f32 %v4767, %v4852
    %v4869 = vmul.f32 %v4769, %v4853
    %v4870 = vadd.f32 %v1662, %v4862
    %v4871 = vadd.f32 %v1664, %v4863
    %v4872 = vadd.f32 %v1666, %v4864
    %v4873 = vadd.f32 %v1668, %v4865
    %v4874 = vadd.f32 %v1672, %v4866
    %v4875 = vadd.f32 %v1674, %v4867
    %v4876 = vadd.f32 %v1676, %v4868
    %v4877 = vadd.f32 %v1678, %v4869
    %v4878 = vtanh.pop %v4870
    %v4879 = vtanh.pop %v4871
    %v4880 = vtanh.pop %v4872
    %v4881 = vtanh.pop %v4873
    %v4882 = vtanh.pop %v4874
    %v4883 = vtanh.pop %v4875
    %v4884 = vtanh.pop %v4876
    %v4885 = vtanh.pop %v4877
    %v4886 = vsub.f32 1.0, %v4829
    %v4887 = vsub.f32 1.0, %v4831
    %v4888 = vsub.f32 1.0, %v4833
    %v4889 = vsub.f32 1.0, %v4835
    %v4890 = vsub.f32 1.0, %v4837
    %v4891 = vsub.f32 1.0, %v4839
    %v4892 = vsub.f32 1.0, %v4841
    %v4893 = vsub.f32 1.0, %v4843
    %v4894 = vmul.f32 %v4886, %v4878
    %v4895 = vmul.f32 %v4887, %v4879
    %v4896 = vmul.f32 %v4888, %v4880
    %v4897 = vmul.f32 %v4889, %v4881
    %v4898 = vmul.f32 %v4890, %v4882
    %v4899 = vmul.f32 %v4891, %v4883
    %v4900 = vmul.f32 %v4892, %v4884
    %v4901 = vmul.f32 %v4893, %v4885
    %v4910 = vrot.slane %v4523, 7
    %v4911 = vrot.slane %v4524, 7
    %v4912 = vrot.slane %v4525, 7
    %v4913 = vrot.slane %v4526, 7
    %v4914 = vrot.slane %v4527, 7
    %v4915 = vrot.slane %v4528, 7
    %v4916 = vrot.slane %v4529, 7
    %v4917 = vrot.slane %v4530, 7
    %v4926 = vmul.f32 %v4829, %v4910
    %v4927 = vmul.f32 %v4831, %v4911
    %v4928 = vmul.f32 %v4833, %v4912
    %v4929 = vmul.f32 %v4835, %v4913
    %v4930 = vmul.f32 %v4837, %v4914
    %v4931 = vmul.f32 %v4839, %v4915
    %v4932 = vmul.f32 %v4841, %v4916
    %v4933 = vmul.f32 %v4843, %v4917
    %v4934 = vadd.f32 %v4894, %v4926
    %v4935 = vadd.f32 %v4895, %v4927
    %v4936 = vadd.f32 %v4896, %v4928
    %v4937 = vadd.f32 %v4897, %v4929
    %v4938 = vadd.f32 %v4898, %v4930
    %v4939 = vadd.f32 %v4899, %v4931
    %v4940 = vadd.f32 %v4900, %v4932
    %v4941 = vadd.f32 %v4901, %v4933
    %v4942 = vpack.c.bf16 %v4934, %v4934
    %v4943 = vpack.c.bf16 %v4935, %v4935
    %v4944 = vpack.c.bf16 %v4936, %v4936
    %v4945 = vpack.c.bf16 %v4937, %v4937
    %v4946 = vpack.c.bf16 %v4938, %v4938
    %v4947 = vpack.c.bf16 %v4939, %v4939
    %v4948 = vpack.c.bf16 %v4940, %v4940
    %v4949 = vpack.c.bf16 %v4941, %v4941
    %v4958 = vunpack.c.l.b16 %v4942
    %v4959 = vunpack.c.l.b16 %v4943
    %v4960 = vunpack.c.l.b16 %v4944
    %v4961 = vunpack.c.l.b16 %v4945
    %v4962 = vunpack.c.l.b16 %v4946
    %v4963 = vunpack.c.l.b16 %v4947
    %v4964 = vunpack.c.l.b16 %v4948
    %v4965 = vunpack.c.l.b16 %v4949
    %v4966 = vrot.slane %v4958, 6
    %v4967 = vrot.slane %v4960, 5
    %v4968 = vsel %vm2524, %v4967, %v4966
    %v4969 = vrot.slane %v4962, 4
    %v4970 = vsel %vm2527, %v4969, %v4968
    %v4971 = vrot.slane %v4964, 3
    %v4972 = vsel %vm2530, %v4971, %v4970
    %v4973 = vrot.slane %v4959, 6
    %v4974 = vrot.slane %v4961, 5
    %v4975 = vsel %vm2524, %v4974, %v4973
    %v4976 = vrot.slane %v4963, 4
    %v4977 = vsel %vm2527, %v4976, %v4975
    %v4978 = vrot.slane %v4965, 3
    %v4979 = vsel %vm2530, %v4978, %v4977
    %v4980 = vpack.c.b16 %v4972, %v4972
    %v4981 = vpack.c.b16 %v4979, %v4979
    %4984 = vmatprep.subr.bf16.mxu0 %v1969
    %4985 = vmatpush1.bf16.msra.mxu0 %v1968
    %4986 = vmatprep.subr.bf16.mxu0 %v1975
    %4987 = vmatpush1.bf16.msra.mxu0 %v1974
    %4988 = vmatprep.subr.bf16.mxu0 %v1981
    %4989 = vmatpush1.bf16.msra.mxu0 %v1980
    %4990 = vmatprep.subr.bf16.mxu0 %v1987
    %4991 = vmatpush1.bf16.msra.mxu0 %v1986
    %4992 = vmatprep.subr.bf16.mxu0 %v1993
    %4993 = vmatpush1.bf16.msra.mxu0 %v1992
    %4994 = vmatprep.subr.bf16.mxu0 %v1999
    %4995 = vmatpush1.bf16.msra.mxu0 %v1998
    %4996 = vmatprep.subr.bf16.mxu0 %v2005
    %4997 = vmatpush1.bf16.msra.mxu0 %v2004
    %4998 = vmatprep.subr.bf16.mxu0 %v2011
    %4999 = vmatpush1.bf16.msra.mxu0 %v2010
    %5000 = vmatprep.subr.bf16.mxu0 %v2017
    %5001 = vmatpush1.bf16.msra.mxu0 %v2016
    %5002 = vmatprep.subr.bf16.mxu0 %v2023
    %5003 = vmatpush1.bf16.msra.mxu0 %v2022
    %5004 = vmatprep.subr.bf16.mxu0 %v2029
    %5005 = vmatpush1.bf16.msra.mxu0 %v2028
    %5006 = vmatprep.subr.bf16.mxu0 %v2035
    %5007 = vmatpush1.bf16.msra.mxu0 %v2034
    %5008 = vmatprep.subr.bf16.mxu0 %v2041
    %5009 = vmatpush1.bf16.msra.mxu0 %v2040
    %5010 = vmatprep.subr.bf16.mxu0 %v2047
    %5011 = vmatpush1.bf16.msra.mxu0 %v2046
    %5012 = vmatprep.subr.bf16.mxu0 %v2053
    %5013 = vmatpush1.bf16.msra.mxu0 %v2052
    %5014 = vmatprep.subr.bf16.mxu0 %v2059
    %5015 = vmatpush1.bf16.msra.mxu0 %v2058
    %5016 = vmatprep.mubr.bf16.mxu0 %v4981
    %5017 = vmatmul.mubr.bf16.gmra.mrb[0].mxu0 %v4980
    %v5018 = vpop.f32.mrb[0].mxu0
    %v5019 = vadd.f32 %v512, %v5018
    %v5020 = vpop.f32.mrb[0].mxu0
    %v5021 = vadd.f32 %v516, %v5020
    %v5022 = vpop.f32.mrb[0].mxu0
    %v5023 = vpop.f32.mrb[0].mxu0
    %5024 = vdwg.mxu0
    %5025 = vmatprep.subr.bf16.mxu0 %v1971
    %5026 = vmatpush1.bf16.msra.mxu0 %v1970
    %5027 = vmatprep.subr.bf16.mxu0 %v1977
    %5028 = vmatpush1.bf16.msra.mxu0 %v1976
    %5029 = vmatprep.subr.bf16.mxu0 %v1983
    %5030 = vmatpush1.bf16.msra.mxu0 %v1982
    %5031 = vmatprep.subr.bf16.mxu0 %v1989
    %5032 = vmatpush1.bf16.msra.mxu0 %v1988
    %5033 = vmatprep.subr.bf16.mxu0 %v1995
    %5034 = vmatpush1.bf16.msra.mxu0 %v1994
    %5035 = vmatprep.subr.bf16.mxu0 %v2001
    %5036 = vmatpush1.bf16.msra.mxu0 %v2000
    %5037 = vmatprep.subr.bf16.mxu0 %v2007
    %5038 = vmatpush1.bf16.msra.mxu0 %v2006
    %5039 = vmatprep.subr.bf16.mxu0 %v2013
    %5040 = vmatpush1.bf16.msra.mxu0 %v2012
    %5041 = vmatprep.subr.bf16.mxu0 %v2019
    %5042 = vmatpush1.bf16.msra.mxu0 %v2018
    %5043 = vmatprep.subr.bf16.mxu0 %v2025
    %5044 = vmatpush1.bf16.msra.mxu0 %v2024
    %5045 = vmatprep.subr.bf16.mxu0 %v2031
    %5046 = vmatpush1.bf16.msra.mxu0 %v2030
    %5047 = vmatprep.subr.bf16.mxu0 %v2037
    %5048 = vmatpush1.bf16.msra.mxu0 %v2036
    %5049 = vmatprep.subr.bf16.mxu0 %v2043
    %5050 = vmatpush1.bf16.msra.mxu0 %v2042
    %5051 = vmatprep.subr.bf16.mxu0 %v2049
    %5052 = vmatpush1.bf16.msra.mxu0 %v2048
    %5053 = vmatprep.subr.bf16.mxu0 %v2055
    %5054 = vmatpush1.bf16.msra.mxu0 %v2054
    %5055 = vmatprep.subr.bf16.mxu0 %v2061
    %5056 = vmatpush1.bf16.msra.mxu0 %v2060
    %5057 = vmatprep.mubr.bf16.mxu0 %v4981
    %5058 = vmatmul.mubr.bf16.gmra.mrb[0].mxu0 %v4980
    %v5059 = vpop.f32.mrb[0].mxu0
    %v5060 = vadd.f32 %v520, %v5059
    %v5061 = vpop.f32.mrb[0].mxu0
    %v5062 = vadd.f32 %v524, %v5061
    %v5063 = vpop.f32.mrb[0].mxu0
    %v5064 = vpop.f32.mrb[0].mxu0
    %5065 = vdwg.mxu0
    %5066 = vmatprep.subr.bf16.mxu0 %v1973
    %5067 = vmatpush1.bf16.msra.mxu0 %v1972
    %5068 = vmatprep.subr.bf16.mxu0 %v1979
    %5069 = vmatpush1.bf16.msra.mxu0 %v1978
    %5070 = vmatprep.subr.bf16.mxu0 %v1985
    %5071 = vmatpush1.bf16.msra.mxu0 %v1984
    %5072 = vmatprep.subr.bf16.mxu0 %v1991
    %5073 = vmatpush1.bf16.msra.mxu0 %v1990
    %5074 = vmatprep.subr.bf16.mxu0 %v1997
    %5075 = vmatpush1.bf16.msra.mxu0 %v1996
    %5076 = vmatprep.subr.bf16.mxu0 %v2003
    %5077 = vmatpush1.bf16.msra.mxu0 %v2002
    %5078 = vmatprep.subr.bf16.mxu0 %v2009
    %5079 = vmatpush1.bf16.msra.mxu0 %v2008
    %5080 = vmatprep.subr.bf16.mxu0 %v2015
    %5081 = vmatpush1.bf16.msra.mxu0 %v2014
    %5082 = vmatprep.subr.bf16.mxu0 %v2021
    %5083 = vmatpush1.bf16.msra.mxu0 %v2020
    %5084 = vmatprep.subr.bf16.mxu0 %v2027
    %5085 = vmatpush1.bf16.msra.mxu0 %v2026
    %5086 = vmatprep.subr.bf16.mxu0 %v2033
    %5087 = vmatpush1.bf16.msra.mxu0 %v2032
    %5088 = vmatprep.subr.bf16.mxu0 %v2039
    %5089 = vmatpush1.bf16.msra.mxu0 %v2038
    %5090 = vmatprep.subr.bf16.mxu0 %v2045
    %5091 = vmatpush1.bf16.msra.mxu0 %v2044
    %5092 = vmatprep.subr.bf16.mxu0 %v2051
    %5093 = vmatpush1.bf16.msra.mxu0 %v2050
    %5094 = vmatprep.subr.bf16.mxu0 %v2057
    %5095 = vmatpush1.bf16.msra.mxu0 %v2056
    %5096 = vmatprep.subr.bf16.mxu0 %v2063
    %5097 = vmatpush1.bf16.msra.mxu0 %v2062
    %5098 = vmatprep.mubr.bf16.mxu0 %v4981
    %5099 = vmatmul.mubr.bf16.gmra.mrb[0].mxu0 %v4980
    %v5100 = vpop.f32.mrb[0].mxu0
    %v5101 = vadd.f32 %v528, %v5100
    %v5102 = vpop.f32.mrb[0].mxu0
    %v5103 = vadd.f32 %v532, %v5102
    %v5104 = vpop.f32.mrb[0].mxu0
    %v5105 = vpop.f32.mrb[0].mxu0
    %5106 = vdwg.mxu0
    %v5109 = vrot.slane %v5019, 1
    %v5110 = vrot.slane %v5021, 1
    %v5111 = vrot.slane %v5019, 2
    %v5112 = vrot.slane %v5021, 2
    %v5113 = vrot.slane %v5019, 3
    %v5114 = vrot.slane %v5021, 3
    %v5115 = vrot.slane %v5019, 4
    %v5116 = vrot.slane %v5021, 4
    %v5125 = vadd.f32 %v1450, %v5109
    %v5126 = vadd.f32 %v1452, %v5110
    %v5127 = vadd.f32 %v1454, %v5111
    %v5128 = vadd.f32 %v1456, %v5112
    %v5129 = vadd.f32 %v1460, %v5113
    %v5130 = vadd.f32 %v1462, %v5114
    %v5131 = vadd.f32 %v1464, %v5115
    %v5132 = vadd.f32 %v1466, %v5116
    %v5133 = vxor.u32 %v5125, 2147483648
    %v5134 = vxor.u32 %v5126, 2147483648
    %v5135 = vxor.u32 %v5127, 2147483648
    %v5136 = vxor.u32 %v5128, 2147483648
    %v5137 = vxor.u32 %v5129, 2147483648
    %v5138 = vxor.u32 %v5130, 2147483648
    %v5139 = vxor.u32 %v5131, 2147483648
    %v5140 = vxor.u32 %v5132, 2147483648
    %v5141 = vmul.f32 %v5133, 1.442695
    %v5142 = vpow.pop %v5141
    %v5143 = vmul.f32 %v5134, 1.442695
    %v5144 = vpow.pop %v5143
    %v5145 = vmul.f32 %v5135, 1.442695
    %v5146 = vpow.pop %v5145
    %v5147 = vmul.f32 %v5136, 1.442695
    %v5148 = vpow.pop %v5147
    %v5149 = vmul.f32 %v5137, 1.442695
    %v5150 = vpow.pop %v5149
    %v5151 = vmul.f32 %v5138, 1.442695
    %v5152 = vpow.pop %v5151
    %v5153 = vmul.f32 %v5139, 1.442695
    %v5154 = vpow.pop %v5153
    %v5155 = vmul.f32 %v5140, 1.442695
    %v5156 = vpow.pop %v5155
    %v5157 = vadd.f32 %v5142, 1.0
    %v5158 = vadd.f32 %v5144, 1.0
    %v5159 = vadd.f32 %v5146, 1.0
    %v5160 = vadd.f32 %v5148, 1.0
    %v5161 = vadd.f32 %v5150, 1.0
    %v5162 = vadd.f32 %v5152, 1.0
    %v5163 = vadd.f32 %v5154, 1.0
    %v5164 = vadd.f32 %v5156, 1.0
    %v5165 = vrcp.pop %v5157
    %v5166 = vmul.f32 1.0, %v5165
    %v5167 = vrcp.pop %v5158
    %v5168 = vmul.f32 1.0, %v5167
    %v5169 = vrcp.pop %v5159
    %v5170 = vmul.f32 1.0, %v5169
    %v5171 = vrcp.pop %v5160
    %v5172 = vmul.f32 1.0, %v5171
    %v5173 = vrcp.pop %v5161
    %v5174 = vmul.f32 1.0, %v5173
    %v5175 = vrcp.pop %v5162
    %v5176 = vmul.f32 1.0, %v5175
    %v5177 = vrcp.pop %v5163
    %v5178 = vmul.f32 1.0, %v5177
    %v5179 = vrcp.pop %v5164
    %v5180 = vmul.f32 1.0, %v5179
    %v5183 = vrot.slane %v5060, 1
    %v5184 = vrot.slane %v5062, 1
    %v5185 = vrot.slane %v5060, 2
    %v5186 = vrot.slane %v5062, 2
    %v5187 = vrot.slane %v5060, 3
    %v5188 = vrot.slane %v5062, 3
    %v5189 = vrot.slane %v5060, 4
    %v5190 = vrot.slane %v5062, 4
    %v5199 = vadd.f32 %v1556, %v5183
    %v5200 = vadd.f32 %v1558, %v5184
    %v5201 = vadd.f32 %v1560, %v5185
    %v5202 = vadd.f32 %v1562, %v5186
    %v5203 = vadd.f32 %v1566, %v5187
    %v5204 = vadd.f32 %v1568, %v5188
    %v5205 = vadd.f32 %v1570, %v5189
    %v5206 = vadd.f32 %v1572, %v5190
    %v5207 = vxor.u32 %v5199, 2147483648
    %v5208 = vxor.u32 %v5200, 2147483648
    %v5209 = vxor.u32 %v5201, 2147483648
    %v5210 = vxor.u32 %v5202, 2147483648
    %v5211 = vxor.u32 %v5203, 2147483648
    %v5212 = vxor.u32 %v5204, 2147483648
    %v5213 = vxor.u32 %v5205, 2147483648
    %v5214 = vxor.u32 %v5206, 2147483648
    %v5215 = vmul.f32 %v5207, 1.442695
    %v5216 = vpow.pop %v5215
    %v5217 = vmul.f32 %v5208, 1.442695
    %v5218 = vpow.pop %v5217
    %v5219 = vmul.f32 %v5209, 1.442695
    %v5220 = vpow.pop %v5219
    %v5221 = vmul.f32 %v5210, 1.442695
    %v5222 = vpow.pop %v5221
    %v5223 = vmul.f32 %v5211, 1.442695
    %v5224 = vpow.pop %v5223
    %v5225 = vmul.f32 %v5212, 1.442695
    %v5226 = vpow.pop %v5225
    %v5227 = vmul.f32 %v5213, 1.442695
    %v5228 = vpow.pop %v5227
    %v5229 = vmul.f32 %v5214, 1.442695
    %v5230 = vpow.pop %v5229
    %v5231 = vadd.f32 %v5216, 1.0
    %v5232 = vadd.f32 %v5218, 1.0
    %v5233 = vadd.f32 %v5220, 1.0
    %v5234 = vadd.f32 %v5222, 1.0
    %v5235 = vadd.f32 %v5224, 1.0
    %v5236 = vadd.f32 %v5226, 1.0
    %v5237 = vadd.f32 %v5228, 1.0
    %v5238 = vadd.f32 %v5230, 1.0
    %v5239 = vrcp.pop %v5231
    %v5240 = vmul.f32 1.0, %v5239
    %v5241 = vrcp.pop %v5232
    %v5242 = vmul.f32 1.0, %v5241
    %v5243 = vrcp.pop %v5233
    %v5244 = vmul.f32 1.0, %v5243
    %v5245 = vrcp.pop %v5234
    %v5246 = vmul.f32 1.0, %v5245
    %v5247 = vrcp.pop %v5235
    %v5248 = vmul.f32 1.0, %v5247
    %v5249 = vrcp.pop %v5236
    %v5250 = vmul.f32 1.0, %v5249
    %v5251 = vrcp.pop %v5237
    %v5252 = vmul.f32 1.0, %v5251
    %v5253 = vrcp.pop %v5238
    %v5254 = vmul.f32 1.0, %v5253
    %v5257 = vrot.slane %v5101, 1
    %v5258 = vrot.slane %v5103, 1
    %v5259 = vrot.slane %v5101, 2
    %v5260 = vrot.slane %v5103, 2
    %v5261 = vrot.slane %v5101, 3
    %v5262 = vrot.slane %v5103, 3
    %v5263 = vrot.slane %v5101, 4
    %v5264 = vrot.slane %v5103, 4
    %v5273 = vmul.f32 %v5166, %v5257
    %v5274 = vmul.f32 %v5168, %v5258
    %v5275 = vmul.f32 %v5170, %v5259
    %v5276 = vmul.f32 %v5172, %v5260
    %v5277 = vmul.f32 %v5174, %v5261
    %v5278 = vmul.f32 %v5176, %v5262
    %v5279 = vmul.f32 %v5178, %v5263
    %v5280 = vmul.f32 %v5180, %v5264
    %v5281 = vadd.f32 %v1662, %v5273
    %v5282 = vadd.f32 %v1664, %v5274
    %v5283 = vadd.f32 %v1666, %v5275
    %v5284 = vadd.f32 %v1668, %v5276
    %v5285 = vadd.f32 %v1672, %v5277
    %v5286 = vadd.f32 %v1674, %v5278
    %v5287 = vadd.f32 %v1676, %v5279
    %v5288 = vadd.f32 %v1678, %v5280
    %v5289 = vtanh.pop %v5281
    %v5290 = vtanh.pop %v5282
    %v5291 = vtanh.pop %v5283
    %v5292 = vtanh.pop %v5284
    %v5293 = vtanh.pop %v5285
    %v5294 = vtanh.pop %v5286
    %v5295 = vtanh.pop %v5287
    %v5296 = vtanh.pop %v5288
    %v5297 = vsub.f32 1.0, %v5240
    %v5298 = vsub.f32 1.0, %v5242
    %v5299 = vsub.f32 1.0, %v5244
    %v5300 = vsub.f32 1.0, %v5246
    %v5301 = vsub.f32 1.0, %v5248
    %v5302 = vsub.f32 1.0, %v5250
    %v5303 = vsub.f32 1.0, %v5252
    %v5304 = vsub.f32 1.0, %v5254
    %v5305 = vmul.f32 %v5297, %v5289
    %v5306 = vmul.f32 %v5298, %v5290
    %v5307 = vmul.f32 %v5299, %v5291
    %v5308 = vmul.f32 %v5300, %v5292
    %v5309 = vmul.f32 %v5301, %v5293
    %v5310 = vmul.f32 %v5302, %v5294
    %v5311 = vmul.f32 %v5303, %v5295
    %v5312 = vmul.f32 %v5304, %v5296
    %v5321 = vrot.slane %v4934, 7
    %v5322 = vrot.slane %v4935, 7
    %v5323 = vrot.slane %v4936, 7
    %v5324 = vrot.slane %v4937, 7
    %v5325 = vrot.slane %v4938, 7
    %v5326 = vrot.slane %v4939, 7
    %v5327 = vrot.slane %v4940, 7
    %v5328 = vrot.slane %v4941, 7
    %v5337 = vmul.f32 %v5240, %v5321
    %v5338 = vmul.f32 %v5242, %v5322
    %v5339 = vmul.f32 %v5244, %v5323
    %v5340 = vmul.f32 %v5246, %v5324
    %v5341 = vmul.f32 %v5248, %v5325
    %v5342 = vmul.f32 %v5250, %v5326
    %v5343 = vmul.f32 %v5252, %v5327
    %v5344 = vmul.f32 %v5254, %v5328
    %v5345 = vadd.f32 %v5305, %v5337
    %v5346 = vadd.f32 %v5306, %v5338
    %v5347 = vadd.f32 %v5307, %v5339
    %v5348 = vadd.f32 %v5308, %v5340
    %v5349 = vadd.f32 %v5309, %v5341
    %v5350 = vadd.f32 %v5310, %v5342
    %v5351 = vadd.f32 %v5311, %v5343
    %v5352 = vadd.f32 %v5312, %v5344
    %v5353 = vsel %vm2524, %v2875, %v2491
    %v5354 = vrot.slane %v2495, 6
    %v5355 = vsel %vm2527, %v5354, %v5353
    %v5356 = vrot.slane %v2497, 5
    %v5357 = vsel %vm2530, %v5356, %v5355
    %v5358 = vsel %vm2524, %v2876, %v2492
    %v5359 = vrot.slane %v2496, 6
    %v5360 = vsel %vm2527, %v5359, %v5358
    %v5361 = vrot.slane %v2498, 5
    %v5362 = vsel %vm2530, %v5361, %v5360
    %v5365 = vrot.slane %v2897, 5
    %v5366 = vrot.slane %v2899, 4
    %vm5367 = vcmask 1045509
    %v5368 = vsel %vm5367, %v5366, %v5365
    %v5369 = vrot.slane %v2901, 3
    %vm5370 = vcmask 1046534
    %v5371 = vsel %vm5370, %v5369, %v5368
    %v5372 = vrot.slane %v2903, 2
    %vm5373 = vcmask 1047559
    %v5374 = vsel %vm5373, %v5372, %v5371
    %v5375 = vrot.slane %v2898, 5
    %v5376 = vrot.slane %v2900, 4
    %v5377 = vsel %vm5367, %v5376, %v5375
    %v5378 = vrot.slane %v2902, 3
    %v5379 = vsel %vm5370, %v5378, %v5377
    %v5380 = vrot.slane %v2904, 2
    %v5381 = vsel %vm5373, %v5380, %v5379
    %v5384 = vrot.slane %v3300, 2
    %v5385 = vrot.slane %v3302, 1
    %v5386 = vsel %vm2524, %v5385, %v5384
    %v5387 = vsel %vm2527, %v3304, %v5386
    %v5388 = vsel %vm2530, %v3685, %v5387
    %v5389 = vrot.slane %v3301, 2
    %v5390 = vrot.slane %v3303, 1
    %v5391 = vsel %vm2524, %v5390, %v5389
    %v5392 = vsel %vm2527, %v3305, %v5391
    %v5393 = vsel %vm2530, %v3686, %v5392
    %v5396 = vrot.slane %v3705, 6
    %v5397 = vsel %vm5367, %v5396, %v4088
    %v5398 = vrot.slane %v3707, 5
    %v5399 = vsel %vm5370, %v5398, %v5397
    %v5400 = vrot.slane %v3709, 4
    %v5401 = vsel %vm5373, %v5400, %v5399
    %v5402 = vrot.slane %v3706, 6
    %v5403 = vsel %vm5367, %v5402, %v4089
    %v5404 = vrot.slane %v3708, 5
    %v5405 = vsel %vm5370, %v5404, %v5403
    %v5406 = vrot.slane %v3710, 4
    %v5407 = vsel %vm5373, %v5406, %v5405
    %v5410 = vrot.slane %v4112, 4
    %v5411 = vrot.slane %v4114, 3
    %v5412 = vsel %vm2524, %v5411, %v5410
    %v5413 = vrot.slane %v4116, 2
    %v5414 = vsel %vm2527, %v5413, %v5412
    %v5415 = vrot.slane %v4118, 1
    %v5416 = vsel %vm2530, %v5415, %v5414
    %v5417 = vrot.slane %v4113, 4
    %v5418 = vrot.slane %v4115, 3
    %v5419 = vsel %vm2524, %v5418, %v5417
    %v5420 = vrot.slane %v4117, 2
    %v5421 = vsel %vm2527, %v5420, %v5419
    %v5422 = vrot.slane %v4119, 1
    %v5423 = vsel %vm2530, %v5422, %v5421
    %v5426 = vrot.slane %v4523, 1
    %v5427 = vsel %vm5367, %v4525, %v5426
    %v5428 = vsel %vm5370, %v4914, %v5427
    %v5429 = vrot.slane %v4529, 6
    %v5430 = vsel %vm5373, %v5429, %v5428
    %v5431 = vrot.slane %v4524, 1
    %v5432 = vsel %vm5367, %v4526, %v5431
    %v5433 = vsel %vm5370, %v4915, %v5432
    %v5434 = vrot.slane %v4530, 6
    %v5435 = vsel %vm5373, %v5434, %v5433
    %v5438 = vrot.slane %v4934, 6
    %v5439 = vrot.slane %v4936, 5
    %v5440 = vsel %vm2524, %v5439, %v5438
    %v5441 = vrot.slane %v4938, 4
    %v5442 = vsel %vm2527, %v5441, %v5440
    %v5443 = vrot.slane %v4940, 3
    %v5444 = vsel %vm2530, %v5443, %v5442
    %v5445 = vrot.slane %v4935, 6
    %v5446 = vrot.slane %v4937, 5
    %v5447 = vsel %vm2524, %v5446, %v5445
    %v5448 = vrot.slane %v4939, 4
    %v5449 = vsel %vm2527, %v5448, %v5447
    %v5450 = vrot.slane %v4941, 3
    %v5451 = vsel %vm2530, %v5450, %v5449
    %v5462 = vrot.slane %v5345, 3
    %v5463 = vrot.slane %v5347, 2
    %v5464 = vsel %vm5367, %v5463, %v5462
    %v5465 = vrot.slane %v5349, 1
    %v5466 = vsel %vm5370, %v5465, %v5464
    %v5467 = vsel %vm5373, %v5351, %v5466
    %v5468 = vrot.slane %v5346, 3
    %v5469 = vrot.slane %v5348, 2
    %v5470 = vsel %vm5367, %v5469, %v5468
    %v5471 = vrot.slane %v5350, 1
    %v5472 = vsel %vm5370, %v5471, %v5470
    %v5473 = vsel %vm5373, %v5352, %v5472
    %vm5476 = vcmask 1043456
    %v5477 = vsel %vm5476, %v5357, %v5374
    %v5478 = vsel %vm5476, %v5362, %v5381
    %v5479 = vsel %vm5476, %v5388, %v5401
    %v5480 = vsel %vm5476, %v5393, %v5407
    %v5481 = vsel %vm5476, %v5416, %v5430
    %v5482 = vsel %vm5476, %v5423, %v5435
    %v5483 = vsel %vm5476, %v5444, %v5467
    %v5484 = vsel %vm5476, %v5451, %v5473
    %v5485 = vpack.c.bf16 %v5479, %v5477
    %v5486 = vpack.c.bf16 %v5480, %v5478
    %v5487 = vpack.c.bf16 %v5483, %v5481
    %v5488 = vpack.c.bf16 %v5484, %v5482
    %v5490 = vlaneseq
    %v5491 = vshrl.u32 %v5490, 7
    %v5492 = vsub.s32 0, %v5491
    %v5493 = vrot.slane %v505, %v5492
    %v5494 = vlaneseq
    %v5495 = vshrl.u32 %v5494, 7
    %v5496 = vsub.s32 1, %v5495
    %v5497 = vrot.slane %v505, %v5496
    %v5498 = vlaneseq
    %v5499 = vshrl.u32 %v5498, 7
    %v5500 = vsub.s32 2, %v5499
    %v5501 = vrot.slane %v505, %v5500
    %v5502 = vlaneseq
    %v5503 = vshrl.u32 %v5502, 7
    %v5504 = vsub.s32 3, %v5503
    %v5505 = vrot.slane %v505, %v5504
    %v5506 = vlaneseq
    %v5507 = vshrl.u32 %v5506, 7
    %v5508 = vsub.s32 4, %v5507
    %v5509 = vrot.slane %v505, %v5508
    %v5510 = vlaneseq
    %v5511 = vshrl.u32 %v5510, 7
    %v5512 = vsub.s32 5, %v5511
    %v5513 = vrot.slane %v505, %v5512
    %v5616 = vunpack.c.l.b16 %v280
    %v5617 = vunpack.c.h.b16 %v280
    %v5618 = vunpack.c.l.b16 %v281
    %v5619 = vunpack.c.h.b16 %v281
    %v5620 = vunpack.c.l.b16 %v282
    %v5621 = vunpack.c.h.b16 %v282
    %v5622 = vunpack.c.l.b16 %v283
    %v5623 = vunpack.c.h.b16 %v283
    %v5624 = vunpack.c.l.b16 %v284
    %v5625 = vunpack.c.h.b16 %v284
    %v5626 = vunpack.c.l.b16 %v285
    %v5627 = vunpack.c.h.b16 %v285
    %v5628 = vunpack.c.l.b16 %v286
    %v5629 = vunpack.c.h.b16 %v286
    %v5630 = vunpack.c.l.b16 %v287
    %v5631 = vunpack.c.h.b16 %v287
    %v5632 = vunpack.c.l.b16 %v288
    %v5633 = vunpack.c.h.b16 %v288
    %v5634 = vunpack.c.l.b16 %v289
    %v5635 = vunpack.c.h.b16 %v289
    %v5636 = vunpack.c.l.b16 %v290
    %v5637 = vunpack.c.h.b16 %v290
    %v5638 = vunpack.c.l.b16 %v291
    %v5639 = vunpack.c.h.b16 %v291
    %v5640 = vunpack.c.l.b16 %v292
    %v5641 = vunpack.c.h.b16 %v292
    %v5642 = vunpack.c.l.b16 %v293
    %v5643 = vunpack.c.h.b16 %v293
    %v5644 = vunpack.c.l.b16 %v294
    %v5645 = vunpack.c.h.b16 %v294
    %v5646 = vunpack.c.l.b16 %v295
    %v5647 = vunpack.c.h.b16 %v295
    %v5648 = vunpack.c.l.b16 %v296
    %v5649 = vunpack.c.h.b16 %v296
    %v5650 = vunpack.c.l.b16 %v297
    %v5651 = vunpack.c.h.b16 %v297
    %v5652 = vunpack.c.l.b16 %v298
    %v5653 = vunpack.c.h.b16 %v298
    %v5654 = vunpack.c.l.b16 %v299
    %v5655 = vunpack.c.h.b16 %v299
    %v5656 = vunpack.c.l.b16 %v300
    %v5657 = vunpack.c.h.b16 %v300
    %v5658 = vunpack.c.l.b16 %v301
    %v5659 = vunpack.c.h.b16 %v301
    %v5660 = vunpack.c.l.b16 %v302
    %v5661 = vunpack.c.h.b16 %v302
    %v5662 = vunpack.c.l.b16 %v303
    %v5663 = vunpack.c.h.b16 %v303
    %v5664 = vunpack.c.l.b16 %v304
    %v5665 = vunpack.c.h.b16 %v304
    %v5666 = vunpack.c.l.b16 %v305
    %v5667 = vunpack.c.h.b16 %v305
    %v5668 = vunpack.c.l.b16 %v306
    %v5669 = vunpack.c.h.b16 %v306
    %v5670 = vunpack.c.l.b16 %v307
    %v5671 = vunpack.c.h.b16 %v307
    %v5672 = vunpack.c.l.b16 %v308
    %v5673 = vunpack.c.h.b16 %v308
    %v5674 = vunpack.c.l.b16 %v309
    %v5675 = vunpack.c.h.b16 %v309
    %v5676 = vunpack.c.l.b16 %v310
    %v5677 = vunpack.c.h.b16 %v310
    %v5678 = vunpack.c.l.b16 %v311
    %v5679 = vunpack.c.h.b16 %v311
    %v5680 = vunpack.c.l.b16 %v312
    %v5681 = vunpack.c.h.b16 %v312
    %v5682 = vunpack.c.l.b16 %v313
    %v5683 = vunpack.c.h.b16 %v313
    %v5684 = vunpack.c.l.b16 %v314
    %v5685 = vunpack.c.h.b16 %v314
    %v5686 = vunpack.c.l.b16 %v315
    %v5687 = vunpack.c.h.b16 %v315
    %v5688 = vunpack.c.l.b16 %v316
    %v5689 = vunpack.c.h.b16 %v316
    %v5690 = vunpack.c.l.b16 %v317
    %v5691 = vunpack.c.h.b16 %v317
    %v5692 = vunpack.c.l.b16 %v318
    %v5693 = vunpack.c.h.b16 %v318
    %v5694 = vunpack.c.l.b16 %v319
    %v5695 = vunpack.c.h.b16 %v319
    %v5696 = vunpack.c.l.b16 %v320
    %v5697 = vunpack.c.h.b16 %v320
    %v5698 = vunpack.c.l.b16 %v321
    %v5699 = vunpack.c.h.b16 %v321
    %v5700 = vunpack.c.l.b16 %v322
    %v5701 = vunpack.c.h.b16 %v322
    %v5702 = vunpack.c.l.b16 %v323
    %v5703 = vunpack.c.h.b16 %v323
    %v5704 = vunpack.c.l.b16 %v324
    %v5705 = vunpack.c.h.b16 %v324
    %v5706 = vunpack.c.l.b16 %v325
    %v5707 = vunpack.c.h.b16 %v325
    %v5708 = vunpack.c.l.b16 %v326
    %v5709 = vunpack.c.h.b16 %v326
    %v5710 = vunpack.c.l.b16 %v327
    %v5711 = vunpack.c.h.b16 %v327
    %v5712 = vunpack.c.l.b16 %v328
    %v5713 = vunpack.c.h.b16 %v328
    %v5714 = vunpack.c.l.b16 %v329
    %v5715 = vunpack.c.h.b16 %v329
    %v5716 = vunpack.c.l.b16 %v330
    %v5717 = vunpack.c.h.b16 %v330
    %v5718 = vunpack.c.l.b16 %v331
    %v5719 = vunpack.c.h.b16 %v331
    %v5720 = vunpack.c.l.b16 %v332
    %v5721 = vunpack.c.h.b16 %v332
    %v5722 = vunpack.c.l.b16 %v333
    %v5723 = vunpack.c.h.b16 %v333
    %v5724 = vunpack.c.l.b16 %v334
    %v5725 = vunpack.c.h.b16 %v334
    %v5726 = vunpack.c.l.b16 %v335
    %v5727 = vunpack.c.h.b16 %v335
    %v5728 = vunpack.c.l.b16 %v336
    %v5729 = vunpack.c.h.b16 %v336
    %v5730 = vunpack.c.l.b16 %v337
    %v5731 = vunpack.c.h.b16 %v337
    %v5732 = vunpack.c.l.b16 %v338
    %v5733 = vunpack.c.h.b16 %v338
    %v5734 = vunpack.c.l.b16 %v339
    %v5735 = vunpack.c.h.b16 %v339
    %v5736 = vunpack.c.l.b16 %v340
    %v5737 = vunpack.c.h.b16 %v340
    %v5738 = vunpack.c.l.b16 %v341
    %v5739 = vunpack.c.h.b16 %v341
    %v5740 = vunpack.c.l.b16 %v342
    %v5741 = vunpack.c.h.b16 %v342
    %v5742 = vunpack.c.l.b16 %v343
    %v5743 = vunpack.c.h.b16 %v343
    %v5744 = vunpack.c.l.b16 %v344
    %v5745 = vunpack.c.h.b16 %v344
    %v5746 = vunpack.c.l.b16 %v345
    %v5747 = vunpack.c.h.b16 %v345
    %v5748 = vunpack.c.l.b16 %v346
    %v5749 = vunpack.c.h.b16 %v346
    %v5750 = vunpack.c.l.b16 %v347
    %v5751 = vunpack.c.h.b16 %v347
    %v5752 = vunpack.c.l.b16 %v348
    %v5753 = vunpack.c.h.b16 %v348
    %v5754 = vunpack.c.l.b16 %v349
    %v5755 = vunpack.c.h.b16 %v349
    %v5756 = vunpack.c.l.b16 %v350
    %v5757 = vunpack.c.h.b16 %v350
    %v5758 = vunpack.c.l.b16 %v351
    %v5759 = vunpack.c.h.b16 %v351
    %v5760 = vunpack.c.l.b16 %v352
    %v5761 = vunpack.c.h.b16 %v352
    %v5762 = vunpack.c.l.b16 %v353
    %v5763 = vunpack.c.h.b16 %v353
    %v5764 = vunpack.c.l.b16 %v354
    %v5765 = vunpack.c.h.b16 %v354
    %v5766 = vunpack.c.l.b16 %v355
    %v5767 = vunpack.c.h.b16 %v355
    %v5768 = vunpack.c.l.b16 %v356
    %v5769 = vunpack.c.h.b16 %v356
    %v5770 = vunpack.c.l.b16 %v357
    %v5771 = vunpack.c.h.b16 %v357
    %v5772 = vunpack.c.l.b16 %v358
    %v5773 = vunpack.c.h.b16 %v358
    %v5774 = vunpack.c.l.b16 %v359
    %v5775 = vunpack.c.h.b16 %v359
    %v5776 = vunpack.c.l.b16 %v360
    %v5777 = vunpack.c.h.b16 %v360
    %v5778 = vunpack.c.l.b16 %v361
    %v5779 = vunpack.c.h.b16 %v361
    %v5780 = vunpack.c.l.b16 %v362
    %v5781 = vunpack.c.h.b16 %v362
    %v5782 = vunpack.c.l.b16 %v363
    %v5783 = vunpack.c.h.b16 %v363
    %v5784 = vunpack.c.l.b16 %v364
    %v5785 = vunpack.c.h.b16 %v364
    %v5786 = vunpack.c.l.b16 %v365
    %v5787 = vunpack.c.h.b16 %v365
    %v5788 = vunpack.c.l.b16 %v366
    %v5789 = vunpack.c.h.b16 %v366
    %v5790 = vunpack.c.l.b16 %v367
    %v5791 = vunpack.c.h.b16 %v367
    %v5792 = vunpack.c.l.b16 %v368
    %v5793 = vunpack.c.h.b16 %v368
    %v5794 = vunpack.c.l.b16 %v369
    %v5795 = vunpack.c.h.b16 %v369
    %v5796 = vunpack.c.l.b16 %v370
    %v5797 = vunpack.c.h.b16 %v370
    %v5798 = vunpack.c.l.b16 %v371
    %v5799 = vunpack.c.h.b16 %v371
    %v5800 = vunpack.c.l.b16 %v372
    %v5801 = vunpack.c.h.b16 %v372
    %v5802 = vunpack.c.l.b16 %v373
    %v5803 = vunpack.c.h.b16 %v373
    %v5804 = vunpack.c.l.b16 %v374
    %v5805 = vunpack.c.h.b16 %v374
    %v5806 = vunpack.c.l.b16 %v375
    %v5807 = vunpack.c.h.b16 %v375
    %v5808 = vpack.c.b16 %v5622, %v5616
    %v5809 = vpack.c.b16 %v5623, %v5617
    %v5810 = vpack.c.b16 %v5624, %v5618
    %v5811 = vpack.c.b16 %v5625, %v5619
    %v5812 = vpack.c.b16 %v5626, %v5620
    %v5813 = vpack.c.b16 %v5627, %v5621
    %v5814 = vpack.c.b16 %v5634, %v5628
    %v5815 = vpack.c.b16 %v5635, %v5629
    %v5816 = vpack.c.b16 %v5636, %v5630
    %v5817 = vpack.c.b16 %v5637, %v5631
    %v5818 = vpack.c.b16 %v5638, %v5632
    %v5819 = vpack.c.b16 %v5639, %v5633
    %v5820 = vpack.c.b16 %v5646, %v5640
    %v5821 = vpack.c.b16 %v5647, %v5641
    %v5822 = vpack.c.b16 %v5648, %v5642
    %v5823 = vpack.c.b16 %v5649, %v5643
    %v5824 = vpack.c.b16 %v5650, %v5644
    %v5825 = vpack.c.b16 %v5651, %v5645
    %v5826 = vpack.c.b16 %v5658, %v5652
    %v5827 = vpack.c.b16 %v5659, %v5653
    %v5828 = vpack.c.b16 %v5660, %v5654
    %v5829 = vpack.c.b16 %v5661, %v5655
    %v5830 = vpack.c.b16 %v5662, %v5656
    %v5831 = vpack.c.b16 %v5663, %v5657
    %v5832 = vpack.c.b16 %v5670, %v5664
    %v5833 = vpack.c.b16 %v5671, %v5665
    %v5834 = vpack.c.b16 %v5672, %v5666
    %v5835 = vpack.c.b16 %v5673, %v5667
    %v5836 = vpack.c.b16 %v5674, %v5668
    %v5837 = vpack.c.b16 %v5675, %v5669
    %v5838 = vpack.c.b16 %v5682, %v5676
    %v5839 = vpack.c.b16 %v5683, %v5677
    %v5840 = vpack.c.b16 %v5684, %v5678
    %v5841 = vpack.c.b16 %v5685, %v5679
    %v5842 = vpack.c.b16 %v5686, %v5680
    %v5843 = vpack.c.b16 %v5687, %v5681
    %v5844 = vpack.c.b16 %v5694, %v5688
    %v5845 = vpack.c.b16 %v5695, %v5689
    %v5846 = vpack.c.b16 %v5696, %v5690
    %v5847 = vpack.c.b16 %v5697, %v5691
    %v5848 = vpack.c.b16 %v5698, %v5692
    %v5849 = vpack.c.b16 %v5699, %v5693
    %v5850 = vpack.c.b16 %v5706, %v5700
    %v5851 = vpack.c.b16 %v5707, %v5701
    %v5852 = vpack.c.b16 %v5708, %v5702
    %v5853 = vpack.c.b16 %v5709, %v5703
    %v5854 = vpack.c.b16 %v5710, %v5704
    %v5855 = vpack.c.b16 %v5711, %v5705
    %v5856 = vpack.c.b16 %v5718, %v5712
    %v5857 = vpack.c.b16 %v5719, %v5713
    %v5858 = vpack.c.b16 %v5720, %v5714
    %v5859 = vpack.c.b16 %v5721, %v5715
    %v5860 = vpack.c.b16 %v5722, %v5716
    %v5861 = vpack.c.b16 %v5723, %v5717
    %v5862 = vpack.c.b16 %v5730, %v5724
    %v5863 = vpack.c.b16 %v5731, %v5725
    %v5864 = vpack.c.b16 %v5732, %v5726
    %v5865 = vpack.c.b16 %v5733, %v5727
    %v5866 = vpack.c.b16 %v5734, %v5728
    %v5867 = vpack.c.b16 %v5735, %v5729
    %v5868 = vpack.c.b16 %v5742, %v5736
    %v5869 = vpack.c.b16 %v5743, %v5737
    %v5870 = vpack.c.b16 %v5744, %v5738
    %v5871 = vpack.c.b16 %v5745, %v5739
    %v5872 = vpack.c.b16 %v5746, %v5740
    %v5873 = vpack.c.b16 %v5747, %v5741
    %v5874 = vpack.c.b16 %v5754, %v5748
    %v5875 = vpack.c.b16 %v5755, %v5749
    %v5876 = vpack.c.b16 %v5756, %v5750
    %v5877 = vpack.c.b16 %v5757, %v5751
    %v5878 = vpack.c.b16 %v5758, %v5752
    %v5879 = vpack.c.b16 %v5759, %v5753
    %v5880 = vpack.c.b16 %v5766, %v5760
    %v5881 = vpack.c.b16 %v5767, %v5761
    %v5882 = vpack.c.b16 %v5768, %v5762
    %v5883 = vpack.c.b16 %v5769, %v5763
    %v5884 = vpack.c.b16 %v5770, %v5764
    %v5885 = vpack.c.b16 %v5771, %v5765
    %v5886 = vpack.c.b16 %v5778, %v5772
    %v5887 = vpack.c.b16 %v5779, %v5773
    %v5888 = vpack.c.b16 %v5780, %v5774
    %v5889 = vpack.c.b16 %v5781, %v5775
    %v5890 = vpack.c.b16 %v5782, %v5776
    %v5891 = vpack.c.b16 %v5783, %v5777
    %v5892 = vpack.c.b16 %v5790, %v5784
    %v5893 = vpack.c.b16 %v5791, %v5785
    %v5894 = vpack.c.b16 %v5792, %v5786
    %v5895 = vpack.c.b16 %v5793, %v5787
    %v5896 = vpack.c.b16 %v5794, %v5788
    %v5897 = vpack.c.b16 %v5795, %v5789
    %v5898 = vpack.c.b16 %v5802, %v5796
    %v5899 = vpack.c.b16 %v5803, %v5797
    %v5900 = vpack.c.b16 %v5804, %v5798
    %v5901 = vpack.c.b16 %v5805, %v5799
    %v5902 = vpack.c.b16 %v5806, %v5800
    %v5903 = vpack.c.b16 %v5807, %v5801
    %6000 = vmatprep.subr.bf16.mxu0 %v5809
    %6001 = vmatpush1.bf16.msra.mxu0 %v5808
    %6002 = vmatprep.subr.bf16.mxu0 %v5815
    %6003 = vmatpush1.bf16.msra.mxu0 %v5814
    %6004 = vmatprep.subr.bf16.mxu0 %v5821
    %6005 = vmatpush1.bf16.msra.mxu0 %v5820
    %6006 = vmatprep.subr.bf16.mxu0 %v5827
    %6007 = vmatpush1.bf16.msra.mxu0 %v5826
    %6008 = vmatprep.subr.bf16.mxu0 %v5833
    %6009 = vmatpush1.bf16.msra.mxu0 %v5832
    %6010 = vmatprep.subr.bf16.mxu0 %v5839
    %6011 = vmatpush1.bf16.msra.mxu0 %v5838
    %6012 = vmatprep.subr.bf16.mxu0 %v5845
    %6013 = vmatpush1.bf16.msra.mxu0 %v5844
    %6014 = vmatprep.subr.bf16.mxu0 %v5851
    %6015 = vmatpush1.bf16.msra.mxu0 %v5850
    %6016 = vmatprep.subr.bf16.mxu0 %v5857
    %6017 = vmatpush1.bf16.msra.mxu0 %v5856
    %6018 = vmatprep.subr.bf16.mxu0 %v5863
    %6019 = vmatpush1.bf16.msra.mxu0 %v5862
    %6020 = vmatprep.subr.bf16.mxu0 %v5869
    %6021 = vmatpush1.bf16.msra.mxu0 %v5868
    %6022 = vmatprep.subr.bf16.mxu0 %v5875
    %6023 = vmatpush1.bf16.msra.mxu0 %v5874
    %6024 = vmatprep.subr.bf16.mxu0 %v5881
    %6025 = vmatpush1.bf16.msra.mxu0 %v5880
    %6026 = vmatprep.subr.bf16.mxu0 %v5887
    %6027 = vmatpush1.bf16.msra.mxu0 %v5886
    %6028 = vmatprep.subr.bf16.mxu0 %v5893
    %6029 = vmatpush1.bf16.msra.mxu0 %v5892
    %6030 = vmatprep.subr.bf16.mxu0 %v5899
    %6031 = vmatpush1.bf16.msra.mxu0 %v5898
    %6032 = vmatprep.mubr.bf16.mxu0 %v5486
    %6033 = vmatmul.mubr.bf16.gmra.mrb[0].mxu0 %v5485
    %v6034 = vpop.f32.mrb[0].mxu0
    %v6035 = vadd.f32 %v5493, %v6034
    %v6036 = vpop.f32.mrb[0].mxu0
    %v6037 = vadd.f32 %v5497, %v6036
    %v6038 = vpop.f32.mrb[0].mxu0
    %v6039 = vadd.f32 %v5493, %v6038
    %v6040 = vpop.f32.mrb[0].mxu0
    %v6041 = vadd.f32 %v5497, %v6040
    %6042 = vmatprep.mubr.bf16.mxu0 %v5488
    %6043 = vmatmul.mubr.bf16.gmra.mrb[0].mxu0 %v5487
    %v6044 = vpop.f32.mrb[0].mxu0
    %v6045 = vadd.f32 %v5493, %v6044
    %v6046 = vpop.f32.mrb[0].mxu0
    %v6047 = vadd.f32 %v5497, %v6046
    %v6048 = vpop.f32.mrb[0].mxu0
    %v6049 = vadd.f32 %v5493, %v6048
    %v6050 = vpop.f32.mrb[0].mxu0
    %v6051 = vadd.f32 %v5497, %v6050
    %6052 = vdwg.mxu0
    %6053 = vmatprep.subr.bf16.mxu0 %v5811
    %6054 = vmatpush1.bf16.msra.mxu0 %v5810
    %6055 = vmatprep.subr.bf16.mxu0 %v5817
    %6056 = vmatpush1.bf16.msra.mxu0 %v5816
    %6057 = vmatprep.subr.bf16.mxu0 %v5823
    %6058 = vmatpush1.bf16.msra.mxu0 %v5822
    %6059 = vmatprep.subr.bf16.mxu0 %v5829
    %6060 = vmatpush1.bf16.msra.mxu0 %v5828
    %6061 = vmatprep.subr.bf16.mxu0 %v5835
    %6062 = vmatpush1.bf16.msra.mxu0 %v5834
    %6063 = vmatprep.subr.bf16.mxu0 %v5841
    %6064 = vmatpush1.bf16.msra.mxu0 %v5840
    %6065 = vmatprep.subr.bf16.mxu0 %v5847
    %6066 = vmatpush1.bf16.msra.mxu0 %v5846
    %6067 = vmatprep.subr.bf16.mxu0 %v5853
    %6068 = vmatpush1.bf16.msra.mxu0 %v5852
    %6069 = vmatprep.subr.bf16.mxu0 %v5859
    %6070 = vmatpush1.bf16.msra.mxu0 %v5858
    %6071 = vmatprep.subr.bf16.mxu0 %v5865
    %6072 = vmatpush1.bf16.msra.mxu0 %v5864
    %6073 = vmatprep.subr.bf16.mxu0 %v5871
    %6074 = vmatpush1.bf16.msra.mxu0 %v5870
    %6075 = vmatprep.subr.bf16.mxu0 %v5877
    %6076 = vmatpush1.bf16.msra.mxu0 %v5876
    %6077 = vmatprep.subr.bf16.mxu0 %v5883
    %6078 = vmatpush1.bf16.msra.mxu0 %v5882
    %6079 = vmatprep.subr.bf16.mxu0 %v5889
    %6080 = vmatpush1.bf16.msra.mxu0 %v5888
    %6081 = vmatprep.subr.bf16.mxu0 %v5895
    %6082 = vmatpush1.bf16.msra.mxu0 %v5894
    %6083 = vmatprep.subr.bf16.mxu0 %v5901
    %6084 = vmatpush1.bf16.msra.mxu0 %v5900
    %6085 = vmatprep.mubr.bf16.mxu0 %v5486
    %6086 = vmatmul.mubr.bf16.gmra.mrb[0].mxu0 %v5485
    %v6087 = vpop.f32.mrb[0].mxu0
    %v6088 = vadd.f32 %v5501, %v6087
    %v6089 = vpop.f32.mrb[0].mxu0
    %v6090 = vadd.f32 %v5505, %v6089
    %v6091 = vpop.f32.mrb[0].mxu0
    %v6092 = vadd.f32 %v5501, %v6091
    %v6093 = vpop.f32.mrb[0].mxu0
    %v6094 = vadd.f32 %v5505, %v6093
    %6095 = vmatprep.mubr.bf16.mxu0 %v5488
    %6096 = vmatmul.mubr.bf16.gmra.mrb[0].mxu0 %v5487
    %v6097 = vpop.f32.mrb[0].mxu0
    %v6098 = vadd.f32 %v5501, %v6097
    %v6099 = vpop.f32.mrb[0].mxu0
    %v6100 = vadd.f32 %v5505, %v6099
    %v6101 = vpop.f32.mrb[0].mxu0
    %v6102 = vadd.f32 %v5501, %v6101
    %v6103 = vpop.f32.mrb[0].mxu0
    %v6104 = vadd.f32 %v5505, %v6103
    %6105 = vdwg.mxu0
    %6106 = vmatprep.subr.bf16.mxu0 %v5813
    %6107 = vmatpush1.bf16.msra.mxu0 %v5812
    %6108 = vmatprep.subr.bf16.mxu0 %v5819
    %6109 = vmatpush1.bf16.msra.mxu0 %v5818
    %6110 = vmatprep.subr.bf16.mxu0 %v5825
    %6111 = vmatpush1.bf16.msra.mxu0 %v5824
    %6112 = vmatprep.subr.bf16.mxu0 %v5831
    %6113 = vmatpush1.bf16.msra.mxu0 %v5830
    %6114 = vmatprep.subr.bf16.mxu0 %v5837
    %6115 = vmatpush1.bf16.msra.mxu0 %v5836
    %6116 = vmatprep.subr.bf16.mxu0 %v5843
    %6117 = vmatpush1.bf16.msra.mxu0 %v5842
    %6118 = vmatprep.subr.bf16.mxu0 %v5849
    %6119 = vmatpush1.bf16.msra.mxu0 %v5848
    %6120 = vmatprep.subr.bf16.mxu0 %v5855
    %6121 = vmatpush1.bf16.msra.mxu0 %v5854
    %6122 = vmatprep.subr.bf16.mxu0 %v5861
    %6123 = vmatpush1.bf16.msra.mxu0 %v5860
    %6124 = vmatprep.subr.bf16.mxu0 %v5867
    %6125 = vmatpush1.bf16.msra.mxu0 %v5866
    %6126 = vmatprep.subr.bf16.mxu0 %v5873
    %6127 = vmatpush1.bf16.msra.mxu0 %v5872
    %6128 = vmatprep.subr.bf16.mxu0 %v5879
    %6129 = vmatpush1.bf16.msra.mxu0 %v5878
    %6130 = vmatprep.subr.bf16.mxu0 %v5885
    %6131 = vmatpush1.bf16.msra.mxu0 %v5884
    %6132 = vmatprep.subr.bf16.mxu0 %v5891
    %6133 = vmatpush1.bf16.msra.mxu0 %v5890
    %6134 = vmatprep.subr.bf16.mxu0 %v5897
    %6135 = vmatpush1.bf16.msra.mxu0 %v5896
    %6136 = vmatprep.subr.bf16.mxu0 %v5903
    %6137 = vmatpush1.bf16.msra.mxu0 %v5902
    %6138 = vmatprep.mubr.bf16.mxu0 %v5486
    %6139 = vmatmul.mubr.bf16.gmra.mrb[0].mxu0 %v5485
    %v6140 = vpop.f32.mrb[0].mxu0
    %v6141 = vadd.f32 %v5509, %v6140
    %v6142 = vpop.f32.mrb[0].mxu0
    %v6143 = vadd.f32 %v5513, %v6142
    %v6144 = vpop.f32.mrb[0].mxu0
    %v6145 = vadd.f32 %v5509, %v6144
    %v6146 = vpop.f32.mrb[0].mxu0
    %v6147 = vadd.f32 %v5513, %v6146
    %6148 = vmatprep.mubr.bf16.mxu0 %v5488
    %6149 = vmatmul.mubr.bf16.gmra.mrb[0].mxu0 %v5487
    %v6150 = vpop.f32.mrb[0].mxu0
    %v6151 = vadd.f32 %v5509, %v6150
    %v6152 = vpop.f32.mrb[0].mxu0
    %v6153 = vadd.f32 %v5513, %v6152
    %v6154 = vpop.f32.mrb[0].mxu0
    %v6155 = vadd.f32 %v5509, %v6154
    %v6156 = vpop.f32.mrb[0].mxu0
    %v6157 = vadd.f32 %v5513, %v6156
    %6158 = vdwg.mxu0
    %v6255 = vunpack.c.l.b16 %v376
    %v6256 = vunpack.c.h.b16 %v376
    %v6257 = vunpack.c.l.b16 %v377
    %v6258 = vunpack.c.h.b16 %v377
    %v6259 = vunpack.c.l.b16 %v378
    %v6260 = vunpack.c.h.b16 %v378
    %v6261 = vunpack.c.l.b16 %v379
    %v6262 = vunpack.c.h.b16 %v379
    %v6263 = vunpack.c.l.b16 %v380
    %v6264 = vunpack.c.h.b16 %v380
    %v6265 = vunpack.c.l.b16 %v381
    %v6266 = vunpack.c.h.b16 %v381
    %v6267 = vunpack.c.l.b16 %v382
    %v6268 = vunpack.c.h.b16 %v382
    %v6269 = vunpack.c.l.b16 %v383
    %v6270 = vunpack.c.h.b16 %v383
    %v6271 = vunpack.c.l.b16 %v384
    %v6272 = vunpack.c.h.b16 %v384
    %v6273 = vunpack.c.l.b16 %v385
    %v6274 = vunpack.c.h.b16 %v385
    %v6275 = vunpack.c.l.b16 %v386
    %v6276 = vunpack.c.h.b16 %v386
    %v6277 = vunpack.c.l.b16 %v387
    %v6278 = vunpack.c.h.b16 %v387
    %v6279 = vunpack.c.l.b16 %v388
    %v6280 = vunpack.c.h.b16 %v388
    %v6281 = vunpack.c.l.b16 %v389
    %v6282 = vunpack.c.h.b16 %v389
    %v6283 = vunpack.c.l.b16 %v390
    %v6284 = vunpack.c.h.b16 %v390
    %v6285 = vunpack.c.l.b16 %v391
    %v6286 = vunpack.c.h.b16 %v391
    %v6287 = vunpack.c.l.b16 %v392
    %v6288 = vunpack.c.h.b16 %v392
    %v6289 = vunpack.c.l.b16 %v393
    %v6290 = vunpack.c.h.b16 %v393
    %v6291 = vunpack.c.l.b16 %v394
    %v6292 = vunpack.c.h.b16 %v394
    %v6293 = vunpack.c.l.b16 %v395
    %v6294 = vunpack.c.h.b16 %v395
    %v6295 = vunpack.c.l.b16 %v396
    %v6296 = vunpack.c.h.b16 %v396
    %v6297 = vunpack.c.l.b16 %v397
    %v6298 = vunpack.c.h.b16 %v397
    %v6299 = vunpack.c.l.b16 %v398
    %v6300 = vunpack.c.h.b16 %v398
    %v6301 = vunpack.c.l.b16 %v399
    %v6302 = vunpack.c.h.b16 %v399
    %v6303 = vunpack.c.l.b16 %v400
    %v6304 = vunpack.c.h.b16 %v400
    %v6305 = vunpack.c.l.b16 %v401
    %v6306 = vunpack.c.h.b16 %v401
    %v6307 = vunpack.c.l.b16 %v402
    %v6308 = vunpack.c.h.b16 %v402
    %v6309 = vunpack.c.l.b16 %v403
    %v6310 = vunpack.c.h.b16 %v403
    %v6311 = vunpack.c.l.b16 %v404
    %v6312 = vunpack.c.h.b16 %v404
    %v6313 = vunpack.c.l.b16 %v405
    %v6314 = vunpack.c.h.b16 %v405
    %v6315 = vunpack.c.l.b16 %v406
    %v6316 = vunpack.c.h.b16 %v406
    %v6317 = vunpack.c.l.b16 %v407
    %v6318 = vunpack.c.h.b16 %v407
    %v6319 = vunpack.c.l.b16 %v408
    %v6320 = vunpack.c.h.b16 %v408
    %v6321 = vunpack.c.l.b16 %v409
    %v6322 = vunpack.c.h.b16 %v409
    %v6323 = vunpack.c.l.b16 %v410
    %v6324 = vunpack.c.h.b16 %v410
    %v6325 = vunpack.c.l.b16 %v411
    %v6326 = vunpack.c.h.b16 %v411
    %v6327 = vunpack.c.l.b16 %v412
    %v6328 = vunpack.c.h.b16 %v412
    %v6329 = vunpack.c.l.b16 %v413
    %v6330 = vunpack.c.h.b16 %v413
    %v6331 = vunpack.c.l.b16 %v414
    %v6332 = vunpack.c.h.b16 %v414
    %v6333 = vunpack.c.l.b16 %v415
    %v6334 = vunpack.c.h.b16 %v415
    %v6335 = vunpack.c.l.b16 %v416
    %v6336 = vunpack.c.h.b16 %v416
    %v6337 = vunpack.c.l.b16 %v417
    %v6338 = vunpack.c.h.b16 %v417
    %v6339 = vunpack.c.l.b16 %v418
    %v6340 = vunpack.c.h.b16 %v418
    %v6341 = vunpack.c.l.b16 %v419
    %v6342 = vunpack.c.h.b16 %v419
    %v6343 = vunpack.c.l.b16 %v420
    %v6344 = vunpack.c.h.b16 %v420
    %v6345 = vunpack.c.l.b16 %v421
    %v6346 = vunpack.c.h.b16 %v421
    %v6347 = vunpack.c.l.b16 %v422
    %v6348 = vunpack.c.h.b16 %v422
    %v6349 = vunpack.c.l.b16 %v423
    %v6350 = vunpack.c.h.b16 %v423
    %v6351 = vunpack.c.l.b16 %v424
    %v6352 = vunpack.c.h.b16 %v424
    %v6353 = vunpack.c.l.b16 %v425
    %v6354 = vunpack.c.h.b16 %v425
    %v6355 = vunpack.c.l.b16 %v426
    %v6356 = vunpack.c.h.b16 %v426
    %v6357 = vunpack.c.l.b16 %v427
    %v6358 = vunpack.c.h.b16 %v427
    %v6359 = vunpack.c.l.b16 %v428
    %v6360 = vunpack.c.h.b16 %v428
    %v6361 = vunpack.c.l.b16 %v429
    %v6362 = vunpack.c.h.b16 %v429
    %v6363 = vunpack.c.l.b16 %v430
    %v6364 = vunpack.c.h.b16 %v430
    %v6365 = vunpack.c.l.b16 %v431
    %v6366 = vunpack.c.h.b16 %v431
    %v6367 = vunpack.c.l.b16 %v432
    %v6368 = vunpack.c.h.b16 %v432
    %v6369 = vunpack.c.l.b16 %v433
    %v6370 = vunpack.c.h.b16 %v433
    %v6371 = vunpack.c.l.b16 %v434
    %v6372 = vunpack.c.h.b16 %v434
    %v6373 = vunpack.c.l.b16 %v435
    %v6374 = vunpack.c.h.b16 %v435
    %v6375 = vunpack.c.l.b16 %v436
    %v6376 = vunpack.c.h.b16 %v436
    %v6377 = vunpack.c.l.b16 %v437
    %v6378 = vunpack.c.h.b16 %v437
    %v6379 = vunpack.c.l.b16 %v438
    %v6380 = vunpack.c.h.b16 %v438
    %v6381 = vunpack.c.l.b16 %v439
    %v6382 = vunpack.c.h.b16 %v439
    %v6383 = vunpack.c.l.b16 %v440
    %v6384 = vunpack.c.h.b16 %v440
    %v6385 = vunpack.c.l.b16 %v441
    %v6386 = vunpack.c.h.b16 %v441
    %v6387 = vunpack.c.l.b16 %v442
    %v6388 = vunpack.c.h.b16 %v442
    %v6389 = vunpack.c.l.b16 %v443
    %v6390 = vunpack.c.h.b16 %v443
    %v6391 = vunpack.c.l.b16 %v444
    %v6392 = vunpack.c.h.b16 %v444
    %v6393 = vunpack.c.l.b16 %v445
    %v6394 = vunpack.c.h.b16 %v445
    %v6395 = vunpack.c.l.b16 %v446
    %v6396 = vunpack.c.h.b16 %v446
    %v6397 = vunpack.c.l.b16 %v447
    %v6398 = vunpack.c.h.b16 %v447
    %v6399 = vunpack.c.l.b16 %v448
    %v6400 = vunpack.c.h.b16 %v448
    %v6401 = vunpack.c.l.b16 %v449
    %v6402 = vunpack.c.h.b16 %v449
    %v6403 = vunpack.c.l.b16 %v450
    %v6404 = vunpack.c.h.b16 %v450
    %v6405 = vunpack.c.l.b16 %v451
    %v6406 = vunpack.c.h.b16 %v451
    %v6407 = vunpack.c.l.b16 %v452
    %v6408 = vunpack.c.h.b16 %v452
    %v6409 = vunpack.c.l.b16 %v453
    %v6410 = vunpack.c.h.b16 %v453
    %v6411 = vunpack.c.l.b16 %v454
    %v6412 = vunpack.c.h.b16 %v454
    %v6413 = vunpack.c.l.b16 %v455
    %v6414 = vunpack.c.h.b16 %v455
    %v6415 = vunpack.c.l.b16 %v456
    %v6416 = vunpack.c.h.b16 %v456
    %v6417 = vunpack.c.l.b16 %v457
    %v6418 = vunpack.c.h.b16 %v457
    %v6419 = vunpack.c.l.b16 %v458
    %v6420 = vunpack.c.h.b16 %v458
    %v6421 = vunpack.c.l.b16 %v459
    %v6422 = vunpack.c.h.b16 %v459
    %v6423 = vunpack.c.l.b16 %v460
    %v6424 = vunpack.c.h.b16 %v460
    %v6425 = vunpack.c.l.b16 %v461
    %v6426 = vunpack.c.h.b16 %v461
    %v6427 = vunpack.c.l.b16 %v462
    %v6428 = vunpack.c.h.b16 %v462
    %v6429 = vunpack.c.l.b16 %v463
    %v6430 = vunpack.c.h.b16 %v463
    %v6431 = vunpack.c.l.b16 %v464
    %v6432 = vunpack.c.h.b16 %v464
    %v6433 = vunpack.c.l.b16 %v465
    %v6434 = vunpack.c.h.b16 %v465
    %v6435 = vunpack.c.l.b16 %v466
    %v6436 = vunpack.c.h.b16 %v466
    %v6437 = vunpack.c.l.b16 %v467
    %v6438 = vunpack.c.h.b16 %v467
    %v6439 = vunpack.c.l.b16 %v468
    %v6440 = vunpack.c.h.b16 %v468
    %v6441 = vunpack.c.l.b16 %v469
    %v6442 = vunpack.c.h.b16 %v469
    %v6443 = vunpack.c.l.b16 %v470
    %v6444 = vunpack.c.h.b16 %v470
    %v6445 = vunpack.c.l.b16 %v471
    %v6446 = vunpack.c.h.b16 %v471
    %v6447 = vpack.c.b16 %v6261, %v6255
    %v6448 = vpack.c.b16 %v6262, %v6256
    %v6449 = vpack.c.b16 %v6263, %v6257
    %v6450 = vpack.c.b16 %v6264, %v6258
    %v6451 = vpack.c.b16 %v6265, %v6259
    %v6452 = vpack.c.b16 %v6266, %v6260
    %v6453 = vpack.c.b16 %v6273, %v6267
    %v6454 = vpack.c.b16 %v6274, %v6268
    %v6455 = vpack.c.b16 %v6275, %v6269
    %v6456 = vpack.c.b16 %v6276, %v6270
    %v6457 = vpack.c.b16 %v6277, %v6271
    %v6458 = vpack.c.b16 %v6278, %v6272
    %v6459 = vpack.c.b16 %v6285, %v6279
    %v6460 = vpack.c.b16 %v6286, %v6280
    %v6461 = vpack.c.b16 %v6287, %v6281
    %v6462 = vpack.c.b16 %v6288, %v6282
    %v6463 = vpack.c.b16 %v6289, %v6283
    %v6464 = vpack.c.b16 %v6290, %v6284
    %v6465 = vpack.c.b16 %v6297, %v6291
    %v6466 = vpack.c.b16 %v6298, %v6292
    %v6467 = vpack.c.b16 %v6299, %v6293
    %v6468 = vpack.c.b16 %v6300, %v6294
    %v6469 = vpack.c.b16 %v6301, %v6295
    %v6470 = vpack.c.b16 %v6302, %v6296
    %v6471 = vpack.c.b16 %v6309, %v6303
    %v6472 = vpack.c.b16 %v6310, %v6304
    %v6473 = vpack.c.b16 %v6311, %v6305
    %v6474 = vpack.c.b16 %v6312, %v6306
    %v6475 = vpack.c.b16 %v6313, %v6307
    %v6476 = vpack.c.b16 %v6314, %v6308
    %v6477 = vpack.c.b16 %v6321, %v6315
    %v6478 = vpack.c.b16 %v6322, %v6316
    %v6479 = vpack.c.b16 %v6323, %v6317
    %v6480 = vpack.c.b16 %v6324, %v6318
    %v6481 = vpack.c.b16 %v6325, %v6319
    %v6482 = vpack.c.b16 %v6326, %v6320
    %v6483 = vpack.c.b16 %v6333, %v6327
    %v6484 = vpack.c.b16 %v6334, %v6328
    %v6485 = vpack.c.b16 %v6335, %v6329
    %v6486 = vpack.c.b16 %v6336, %v6330
    %v6487 = vpack.c.b16 %v6337, %v6331
    %v6488 = vpack.c.b16 %v6338, %v6332
    %v6489 = vpack.c.b16 %v6345, %v6339
    %v6490 = vpack.c.b16 %v6346, %v6340
    %v6491 = vpack.c.b16 %v6347, %v6341
    %v6492 = vpack.c.b16 %v6348, %v6342
    %v6493 = vpack.c.b16 %v6349, %v6343
    %v6494 = vpack.c.b16 %v6350, %v6344
    %v6495 = vpack.c.b16 %v6357, %v6351
    %v6496 = vpack.c.b16 %v6358, %v6352
    %v6497 = vpack.c.b16 %v6359, %v6353
    %v6498 = vpack.c.b16 %v6360, %v6354
    %v6499 = vpack.c.b16 %v6361, %v6355
    %v6500 = vpack.c.b16 %v6362, %v6356
    %v6501 = vpack.c.b16 %v6369, %v6363
    %v6502 = vpack.c.b16 %v6370, %v6364
    %v6503 = vpack.c.b16 %v6371, %v6365
    %v6504 = vpack.c.b16 %v6372, %v6366
    %v6505 = vpack.c.b16 %v6373, %v6367
    %v6506 = vpack.c.b16 %v6374, %v6368
    %v6507 = vpack.c.b16 %v6381, %v6375
    %v6508 = vpack.c.b16 %v6382, %v6376
    %v6509 = vpack.c.b16 %v6383, %v6377
    %v6510 = vpack.c.b16 %v6384, %v6378
    %v6511 = vpack.c.b16 %v6385, %v6379
    %v6512 = vpack.c.b16 %v6386, %v6380
    %v6513 = vpack.c.b16 %v6393, %v6387
    %v6514 = vpack.c.b16 %v6394, %v6388
    %v6515 = vpack.c.b16 %v6395, %v6389
    %v6516 = vpack.c.b16 %v6396, %v6390
    %v6517 = vpack.c.b16 %v6397, %v6391
    %v6518 = vpack.c.b16 %v6398, %v6392
    %v6519 = vpack.c.b16 %v6405, %v6399
    %v6520 = vpack.c.b16 %v6406, %v6400
    %v6521 = vpack.c.b16 %v6407, %v6401
    %v6522 = vpack.c.b16 %v6408, %v6402
    %v6523 = vpack.c.b16 %v6409, %v6403
    %v6524 = vpack.c.b16 %v6410, %v6404
    %v6525 = vpack.c.b16 %v6417, %v6411
    %v6526 = vpack.c.b16 %v6418, %v6412
    %v6527 = vpack.c.b16 %v6419, %v6413
    %v6528 = vpack.c.b16 %v6420, %v6414
    %v6529 = vpack.c.b16 %v6421, %v6415
    %v6530 = vpack.c.b16 %v6422, %v6416
    %v6531 = vpack.c.b16 %v6429, %v6423
    %v6532 = vpack.c.b16 %v6430, %v6424
    %v6533 = vpack.c.b16 %v6431, %v6425
    %v6534 = vpack.c.b16 %v6432, %v6426
    %v6535 = vpack.c.b16 %v6433, %v6427
    %v6536 = vpack.c.b16 %v6434, %v6428
    %v6537 = vpack.c.b16 %v6441, %v6435
    %v6538 = vpack.c.b16 %v6442, %v6436
    %v6539 = vpack.c.b16 %v6443, %v6437
    %v6540 = vpack.c.b16 %v6444, %v6438
    %v6541 = vpack.c.b16 %v6445, %v6439
    %v6542 = vpack.c.b16 %v6446, %v6440
    %6639 = vmatprep.subr.bf16.mxu0 %v6448
    %6640 = vmatpush1.bf16.msra.mxu0 %v6447
    %6641 = vmatprep.subr.bf16.mxu0 %v6454
    %6642 = vmatpush1.bf16.msra.mxu0 %v6453
    %6643 = vmatprep.subr.bf16.mxu0 %v6460
    %6644 = vmatpush1.bf16.msra.mxu0 %v6459
    %6645 = vmatprep.subr.bf16.mxu0 %v6466
    %6646 = vmatpush1.bf16.msra.mxu0 %v6465
    %6647 = vmatprep.subr.bf16.mxu0 %v6472
    %6648 = vmatpush1.bf16.msra.mxu0 %v6471
    %6649 = vmatprep.subr.bf16.mxu0 %v6478
    %6650 = vmatpush1.bf16.msra.mxu0 %v6477
    %6651 = vmatprep.subr.bf16.mxu0 %v6484
    %6652 = vmatpush1.bf16.msra.mxu0 %v6483
    %6653 = vmatprep.subr.bf16.mxu0 %v6490
    %6654 = vmatpush1.bf16.msra.mxu0 %v6489
    %6655 = vmatprep.subr.bf16.mxu0 %v6496
    %6656 = vmatpush1.bf16.msra.mxu0 %v6495
    %6657 = vmatprep.subr.bf16.mxu0 %v6502
    %6658 = vmatpush1.bf16.msra.mxu0 %v6501
    %6659 = vmatprep.subr.bf16.mxu0 %v6508
    %6660 = vmatpush1.bf16.msra.mxu0 %v6507
    %6661 = vmatprep.subr.bf16.mxu0 %v6514
    %6662 = vmatpush1.bf16.msra.mxu0 %v6513
    %6663 = vmatprep.subr.bf16.mxu0 %v6520
    %6664 = vmatpush1.bf16.msra.mxu0 %v6519
    %6665 = vmatprep.subr.bf16.mxu0 %v6526
    %6666 = vmatpush1.bf16.msra.mxu0 %v6525
    %6667 = vmatprep.subr.bf16.mxu0 %v6532
    %6668 = vmatpush1.bf16.msra.mxu0 %v6531
    %6669 = vmatprep.subr.bf16.mxu0 %v6538
    %6670 = vmatpush1.bf16.msra.mxu0 %v6537
    %6671 = vmatprep.mubr.bf16.mxu0 0
    %6672 = vmatmul.mubr.bf16.gmra.mrb[0].mxu0 0
    %v6673 = vpop.f32.mrb[0].mxu0
    %v6674 = vadd.f32 %v544, %v6673
    %v6675 = vpop.f32.mrb[0].mxu0
    %v6676 = vadd.f32 %v548, %v6675
    %v6677 = vpop.f32.mrb[0].mxu0
    %v6678 = vpop.f32.mrb[0].mxu0
    %6679 = vdwg.mxu0
    %6680 = vmatprep.subr.bf16.mxu0 %v6450
    %6681 = vmatpush1.bf16.msra.mxu0 %v6449
    %6682 = vmatprep.subr.bf16.mxu0 %v6456
    %6683 = vmatpush1.bf16.msra.mxu0 %v6455
    %6684 = vmatprep.subr.bf16.mxu0 %v6462
    %6685 = vmatpush1.bf16.msra.mxu0 %v6461
    %6686 = vmatprep.subr.bf16.mxu0 %v6468
    %6687 = vmatpush1.bf16.msra.mxu0 %v6467
    %6688 = vmatprep.subr.bf16.mxu0 %v6474
    %6689 = vmatpush1.bf16.msra.mxu0 %v6473
    %6690 = vmatprep.subr.bf16.mxu0 %v6480
    %6691 = vmatpush1.bf16.msra.mxu0 %v6479
    %6692 = vmatprep.subr.bf16.mxu0 %v6486
    %6693 = vmatpush1.bf16.msra.mxu0 %v6485
    %6694 = vmatprep.subr.bf16.mxu0 %v6492
    %6695 = vmatpush1.bf16.msra.mxu0 %v6491
    %6696 = vmatprep.subr.bf16.mxu0 %v6498
    %6697 = vmatpush1.bf16.msra.mxu0 %v6497
    %6698 = vmatprep.subr.bf16.mxu0 %v6504
    %6699 = vmatpush1.bf16.msra.mxu0 %v6503
    %6700 = vmatprep.subr.bf16.mxu0 %v6510
    %6701 = vmatpush1.bf16.msra.mxu0 %v6509
    %6702 = vmatprep.subr.bf16.mxu0 %v6516
    %6703 = vmatpush1.bf16.msra.mxu0 %v6515
    %6704 = vmatprep.subr.bf16.mxu0 %v6522
    %6705 = vmatpush1.bf16.msra.mxu0 %v6521
    %6706 = vmatprep.subr.bf16.mxu0 %v6528
    %6707 = vmatpush1.bf16.msra.mxu0 %v6527
    %6708 = vmatprep.subr.bf16.mxu0 %v6534
    %6709 = vmatpush1.bf16.msra.mxu0 %v6533
    %6710 = vmatprep.subr.bf16.mxu0 %v6540
    %6711 = vmatpush1.bf16.msra.mxu0 %v6539
    %6712 = vmatprep.mubr.bf16.mxu0 0
    %6713 = vmatmul.mubr.bf16.gmra.mrb[0].mxu0 0
    %v6714 = vpop.f32.mrb[0].mxu0
    %v6715 = vadd.f32 %v552, %v6714
    %v6716 = vpop.f32.mrb[0].mxu0
    %v6717 = vadd.f32 %v556, %v6716
    %v6718 = vpop.f32.mrb[0].mxu0
    %v6719 = vpop.f32.mrb[0].mxu0
    %6720 = vdwg.mxu0
    %6721 = vmatprep.subr.bf16.mxu0 %v6452
    %6722 = vmatpush1.bf16.msra.mxu0 %v6451
    %6723 = vmatprep.subr.bf16.mxu0 %v6458
    %6724 = vmatpush1.bf16.msra.mxu0 %v6457
    %6725 = vmatprep.subr.bf16.mxu0 %v6464
    %6726 = vmatpush1.bf16.msra.mxu0 %v6463
    %6727 = vmatprep.subr.bf16.mxu0 %v6470
    %6728 = vmatpush1.bf16.msra.mxu0 %v6469
    %6729 = vmatprep.subr.bf16.mxu0 %v6476
    %6730 = vmatpush1.bf16.msra.mxu0 %v6475
    %6731 = vmatprep.subr.bf16.mxu0 %v6482
    %6732 = vmatpush1.bf16.msra.mxu0 %v6481
    %6733 = vmatprep.subr.bf16.mxu0 %v6488
    %6734 = vmatpush1.bf16.msra.mxu0 %v6487
    %6735 = vmatprep.subr.bf16.mxu0 %v6494
    %6736 = vmatpush1.bf16.msra.mxu0 %v6493
    %6737 = vmatprep.subr.bf16.mxu0 %v6500
    %6738 = vmatpush1.bf16.msra.mxu0 %v6499
    %6739 = vmatprep.subr.bf16.mxu0 %v6506
    %6740 = vmatpush1.bf16.msra.mxu0 %v6505
    %6741 = vmatprep.subr.bf16.mxu0 %v6512
    %6742 = vmatpush1.bf16.msra.mxu0 %v6511
    %6743 = vmatprep.subr.bf16.mxu0 %v6518
    %6744 = vmatpush1.bf16.msra.mxu0 %v6517
    %6745 = vmatprep.subr.bf16.mxu0 %v6524
    %6746 = vmatpush1.bf16.msra.mxu0 %v6523
    %6747 = vmatprep.subr.bf16.mxu0 %v6530
    %6748 = vmatpush1.bf16.msra.mxu0 %v6529
    %6749 = vmatprep.subr.bf16.mxu0 %v6536
    %6750 = vmatpush1.bf16.msra.mxu0 %v6535
    %6751 = vmatprep.subr.bf16.mxu0 %v6542
    %6752 = vmatpush1.bf16.msra.mxu0 %v6541
    %6753 = vmatprep.mubr.bf16.mxu0 0
    %6754 = vmatmul.mubr.bf16.gmra.mrb[0].mxu0 0
    %v6755 = vpop.f32.mrb[0].mxu0
    %v6756 = vadd.f32 %v560, %v6755
    %v6757 = vpop.f32.mrb[0].mxu0
    %v6758 = vadd.f32 %v564, %v6757
    %v6759 = vpop.f32.mrb[0].mxu0
    %v6760 = vpop.f32.mrb[0].mxu0
    %6761 = vdwg.mxu0
    %v6762 = vadd.f32 %v6035, %v6674
    %v6763 = vadd.f32 %v6037, %v6676
    %v6764 = vxor.u32 %v6762, 2147483648
    %v6765 = vxor.u32 %v6763, 2147483648
    %v6766 = vmul.f32 %v6764, 1.442695
    %v6767 = vpow.pop %v6766
    %v6768 = vmul.f32 %v6765, 1.442695
    %v6769 = vpow.pop %v6768
    %v6770 = vadd.f32 %v6767, 1.0
    %v6771 = vadd.f32 %v6769, 1.0
    %v6772 = vrcp.pop %v6770
    %v6773 = vmul.f32 1.0, %v6772
    %v6774 = vrcp.pop %v6771
    %v6775 = vmul.f32 1.0, %v6774
    %v6776 = vadd.f32 %v6088, %v6715
    %v6777 = vadd.f32 %v6090, %v6717
    %v6778 = vxor.u32 %v6776, 2147483648
    %v6779 = vxor.u32 %v6777, 2147483648
    %v6780 = vmul.f32 %v6778, 1.442695
    %v6781 = vpow.pop %v6780
    %v6782 = vmul.f32 %v6779, 1.442695
    %v6783 = vpow.pop %v6782
    %v6784 = vadd.f32 %v6781, 1.0
    %v6785 = vadd.f32 %v6783, 1.0
    %v6786 = vrcp.pop %v6784
    %v6787 = vmul.f32 1.0, %v6786
    %v6788 = vrcp.pop %v6785
    %v6789 = vmul.f32 1.0, %v6788
    %v6790 = vmul.f32 %v6773, %v6756
    %v6791 = vmul.f32 %v6775, %v6758
    %v6792 = vadd.f32 %v6141, %v6790
    %v6793 = vadd.f32 %v6143, %v6791
    %v6794 = vtanh.pop %v6792
    %v6795 = vtanh.pop %v6793
    %v6796 = vsub.f32 1.0, %v6787
    %v6797 = vsub.f32 1.0, %v6789
    %v6798 = vmul.f32 %v6796, %v6794
    %v6799 = vmul.f32 %v6797, %v6795
    %v6800 = vmul.f32 %v6787, 0.0
    %v6801 = vmul.f32 %v6789, 0.0
    %v6802 = vadd.f32 %v6798, %v6800
    %v6803 = vadd.f32 %v6799, %v6801
    %v6804 = vpack.c.bf16 %v6802, %v6802
    %v6805 = vpack.c.bf16 %v6803, %v6803
    %6806 = vmatprep.subr.bf16.mxu0 %v6448
    %6807 = vmatpush1.bf16.msra.mxu0 %v6447
    %6808 = vmatprep.subr.bf16.mxu0 %v6454
    %6809 = vmatpush1.bf16.msra.mxu0 %v6453
    %6810 = vmatprep.subr.bf16.mxu0 %v6460
    %6811 = vmatpush1.bf16.msra.mxu0 %v6459
    %6812 = vmatprep.subr.bf16.mxu0 %v6466
    %6813 = vmatpush1.bf16.msra.mxu0 %v6465
    %6814 = vmatprep.subr.bf16.mxu0 %v6472
    %6815 = vmatpush1.bf16.msra.mxu0 %v6471
    %6816 = vmatprep.subr.bf16.mxu0 %v6478
    %6817 = vmatpush1.bf16.msra.mxu0 %v6477
    %6818 = vmatprep.subr.bf16.mxu0 %v6484
    %6819 = vmatpush1.bf16.msra.mxu0 %v6483
    %6820 = vmatprep.subr.bf16.mxu0 %v6490
    %6821 = vmatpush1.bf16.msra.mxu0 %v6489
    %6822 = vmatprep.subr.bf16.mxu0 %v6496
    %6823 = vmatpush1.bf16.msra.mxu0 %v6495
    %6824 = vmatprep.subr.bf16.mxu0 %v6502
    %6825 = vmatpush1.bf16.msra.mxu0 %v6501
    %6826 = vmatprep.subr.bf16.mxu0 %v6508
    %6827 = vmatpush1.bf16.msra.mxu0 %v6507
    %6828 = vmatprep.subr.bf16.mxu0 %v6514
    %6829 = vmatpush1.bf16.msra.mxu0 %v6513
    %6830 = vmatprep.subr.bf16.mxu0 %v6520
    %6831 = vmatpush1.bf16.msra.mxu0 %v6519
    %6832 = vmatprep.subr.bf16.mxu0 %v6526
    %6833 = vmatpush1.bf16.msra.mxu0 %v6525
    %6834 = vmatprep.subr.bf16.mxu0 %v6532
    %6835 = vmatpush1.bf16.msra.mxu0 %v6531
    %6836 = vmatprep.subr.bf16.mxu0 %v6538
    %6837 = vmatpush1.bf16.msra.mxu0 %v6537
    %6838 = vmatprep.mubr.bf16.mxu0 %v6805
    %6839 = vmatmul.mubr.bf16.gmra.mrb[0].mxu0 %v6804
    %v6840 = vpop.f32.mrb[0].mxu0
    %v6841 = vadd.f32 %v544, %v6840
    %v6842 = vpop.f32.mrb[0].mxu0
    %v6843 = vadd.f32 %v548, %v6842
    %v6844 = vpop.f32.mrb[0].mxu0
    %v6845 = vpop.f32.mrb[0].mxu0
    %6846 = vdwg.mxu0
    %6847 = vmatprep.subr.bf16.mxu0 %v6450
    %6848 = vmatpush1.bf16.msra.mxu0 %v6449
    %6849 = vmatprep.subr.bf16.mxu0 %v6456
    %6850 = vmatpush1.bf16.msra.mxu0 %v6455
    %6851 = vmatprep.subr.bf16.mxu0 %v6462
    %6852 = vmatpush1.bf16.msra.mxu0 %v6461
    %6853 = vmatprep.subr.bf16.mxu0 %v6468
    %6854 = vmatpush1.bf16.msra.mxu0 %v6467
    %6855 = vmatprep.subr.bf16.mxu0 %v6474
    %6856 = vmatpush1.bf16.msra.mxu0 %v6473
    %6857 = vmatprep.subr.bf16.mxu0 %v6480
    %6858 = vmatpush1.bf16.msra.mxu0 %v6479
    %6859 = vmatprep.subr.bf16.mxu0 %v6486
    %6860 = vmatpush1.bf16.msra.mxu0 %v6485
    %6861 = vmatprep.subr.bf16.mxu0 %v6492
    %6862 = vmatpush1.bf16.msra.mxu0 %v6491
    %6863 = vmatprep.subr.bf16.mxu0 %v6498
    %6864 = vmatpush1.bf16.msra.mxu0 %v6497
    %6865 = vmatprep.subr.bf16.mxu0 %v6504
    %6866 = vmatpush1.bf16.msra.mxu0 %v6503
    %6867 = vmatprep.subr.bf16.mxu0 %v6510
    %6868 = vmatpush1.bf16.msra.mxu0 %v6509
    %6869 = vmatprep.subr.bf16.mxu0 %v6516
    %6870 = vmatpush1.bf16.msra.mxu0 %v6515
    %6871 = vmatprep.subr.bf16.mxu0 %v6522
    %6872 = vmatpush1.bf16.msra.mxu0 %v6521
    %6873 = vmatprep.subr.bf16.mxu0 %v6528
    %6874 = vmatpush1.bf16.msra.mxu0 %v6527
    %6875 = vmatprep.subr.bf16.mxu0 %v6534
    %6876 = vmatpush1.bf16.msra.mxu0 %v6533
    %6877 = vmatprep.subr.bf16.mxu0 %v6540
    %6878 = vmatpush1.bf16.msra.mxu0 %v6539
    %6879 = vmatprep.mubr.bf16.mxu0 %v6805
    %6880 = vmatmul.mubr.bf16.gmra.mrb[0].mxu0 %v6804
    %v6881 = vpop.f32.mrb[0].mxu0
    %v6882 = vadd.f32 %v552, %v6881
    %v6883 = vpop.f32.mrb[0].mxu0
    %v6884 = vadd.f32 %v556, %v6883
    %v6885 = vpop.f32.mrb[0].mxu0
    %v6886 = vpop.f32.mrb[0].mxu0
    %6887 = vdwg.mxu0
    %6888 = vmatprep.subr.bf16.mxu0 %v6452
    %6889 = vmatpush1.bf16.msra.mxu0 %v6451
    %6890 = vmatprep.subr.bf16.mxu0 %v6458
    %6891 = vmatpush1.bf16.msra.mxu0 %v6457
    %6892 = vmatprep.subr.bf16.mxu0 %v6464
    %6893 = vmatpush1.bf16.msra.mxu0 %v6463
    %6894 = vmatprep.subr.bf16.mxu0 %v6470
    %6895 = vmatpush1.bf16.msra.mxu0 %v6469
    %6896 = vmatprep.subr.bf16.mxu0 %v6476
    %6897 = vmatpush1.bf16.msra.mxu0 %v6475
    %6898 = vmatprep.subr.bf16.mxu0 %v6482
    %6899 = vmatpush1.bf16.msra.mxu0 %v6481
    %6900 = vmatprep.subr.bf16.mxu0 %v6488
    %6901 = vmatpush1.bf16.msra.mxu0 %v6487
    %6902 = vmatprep.subr.bf16.mxu0 %v6494
    %6903 = vmatpush1.bf16.msra.mxu0 %v6493
    %6904 = vmatprep.subr.bf16.mxu0 %v6500
    %6905 = vmatpush1.bf16.msra.mxu0 %v6499
    %6906 = vmatprep.subr.bf16.mxu0 %v6506
    %6907 = vmatpush1.bf16.msra.mxu0 %v6505
    %6908 = vmatprep.subr.bf16.mxu0 %v6512
    %6909 = vmatpush1.bf16.msra.mxu0 %v6511
    %6910 = vmatprep.subr.bf16.mxu0 %v6518
    %6911 = vmatpush1.bf16.msra.mxu0 %v6517
    %6912 = vmatprep.subr.bf16.mxu0 %v6524
    %6913 = vmatpush1.bf16.msra.mxu0 %v6523
    %6914 = vmatprep.subr.bf16.mxu0 %v6530
    %6915 = vmatpush1.bf16.msra.mxu0 %v6529
    %6916 = vmatprep.subr.bf16.mxu0 %v6536
    %6917 = vmatpush1.bf16.msra.mxu0 %v6535
    %6918 = vmatprep.subr.bf16.mxu0 %v6542
    %6919 = vmatpush1.bf16.msra.mxu0 %v6541
    %6920 = vmatprep.mubr.bf16.mxu0 %v6805
    %6921 = vmatmul.mubr.bf16.gmra.mrb[0].mxu0 %v6804
    %v6922 = vpop.f32.mrb[0].mxu0
    %v6923 = vadd.f32 %v560, %v6922
    %v6924 = vpop.f32.mrb[0].mxu0
    %v6925 = vadd.f32 %v564, %v6924
    %v6926 = vpop.f32.mrb[0].mxu0
    %v6927 = vpop.f32.mrb[0].mxu0
    %6928 = vdwg.mxu0
    %v6931 = vrot.slane %v6841, 4
    %v6932 = vrot.slane %v6843, 4
    %v6935 = vadd.f32 %v6035, %v6931
    %v6936 = vadd.f32 %v6037, %v6932
    %v6937 = vxor.u32 %v6935, 2147483648
    %v6938 = vxor.u32 %v6936, 2147483648
    %v6939 = vmul.f32 %v6937, 1.442695
    %v6940 = vpow.pop %v6939
    %v6941 = vmul.f32 %v6938, 1.442695
    %v6942 = vpow.pop %v6941
    %v6943 = vadd.f32 %v6940, 1.0
    %v6944 = vadd.f32 %v6942, 1.0
    %v6945 = vrcp.pop %v6943
    %v6946 = vmul.f32 1.0, %v6945
    %v6947 = vrcp.pop %v6944
    %v6948 = vmul.f32 1.0, %v6947
    %v6951 = vrot.slane %v6882, 4
    %v6952 = vrot.slane %v6884, 4
    %v6955 = vadd.f32 %v6088, %v6951
    %v6956 = vadd.f32 %v6090, %v6952
    %v6957 = vxor.u32 %v6955, 2147483648
    %v6958 = vxor.u32 %v6956, 2147483648
    %v6959 = vmul.f32 %v6957, 1.442695
    %v6960 = vpow.pop %v6959
    %v6961 = vmul.f32 %v6958, 1.442695
    %v6962 = vpow.pop %v6961
    %v6963 = vadd.f32 %v6960, 1.0
    %v6964 = vadd.f32 %v6962, 1.0
    %v6965 = vrcp.pop %v6963
    %v6966 = vmul.f32 1.0, %v6965
    %v6967 = vrcp.pop %v6964
    %v6968 = vmul.f32 1.0, %v6967
    %v6971 = vrot.slane %v6923, 4
    %v6972 = vrot.slane %v6925, 4
    %v6975 = vmul.f32 %v6946, %v6971
    %v6976 = vmul.f32 %v6948, %v6972
    %v6977 = vadd.f32 %v6141, %v6975
    %v6978 = vadd.f32 %v6143, %v6976
    %v6979 = vtanh.pop %v6977
    %v6980 = vtanh.pop %v6978
    %v6981 = vsub.f32 1.0, %v6966
    %v6982 = vsub.f32 1.0, %v6968
    %v6983 = vmul.f32 %v6981, %v6979
    %v6984 = vmul.f32 %v6982, %v6980
    %v6987 = vrot.slane %v6802, 4
    %v6988 = vrot.slane %v6803, 4
    %v6991 = vmul.f32 %v6966, %v6987
    %v6992 = vmul.f32 %v6968, %v6988
    %v6993 = vadd.f32 %v6983, %v6991
    %v6994 = vadd.f32 %v6984, %v6992
    %v6995 = vpack.c.bf16 %v6993, %v6993
    %v6996 = vpack.c.bf16 %v6994, %v6994
    %v6999 = vrot.slane %v6995, 2
    %v7000 = vrot.slane %v6996, 2
    %7003 = vmatprep.subr.bf16.mxu0 %v6448
    %7004 = vmatpush1.bf16.msra.mxu0 %v6447
    %7005 = vmatprep.subr.bf16.mxu0 %v6454
    %7006 = vmatpush1.bf16.msra.mxu0 %v6453
    %7007 = vmatprep.subr.bf16.mxu0 %v6460
    %7008 = vmatpush1.bf16.msra.mxu0 %v6459
    %7009 = vmatprep.subr.bf16.mxu0 %v6466
    %7010 = vmatpush1.bf16.msra.mxu0 %v6465
    %7011 = vmatprep.subr.bf16.mxu0 %v6472
    %7012 = vmatpush1.bf16.msra.mxu0 %v6471
    %7013 = vmatprep.subr.bf16.mxu0 %v6478
    %7014 = vmatpush1.bf16.msra.mxu0 %v6477
    %7015 = vmatprep.subr.bf16.mxu0 %v6484
    %7016 = vmatpush1.bf16.msra.mxu0 %v6483
    %7017 = vmatprep.subr.bf16.mxu0 %v6490
    %7018 = vmatpush1.bf16.msra.mxu0 %v6489
    %7019 = vmatprep.subr.bf16.mxu0 %v6496
    %7020 = vmatpush1.bf16.msra.mxu0 %v6495
    %7021 = vmatprep.subr.bf16.mxu0 %v6502
    %7022 = vmatpush1.bf16.msra.mxu0 %v6501
    %7023 = vmatprep.subr.bf16.mxu0 %v6508
    %7024 = vmatpush1.bf16.msra.mxu0 %v6507
    %7025 = vmatprep.subr.bf16.mxu0 %v6514
    %7026 = vmatpush1.bf16.msra.mxu0 %v6513
    %7027 = vmatprep.subr.bf16.mxu0 %v6520
    %7028 = vmatpush1.bf16.msra.mxu0 %v6519
    %7029 = vmatprep.subr.bf16.mxu0 %v6526
    %7030 = vmatpush1.bf16.msra.mxu0 %v6525
    %7031 = vmatprep.subr.bf16.mxu0 %v6532
    %7032 = vmatpush1.bf16.msra.mxu0 %v6531
    %7033 = vmatprep.subr.bf16.mxu0 %v6538
    %7034 = vmatpush1.bf16.msra.mxu0 %v6537
    %7035 = vmatprep.mubr.bf16.mxu0 %v7000
    %7036 = vmatmul.mubr.bf16.gmra.mrb[0].mxu0 %v6999
    %v7037 = vpop.f32.mrb[0].mxu0
    %v7038 = vadd.f32 %v544, %v7037
    %v7039 = vpop.f32.mrb[0].mxu0
    %v7040 = vadd.f32 %v548, %v7039
    %v7041 = vpop.f32.mrb[0].mxu0
    %v7042 = vpop.f32.mrb[0].mxu0
    %7043 = vdwg.mxu0
    %7044 = vmatprep.subr.bf16.mxu0 %v6450
    %7045 = vmatpush1.bf16.msra.mxu0 %v6449
    %7046 = vmatprep.subr.bf16.mxu0 %v6456
    %7047 = vmatpush1.bf16.msra.mxu0 %v6455
    %7048 = vmatprep.subr.bf16.mxu0 %v6462
    %7049 = vmatpush1.bf16.msra.mxu0 %v6461
    %7050 = vmatprep.subr.bf16.mxu0 %v6468
    %7051 = vmatpush1.bf16.msra.mxu0 %v6467
    %7052 = vmatprep.subr.bf16.mxu0 %v6474
    %7053 = vmatpush1.bf16.msra.mxu0 %v6473
    %7054 = vmatprep.subr.bf16.mxu0 %v6480
    %7055 = vmatpush1.bf16.msra.mxu0 %v6479
    %7056 = vmatprep.subr.bf16.mxu0 %v6486
    %7057 = vmatpush1.bf16.msra.mxu0 %v6485
    %7058 = vmatprep.subr.bf16.mxu0 %v6492
    %7059 = vmatpush1.bf16.msra.mxu0 %v6491
    %7060 = vmatprep.subr.bf16.mxu0 %v6498
    %7061 = vmatpush1.bf16.msra.mxu0 %v6497
    %7062 = vmatprep.subr.bf16.mxu0 %v6504
    %7063 = vmatpush1.bf16.msra.mxu0 %v6503
    %7064 = vmatprep.subr.bf16.mxu0 %v6510
    %7065 = vmatpush1.bf16.msra.mxu0 %v6509
    %7066 = vmatprep.subr.bf16.mxu0 %v6516
    %7067 = vmatpush1.bf16.msra.mxu0 %v6515
    %7068 = vmatprep.subr.bf16.mxu0 %v6522
    %7069 = vmatpush1.bf16.msra.mxu0 %v6521
    %7070 = vmatprep.subr.bf16.mxu0 %v6528
    %7071 = vmatpush1.bf16.msra.mxu0 %v6527
    %7072 = vmatprep.subr.bf16.mxu0 %v6534
    %7073 = vmatpush1.bf16.msra.mxu0 %v6533
    %7074 = vmatprep.subr.bf16.mxu0 %v6540
    %7075 = vmatpush1.bf16.msra.mxu0 %v6539
    %7076 = vmatprep.mubr.bf16.mxu0 %v7000
    %7077 = vmatmul.mubr.bf16.gmra.mrb[0].mxu0 %v6999
    %v7078 = vpop.f32.mrb[0].mxu0
    %v7079 = vadd.f32 %v552, %v7078
    %v7080 = vpop.f32.mrb[0].mxu0
    %v7081 = vadd.f32 %v556, %v7080
    %v7082 = vpop.f32.mrb[0].mxu0
    %v7083 = vpop.f32.mrb[0].mxu0
    %7084 = vdwg.mxu0
    %7085 = vmatprep.subr.bf16.mxu0 %v6452
    %7086 = vmatpush1.bf16.msra.mxu0 %v6451
    %7087 = vmatprep.subr.bf16.mxu0 %v6458
    %7088 = vmatpush1.bf16.msra.mxu0 %v6457
    %7089 = vmatprep.subr.bf16.mxu0 %v6464
    %7090 = vmatpush1.bf16.msra.mxu0 %v6463
    %7091 = vmatprep.subr.bf16.mxu0 %v6470
    %7092 = vmatpush1.bf16.msra.mxu0 %v6469
    %7093 = vmatprep.subr.bf16.mxu0 %v6476
    %7094 = vmatpush1.bf16.msra.mxu0 %v6475
    %7095 = vmatprep.subr.bf16.mxu0 %v6482
    %7096 = vmatpush1.bf16.msra.mxu0 %v6481
    %7097 = vmatprep.subr.bf16.mxu0 %v6488
    %7098 = vmatpush1.bf16.msra.mxu0 %v6487
    %7099 = vmatprep.subr.bf16.mxu0 %v6494
    %7100 = vmatpush1.bf16.msra.mxu0 %v6493
    %7101 = vmatprep.subr.bf16.mxu0 %v6500
    %7102 = vmatpush1.bf16.msra.mxu0 %v6499
    %7103 = vmatprep.subr.bf16.mxu0 %v6506
    %7104 = vmatpush1.bf16.msra.mxu0 %v6505
    %7105 = vmatprep.subr.bf16.mxu0 %v6512
    %7106 = vmatpush1.bf16.msra.mxu0 %v6511
    %7107 = vmatprep.subr.bf16.mxu0 %v6518
    %7108 = vmatpush1.bf16.msra.mxu0 %v6517
    %7109 = vmatprep.subr.bf16.mxu0 %v6524
    %7110 = vmatpush1.bf16.msra.mxu0 %v6523
    %7111 = vmatprep.subr.bf16.mxu0 %v6530
    %7112 = vmatpush1.bf16.msra.mxu0 %v6529
    %7113 = vmatprep.subr.bf16.mxu0 %v6536
    %7114 = vmatpush1.bf16.msra.mxu0 %v6535
    %7115 = vmatprep.subr.bf16.mxu0 %v6542
    %7116 = vmatpush1.bf16.msra.mxu0 %v6541
    %7117 = vmatprep.mubr.bf16.mxu0 %v7000
    %7118 = vmatmul.mubr.bf16.gmra.mrb[0].mxu0 %v6999
    %v7119 = vpop.f32.mrb[0].mxu0
    %v7120 = vadd.f32 %v560, %v7119
    %v7121 = vpop.f32.mrb[0].mxu0
    %v7122 = vadd.f32 %v564, %v7121
    %v7123 = vpop.f32.mrb[0].mxu0
    %v7124 = vpop.f32.mrb[0].mxu0
    %7125 = vdwg.mxu0
    %v7126 = vadd.f32 %v6039, %v7038
    %v7127 = vadd.f32 %v6041, %v7040
    %v7128 = vxor.u32 %v7126, 2147483648
    %v7129 = vxor.u32 %v7127, 2147483648
    %v7130 = vmul.f32 %v7128, 1.442695
    %v7131 = vpow.pop %v7130
    %v7132 = vmul.f32 %v7129, 1.442695
    %v7133 = vpow.pop %v7132
    %v7134 = vadd.f32 %v7131, 1.0
    %v7135 = vadd.f32 %v7133, 1.0
    %v7136 = vrcp.pop %v7134
    %v7137 = vmul.f32 1.0, %v7136
    %v7138 = vrcp.pop %v7135
    %v7139 = vmul.f32 1.0, %v7138
    %v7140 = vadd.f32 %v6092, %v7079
    %v7141 = vadd.f32 %v6094, %v7081
    %v7142 = vxor.u32 %v7140, 2147483648
    %v7143 = vxor.u32 %v7141, 2147483648
    %v7144 = vmul.f32 %v7142, 1.442695
    %v7145 = vpow.pop %v7144
    %v7146 = vmul.f32 %v7143, 1.442695
    %v7147 = vpow.pop %v7146
    %v7148 = vadd.f32 %v7145, 1.0
    %v7149 = vadd.f32 %v7147, 1.0
    %v7150 = vrcp.pop %v7148
    %v7151 = vmul.f32 1.0, %v7150
    %v7152 = vrcp.pop %v7149
    %v7153 = vmul.f32 1.0, %v7152
    %v7154 = vmul.f32 %v7137, %v7120
    %v7155 = vmul.f32 %v7139, %v7122
    %v7156 = vadd.f32 %v6145, %v7154
    %v7157 = vadd.f32 %v6147, %v7155
    %v7158 = vtanh.pop %v7156
    %v7159 = vtanh.pop %v7157
    %v7160 = vsub.f32 1.0, %v7151
    %v7161 = vsub.f32 1.0, %v7153
    %v7162 = vmul.f32 %v7160, %v7158
    %v7163 = vmul.f32 %v7161, %v7159
    %v7166 = vrot.slane %v6993, 4
    %v7167 = vrot.slane %v6994, 4
    %v7170 = vmul.f32 %v7151, %v7166
    %v7171 = vmul.f32 %v7153, %v7167
    %v7172 = vadd.f32 %v7162, %v7170
    %v7173 = vadd.f32 %v7163, %v7171
    %v7174 = vpack.c.bf16 %v7172, %v7172
    %v7175 = vpack.c.bf16 %v7173, %v7173
    %7176 = vmatprep.subr.bf16.mxu0 %v6448
    %7177 = vmatpush1.bf16.msra.mxu0 %v6447
    %7178 = vmatprep.subr.bf16.mxu0 %v6454
    %7179 = vmatpush1.bf16.msra.mxu0 %v6453
    %7180 = vmatprep.subr.bf16.mxu0 %v6460
    %7181 = vmatpush1.bf16.msra.mxu0 %v6459
    %7182 = vmatprep.subr.bf16.mxu0 %v6466
    %7183 = vmatpush1.bf16.msra.mxu0 %v6465
    %7184 = vmatprep.subr.bf16.mxu0 %v6472
    %7185 = vmatpush1.bf16.msra.mxu0 %v6471
    %7186 = vmatprep.subr.bf16.mxu0 %v6478
    %7187 = vmatpush1.bf16.msra.mxu0 %v6477
    %7188 = vmatprep.subr.bf16.mxu0 %v6484
    %7189 = vmatpush1.bf16.msra.mxu0 %v6483
    %7190 = vmatprep.subr.bf16.mxu0 %v6490
    %7191 = vmatpush1.bf16.msra.mxu0 %v6489
    %7192 = vmatprep.subr.bf16.mxu0 %v6496
    %7193 = vmatpush1.bf16.msra.mxu0 %v6495
    %7194 = vmatprep.subr.bf16.mxu0 %v6502
    %7195 = vmatpush1.bf16.msra.mxu0 %v6501
    %7196 = vmatprep.subr.bf16.mxu0 %v6508
    %7197 = vmatpush1.bf16.msra.mxu0 %v6507
    %7198 = vmatprep.subr.bf16.mxu0 %v6514
    %7199 = vmatpush1.bf16.msra.mxu0 %v6513
    %7200 = vmatprep.subr.bf16.mxu0 %v6520
    %7201 = vmatpush1.bf16.msra.mxu0 %v6519
    %7202 = vmatprep.subr.bf16.mxu0 %v6526
    %7203 = vmatpush1.bf16.msra.mxu0 %v6525
    %7204 = vmatprep.subr.bf16.mxu0 %v6532
    %7205 = vmatpush1.bf16.msra.mxu0 %v6531
    %7206 = vmatprep.subr.bf16.mxu0 %v6538
    %7207 = vmatpush1.bf16.msra.mxu0 %v6537
    %7208 = vmatprep.mubr.bf16.mxu0 %v7175
    %7209 = vmatmul.mubr.bf16.gmra.mrb[0].mxu0 %v7174
    %v7210 = vpop.f32.mrb[0].mxu0
    %v7211 = vadd.f32 %v544, %v7210
    %v7212 = vpop.f32.mrb[0].mxu0
    %v7213 = vadd.f32 %v548, %v7212
    %v7214 = vpop.f32.mrb[0].mxu0
    %v7215 = vpop.f32.mrb[0].mxu0
    %7216 = vdwg.mxu0
    %7217 = vmatprep.subr.bf16.mxu0 %v6450
    %7218 = vmatpush1.bf16.msra.mxu0 %v6449
    %7219 = vmatprep.subr.bf16.mxu0 %v6456
    %7220 = vmatpush1.bf16.msra.mxu0 %v6455
    %7221 = vmatprep.subr.bf16.mxu0 %v6462
    %7222 = vmatpush1.bf16.msra.mxu0 %v6461
    %7223 = vmatprep.subr.bf16.mxu0 %v6468
    %7224 = vmatpush1.bf16.msra.mxu0 %v6467
    %7225 = vmatprep.subr.bf16.mxu0 %v6474
    %7226 = vmatpush1.bf16.msra.mxu0 %v6473
    %7227 = vmatprep.subr.bf16.mxu0 %v6480
    %7228 = vmatpush1.bf16.msra.mxu0 %v6479
    %7229 = vmatprep.subr.bf16.mxu0 %v6486
    %7230 = vmatpush1.bf16.msra.mxu0 %v6485
    %7231 = vmatprep.subr.bf16.mxu0 %v6492
    %7232 = vmatpush1.bf16.msra.mxu0 %v6491
    %7233 = vmatprep.subr.bf16.mxu0 %v6498
    %7234 = vmatpush1.bf16.msra.mxu0 %v6497
    %7235 = vmatprep.subr.bf16.mxu0 %v6504
    %7236 = vmatpush1.bf16.msra.mxu0 %v6503
    %7237 = vmatprep.subr.bf16.mxu0 %v6510
    %7238 = vmatpush1.bf16.msra.mxu0 %v6509
    %7239 = vmatprep.subr.bf16.mxu0 %v6516
    %7240 = vmatpush1.bf16.msra.mxu0 %v6515
    %7241 = vmatprep.subr.bf16.mxu0 %v6522
    %7242 = vmatpush1.bf16.msra.mxu0 %v6521
    %7243 = vmatprep.subr.bf16.mxu0 %v6528
    %7244 = vmatpush1.bf16.msra.mxu0 %v6527
    %7245 = vmatprep.subr.bf16.mxu0 %v6534
    %7246 = vmatpush1.bf16.msra.mxu0 %v6533
    %7247 = vmatprep.subr.bf16.mxu0 %v6540
    %7248 = vmatpush1.bf16.msra.mxu0 %v6539
    %7249 = vmatprep.mubr.bf16.mxu0 %v7175
    %7250 = vmatmul.mubr.bf16.gmra.mrb[0].mxu0 %v7174
    %v7251 = vpop.f32.mrb[0].mxu0
    %v7252 = vadd.f32 %v552, %v7251
    %v7253 = vpop.f32.mrb[0].mxu0
    %v7254 = vadd.f32 %v556, %v7253
    %v7255 = vpop.f32.mrb[0].mxu0
    %v7256 = vpop.f32.mrb[0].mxu0
    %7257 = vdwg.mxu0
    %7258 = vmatprep.subr.bf16.mxu0 %v6452
    %7259 = vmatpush1.bf16.msra.mxu0 %v6451
    %7260 = vmatprep.subr.bf16.mxu0 %v6458
    %7261 = vmatpush1.bf16.msra.mxu0 %v6457
    %7262 = vmatprep.subr.bf16.mxu0 %v6464
    %7263 = vmatpush1.bf16.msra.mxu0 %v6463
    %7264 = vmatprep.subr.bf16.mxu0 %v6470
    %7265 = vmatpush1.bf16.msra.mxu0 %v6469
    %7266 = vmatprep.subr.bf16.mxu0 %v6476
    %7267 = vmatpush1.bf16.msra.mxu0 %v6475
    %7268 = vmatprep.subr.bf16.mxu0 %v6482
    %7269 = vmatpush1.bf16.msra.mxu0 %v6481
    %7270 = vmatprep.subr.bf16.mxu0 %v6488
    %7271 = vmatpush1.bf16.msra.mxu0 %v6487
    %7272 = vmatprep.subr.bf16.mxu0 %v6494
    %7273 = vmatpush1.bf16.msra.mxu0 %v6493
    %7274 = vmatprep.subr.bf16.mxu0 %v6500
    %7275 = vmatpush1.bf16.msra.mxu0 %v6499
    %7276 = vmatprep.subr.bf16.mxu0 %v6506
    %7277 = vmatpush1.bf16.msra.mxu0 %v6505
    %7278 = vmatprep.subr.bf16.mxu0 %v6512
    %7279 = vmatpush1.bf16.msra.mxu0 %v6511
    %7280 = vmatprep.subr.bf16.mxu0 %v6518
    %7281 = vmatpush1.bf16.msra.mxu0 %v6517
    %7282 = vmatprep.subr.bf16.mxu0 %v6524
    %7283 = vmatpush1.bf16.msra.mxu0 %v6523
    %7284 = vmatprep.subr.bf16.mxu0 %v6530
    %7285 = vmatpush1.bf16.msra.mxu0 %v6529
    %7286 = vmatprep.subr.bf16.mxu0 %v6536
    %7287 = vmatpush1.bf16.msra.mxu0 %v6535
    %7288 = vmatprep.subr.bf16.mxu0 %v6542
    %7289 = vmatpush1.bf16.msra.mxu0 %v6541
    %7290 = vmatprep.mubr.bf16.mxu0 %v7175
    %7291 = vmatmul.mubr.bf16.gmra.mrb[0].mxu0 %v7174
    %v7292 = vpop.f32.mrb[0].mxu0
    %v7293 = vadd.f32 %v560, %v7292
    %v7294 = vpop.f32.mrb[0].mxu0
    %v7295 = vadd.f32 %v564, %v7294
    %v7296 = vpop.f32.mrb[0].mxu0
    %v7297 = vpop.f32.mrb[0].mxu0
    %7298 = vdwg.mxu0
    %v7301 = vrot.slane %v7211, 4
    %v7302 = vrot.slane %v7213, 4
    %v7305 = vadd.f32 %v6039, %v7301
    %v7306 = vadd.f32 %v6041, %v7302
    %v7307 = vxor.u32 %v7305, 2147483648
    %v7308 = vxor.u32 %v7306, 2147483648
    %v7309 = vmul.f32 %v7307, 1.442695
    %v7310 = vpow.pop %v7309
    %v7311 = vmul.f32 %v7308, 1.442695
    %v7312 = vpow.pop %v7311
    %v7313 = vadd.f32 %v7310, 1.0
    %v7314 = vadd.f32 %v7312, 1.0
    %v7315 = vrcp.pop %v7313
    %v7316 = vmul.f32 1.0, %v7315
    %v7317 = vrcp.pop %v7314
    %v7318 = vmul.f32 1.0, %v7317
    %v7321 = vrot.slane %v7252, 4
    %v7322 = vrot.slane %v7254, 4
    %v7325 = vadd.f32 %v6092, %v7321
    %v7326 = vadd.f32 %v6094, %v7322
    %v7327 = vxor.u32 %v7325, 2147483648
    %v7328 = vxor.u32 %v7326, 2147483648
    %v7329 = vmul.f32 %v7327, 1.442695
    %v7330 = vpow.pop %v7329
    %v7331 = vmul.f32 %v7328, 1.442695
    %v7332 = vpow.pop %v7331
    %v7333 = vadd.f32 %v7330, 1.0
    %v7334 = vadd.f32 %v7332, 1.0
    %v7335 = vrcp.pop %v7333
    %v7336 = vmul.f32 1.0, %v7335
    %v7337 = vrcp.pop %v7334
    %v7338 = vmul.f32 1.0, %v7337
    %v7341 = vrot.slane %v7293, 4
    %v7342 = vrot.slane %v7295, 4
    %v7345 = vmul.f32 %v7316, %v7341
    %v7346 = vmul.f32 %v7318, %v7342
    %v7347 = vadd.f32 %v6145, %v7345
    %v7348 = vadd.f32 %v6147, %v7346
    %v7349 = vtanh.pop %v7347
    %v7350 = vtanh.pop %v7348
    %v7351 = vsub.f32 1.0, %v7336
    %v7352 = vsub.f32 1.0, %v7338
    %v7353 = vmul.f32 %v7351, %v7349
    %v7354 = vmul.f32 %v7352, %v7350
    %v7357 = vrot.slane %v7172, 4
    %v7358 = vrot.slane %v7173, 4
    %v7361 = vmul.f32 %v7336, %v7357
    %v7362 = vmul.f32 %v7338, %v7358
    %v7363 = vadd.f32 %v7353, %v7361
    %v7364 = vadd.f32 %v7354, %v7362
    %v7365 = vpack.c.bf16 %v7363, %v7363
    %v7366 = vpack.c.bf16 %v7364, %v7364
    %v7369 = vrot.slane %v7365, 2
    %v7370 = vrot.slane %v7366, 2
    %7373 = vmatprep.subr.bf16.mxu0 %v6448
    %7374 = vmatpush1.bf16.msra.mxu0 %v6447
    %7375 = vmatprep.subr.bf16.mxu0 %v6454
    %7376 = vmatpush1.bf16.msra.mxu0 %v6453
    %7377 = vmatprep.subr.bf16.mxu0 %v6460
    %7378 = vmatpush1.bf16.msra.mxu0 %v6459
    %7379 = vmatprep.subr.bf16.mxu0 %v6466
    %7380 = vmatpush1.bf16.msra.mxu0 %v6465
    %7381 = vmatprep.subr.bf16.mxu0 %v6472
    %7382 = vmatpush1.bf16.msra.mxu0 %v6471
    %7383 = vmatprep.subr.bf16.mxu0 %v6478
    %7384 = vmatpush1.bf16.msra.mxu0 %v6477
    %7385 = vmatprep.subr.bf16.mxu0 %v6484
    %7386 = vmatpush1.bf16.msra.mxu0 %v6483
    %7387 = vmatprep.subr.bf16.mxu0 %v6490
    %7388 = vmatpush1.bf16.msra.mxu0 %v6489
    %7389 = vmatprep.subr.bf16.mxu0 %v6496
    %7390 = vmatpush1.bf16.msra.mxu0 %v6495
    %7391 = vmatprep.subr.bf16.mxu0 %v6502
    %7392 = vmatpush1.bf16.msra.mxu0 %v6501
    %7393 = vmatprep.subr.bf16.mxu0 %v6508
    %7394 = vmatpush1.bf16.msra.mxu0 %v6507
    %7395 = vmatprep.subr.bf16.mxu0 %v6514
    %7396 = vmatpush1.bf16.msra.mxu0 %v6513
    %7397 = vmatprep.subr.bf16.mxu0 %v6520
    %7398 = vmatpush1.bf16.msra.mxu0 %v6519
    %7399 = vmatprep.subr.bf16.mxu0 %v6526
    %7400 = vmatpush1.bf16.msra.mxu0 %v6525
    %7401 = vmatprep.subr.bf16.mxu0 %v6532
    %7402 = vmatpush1.bf16.msra.mxu0 %v6531
    %7403 = vmatprep.subr.bf16.mxu0 %v6538
    %7404 = vmatpush1.bf16.msra.mxu0 %v6537
    %7405 = vmatprep.mubr.bf16.mxu0 %v7370
    %7406 = vmatmul.mubr.bf16.gmra.mrb[0].mxu0 %v7369
    %v7407 = vpop.f32.mrb[0].mxu0
    %v7408 = vadd.f32 %v544, %v7407
    %v7409 = vpop.f32.mrb[0].mxu0
    %v7410 = vadd.f32 %v548, %v7409
    %v7411 = vpop.f32.mrb[0].mxu0
    %v7412 = vpop.f32.mrb[0].mxu0
    %7413 = vdwg.mxu0
    %7414 = vmatprep.subr.bf16.mxu0 %v6450
    %7415 = vmatpush1.bf16.msra.mxu0 %v6449
    %7416 = vmatprep.subr.bf16.mxu0 %v6456
    %7417 = vmatpush1.bf16.msra.mxu0 %v6455
    %7418 = vmatprep.subr.bf16.mxu0 %v6462
    %7419 = vmatpush1.bf16.msra.mxu0 %v6461
    %7420 = vmatprep.subr.bf16.mxu0 %v6468
    %7421 = vmatpush1.bf16.msra.mxu0 %v6467
    %7422 = vmatprep.subr.bf16.mxu0 %v6474
    %7423 = vmatpush1.bf16.msra.mxu0 %v6473
    %7424 = vmatprep.subr.bf16.mxu0 %v6480
    %7425 = vmatpush1.bf16.msra.mxu0 %v6479
    %7426 = vmatprep.subr.bf16.mxu0 %v6486
    %7427 = vmatpush1.bf16.msra.mxu0 %v6485
    %7428 = vmatprep.subr.bf16.mxu0 %v6492
    %7429 = vmatpush1.bf16.msra.mxu0 %v6491
    %7430 = vmatprep.subr.bf16.mxu0 %v6498
    %7431 = vmatpush1.bf16.msra.mxu0 %v6497
    %7432 = vmatprep.subr.bf16.mxu0 %v6504
    %7433 = vmatpush1.bf16.msra.mxu0 %v6503
    %7434 = vmatprep.subr.bf16.mxu0 %v6510
    %7435 = vmatpush1.bf16.msra.mxu0 %v6509
    %7436 = vmatprep.subr.bf16.mxu0 %v6516
    %7437 = vmatpush1.bf16.msra.mxu0 %v6515
    %7438 = vmatprep.subr.bf16.mxu0 %v6522
    %7439 = vmatpush1.bf16.msra.mxu0 %v6521
    %7440 = vmatprep.subr.bf16.mxu0 %v6528
    %7441 = vmatpush1.bf16.msra.mxu0 %v6527
    %7442 = vmatprep.subr.bf16.mxu0 %v6534
    %7443 = vmatpush1.bf16.msra.mxu0 %v6533
    %7444 = vmatprep.subr.bf16.mxu0 %v6540
    %7445 = vmatpush1.bf16.msra.mxu0 %v6539
    %7446 = vmatprep.mubr.bf16.mxu0 %v7370
    %7447 = vmatmul.mubr.bf16.gmra.mrb[0].mxu0 %v7369
    %v7448 = vpop.f32.mrb[0].mxu0
    %v7449 = vadd.f32 %v552, %v7448
    %v7450 = vpop.f32.mrb[0].mxu0
    %v7451 = vadd.f32 %v556, %v7450
    %v7452 = vpop.f32.mrb[0].mxu0
    %v7453 = vpop.f32.mrb[0].mxu0
    %7454 = vdwg.mxu0
    %7455 = vmatprep.subr.bf16.mxu0 %v6452
    %7456 = vmatpush1.bf16.msra.mxu0 %v6451
    %7457 = vmatprep.subr.bf16.mxu0 %v6458
    %7458 = vmatpush1.bf16.msra.mxu0 %v6457
    %7459 = vmatprep.subr.bf16.mxu0 %v6464
    %7460 = vmatpush1.bf16.msra.mxu0 %v6463
    %7461 = vmatprep.subr.bf16.mxu0 %v6470
    %7462 = vmatpush1.bf16.msra.mxu0 %v6469
    %7463 = vmatprep.subr.bf16.mxu0 %v6476
    %7464 = vmatpush1.bf16.msra.mxu0 %v6475
    %7465 = vmatprep.subr.bf16.mxu0 %v6482
    %7466 = vmatpush1.bf16.msra.mxu0 %v6481
    %7467 = vmatprep.subr.bf16.mxu0 %v6488
    %7468 = vmatpush1.bf16.msra.mxu0 %v6487
    %7469 = vmatprep.subr.bf16.mxu0 %v6494
    %7470 = vmatpush1.bf16.msra.mxu0 %v6493
    %7471 = vmatprep.subr.bf16.mxu0 %v6500
    %7472 = vmatpush1.bf16.msra.mxu0 %v6499
    %7473 = vmatprep.subr.bf16.mxu0 %v6506
    %7474 = vmatpush1.bf16.msra.mxu0 %v6505
    %7475 = vmatprep.subr.bf16.mxu0 %v6512
    %7476 = vmatpush1.bf16.msra.mxu0 %v6511
    %7477 = vmatprep.subr.bf16.mxu0 %v6518
    %7478 = vmatpush1.bf16.msra.mxu0 %v6517
    %7479 = vmatprep.subr.bf16.mxu0 %v6524
    %7480 = vmatpush1.bf16.msra.mxu0 %v6523
    %7481 = vmatprep.subr.bf16.mxu0 %v6530
    %7482 = vmatpush1.bf16.msra.mxu0 %v6529
    %7483 = vmatprep.subr.bf16.mxu0 %v6536
    %7484 = vmatpush1.bf16.msra.mxu0 %v6535
    %7485 = vmatprep.subr.bf16.mxu0 %v6542
    %7486 = vmatpush1.bf16.msra.mxu0 %v6541
    %7487 = vmatprep.mubr.bf16.mxu0 %v7370
    %7488 = vmatmul.mubr.bf16.gmra.mrb[0].mxu0 %v7369
    %v7489 = vpop.f32.mrb[0].mxu0
    %v7490 = vadd.f32 %v560, %v7489
    %v7491 = vpop.f32.mrb[0].mxu0
    %v7492 = vadd.f32 %v564, %v7491
    %v7493 = vpop.f32.mrb[0].mxu0
    %v7494 = vpop.f32.mrb[0].mxu0
    %7495 = vdwg.mxu0
    %v7496 = vadd.f32 %v6045, %v7408
    %v7497 = vadd.f32 %v6047, %v7410
    %v7498 = vxor.u32 %v7496, 2147483648
    %v7499 = vxor.u32 %v7497, 2147483648
    %v7500 = vmul.f32 %v7498, 1.442695
    %v7501 = vpow.pop %v7500
    %v7502 = vmul.f32 %v7499, 1.442695
    %v7503 = vpow.pop %v7502
    %v7504 = vadd.f32 %v7501, 1.0
    %v7505 = vadd.f32 %v7503, 1.0
    %v7506 = vrcp.pop %v7504
    %v7507 = vmul.f32 1.0, %v7506
    %v7508 = vrcp.pop %v7505
    %v7509 = vmul.f32 1.0, %v7508
    %v7510 = vadd.f32 %v6098, %v7449
    %v7511 = vadd.f32 %v6100, %v7451
    %v7512 = vxor.u32 %v7510, 2147483648
    %v7513 = vxor.u32 %v7511, 2147483648
    %v7514 = vmul.f32 %v7512, 1.442695
    %v7515 = vpow.pop %v7514
    %v7516 = vmul.f32 %v7513, 1.442695
    %v7517 = vpow.pop %v7516
    %v7518 = vadd.f32 %v7515, 1.0
    %v7519 = vadd.f32 %v7517, 1.0
    %v7520 = vrcp.pop %v7518
    %v7521 = vmul.f32 1.0, %v7520
    %v7522 = vrcp.pop %v7519
    %v7523 = vmul.f32 1.0, %v7522
    %v7524 = vmul.f32 %v7507, %v7490
    %v7525 = vmul.f32 %v7509, %v7492
    %v7526 = vadd.f32 %v6151, %v7524
    %v7527 = vadd.f32 %v6153, %v7525
    %v7528 = vtanh.pop %v7526
    %v7529 = vtanh.pop %v7527
    %v7530 = vsub.f32 1.0, %v7521
    %v7531 = vsub.f32 1.0, %v7523
    %v7532 = vmul.f32 %v7530, %v7528
    %v7533 = vmul.f32 %v7531, %v7529
    %v7536 = vrot.slane %v7363, 4
    %v7537 = vrot.slane %v7364, 4
    %v7540 = vmul.f32 %v7521, %v7536
    %v7541 = vmul.f32 %v7523, %v7537
    %v7542 = vadd.f32 %v7532, %v7540
    %v7543 = vadd.f32 %v7533, %v7541
    %v7544 = vpack.c.bf16 %v7542, %v7542
    %v7545 = vpack.c.bf16 %v7543, %v7543
    %7546 = vmatprep.subr.bf16.mxu0 %v6448
    %7547 = vmatpush1.bf16.msra.mxu0 %v6447
    %7548 = vmatprep.subr.bf16.mxu0 %v6454
    %7549 = vmatpush1.bf16.msra.mxu0 %v6453
    %7550 = vmatprep.subr.bf16.mxu0 %v6460
    %7551 = vmatpush1.bf16.msra.mxu0 %v6459
    %7552 = vmatprep.subr.bf16.mxu0 %v6466
    %7553 = vmatpush1.bf16.msra.mxu0 %v6465
    %7554 = vmatprep.subr.bf16.mxu0 %v6472
    %7555 = vmatpush1.bf16.msra.mxu0 %v6471
    %7556 = vmatprep.subr.bf16.mxu0 %v6478
    %7557 = vmatpush1.bf16.msra.mxu0 %v6477
    %7558 = vmatprep.subr.bf16.mxu0 %v6484
    %7559 = vmatpush1.bf16.msra.mxu0 %v6483
    %7560 = vmatprep.subr.bf16.mxu0 %v6490
    %7561 = vmatpush1.bf16.msra.mxu0 %v6489
    %7562 = vmatprep.subr.bf16.mxu0 %v6496
    %7563 = vmatpush1.bf16.msra.mxu0 %v6495
    %7564 = vmatprep.subr.bf16.mxu0 %v6502
    %7565 = vmatpush1.bf16.msra.mxu0 %v6501
    %7566 = vmatprep.subr.bf16.mxu0 %v6508
    %7567 = vmatpush1.bf16.msra.mxu0 %v6507
    %7568 = vmatprep.subr.bf16.mxu0 %v6514
    %7569 = vmatpush1.bf16.msra.mxu0 %v6513
    %7570 = vmatprep.subr.bf16.mxu0 %v6520
    %7571 = vmatpush1.bf16.msra.mxu0 %v6519
    %7572 = vmatprep.subr.bf16.mxu0 %v6526
    %7573 = vmatpush1.bf16.msra.mxu0 %v6525
    %7574 = vmatprep.subr.bf16.mxu0 %v6532
    %7575 = vmatpush1.bf16.msra.mxu0 %v6531
    %7576 = vmatprep.subr.bf16.mxu0 %v6538
    %7577 = vmatpush1.bf16.msra.mxu0 %v6537
    %7578 = vmatprep.mubr.bf16.mxu0 %v7545
    %7579 = vmatmul.mubr.bf16.gmra.mrb[0].mxu0 %v7544
    %v7580 = vpop.f32.mrb[0].mxu0
    %v7581 = vadd.f32 %v544, %v7580
    %v7582 = vpop.f32.mrb[0].mxu0
    %v7583 = vadd.f32 %v548, %v7582
    %v7584 = vpop.f32.mrb[0].mxu0
    %v7585 = vpop.f32.mrb[0].mxu0
    %7586 = vdwg.mxu0
    %7587 = vmatprep.subr.bf16.mxu0 %v6450
    %7588 = vmatpush1.bf16.msra.mxu0 %v6449
    %7589 = vmatprep.subr.bf16.mxu0 %v6456
    %7590 = vmatpush1.bf16.msra.mxu0 %v6455
    %7591 = vmatprep.subr.bf16.mxu0 %v6462
    %7592 = vmatpush1.bf16.msra.mxu0 %v6461
    %7593 = vmatprep.subr.bf16.mxu0 %v6468
    %7594 = vmatpush1.bf16.msra.mxu0 %v6467
    %7595 = vmatprep.subr.bf16.mxu0 %v6474
    %7596 = vmatpush1.bf16.msra.mxu0 %v6473
    %7597 = vmatprep.subr.bf16.mxu0 %v6480
    %7598 = vmatpush1.bf16.msra.mxu0 %v6479
    %7599 = vmatprep.subr.bf16.mxu0 %v6486
    %7600 = vmatpush1.bf16.msra.mxu0 %v6485
    %7601 = vmatprep.subr.bf16.mxu0 %v6492
    %7602 = vmatpush1.bf16.msra.mxu0 %v6491
    %7603 = vmatprep.subr.bf16.mxu0 %v6498
    %7604 = vmatpush1.bf16.msra.mxu0 %v6497
    %7605 = vmatprep.subr.bf16.mxu0 %v6504
    %7606 = vmatpush1.bf16.msra.mxu0 %v6503
    %7607 = vmatprep.subr.bf16.mxu0 %v6510
    %7608 = vmatpush1.bf16.msra.mxu0 %v6509
    %7609 = vmatprep.subr.bf16.mxu0 %v6516
    %7610 = vmatpush1.bf16.msra.mxu0 %v6515
    %7611 = vmatprep.subr.bf16.mxu0 %v6522
    %7612 = vmatpush1.bf16.msra.mxu0 %v6521
    %7613 = vmatprep.subr.bf16.mxu0 %v6528
    %7614 = vmatpush1.bf16.msra.mxu0 %v6527
    %7615 = vmatprep.subr.bf16.mxu0 %v6534
    %7616 = vmatpush1.bf16.msra.mxu0 %v6533
    %7617 = vmatprep.subr.bf16.mxu0 %v6540
    %7618 = vmatpush1.bf16.msra.mxu0 %v6539
    %7619 = vmatprep.mubr.bf16.mxu0 %v7545
    %7620 = vmatmul.mubr.bf16.gmra.mrb[0].mxu0 %v7544
    %v7621 = vpop.f32.mrb[0].mxu0
    %v7622 = vadd.f32 %v552, %v7621
    %v7623 = vpop.f32.mrb[0].mxu0
    %v7624 = vadd.f32 %v556, %v7623
    %v7625 = vpop.f32.mrb[0].mxu0
    %v7626 = vpop.f32.mrb[0].mxu0
    %7627 = vdwg.mxu0
    %7628 = vmatprep.subr.bf16.mxu0 %v6452
    %7629 = vmatpush1.bf16.msra.mxu0 %v6451
    %7630 = vmatprep.subr.bf16.mxu0 %v6458
    %7631 = vmatpush1.bf16.msra.mxu0 %v6457
    %7632 = vmatprep.subr.bf16.mxu0 %v6464
    %7633 = vmatpush1.bf16.msra.mxu0 %v6463
    %7634 = vmatprep.subr.bf16.mxu0 %v6470
    %7635 = vmatpush1.bf16.msra.mxu0 %v6469
    %7636 = vmatprep.subr.bf16.mxu0 %v6476
    %7637 = vmatpush1.bf16.msra.mxu0 %v6475
    %7638 = vmatprep.subr.bf16.mxu0 %v6482
    %7639 = vmatpush1.bf16.msra.mxu0 %v6481
    %7640 = vmatprep.subr.bf16.mxu0 %v6488
    %7641 = vmatpush1.bf16.msra.mxu0 %v6487
    %7642 = vmatprep.subr.bf16.mxu0 %v6494
    %7643 = vmatpush1.bf16.msra.mxu0 %v6493
    %7644 = vmatprep.subr.bf16.mxu0 %v6500
    %7645 = vmatpush1.bf16.msra.mxu0 %v6499
    %7646 = vmatprep.subr.bf16.mxu0 %v6506
    %7647 = vmatpush1.bf16.msra.mxu0 %v6505
    %7648 = vmatprep.subr.bf16.mxu0 %v6512
    %7649 = vmatpush1.bf16.msra.mxu0 %v6511
    %7650 = vmatprep.subr.bf16.mxu0 %v6518
    %7651 = vmatpush1.bf16.msra.mxu0 %v6517
    %7652 = vmatprep.subr.bf16.mxu0 %v6524
    %7653 = vmatpush1.bf16.msra.mxu0 %v6523
    %7654 = vmatprep.subr.bf16.mxu0 %v6530
    %7655 = vmatpush1.bf16.msra.mxu0 %v6529
    %7656 = vmatprep.subr.bf16.mxu0 %v6536
    %7657 = vmatpush1.bf16.msra.mxu0 %v6535
    %7658 = vmatprep.subr.bf16.mxu0 %v6542
    %7659 = vmatpush1.bf16.msra.mxu0 %v6541
    %7660 = vmatprep.mubr.bf16.mxu0 %v7545
    %7661 = vmatmul.mubr.bf16.gmra.mrb[0].mxu0 %v7544
    %v7662 = vpop.f32.mrb[0].mxu0
    %v7663 = vadd.f32 %v560, %v7662
    %v7664 = vpop.f32.mrb[0].mxu0
    %v7665 = vadd.f32 %v564, %v7664
    %v7666 = vpop.f32.mrb[0].mxu0
    %v7667 = vpop.f32.mrb[0].mxu0
    %7668 = vdwg.mxu0
    %v7671 = vrot.slane %v7581, 4
    %v7672 = vrot.slane %v7583, 4
    %v7675 = vadd.f32 %v6045, %v7671
    %v7676 = vadd.f32 %v6047, %v7672
    %v7677 = vxor.u32 %v7675, 2147483648
    %v7678 = vxor.u32 %v7676, 2147483648
    %v7679 = vmul.f32 %v7677, 1.442695
    %v7680 = vpow.pop %v7679
    %v7681 = vmul.f32 %v7678, 1.442695
    %v7682 = vpow.pop %v7681
    %v7683 = vadd.f32 %v7680, 1.0
    %v7684 = vadd.f32 %v7682, 1.0
    %v7685 = vrcp.pop %v7683
    %v7686 = vmul.f32 1.0, %v7685
    %v7687 = vrcp.pop %v7684
    %v7688 = vmul.f32 1.0, %v7687
    %v7691 = vrot.slane %v7622, 4
    %v7692 = vrot.slane %v7624, 4
    %v7695 = vadd.f32 %v6098, %v7691
    %v7696 = vadd.f32 %v6100, %v7692
    %v7697 = vxor.u32 %v7695, 2147483648
    %v7698 = vxor.u32 %v7696, 2147483648
    %v7699 = vmul.f32 %v7697, 1.442695
    %v7700 = vpow.pop %v7699
    %v7701 = vmul.f32 %v7698, 1.442695
    %v7702 = vpow.pop %v7701
    %v7703 = vadd.f32 %v7700, 1.0
    %v7704 = vadd.f32 %v7702, 1.0
    %v7705 = vrcp.pop %v7703
    %v7706 = vmul.f32 1.0, %v7705
    %v7707 = vrcp.pop %v7704
    %v7708 = vmul.f32 1.0, %v7707
    %v7711 = vrot.slane %v7663, 4
    %v7712 = vrot.slane %v7665, 4
    %v7715 = vmul.f32 %v7686, %v7711
    %v7716 = vmul.f32 %v7688, %v7712
    %v7717 = vadd.f32 %v6151, %v7715
    %v7718 = vadd.f32 %v6153, %v7716
    %v7719 = vtanh.pop %v7717
    %v7720 = vtanh.pop %v7718
    %v7721 = vsub.f32 1.0, %v7706
    %v7722 = vsub.f32 1.0, %v7708
    %v7723 = vmul.f32 %v7721, %v7719
    %v7724 = vmul.f32 %v7722, %v7720
    %v7727 = vrot.slane %v7542, 4
    %v7728 = vrot.slane %v7543, 4
    %v7731 = vmul.f32 %v7706, %v7727
    %v7732 = vmul.f32 %v7708, %v7728
    %v7733 = vadd.f32 %v7723, %v7731
    %v7734 = vadd.f32 %v7724, %v7732
    %v7735 = vpack.c.bf16 %v7733, %v7733
    %v7736 = vpack.c.bf16 %v7734, %v7734
    %v7739 = vrot.slane %v7735, 2
    %v7740 = vrot.slane %v7736, 2
    %7743 = vmatprep.subr.bf16.mxu0 %v6448
    %7744 = vmatpush1.bf16.msra.mxu0 %v6447
    %7745 = vmatprep.subr.bf16.mxu0 %v6454
    %7746 = vmatpush1.bf16.msra.mxu0 %v6453
    %7747 = vmatprep.subr.bf16.mxu0 %v6460
    %7748 = vmatpush1.bf16.msra.mxu0 %v6459
    %7749 = vmatprep.subr.bf16.mxu0 %v6466
    %7750 = vmatpush1.bf16.msra.mxu0 %v6465
    %7751 = vmatprep.subr.bf16.mxu0 %v6472
    %7752 = vmatpush1.bf16.msra.mxu0 %v6471
    %7753 = vmatprep.subr.bf16.mxu0 %v6478
    %7754 = vmatpush1.bf16.msra.mxu0 %v6477
    %7755 = vmatprep.subr.bf16.mxu0 %v6484
    %7756 = vmatpush1.bf16.msra.mxu0 %v6483
    %7757 = vmatprep.subr.bf16.mxu0 %v6490
    %7758 = vmatpush1.bf16.msra.mxu0 %v6489
    %7759 = vmatprep.subr.bf16.mxu0 %v6496
    %7760 = vmatpush1.bf16.msra.mxu0 %v6495
    %7761 = vmatprep.subr.bf16.mxu0 %v6502
    %7762 = vmatpush1.bf16.msra.mxu0 %v6501
    %7763 = vmatprep.subr.bf16.mxu0 %v6508
    %7764 = vmatpush1.bf16.msra.mxu0 %v6507
    %7765 = vmatprep.subr.bf16.mxu0 %v6514
    %7766 = vmatpush1.bf16.msra.mxu0 %v6513
    %7767 = vmatprep.subr.bf16.mxu0 %v6520
    %7768 = vmatpush1.bf16.msra.mxu0 %v6519
    %7769 = vmatprep.subr.bf16.mxu0 %v6526
    %7770 = vmatpush1.bf16.msra.mxu0 %v6525
    %7771 = vmatprep.subr.bf16.mxu0 %v6532
    %7772 = vmatpush1.bf16.msra.mxu0 %v6531
    %7773 = vmatprep.subr.bf16.mxu0 %v6538
    %7774 = vmatpush1.bf16.msra.mxu0 %v6537
    %7775 = vmatprep.mubr.bf16.mxu0 %v7740
    %7776 = vmatmul.mubr.bf16.gmra.mrb[0].mxu0 %v7739
    %v7777 = vpop.f32.mrb[0].mxu0
    %v7778 = vadd.f32 %v544, %v7777
    %v7779 = vpop.f32.mrb[0].mxu0
    %v7780 = vadd.f32 %v548, %v7779
    %v7781 = vpop.f32.mrb[0].mxu0
    %v7782 = vpop.f32.mrb[0].mxu0
    %7783 = vdwg.mxu0
    %7784 = vmatprep.subr.bf16.mxu0 %v6450
    %7785 = vmatpush1.bf16.msra.mxu0 %v6449
    %7786 = vmatprep.subr.bf16.mxu0 %v6456
    %7787 = vmatpush1.bf16.msra.mxu0 %v6455
    %7788 = vmatprep.subr.bf16.mxu0 %v6462
    %7789 = vmatpush1.bf16.msra.mxu0 %v6461
    %7790 = vmatprep.subr.bf16.mxu0 %v6468
    %7791 = vmatpush1.bf16.msra.mxu0 %v6467
    %7792 = vmatprep.subr.bf16.mxu0 %v6474
    %7793 = vmatpush1.bf16.msra.mxu0 %v6473
    %7794 = vmatprep.subr.bf16.mxu0 %v6480
    %7795 = vmatpush1.bf16.msra.mxu0 %v6479
    %7796 = vmatprep.subr.bf16.mxu0 %v6486
    %7797 = vmatpush1.bf16.msra.mxu0 %v6485
    %7798 = vmatprep.subr.bf16.mxu0 %v6492
    %7799 = vmatpush1.bf16.msra.mxu0 %v6491
    %7800 = vmatprep.subr.bf16.mxu0 %v6498
    %7801 = vmatpush1.bf16.msra.mxu0 %v6497
    %7802 = vmatprep.subr.bf16.mxu0 %v6504
    %7803 = vmatpush1.bf16.msra.mxu0 %v6503
    %7804 = vmatprep.subr.bf16.mxu0 %v6510
    %7805 = vmatpush1.bf16.msra.mxu0 %v6509
    %7806 = vmatprep.subr.bf16.mxu0 %v6516
    %7807 = vmatpush1.bf16.msra.mxu0 %v6515
    %7808 = vmatprep.subr.bf16.mxu0 %v6522
    %7809 = vmatpush1.bf16.msra.mxu0 %v6521
    %7810 = vmatprep.subr.bf16.mxu0 %v6528
    %7811 = vmatpush1.bf16.msra.mxu0 %v6527
    %7812 = vmatprep.subr.bf16.mxu0 %v6534
    %7813 = vmatpush1.bf16.msra.mxu0 %v6533
    %7814 = vmatprep.subr.bf16.mxu0 %v6540
    %7815 = vmatpush1.bf16.msra.mxu0 %v6539
    %7816 = vmatprep.mubr.bf16.mxu0 %v7740
    %7817 = vmatmul.mubr.bf16.gmra.mrb[0].mxu0 %v7739
    %v7818 = vpop.f32.mrb[0].mxu0
    %v7819 = vadd.f32 %v552, %v7818
    %v7820 = vpop.f32.mrb[0].mxu0
    %v7821 = vadd.f32 %v556, %v7820
    %v7822 = vpop.f32.mrb[0].mxu0
    %v7823 = vpop.f32.mrb[0].mxu0
    %7824 = vdwg.mxu0
    %7825 = vmatprep.subr.bf16.mxu0 %v6452
    %7826 = vmatpush1.bf16.msra.mxu0 %v6451
    %7827 = vmatprep.subr.bf16.mxu0 %v6458
    %7828 = vmatpush1.bf16.msra.mxu0 %v6457
    %7829 = vmatprep.subr.bf16.mxu0 %v6464
    %7830 = vmatpush1.bf16.msra.mxu0 %v6463
    %7831 = vmatprep.subr.bf16.mxu0 %v6470
    %7832 = vmatpush1.bf16.msra.mxu0 %v6469
    %7833 = vmatprep.subr.bf16.mxu0 %v6476
    %7834 = vmatpush1.bf16.msra.mxu0 %v6475
    %7835 = vmatprep.subr.bf16.mxu0 %v6482
    %7836 = vmatpush1.bf16.msra.mxu0 %v6481
    %7837 = vmatprep.subr.bf16.mxu0 %v6488
    %7838 = vmatpush1.bf16.msra.mxu0 %v6487
    %7839 = vmatprep.subr.bf16.mxu0 %v6494
    %7840 = vmatpush1.bf16.msra.mxu0 %v6493
    %7841 = vmatprep.subr.bf16.mxu0 %v6500
    %7842 = vmatpush1.bf16.msra.mxu0 %v6499
    %7843 = vmatprep.subr.bf16.mxu0 %v6506
    %7844 = vmatpush1.bf16.msra.mxu0 %v6505
    %7845 = vmatprep.subr.bf16.mxu0 %v6512
    %7846 = vmatpush1.bf16.msra.mxu0 %v6511
    %7847 = vmatprep.subr.bf16.mxu0 %v6518
    %7848 = vmatpush1.bf16.msra.mxu0 %v6517
    %7849 = vmatprep.subr.bf16.mxu0 %v6524
    %7850 = vmatpush1.bf16.msra.mxu0 %v6523
    %7851 = vmatprep.subr.bf16.mxu0 %v6530
    %7852 = vmatpush1.bf16.msra.mxu0 %v6529
    %7853 = vmatprep.subr.bf16.mxu0 %v6536
    %7854 = vmatpush1.bf16.msra.mxu0 %v6535
    %7855 = vmatprep.subr.bf16.mxu0 %v6542
    %7856 = vmatpush1.bf16.msra.mxu0 %v6541
    %7857 = vmatprep.mubr.bf16.mxu0 %v7740
    %7858 = vmatmul.mubr.bf16.gmra.mrb[0].mxu0 %v7739
    %v7859 = vpop.f32.mrb[0].mxu0
    %v7860 = vadd.f32 %v560, %v7859
    %v7861 = vpop.f32.mrb[0].mxu0
    %v7862 = vadd.f32 %v564, %v7861
    %v7863 = vpop.f32.mrb[0].mxu0
    %v7864 = vpop.f32.mrb[0].mxu0
    %7865 = vdwg.mxu0
    %v7866 = vadd.f32 %v6049, %v7778
    %v7867 = vadd.f32 %v6051, %v7780
    %v7868 = vxor.u32 %v7866, 2147483648
    %v7869 = vxor.u32 %v7867, 2147483648
    %v7870 = vmul.f32 %v7868, 1.442695
    %v7871 = vpow.pop %v7870
    %v7872 = vmul.f32 %v7869, 1.442695
    %v7873 = vpow.pop %v7872
    %v7874 = vadd.f32 %v7871, 1.0
    %v7875 = vadd.f32 %v7873, 1.0
    %v7876 = vrcp.pop %v7874
    %v7877 = vmul.f32 1.0, %v7876
    %v7878 = vrcp.pop %v7875
    %v7879 = vmul.f32 1.0, %v7878
    %v7880 = vadd.f32 %v6102, %v7819
    %v7881 = vadd.f32 %v6104, %v7821
    %v7882 = vxor.u32 %v7880, 2147483648
    %v7883 = vxor.u32 %v7881, 2147483648
    %v7884 = vmul.f32 %v7882, 1.442695
    %v7885 = vpow.pop %v7884
    %v7886 = vmul.f32 %v7883, 1.442695
    %v7887 = vpow.pop %v7886
    %v7888 = vadd.f32 %v7885, 1.0
    %v7889 = vadd.f32 %v7887, 1.0
    %v7890 = vrcp.pop %v7888
    %v7891 = vmul.f32 1.0, %v7890
    %v7892 = vrcp.pop %v7889
    %v7893 = vmul.f32 1.0, %v7892
    %v7894 = vmul.f32 %v7877, %v7860
    %v7895 = vmul.f32 %v7879, %v7862
    %v7896 = vadd.f32 %v6155, %v7894
    %v7897 = vadd.f32 %v6157, %v7895
    %v7898 = vtanh.pop %v7896
    %v7899 = vtanh.pop %v7897
    %v7900 = vsub.f32 1.0, %v7891
    %v7901 = vsub.f32 1.0, %v7893
    %v7902 = vmul.f32 %v7900, %v7898
    %v7903 = vmul.f32 %v7901, %v7899
    %v7906 = vrot.slane %v7733, 4
    %v7907 = vrot.slane %v7734, 4
    %v7910 = vmul.f32 %v7891, %v7906
    %v7911 = vmul.f32 %v7893, %v7907
    %v7912 = vadd.f32 %v7902, %v7910
    %v7913 = vadd.f32 %v7903, %v7911
    %v7914 = vpack.c.bf16 %v7912, %v7912
    %v7915 = vpack.c.bf16 %v7913, %v7913
    %7916 = vmatprep.subr.bf16.mxu0 %v6448
    %7917 = vmatpush1.bf16.msra.mxu0 %v6447
    %7918 = vmatprep.subr.bf16.mxu0 %v6454
    %7919 = vmatpush1.bf16.msra.mxu0 %v6453
    %7920 = vmatprep.subr.bf16.mxu0 %v6460
    %7921 = vmatpush1.bf16.msra.mxu0 %v6459
    %7922 = vmatprep.subr.bf16.mxu0 %v6466
    %7923 = vmatpush1.bf16.msra.mxu0 %v6465
    %7924 = vmatprep.subr.bf16.mxu0 %v6472
    %7925 = vmatpush1.bf16.msra.mxu0 %v6471
    %7926 = vmatprep.subr.bf16.mxu0 %v6478
    %7927 = vmatpush1.bf16.msra.mxu0 %v6477
    %7928 = vmatprep.subr.bf16.mxu0 %v6484
    %7929 = vmatpush1.bf16.msra.mxu0 %v6483
    %7930 = vmatprep.subr.bf16.mxu0 %v6490
    %7931 = vmatpush1.bf16.msra.mxu0 %v6489
    %7932 = vmatprep.subr.bf16.mxu0 %v6496
    %7933 = vmatpush1.bf16.msra.mxu0 %v6495
    %7934 = vmatprep.subr.bf16.mxu0 %v6502
    %7935 = vmatpush1.bf16.msra.mxu0 %v6501
    %7936 = vmatprep.subr.bf16.mxu0 %v6508
    %7937 = vmatpush1.bf16.msra.mxu0 %v6507
    %7938 = vmatprep.subr.bf16.mxu0 %v6514
    %7939 = vmatpush1.bf16.msra.mxu0 %v6513
    %7940 = vmatprep.subr.bf16.mxu0 %v6520
    %7941 = vmatpush1.bf16.msra.mxu0 %v6519
    %7942 = vmatprep.subr.bf16.mxu0 %v6526
    %7943 = vmatpush1.bf16.msra.mxu0 %v6525
    %7944 = vmatprep.subr.bf16.mxu0 %v6532
    %7945 = vmatpush1.bf16.msra.mxu0 %v6531
    %7946 = vmatprep.subr.bf16.mxu0 %v6538
    %7947 = vmatpush1.bf16.msra.mxu0 %v6537
    %7948 = vmatprep.mubr.bf16.mxu0 %v7915
    %7949 = vmatmul.mubr.bf16.gmra.mrb[0].mxu0 %v7914
    %v7950 = vpop.f32.mrb[0].mxu0
    %v7951 = vadd.f32 %v544, %v7950
    %v7952 = vpop.f32.mrb[0].mxu0
    %v7953 = vadd.f32 %v548, %v7952
    %v7954 = vpop.f32.mrb[0].mxu0
    %v7955 = vpop.f32.mrb[0].mxu0
    %7956 = vdwg.mxu0
    %7957 = vmatprep.subr.bf16.mxu0 %v6450
    %7958 = vmatpush1.bf16.msra.mxu0 %v6449
    %7959 = vmatprep.subr.bf16.mxu0 %v6456
    %7960 = vmatpush1.bf16.msra.mxu0 %v6455
    %7961 = vmatprep.subr.bf16.mxu0 %v6462
    %7962 = vmatpush1.bf16.msra.mxu0 %v6461
    %7963 = vmatprep.subr.bf16.mxu0 %v6468
    %7964 = vmatpush1.bf16.msra.mxu0 %v6467
    %7965 = vmatprep.subr.bf16.mxu0 %v6474
    %7966 = vmatpush1.bf16.msra.mxu0 %v6473
    %7967 = vmatprep.subr.bf16.mxu0 %v6480
    %7968 = vmatpush1.bf16.msra.mxu0 %v6479
    %7969 = vmatprep.subr.bf16.mxu0 %v6486
    %7970 = vmatpush1.bf16.msra.mxu0 %v6485
    %7971 = vmatprep.subr.bf16.mxu0 %v6492
    %7972 = vmatpush1.bf16.msra.mxu0 %v6491
    %7973 = vmatprep.subr.bf16.mxu0 %v6498
    %7974 = vmatpush1.bf16.msra.mxu0 %v6497
    %7975 = vmatprep.subr.bf16.mxu0 %v6504
    %7976 = vmatpush1.bf16.msra.mxu0 %v6503
    %7977 = vmatprep.subr.bf16.mxu0 %v6510
    %7978 = vmatpush1.bf16.msra.mxu0 %v6509
    %7979 = vmatprep.subr.bf16.mxu0 %v6516
    %7980 = vmatpush1.bf16.msra.mxu0 %v6515
    %7981 = vmatprep.subr.bf16.mxu0 %v6522
    %7982 = vmatpush1.bf16.msra.mxu0 %v6521
    %7983 = vmatprep.subr.bf16.mxu0 %v6528
    %7984 = vmatpush1.bf16.msra.mxu0 %v6527
    %7985 = vmatprep.subr.bf16.mxu0 %v6534
    %7986 = vmatpush1.bf16.msra.mxu0 %v6533
    %7987 = vmatprep.subr.bf16.mxu0 %v6540
    %7988 = vmatpush1.bf16.msra.mxu0 %v6539
    %7989 = vmatprep.mubr.bf16.mxu0 %v7915
    %7990 = vmatmul.mubr.bf16.gmra.mrb[0].mxu0 %v7914
    %v7991 = vpop.f32.mrb[0].mxu0
    %v7992 = vadd.f32 %v552, %v7991
    %v7993 = vpop.f32.mrb[0].mxu0
    %v7994 = vadd.f32 %v556, %v7993
    %v7995 = vpop.f32.mrb[0].mxu0
    %v7996 = vpop.f32.mrb[0].mxu0
    %7997 = vdwg.mxu0
    %7998 = vmatprep.subr.bf16.mxu0 %v6452
    %7999 = vmatpush1.bf16.msra.mxu0 %v6451
    %8000 = vmatprep.subr.bf16.mxu0 %v6458
    %8001 = vmatpush1.bf16.msra.mxu0 %v6457
    %8002 = vmatprep.subr.bf16.mxu0 %v6464
    %8003 = vmatpush1.bf16.msra.mxu0 %v6463
    %8004 = vmatprep.subr.bf16.mxu0 %v6470
    %8005 = vmatpush1.bf16.msra.mxu0 %v6469
    %8006 = vmatprep.subr.bf16.mxu0 %v6476
    %8007 = vmatpush1.bf16.msra.mxu0 %v6475
    %8008 = vmatprep.subr.bf16.mxu0 %v6482
    %8009 = vmatpush1.bf16.msra.mxu0 %v6481
    %8010 = vmatprep.subr.bf16.mxu0 %v6488
    %8011 = vmatpush1.bf16.msra.mxu0 %v6487
    %8012 = vmatprep.subr.bf16.mxu0 %v6494
    %8013 = vmatpush1.bf16.msra.mxu0 %v6493
    %8014 = vmatprep.subr.bf16.mxu0 %v6500
    %8015 = vmatpush1.bf16.msra.mxu0 %v6499
    %8016 = vmatprep.subr.bf16.mxu0 %v6506
    %8017 = vmatpush1.bf16.msra.mxu0 %v6505
    %8018 = vmatprep.subr.bf16.mxu0 %v6512
    %8019 = vmatpush1.bf16.msra.mxu0 %v6511
    %8020 = vmatprep.subr.bf16.mxu0 %v6518
    %8021 = vmatpush1.bf16.msra.mxu0 %v6517
    %8022 = vmatprep.subr.bf16.mxu0 %v6524
    %8023 = vmatpush1.bf16.msra.mxu0 %v6523
    %8024 = vmatprep.subr.bf16.mxu0 %v6530
    %8025 = vmatpush1.bf16.msra.mxu0 %v6529
    %8026 = vmatprep.subr.bf16.mxu0 %v6536
    %8027 = vmatpush1.bf16.msra.mxu0 %v6535
    %8028 = vmatprep.subr.bf16.mxu0 %v6542
    %8029 = vmatpush1.bf16.msra.mxu0 %v6541
    %8030 = vmatprep.mubr.bf16.mxu0 %v7915
    %8031 = vmatmul.mubr.bf16.gmra.mrb[0].mxu0 %v7914
    %v8032 = vpop.f32.mrb[0].mxu0
    %v8033 = vadd.f32 %v560, %v8032
    %v8034 = vpop.f32.mrb[0].mxu0
    %v8035 = vadd.f32 %v564, %v8034
    %v8036 = vpop.f32.mrb[0].mxu0
    %v8037 = vpop.f32.mrb[0].mxu0
    %8038 = vdwg.mxu0
    %v8041 = vrot.slane %v7951, 4
    %v8042 = vrot.slane %v7953, 4
    %v8045 = vadd.f32 %v6049, %v8041
    %v8046 = vadd.f32 %v6051, %v8042
    %v8047 = vxor.u32 %v8045, 2147483648
    %v8048 = vxor.u32 %v8046, 2147483648
    %v8049 = vmul.f32 %v8047, 1.442695
    %v8050 = vpow.pop %v8049
    %v8051 = vmul.f32 %v8048, 1.442695
    %v8052 = vpow.pop %v8051
    %v8053 = vadd.f32 %v8050, 1.0
    %v8054 = vadd.f32 %v8052, 1.0
    %v8055 = vrcp.pop %v8053
    %v8056 = vmul.f32 1.0, %v8055
    %v8057 = vrcp.pop %v8054
    %v8058 = vmul.f32 1.0, %v8057
    %v8061 = vrot.slane %v7992, 4
    %v8062 = vrot.slane %v7994, 4
    %v8065 = vadd.f32 %v6102, %v8061
    %v8066 = vadd.f32 %v6104, %v8062
    %v8067 = vxor.u32 %v8065, 2147483648
    %v8068 = vxor.u32 %v8066, 2147483648
    %v8069 = vmul.f32 %v8067, 1.442695
    %v8070 = vpow.pop %v8069
    %v8071 = vmul.f32 %v8068, 1.442695
    %v8072 = vpow.pop %v8071
    %v8073 = vadd.f32 %v8070, 1.0
    %v8074 = vadd.f32 %v8072, 1.0
    %v8075 = vrcp.pop %v8073
    %v8076 = vmul.f32 1.0, %v8075
    %v8077 = vrcp.pop %v8074
    %v8078 = vmul.f32 1.0, %v8077
    %v8081 = vrot.slane %v8033, 4
    %v8082 = vrot.slane %v8035, 4
    %v8085 = vmul.f32 %v8056, %v8081
    %v8086 = vmul.f32 %v8058, %v8082
    %v8087 = vadd.f32 %v6155, %v8085
    %v8088 = vadd.f32 %v6157, %v8086
    %v8089 = vtanh.pop %v8087
    %v8090 = vtanh.pop %v8088
    %v8091 = vsub.f32 1.0, %v8076
    %v8092 = vsub.f32 1.0, %v8078
    %v8093 = vmul.f32 %v8091, %v8089
    %v8094 = vmul.f32 %v8092, %v8090
    %v8097 = vrot.slane %v7912, 4
    %v8098 = vrot.slane %v7913, 4
    %v8101 = vmul.f32 %v8076, %v8097
    %v8102 = vmul.f32 %v8078, %v8098
    %v8103 = vadd.f32 %v8093, %v8101
    %v8104 = vadd.f32 %v8094, %v8102
    %v8105 = vpack.c.bf16 %v8103, %v8103
    %v8106 = vpack.c.bf16 %v8104, %v8104
    %v8108 = vlaneseq
    %v8109 = vshrl.u32 %v8108, 7
    %v8110 = vsub.s32 0, %v8109
    %v8111 = vrot.slane %v506, %v8110
    %v8115 = vrot.slane %v8105, 2
    %v8116 = vrot.slane %v8106, 2
    %v8151 = vunpack.c.l.b16 %v472
    %v8152 = vunpack.c.l.b16 %v473
    %v8153 = vunpack.c.l.b16 %v474
    %v8154 = vunpack.c.l.b16 %v475
    %v8155 = vunpack.c.l.b16 %v476
    %v8156 = vunpack.c.l.b16 %v477
    %v8157 = vunpack.c.l.b16 %v478
    %v8158 = vunpack.c.l.b16 %v479
    %v8159 = vunpack.c.l.b16 %v480
    %v8160 = vunpack.c.l.b16 %v481
    %v8161 = vunpack.c.l.b16 %v482
    %v8162 = vunpack.c.l.b16 %v483
    %v8163 = vunpack.c.l.b16 %v484
    %v8164 = vunpack.c.l.b16 %v485
    %v8165 = vunpack.c.l.b16 %v486
    %v8166 = vunpack.c.l.b16 %v487
    %v8167 = vunpack.c.l.b16 %v488
    %v8168 = vunpack.c.l.b16 %v489
    %v8169 = vunpack.c.l.b16 %v490
    %v8170 = vunpack.c.l.b16 %v491
    %v8171 = vunpack.c.l.b16 %v492
    %v8172 = vunpack.c.l.b16 %v493
    %v8173 = vunpack.c.l.b16 %v494
    %v8174 = vunpack.c.l.b16 %v495
    %v8175 = vunpack.c.l.b16 %v496
    %v8176 = vunpack.c.l.b16 %v497
    %v8177 = vunpack.c.l.b16 %v498
    %v8178 = vunpack.c.l.b16 %v499
    %v8179 = vunpack.c.l.b16 %v500
    %v8180 = vunpack.c.l.b16 %v501
    %v8181 = vunpack.c.l.b16 %v502
    %v8182 = vunpack.c.l.b16 %v503
    %v8183 = vpack.c.b16 %v8152, %v8151
    %v8184 = vpack.c.b16 %v8154, %v8153
    %v8185 = vpack.c.b16 %v8156, %v8155
    %v8186 = vpack.c.b16 %v8158, %v8157
    %v8187 = vpack.c.b16 %v8160, %v8159
    %v8188 = vpack.c.b16 %v8162, %v8161
    %v8189 = vpack.c.b16 %v8164, %v8163
    %v8190 = vpack.c.b16 %v8166, %v8165
    %v8191 = vpack.c.b16 %v8168, %v8167
    %v8192 = vpack.c.b16 %v8170, %v8169
    %v8193 = vpack.c.b16 %v8172, %v8171
    %v8194 = vpack.c.b16 %v8174, %v8173
    %v8195 = vpack.c.b16 %v8176, %v8175
    %v8196 = vpack.c.b16 %v8178, %v8177
    %v8197 = vpack.c.b16 %v8180, %v8179
    %v8198 = vpack.c.b16 %v8182, %v8181
    %8215 = vmatprep.subr.bf16.mxu0 0
    %8216 = vmatpush1.bf16.msra.mxu0 %v8183
    %8217 = vmatprep.subr.bf16.mxu0 0
    %8218 = vmatpush1.bf16.msra.mxu0 %v8184
    %8219 = vmatprep.subr.bf16.mxu0 0
    %8220 = vmatpush1.bf16.msra.mxu0 %v8185
    %8221 = vmatprep.subr.bf16.mxu0 0
    %8222 = vmatpush1.bf16.msra.mxu0 %v8186
    %8223 = vmatprep.subr.bf16.mxu0 0
    %8224 = vmatpush1.bf16.msra.mxu0 %v8187
    %8225 = vmatprep.subr.bf16.mxu0 0
    %8226 = vmatpush1.bf16.msra.mxu0 %v8188
    %8227 = vmatprep.subr.bf16.mxu0 0
    %8228 = vmatpush1.bf16.msra.mxu0 %v8189
    %8229 = vmatprep.subr.bf16.mxu0 0
    %8230 = vmatpush1.bf16.msra.mxu0 %v8190
    %8231 = vmatprep.subr.bf16.mxu0 0
    %8232 = vmatpush1.bf16.msra.mxu0 %v8191
    %8233 = vmatprep.subr.bf16.mxu0 0
    %8234 = vmatpush1.bf16.msra.mxu0 %v8192
    %8235 = vmatprep.subr.bf16.mxu0 0
    %8236 = vmatpush1.bf16.msra.mxu0 %v8193
    %8237 = vmatprep.subr.bf16.mxu0 0
    %8238 = vmatpush1.bf16.msra.mxu0 %v8194
    %8239 = vmatprep.subr.bf16.mxu0 0
    %8240 = vmatpush1.bf16.msra.mxu0 %v8195
    %8241 = vmatprep.subr.bf16.mxu0 0
    %8242 = vmatpush1.bf16.msra.mxu0 %v8196
    %8243 = vmatprep.subr.bf16.mxu0 0
    %8244 = vmatpush1.bf16.msra.mxu0 %v8197
    %8245 = vmatprep.subr.bf16.mxu0 0
    %8246 = vmatpush1.bf16.msra.mxu0 %v8198
    %8247 = vmatprep.mubr.bf16.mxu0 %v8116
    %8248 = vmatmul.mubr.bf16.gmra.mrb[0].mxu0 %v8115
    %v8249 = vpop.f32.mrb[0].mxu0
    %v8250 = vadd.f32 %v8111, %v8249
    %v8251 = vpop.f32.mrb[0].mxu0
    %v8252 = vpop.f32.mrb[0].mxu0
    %v8253 = vpop.f32.mrb[0].mxu0
    %8254 = vdwg.mxu0
    %8255 = vst [vmem:[#allocation2] sm:$0xf] %v8250
    // Predicated region
    $region46: #{_encode_batch.1} parent=1 // pred_check
      _
    $region47: #{_encode_batch.1} parent=1 // pred_check_branch
      %8257 = sbr.rel (0) target = $region49
    $region48: #{_encode_batch.1} parent=1 // pred_region
      %s8259 = ssub.s32 64, 64
      %8260 = vsyncadd [#allocation3], %s8259
      %s8262 = sshll.u32 [#allocation2], 4
      %s8263 = int_to_ptr.vmem [resolvable:$true] %s8262
      %8265 = dma.vmem_to_hbm [thread:$0]  %s8263, 64, %s11, [#allocation3]
    $region49: #{_encode_batch.1} parent=1 // pred_fallthru
      _
    // Predicated region
    $region50: #{_encode_batch.1} parent=1 // pred_check
      _
    $region51: #{_encode_batch.1} parent=1 // pred_check_branch
      %8267 = sbr.rel (0) target = $region53
    $region52: #{_encode_batch.1} parent=1 // pred_region
      %8268 = dma.done [#allocation3], 64
    $region53: #{_encode_batch.1} parent=1 // pred_fallthru
      _
    %8269 = vsyncpa [#allocation3], 1

</llo_original>
